<compile_context>
chip_gen: v6e
topology: v6e:2x2x1
jax: 0.10.0
libtpu: 0.0.40
codegen_flags: <defaults>
</compile_context>

<pallas_src>
import jax
import jax.numpy as jnp
from jax.experimental import pallas as pl
from jax.experimental.pallas import tpu as pltpu


# ----------------------------------------------------------------------------
# Fused encoder kernel (one grid step == one image, everything in VMEM)
# ----------------------------------------------------------------------------

def _encoder_kernel(xpad_ref, w_stem_ref, bn1_s_ref, bn1_b_ref,
                    w_b0_ref, b0_bias_ref, w_b1_ref, b1_bias_ref,
                    w_head_ref, bn2_s_ref, bn2_b_ref,
                    f1_ref, f2_ref, f3_ref, f4_ref,
                    f5_ref, f6_ref, f7_ref, f8_ref,
                    pad_ref):
    H, W = f1_ref.shape[1], f1_ref.shape[2]

    def silu(t):
        return t * jax.nn.sigmoid(t)

    def im2col(window, cin):
        # window(kh, kw) -> (H, W, cin).  Result (H*W, 9*cin); channel order
        # (kh, kw, cin) matches weight.reshape(9*cin, cout).
        cols = [window(kh, kw).reshape(H * W, cin)
                for kh in range(3) for kw in range(3)]
        return jnp.concatenate(cols, axis=-1)

    # ---- conv_stem (3x3, Cin -> 8): one K=9*Cin MXU matmul ----
    cin0 = xpad_ref.shape[3]
    patch = im2col(lambda kh, kw: xpad_ref[0, kh:kh + H, kw:kw + W, :], cin0)
    conv_stem = jnp.dot(patch, w_stem_ref[...],
                        preferred_element_type=jnp.float32)        # (H*W, 8)
    f1_ref[...] = conv_stem.reshape(f1_ref.shape).astype(f1_ref.dtype)

    # ---- bn1 / act1 (both are collected features, so kept explicit) ----
    bn1 = conv_stem * bn1_s_ref[...] + bn1_b_ref[...]
    f2_ref[...] = bn1.reshape(f2_ref.shape).astype(f2_ref.dtype)
    act1 = silu(bn1)
    f3_ref[...] = act1.reshape(f3_ref.shape).astype(f3_ref.dtype)

    # Zero the padded scratch once; the interior is fully overwritten per
    # block and the 1-pixel border stays zero.
    pad_ref[...] = jnp.zeros_like(pad_ref)
    cb = pad_ref.shape[-1]

    # ---- blocks.0: 3x3 conv (BN folded) + SiLU, fused, one K=72 matmul ----
    pad_ref[1:H + 1, 1:W + 1, :] = act1.reshape(H, W, cb)
    patch = im2col(lambda kh, kw: pad_ref[kh:kh + H, kw:kw + W, :], cb)
    y = jnp.dot(patch, w_b0_ref[...], preferred_element_type=jnp.float32)
    blk0 = silu(y + b0_bias_ref[...])                               # (H*W, 8)
    f4_ref[...] = blk0.reshape(f4_ref.shape).astype(f4_ref.dtype)

    # ---- blocks.1: 3x3 conv (BN folded) + SiLU ----
    pad_ref[1:H + 1, 1:W + 1, :] = blk0.reshape(H, W, cb)
    patch = im2col(lambda kh, kw: pad_ref[kh:kh + H, kw:kw + W, :], cb)
    y = jnp.dot(patch, w_b1_ref[...], preferred_element_type=jnp.float32)
    blk1 = silu(y + b1_bias_ref[...])                               # (H*W, 16)
    f5_ref[...] = blk1.reshape(f5_ref.shape).astype(f5_ref.dtype)

    # ---- conv_head (1x1) / bn2 / act2 (all three are collected) ----
    head = jnp.dot(blk1, w_head_ref[...],
                   preferred_element_type=jnp.float32)              # (H*W, 32)
    f6_ref[...] = head.reshape(f6_ref.shape).astype(f6_ref.dtype)
    bn2 = head * bn2_s_ref[...] + bn2_b_ref[...]
    f7_ref[...] = bn2.reshape(f7_ref.shape).astype(f7_ref.dtype)
    act2 = silu(bn2)
    f8_ref[...] = act2.reshape(f8_ref.shape).astype(f8_ref.dtype)


# ----------------------------------------------------------------------------
# Wrapper: BN folding + one pallas_call; NCHW API at the boundary only
# ----------------------------------------------------------------------------

def make_encoder_forward(p, eps=1e-5):
    def bn_fold(prm):
        g, b, m, v = prm
        s = g / jnp.sqrt(v + eps)
        return s, b - m * s

    bn1_s, bn1_b = bn_fold(p["bn1"])
    b0_s, b0_sh = bn_fold(p["block0_bn"])
    b1_s, b1_sh = bn_fold(p["block1_bn"])
    bn2_s, bn2_b = bn_fold(p["bn2"])

    c_stem = p["conv_stem_w"].shape[-1]        # 8
    c_b0 = p["block0_w"].shape[-1]             # 8
    c_b1 = p["block1_w"].shape[-1]             # 16
    c_head = p["conv_head_w"].shape[-1]        # 32

    # im2col weight layout (9*Cin, Cout); block convs get BN folded in.
    w_stem = p["conv_stem_w"].reshape(-1, c_stem)
    w_b0 = (p["block0_w"] * b0_s).reshape(-1, c_b0)
    w_b1 = (p["block1_w"] * b1_s).reshape(-1, c_b1)
    w_head = p["conv_head_w"]                  # (16, 32)

    def forward(x_nchw):
        N, Cin, H, W = x_nchw.shape
        # Single layout change on entry; everything below is NHWC.
        x = jnp.transpose(x_nchw, (0, 2, 3, 1))
        xpad = jnp.pad(x, ((0, 0), (1, 1), (1, 1), (0, 0)))

        def full_spec(shape):
            return pl.BlockSpec(shape, lambda n, _s=len(shape): (0,) * _s)

        def feat_spec(c):
            return pl.BlockSpec((1, H, W, c), lambda n: (n, 0, 0, 0))

        out_channels = (c_stem, c_stem, c_stem, c_b0, c_b1,
                        c_head, c_head, c_head)
        out_shapes = tuple(jax.ShapeDtypeStruct((N, H, W, c), x.dtype)
                           for c in out_channels)

        feats = pl.pallas_call(
            _encoder_kernel,
            out_shape=out_shapes,
            grid=(N,),
            in_specs=[
                pl.BlockSpec((1, H + 2, W + 2, Cin), lambda n: (n, 0, 0, 0)),
                full_spec(w_stem.shape),
                full_spec((1, c_stem)), full_spec((1, c_stem)),
                full_spec(w_b0.shape), full_spec((1, c_b0)),
                full_spec(w_b1.shape), full_spec((1, c_b1)),
                full_spec(w_head.shape),
                full_spec((1, c_head)), full_spec((1, c_head)),
            ],
            out_specs=tuple(feat_spec(c) for c in out_channels),
            scratch_shapes=[pltpu.VMEM((H + 2, W + 2, c_b0), jnp.float32)],
            compiler_params=pltpu.CompilerParams(
                dimension_semantics=("parallel",)),
        )(xpad, w_stem,
          bn1_s.reshape(1, c_stem), bn1_b.reshape(1, c_stem),
          w_b0, b0_sh.reshape(1, c_b0),
          w_b1, b1_sh.reshape(1, c_b1),
          w_head, bn2_s.reshape(1, c_head), bn2_b.reshape(1, c_head))

        # Transpose back to NCHW only at the API boundary (matches PyTorch).
        return [x_nchw] + [jnp.transpose(f, (0, 3, 1, 2)) for f in feats]

    return forward


# ----------------------------------------------------------------------------
# Deterministic parameters + pure-JAX reference
# ----------------------------------------------------------------------------

def build_params():
    key = jax.random.PRNGKey(0)
    ks = iter(jax.random.split(key, 32))   # 20 keys needed; 32 for headroom

    def conv_w(shape):
        return (0.1 * jax.random.normal(next(ks), shape)).astype(jnp.float32)

    def bn_params(c):
        gamma = 1.0 + 0.1 * jax.random.normal(next(ks), (c,))
        beta = 0.05 * jax.random.normal(next(ks), (c,))
        mean = 0.1 * jax.random.normal(next(ks), (c,))
        var = 1.0 + 0.1 * jax.nn.softplus(jax.random.normal(next(ks), (c,)))
        return (gamma.astype(jnp.float32), beta.astype(jnp.float32),
                mean.astype(jnp.float32), var.astype(jnp.float32))

    return {
        "conv_stem_w": conv_w((3, 3, 4, 8)),     # HWIO, Cin=4 -> 8
        "bn1": bn_params(8),
        "block0_w": conv_w((3, 3, 8, 8)),
        "block0_bn": bn_params(8),
        "block1_w": conv_w((3, 3, 8, 16)),
        "block1_bn": bn_params(16),
        "conv_head_w": conv_w((16, 32)),         # 1x1 conv as (Cin, Cout)
        "bn2": bn_params(32),
    }


def reference_forward(p, x, eps=1e-5):
    """Pure-JAX (lax) reference, un-folded BN, for correctness checking."""
    def conv3(t, w_hwio):
        return jax.lax.conv_general_dilated(
            t, w_hwio, window_strides=(1, 1), padding="SAME",
            dimension_numbers=("NCHW", "HWIO", "NCHW"))

    def bn(t, prm):
        g, b, m, v = prm
        s = (g / jnp.sqrt(v + eps)).reshape(1, -1, 1, 1)
        sh = (b - m * g / jnp.sqrt(v + eps)).reshape(1, -1, 1, 1)
        return t * s + sh

    silu = lambda t: t * jax.nn.sigmoid(t)

    feats = [x]
    feats.append(conv3(feats[-1], p["conv_stem_w"]))
    feats.append(bn(feats[-1], p["bn1"]))
    feats.append(silu(feats[-1]))
    feats.append(silu(bn(conv3(feats[-1], p["block0_w"]), p["block0_bn"])))
    feats.append(silu(bn(conv3(feats[-1], p["block1_w"]), p["block1_bn"])))
    feats.append(conv3(feats[-1], p["conv_head_w"][None, None]))   # 1x1
    feats.append(bn(feats[-1], p["bn2"]))
    feats.append(silu(feats[-1]))
    return feats


if __name__ == "__main__":
    params = build_params()
    encoder = jax.jit(make_encoder_forward(params))

    # PyTorch NCHW convention: (batch=2, channels=4, 16, 16).
    x = jax.random.normal(jax.random.PRNGKey(0), (2, 4, 16, 16), jnp.float32)

    features = encoder(x)
    features = jax.block_until_ready(features)

    ref = reference_forward(params, x)
    assert len(features) == len(ref) == 9
    for f, r in zip(features, ref):
        assert f.shape == r.shape, (f.shape, r.shape)
        assert jnp.allclose(f, r, atol=1e-4, rtol=1e-4), "mismatch vs reference"

    print("KERNEL_OK")
</pallas_src>

<mosaic_0001>
module attributes {stable_mosaic.version = 11 : i64} {
  func.func @_encoder_kernel(%arg0: i32, %arg1: memref<1x18x18x4xf32, #tpu.memory_space<vmem>>, %arg2: memref<36x8xf32, #tpu.memory_space<vmem>>, %arg3: memref<1x8xf32, #tpu.memory_space<vmem>>, %arg4: memref<1x8xf32, #tpu.memory_space<vmem>>, %arg5: memref<72x8xf32, #tpu.memory_space<vmem>>, %arg6: memref<1x8xf32, #tpu.memory_space<vmem>>, %arg7: memref<72x16xf32, #tpu.memory_space<vmem>>, %arg8: memref<1x16xf32, #tpu.memory_space<vmem>>, %arg9: memref<16x32xf32, #tpu.memory_space<vmem>>, %arg10: memref<1x32xf32, #tpu.memory_space<vmem>>, %arg11: memref<1x32xf32, #tpu.memory_space<vmem>>, %arg12: memref<1x16x16x8xf32, #tpu.memory_space<vmem>>, %arg13: memref<1x16x16x8xf32, #tpu.memory_space<vmem>>, %arg14: memref<1x16x16x8xf32, #tpu.memory_space<vmem>>, %arg15: memref<1x16x16x8xf32, #tpu.memory_space<vmem>>, %arg16: memref<1x16x16x16xf32, #tpu.memory_space<vmem>>, %arg17: memref<1x16x16x32xf32, #tpu.memory_space<vmem>>, %arg18: memref<1x16x16x32xf32, #tpu.memory_space<vmem>>, %arg19: memref<1x16x16x32xf32, #tpu.memory_space<vmem>>, %arg20: memref<18x18x8xf32, #tpu.memory_space<vmem>>) attributes {dimension_semantics = [#tpu.dimension_semantics<parallel>], iteration_bounds = array<i64: 2>, scalar_prefetch = 0 : i64, scratch_operands = 1 : i64, tpu.core_type = #tpu.core_type<tc>, window_params = [{transform_indices = @transform_0, window_bounds = array<i64: 1, 18, 18, 4>}, {pipeline_mode = #tpu.pipeline_mode<synchronous>, transform_indices = @transform_1, window_bounds = array<i64: 36, 8>}, {pipeline_mode = #tpu.pipeline_mode<synchronous>, transform_indices = @transform_2, window_bounds = array<i64: 1, 8>}, {pipeline_mode = #tpu.pipeline_mode<synchronous>, transform_indices = @transform_3, window_bounds = array<i64: 1, 8>}, {pipeline_mode = #tpu.pipeline_mode<synchronous>, transform_indices = @transform_4, window_bounds = array<i64: 72, 8>}, {pipeline_mode = #tpu.pipeline_mode<synchronous>, transform_indices = @transform_5, window_bounds = array<i64: 1, 8>}, {pipeline_mode = #tpu.pipeline_mode<synchronous>, transform_indices = @transform_6, window_bounds = array<i64: 72, 16>}, {pipeline_mode = #tpu.pipeline_mode<synchronous>, transform_indices = @transform_7, window_bounds = array<i64: 1, 16>}, {pipeline_mode = #tpu.pipeline_mode<synchronous>, transform_indices = @transform_8, window_bounds = array<i64: 16, 32>}, {pipeline_mode = #tpu.pipeline_mode<synchronous>, transform_indices = @transform_9, window_bounds = array<i64: 1, 32>}, {pipeline_mode = #tpu.pipeline_mode<synchronous>, transform_indices = @transform_10, window_bounds = array<i64: 1, 32>}, {transform_indices = @transform_11, window_bounds = array<i64: 1, 16, 16, 8>}, {transform_indices = @transform_12, window_bounds = array<i64: 1, 16, 16, 8>}, {transform_indices = @transform_13, window_bounds = array<i64: 1, 16, 16, 8>}, {transform_indices = @transform_14, window_bounds = array<i64: 1, 16, 16, 8>}, {transform_indices = @transform_15, window_bounds = array<i64: 1, 16, 16, 16>}, {transform_indices = @transform_16, window_bounds = array<i64: 1, 16, 16, 32>}, {transform_indices = @transform_17, window_bounds = array<i64: 1, 16, 16, 32>}, {transform_indices = @transform_18, window_bounds = array<i64: 1, 16, 16, 32>}]} {
    %c0 = arith.constant 0 : index
    %c0_0 = arith.constant 0 : index
    %c0_1 = arith.constant 0 : index
    %c0_2 = arith.constant 0 : index
    %0 = vector.load %arg1[%c0, %c0_0, %c0_1, %c0_2] : memref<1x18x18x4xf32, #tpu.memory_space<vmem>>, vector<1x16x16x4xf32>
    %1 = vector.shape_cast %0 : vector<1x16x16x4xf32> to vector<16x16x4xf32>
    %2 = vector.shape_cast %1 : vector<16x16x4xf32> to vector<256x4xf32>
    %c0_3 = arith.constant 0 : index
    %c0_4 = arith.constant 0 : index
    %c1 = arith.constant 1 : index
    %c0_5 = arith.constant 0 : index
    %3 = vector.load %arg1[%c0_3, %c0_4, %c1, %c0_5] : memref<1x18x18x4xf32, #tpu.memory_space<vmem>>, vector<1x16x16x4xf32>
    %4 = vector.shape_cast %3 : vector<1x16x16x4xf32> to vector<16x16x4xf32>
    %5 = vector.shape_cast %4 : vector<16x16x4xf32> to vector<256x4xf32>
    %c0_6 = arith.constant 0 : index
    %c0_7 = arith.constant 0 : index
    %c2 = arith.constant 2 : index
    %c0_8 = arith.constant 0 : index
    %6 = vector.load %arg1[%c0_6, %c0_7, %c2, %c0_8] : memref<1x18x18x4xf32, #tpu.memory_space<vmem>>, vector<1x16x16x4xf32>
    %7 = vector.shape_cast %6 : vector<1x16x16x4xf32> to vector<16x16x4xf32>
    %8 = vector.shape_cast %7 : vector<16x16x4xf32> to vector<256x4xf32>
    %c0_9 = arith.constant 0 : index
    %c1_10 = arith.constant 1 : index
    %c0_11 = arith.constant 0 : index
    %c0_12 = arith.constant 0 : index
    %9 = vector.load %arg1[%c0_9, %c1_10, %c0_11, %c0_12] : memref<1x18x18x4xf32, #tpu.memory_space<vmem>>, vector<1x16x16x4xf32>
    %10 = vector.shape_cast %9 : vector<1x16x16x4xf32> to vector<16x16x4xf32>
    %11 = vector.shape_cast %10 : vector<16x16x4xf32> to vector<256x4xf32>
    %c0_13 = arith.constant 0 : index
    %c1_14 = arith.constant 1 : index
    %c1_15 = arith.constant 1 : index
    %c0_16 = arith.constant 0 : index
    %12 = vector.load %arg1[%c0_13, %c1_14, %c1_15, %c0_16] : memref<1x18x18x4xf32, #tpu.memory_space<vmem>>, vector<1x16x16x4xf32>
    %13 = vector.shape_cast %12 : vector<1x16x16x4xf32> to vector<16x16x4xf32>
    %14 = vector.shape_cast %13 : vector<16x16x4xf32> to vector<256x4xf32>
    %c0_17 = arith.constant 0 : index
    %c1_18 = arith.constant 1 : index
    %c2_19 = arith.constant 2 : index
    %c0_20 = arith.constant 0 : index
    %15 = vector.load %arg1[%c0_17, %c1_18, %c2_19, %c0_20] : memref<1x18x18x4xf32, #tpu.memory_space<vmem>>, vector<1x16x16x4xf32>
    %16 = vector.shape_cast %15 : vector<1x16x16x4xf32> to vector<16x16x4xf32>
    %17 = vector.shape_cast %16 : vector<16x16x4xf32> to vector<256x4xf32>
    %c0_21 = arith.constant 0 : index
    %c2_22 = arith.constant 2 : index
    %c0_23 = arith.constant 0 : index
    %c0_24 = arith.constant 0 : index
    %18 = vector.load %arg1[%c0_21, %c2_22, %c0_23, %c0_24] : memref<1x18x18x4xf32, #tpu.memory_space<vmem>>, vector<1x16x16x4xf32>
    %19 = vector.shape_cast %18 : vector<1x16x16x4xf32> to vector<16x16x4xf32>
    %20 = vector.shape_cast %19 : vector<16x16x4xf32> to vector<256x4xf32>
    %c0_25 = arith.constant 0 : index
    %c2_26 = arith.constant 2 : index
    %c1_27 = arith.constant 1 : index
    %c0_28 = arith.constant 0 : index
    %21 = vector.load %arg1[%c0_25, %c2_26, %c1_27, %c0_28] : memref<1x18x18x4xf32, #tpu.memory_space<vmem>>, vector<1x16x16x4xf32>
    %22 = vector.shape_cast %21 : vector<1x16x16x4xf32> to vector<16x16x4xf32>
    %23 = vector.shape_cast %22 : vector<16x16x4xf32> to vector<256x4xf32>
    %c0_29 = arith.constant 0 : index
    %c2_30 = arith.constant 2 : index
    %c2_31 = arith.constant 2 : index
    %c0_32 = arith.constant 0 : index
    %24 = vector.load %arg1[%c0_29, %c2_30, %c2_31, %c0_32] : memref<1x18x18x4xf32, #tpu.memory_space<vmem>>, vector<1x16x16x4xf32>
    %25 = vector.shape_cast %24 : vector<1x16x16x4xf32> to vector<16x16x4xf32>
    %26 = vector.shape_cast %25 : vector<16x16x4xf32> to vector<256x4xf32>
    %27 = tpu.concatenate %2, %5, %8, %11, %14, %17, %20, %23, %26 in 1 : vector<256x4xf32>, vector<256x4xf32>, vector<256x4xf32>, vector<256x4xf32>, vector<256x4xf32>, vector<256x4xf32>, vector<256x4xf32>, vector<256x4xf32>, vector<256x4xf32> -> vector<256x36xf32>
    %c0_33 = arith.constant 0 : index
    %c0_34 = arith.constant 0 : index
    %28 = vector.load %arg2[%c0_33, %c0_34] : memref<36x8xf32, #tpu.memory_space<vmem>>, vector<36x8xf32>
    %cst = arith.constant dense<0.000000e+00> : vector<256x8xf32>
    %29 = tpu.matmul %27, %28, %cst {dimension_numbers = #tpu.dot_dimension_numbers<[1], [0], [0], [1], [0, 0, 1, 1], [], []>} : vector<256x36xf32>, vector<36x8xf32>, vector<256x8xf32> -> vector<256x8xf32>
    %30 = vector.shape_cast %29 : vector<256x8xf32> to vector<1x16x16x8xf32>
    %c0_35 = arith.constant 0 : index
    %c0_36 = arith.constant 0 : index
    %c0_37 = arith.constant 0 : index
    %c0_38 = arith.constant 0 : index
    %31 = vector.load %arg12[%c0_35, %c0_36, %c0_37, %c0_38] : memref<1x16x16x8xf32, #tpu.memory_space<vmem>>, vector<1x16x16x8xf32>
    tpu.vector_store %arg12[%c0_35, %c0_36, %c0_37, %c0_38], %30 {strides = array<i32>} : memref<1x16x16x8xf32, #tpu.memory_space<vmem>>, vector<1x16x16x8xf32>,
    %c0_39 = arith.constant 0 : index
    %c0_40 = arith.constant 0 : index
    %32 = vector.load %arg3[%c0_39, %c0_40] : memref<1x8xf32, #tpu.memory_space<vmem>>, vector<1x8xf32>
    %33 = vector.broadcast %32 : vector<1x8xf32> to vector<256x8xf32>
    %34 = arith.mulf %29, %33 : vector<256x8xf32>
    %c0_41 = arith.constant 0 : index
    %c0_42 = arith.constant 0 : index
    %35 = vector.load %arg4[%c0_41, %c0_42] : memref<1x8xf32, #tpu.memory_space<vmem>>, vector<1x8xf32>
    %36 = vector.broadcast %35 : vector<1x8xf32> to vector<256x8xf32>
    %37 = arith.addf %34, %36 : vector<256x8xf32>
    %38 = vector.shape_cast %37 : vector<256x8xf32> to vector<1x16x16x8xf32>
    %c0_43 = arith.constant 0 : index
    %c0_44 = arith.constant 0 : index
    %c0_45 = arith.constant 0 : index
    %c0_46 = arith.constant 0 : index
    %39 = vector.load %arg13[%c0_43, %c0_44, %c0_45, %c0_46] : memref<1x16x16x8xf32, #tpu.memory_space<vmem>>, vector<1x16x16x8xf32>
    tpu.vector_store %arg13[%c0_43, %c0_44, %c0_45, %c0_46], %38 {strides = array<i32>} : memref<1x16x16x8xf32, #tpu.memory_space<vmem>>, vector<1x16x16x8xf32>,
    %40 = arith.negf %37 : vector<256x8xf32>
    %41 = math.exp %40 : vector<256x8xf32>
    %cst_47 = arith.constant 1.000000e+00 : f32
    %42 = vector.broadcast %cst_47 : f32 to vector<256x8xf32>
    %43 = arith.addf %42, %41 : vector<256x8xf32>
    %44 = arith.divf %42, %43 : vector<256x8xf32>
    %45 = arith.mulf %37, %44 : vector<256x8xf32>
    %46 = vector.shape_cast %45 : vector<256x8xf32> to vector<1x16x16x8xf32>
    %c0_48 = arith.constant 0 : index
    %c0_49 = arith.constant 0 : index
    %c0_50 = arith.constant 0 : index
    %c0_51 = arith.constant 0 : index
    %47 = vector.load %arg14[%c0_48, %c0_49, %c0_50, %c0_51] : memref<1x16x16x8xf32, #tpu.memory_space<vmem>>, vector<1x16x16x8xf32>
    tpu.vector_store %arg14[%c0_48, %c0_49, %c0_50, %c0_51], %46 {strides = array<i32>} : memref<1x16x16x8xf32, #tpu.memory_space<vmem>>, vector<1x16x16x8xf32>,
    %cst_52 = arith.constant 0.000000e+00 : f32
    %48 = vector.broadcast %cst_52 : f32 to vector<18x18x8xf32>
    %c0_53 = arith.constant 0 : index
    %c0_54 = arith.constant 0 : index
    %c0_55 = arith.constant 0 : index
    %49 = vector.load %arg20[%c0_53, %c0_54, %c0_55] : memref<18x18x8xf32, #tpu.memory_space<vmem>>, vector<18x18x8xf32>
    tpu.vector_store %arg20[%c0_53, %c0_54, %c0_55], %48 {strides = array<i32>} : memref<18x18x8xf32, #tpu.memory_space<vmem>>, vector<18x18x8xf32>,
    %50 = vector.shape_cast %45 : vector<256x8xf32> to vector<16x16x8xf32>
    %c1_56 = arith.constant 1 : index
    %c1_57 = arith.constant 1 : index
    %c0_58 = arith.constant 0 : index
    %51 = vector.load %arg20[%c1_56, %c1_57, %c0_58] : memref<18x18x8xf32, #tpu.memory_space<vmem>>, vector<16x16x8xf32>
    tpu.vector_store %arg20[%c1_56, %c1_57, %c0_58], %50 {strides = array<i32>} : memref<18x18x8xf32, #tpu.memory_space<vmem>>, vector<16x16x8xf32>,
    %c0_59 = arith.constant 0 : index
    %c0_60 = arith.constant 0 : index
    %c0_61 = arith.constant 0 : index
    %52 = vector.load %arg20[%c0_59, %c0_60, %c0_61] : memref<18x18x8xf32, #tpu.memory_space<vmem>>, vector<16x16x8xf32>
    %53 = vector.shape_cast %52 : vector<16x16x8xf32> to vector<256x8xf32>
    %c0_62 = arith.constant 0 : index
    %c1_63 = arith.constant 1 : index
    %c0_64 = arith.constant 0 : index
    %54 = vector.load %arg20[%c0_62, %c1_63, %c0_64] : memref<18x18x8xf32, #tpu.memory_space<vmem>>, vector<16x16x8xf32>
    %55 = vector.shape_cast %54 : vector<16x16x8xf32> to vector<256x8xf32>
    %c0_65 = arith.constant 0 : index
    %c2_66 = arith.constant 2 : index
    %c0_67 = arith.constant 0 : index
    %56 = vector.load %arg20[%c0_65, %c2_66, %c0_67] : memref<18x18x8xf32, #tpu.memory_space<vmem>>, vector<16x16x8xf32>
    %57 = vector.shape_cast %56 : vector<16x16x8xf32> to vector<256x8xf32>
    %c1_68 = arith.constant 1 : index
    %c0_69 = arith.constant 0 : index
    %c0_70 = arith.constant 0 : index
    %58 = vector.load %arg20[%c1_68, %c0_69, %c0_70] : memref<18x18x8xf32, #tpu.memory_space<vmem>>, vector<16x16x8xf32>
    %59 = vector.shape_cast %58 : vector<16x16x8xf32> to vector<256x8xf32>
    %c1_71 = arith.constant 1 : index
    %c1_72 = arith.constant 1 : index
    %c0_73 = arith.constant 0 : index
    %60 = vector.load %arg20[%c1_71, %c1_72, %c0_73] : memref<18x18x8xf32, #tpu.memory_space<vmem>>, vector<16x16x8xf32>
    %61 = vector.shape_cast %60 : vector<16x16x8xf32> to vector<256x8xf32>
    %c1_74 = arith.constant 1 : index
    %c2_75 = arith.constant 2 : index
    %c0_76 = arith.constant 0 : index
    %62 = vector.load %arg20[%c1_74, %c2_75, %c0_76] : memref<18x18x8xf32, #tpu.memory_space<vmem>>, vector<16x16x8xf32>
    %63 = vector.shape_cast %62 : vector<16x16x8xf32> to vector<256x8xf32>
    %c2_77 = arith.constant 2 : index
    %c0_78 = arith.constant 0 : index
    %c0_79 = arith.constant 0 : index
    %64 = vector.load %arg20[%c2_77, %c0_78, %c0_79] : memref<18x18x8xf32, #tpu.memory_space<vmem>>, vector<16x16x8xf32>
    %65 = vector.shape_cast %64 : vector<16x16x8xf32> to vector<256x8xf32>
    %c2_80 = arith.constant 2 : index
    %c1_81 = arith.constant 1 : index
    %c0_82 = arith.constant 0 : index
    %66 = vector.load %arg20[%c2_80, %c1_81, %c0_82] : memref<18x18x8xf32, #tpu.memory_space<vmem>>, vector<16x16x8xf32>
    %67 = vector.shape_cast %66 : vector<16x16x8xf32> to vector<256x8xf32>
    %c2_83 = arith.constant 2 : index
    %c2_84 = arith.constant 2 : index
    %c0_85 = arith.constant 0 : index
    %68 = vector.load %arg20[%c2_83, %c2_84, %c0_85] : memref<18x18x8xf32, #tpu.memory_space<vmem>>, vector<16x16x8xf32>
    %69 = vector.shape_cast %68 : vector<16x16x8xf32> to vector<256x8xf32>
    %70 = tpu.concatenate %53, %55, %57, %59, %61, %63, %65, %67, %69 in 1 : vector<256x8xf32>, vector<256x8xf32>, vector<256x8xf32>, vector<256x8xf32>, vector<256x8xf32>, vector<256x8xf32>, vector<256x8xf32>, vector<256x8xf32>, vector<256x8xf32> -> vector<256x72xf32>
    %c0_86 = arith.constant 0 : index
    %c0_87 = arith.constant 0 : index
    %71 = vector.load %arg5[%c0_86, %c0_87] : memref<72x8xf32, #tpu.memory_space<vmem>>, vector<72x8xf32>
    %cst_88 = arith.constant dense<0.000000e+00> : vector<256x8xf32>
    %72 = tpu.matmul %70, %71, %cst_88 {dimension_numbers = #tpu.dot_dimension_numbers<[1], [0], [0], [1], [0, 0, 1, 1], [], []>} : vector<256x72xf32>, vector<72x8xf32>, vector<256x8xf32> -> vector<256x8xf32>
    %c0_89 = arith.constant 0 : index
    %c0_90 = arith.constant 0 : index
    %73 = vector.load %arg6[%c0_89, %c0_90] : memref<1x8xf32, #tpu.memory_space<vmem>>, vector<1x8xf32>
    %74 = vector.broadcast %73 : vector<1x8xf32> to vector<256x8xf32>
    %75 = arith.addf %72, %74 : vector<256x8xf32>
    %76 = arith.negf %75 : vector<256x8xf32>
    %77 = math.exp %76 : vector<256x8xf32>
    %cst_91 = arith.constant 1.000000e+00 : f32
    %78 = vector.broadcast %cst_91 : f32 to vector<256x8xf32>
    %79 = arith.addf %78, %77 : vector<256x8xf32>
    %80 = arith.divf %78, %79 : vector<256x8xf32>
    %81 = arith.mulf %75, %80 : vector<256x8xf32>
    %82 = vector.shape_cast %81 : vector<256x8xf32> to vector<1x16x16x8xf32>
    %c0_92 = arith.constant 0 : index
    %c0_93 = arith.constant 0 : index
    %c0_94 = arith.constant 0 : index
    %c0_95 = arith.constant 0 : index
    %83 = vector.load %arg15[%c0_92, %c0_93, %c0_94, %c0_95] : memref<1x16x16x8xf32, #tpu.memory_space<vmem>>, vector<1x16x16x8xf32>
    tpu.vector_store %arg15[%c0_92, %c0_93, %c0_94, %c0_95], %82 {strides = array<i32>} : memref<1x16x16x8xf32, #tpu.memory_space<vmem>>, vector<1x16x16x8xf32>,
    %84 = vector.shape_cast %81 : vector<256x8xf32> to vector<16x16x8xf32>
    %c1_96 = arith.constant 1 : index
    %c1_97 = arith.constant 1 : index
    %c0_98 = arith.constant 0 : index
    %85 = vector.load %arg20[%c1_96, %c1_97, %c0_98] : memref<18x18x8xf32, #tpu.memory_space<vmem>>, vector<16x16x8xf32>
    tpu.vector_store %arg20[%c1_96, %c1_97, %c0_98], %84 {strides = array<i32>} : memref<18x18x8xf32, #tpu.memory_space<vmem>>, vector<16x16x8xf32>,
    %c0_99 = arith.constant 0 : index
    %c0_100 = arith.constant 0 : index
    %c0_101 = arith.constant 0 : index
    %86 = vector.load %arg20[%c0_99, %c0_100, %c0_101] : memref<18x18x8xf32, #tpu.memory_space<vmem>>, vector<16x16x8xf32>
    %87 = vector.shape_cast %86 : vector<16x16x8xf32> to vector<256x8xf32>
    %c0_102 = arith.constant 0 : index
    %c1_103 = arith.constant 1 : index
    %c0_104 = arith.constant 0 : index
    %88 = vector.load %arg20[%c0_102, %c1_103, %c0_104] : memref<18x18x8xf32, #tpu.memory_space<vmem>>, vector<16x16x8xf32>
    %89 = vector.shape_cast %88 : vector<16x16x8xf32> to vector<256x8xf32>
    %c0_105 = arith.constant 0 : index
    %c2_106 = arith.constant 2 : index
    %c0_107 = arith.constant 0 : index
    %90 = vector.load %arg20[%c0_105, %c2_106, %c0_107] : memref<18x18x8xf32, #tpu.memory_space<vmem>>, vector<16x16x8xf32>
    %91 = vector.shape_cast %90 : vector<16x16x8xf32> to vector<256x8xf32>
    %c1_108 = arith.constant 1 : index
    %c0_109 = arith.constant 0 : index
    %c0_110 = arith.constant 0 : index
    %92 = vector.load %arg20[%c1_108, %c0_109, %c0_110] : memref<18x18x8xf32, #tpu.memory_space<vmem>>, vector<16x16x8xf32>
    %93 = vector.shape_cast %92 : vector<16x16x8xf32> to vector<256x8xf32>
    %c1_111 = arith.constant 1 : index
    %c1_112 = arith.constant 1 : index
    %c0_113 = arith.constant 0 : index
    %94 = vector.load %arg20[%c1_111, %c1_112, %c0_113] : memref<18x18x8xf32, #tpu.memory_space<vmem>>, vector<16x16x8xf32>
    %95 = vector.shape_cast %94 : vector<16x16x8xf32> to vector<256x8xf32>
    %c1_114 = arith.constant 1 : index
    %c2_115 = arith.constant 2 : index
    %c0_116 = arith.constant 0 : index
    %96 = vector.load %arg20[%c1_114, %c2_115, %c0_116] : memref<18x18x8xf32, #tpu.memory_space<vmem>>, vector<16x16x8xf32>
    %97 = vector.shape_cast %96 : vector<16x16x8xf32> to vector<256x8xf32>
    %c2_117 = arith.constant 2 : index
    %c0_118 = arith.constant 0 : index
    %c0_119 = arith.constant 0 : index
    %98 = vector.load %arg20[%c2_117, %c0_118, %c0_119] : memref<18x18x8xf32, #tpu.memory_space<vmem>>, vector<16x16x8xf32>
    %99 = vector.shape_cast %98 : vector<16x16x8xf32> to vector<256x8xf32>
    %c2_120 = arith.constant 2 : index
    %c1_121 = arith.constant 1 : index
    %c0_122 = arith.constant 0 : index
    %100 = vector.load %arg20[%c2_120, %c1_121, %c0_122] : memref<18x18x8xf32, #tpu.memory_space<vmem>>, vector<16x16x8xf32>
    %101 = vector.shape_cast %100 : vector<16x16x8xf32> to vector<256x8xf32>
    %c2_123 = arith.constant 2 : index
    %c2_124 = arith.constant 2 : index
    %c0_125 = arith.constant 0 : index
    %102 = vector.load %arg20[%c2_123, %c2_124, %c0_125] : memref<18x18x8xf32, #tpu.memory_space<vmem>>, vector<16x16x8xf32>
    %103 = vector.shape_cast %102 : vector<16x16x8xf32> to vector<256x8xf32>
    %104 = tpu.concatenate %87, %89, %91, %93, %95, %97, %99, %101, %103 in 1 : vector<256x8xf32>, vector<256x8xf32>, vector<256x8xf32>, vector<256x8xf32>, vector<256x8xf32>, vector<256x8xf32>, vector<256x8xf32>, vector<256x8xf32>, vector<256x8xf32> -> vector<256x72xf32>
    %c0_126 = arith.constant 0 : index
    %c0_127 = arith.constant 0 : index
    %105 = vector.load %arg7[%c0_126, %c0_127] : memref<72x16xf32, #tpu.memory_space<vmem>>, vector<72x16xf32>
    %cst_128 = arith.constant dense<0.000000e+00> : vector<256x16xf32>
    %106 = tpu.matmul %104, %105, %cst_128 {dimension_numbers = #tpu.dot_dimension_numbers<[1], [0], [0], [1], [0, 0, 1, 1], [], []>} : vector<256x72xf32>, vector<72x16xf32>, vector<256x16xf32> -> vector<256x16xf32>
    %c0_129 = arith.constant 0 : index
    %c0_130 = arith.constant 0 : index
    %107 = vector.load %arg8[%c0_129, %c0_130] : memref<1x16xf32, #tpu.memory_space<vmem>>, vector<1x16xf32>
    %108 = vector.broadcast %107 : vector<1x16xf32> to vector<256x16xf32>
    %109 = arith.addf %106, %108 : vector<256x16xf32>
    %110 = arith.negf %109 : vector<256x16xf32>
    %111 = math.exp %110 : vector<256x16xf32>
    %cst_131 = arith.constant 1.000000e+00 : f32
    %112 = vector.broadcast %cst_131 : f32 to vector<256x16xf32>
    %113 = arith.addf %112, %111 : vector<256x16xf32>
    %114 = arith.divf %112, %113 : vector<256x16xf32>
    %115 = arith.mulf %109, %114 : vector<256x16xf32>
    %116 = vector.shape_cast %115 : vector<256x16xf32> to vector<1x16x16x16xf32>
    %c0_132 = arith.constant 0 : index
    %c0_133 = arith.constant 0 : index
    %c0_134 = arith.constant 0 : index
    %c0_135 = arith.constant 0 : index
    %117 = vector.load %arg16[%c0_132, %c0_133, %c0_134, %c0_135] : memref<1x16x16x16xf32, #tpu.memory_space<vmem>>, vector<1x16x16x16xf32>
    tpu.vector_store %arg16[%c0_132, %c0_133, %c0_134, %c0_135], %116 {strides = array<i32>} : memref<1x16x16x16xf32, #tpu.memory_space<vmem>>, vector<1x16x16x16xf32>,
    %c0_136 = arith.constant 0 : index
    %c0_137 = arith.constant 0 : index
    %118 = vector.load %arg9[%c0_136, %c0_137] : memref<16x32xf32, #tpu.memory_space<vmem>>, vector<16x32xf32>
    %cst_138 = arith.constant dense<0.000000e+00> : vector<256x32xf32>
    %119 = tpu.matmul %115, %118, %cst_138 {dimension_numbers = #tpu.dot_dimension_numbers<[1], [0], [0], [1], [0, 0, 1, 1], [], []>} : vector<256x16xf32>, vector<16x32xf32>, vector<256x32xf32> -> vector<256x32xf32>
    %120 = vector.shape_cast %119 : vector<256x32xf32> to vector<1x16x16x32xf32>
    %c0_139 = arith.constant 0 : index
    %c0_140 = arith.constant 0 : index
    %c0_141 = arith.constant 0 : index
    %c0_142 = arith.constant 0 : index
    %121 = vector.load %arg17[%c0_139, %c0_140, %c0_141, %c0_142] : memref<1x16x16x32xf32, #tpu.memory_space<vmem>>, vector<1x16x16x32xf32>
    tpu.vector_store %arg17[%c0_139, %c0_140, %c0_141, %c0_142], %120 {strides = array<i32>} : memref<1x16x16x32xf32, #tpu.memory_space<vmem>>, vector<1x16x16x32xf32>,
    %c0_143 = arith.constant 0 : index
    %c0_144 = arith.constant 0 : index
    %122 = vector.load %arg10[%c0_143, %c0_144] : memref<1x32xf32, #tpu.memory_space<vmem>>, vector<1x32xf32>
    %123 = vector.broadcast %122 : vector<1x32xf32> to vector<256x32xf32>
    %124 = arith.mulf %119, %123 : vector<256x32xf32>
    %c0_145 = arith.constant 0 : index
    %c0_146 = arith.constant 0 : index
    %125 = vector.load %arg11[%c0_145, %c0_146] : memref<1x32xf32, #tpu.memory_space<vmem>>, vector<1x32xf32>
    %126 = vector.broadcast %125 : vector<1x32xf32> to vector<256x32xf32>
    %127 = arith.addf %124, %126 : vector<256x32xf32>
    %128 = vector.shape_cast %127 : vector<256x32xf32> to vector<1x16x16x32xf32>
    %c0_147 = arith.constant 0 : index
    %c0_148 = arith.constant 0 : index
    %c0_149 = arith.constant 0 : index
    %c0_150 = arith.constant 0 : index
    %129 = vector.load %arg18[%c0_147, %c0_148, %c0_149, %c0_150] : memref<1x16x16x32xf32, #tpu.memory_space<vmem>>, vector<1x16x16x32xf32>
    tpu.vector_store %arg18[%c0_147, %c0_148, %c0_149, %c0_150], %128 {strides = array<i32>} : memref<1x16x16x32xf32, #tpu.memory_space<vmem>>, vector<1x16x16x32xf32>,
    %130 = arith.negf %127 : vector<256x32xf32>
    %131 = math.exp %130 : vector<256x32xf32>
    %cst_151 = arith.constant 1.000000e+00 : f32
    %132 = vector.broadcast %cst_151 : f32 to vector<256x32xf32>
    %133 = arith.addf %132, %131 : vector<256x32xf32>
    %134 = arith.divf %132, %133 : vector<256x32xf32>
    %135 = arith.mulf %127, %134 : vector<256x32xf32>
    %136 = vector.shape_cast %135 : vector<256x32xf32> to vector<1x16x16x32xf32>
    %c0_152 = arith.constant 0 : index
    %c0_153 = arith.constant 0 : index
    %c0_154 = arith.constant 0 : index
    %c0_155 = arith.constant 0 : index
    %137 = vector.load %arg19[%c0_152, %c0_153, %c0_154, %c0_155] : memref<1x16x16x32xf32, #tpu.memory_space<vmem>>, vector<1x16x16x32xf32>
    tpu.vector_store %arg19[%c0_152, %c0_153, %c0_154, %c0_155], %136 {strides = array<i32>} : memref<1x16x16x32xf32, #tpu.memory_space<vmem>>, vector<1x16x16x32xf32>,
    return
  }
  func.func @transform_0(%arg0: i32) -> (i32, i32, i32, i32) {
    %c0_i32 = arith.constant 0 : i32
    %c0_i32_0 = arith.constant 0 : i32
    %c0_i32_1 = arith.constant 0 : i32
    %c0_i32_2 = arith.constant 0 : i32
    return %arg0, %c0_i32, %c0_i32_0, %c0_i32_1 : i32, i32, i32, i32
  }
  func.func @transform_1(%arg0: i32) -> (i32, i32) {
    %c0_i32 = arith.constant 0 : i32
    %c0_i32_0 = arith.constant 0 : i32
    %c0_i32_1 = arith.constant 0 : i32
    return %c0_i32, %c0_i32_0 : i32, i32
  }
  func.func @transform_2(%arg0: i32) -> (i32, i32) {
    %c0_i32 = arith.constant 0 : i32
    %c0_i32_0 = arith.constant 0 : i32
    %c0_i32_1 = arith.constant 0 : i32
    return %c0_i32, %c0_i32_0 : i32, i32
  }
  func.func @transform_3(%arg0: i32) -> (i32, i32) {
    %c0_i32 = arith.constant 0 : i32
    %c0_i32_0 = arith.constant 0 : i32
    %c0_i32_1 = arith.constant 0 : i32
    return %c0_i32, %c0_i32_0 : i32, i32
  }
  func.func @transform_4(%arg0: i32) -> (i32, i32) {
    %c0_i32 = arith.constant 0 : i32
    %c0_i32_0 = arith.constant 0 : i32
    %c0_i32_1 = arith.constant 0 : i32
    return %c0_i32, %c0_i32_0 : i32, i32
  }
  func.func @transform_5(%arg0: i32) -> (i32, i32) {
    %c0_i32 = arith.constant 0 : i32
    %c0_i32_0 = arith.constant 0 : i32
    %c0_i32_1 = arith.constant 0 : i32
    return %c0_i32, %c0_i32_0 : i32, i32
  }
  func.func @transform_6(%arg0: i32) -> (i32, i32) {
    %c0_i32 = arith.constant 0 : i32
    %c0_i32_0 = arith.constant 0 : i32
    %c0_i32_1 = arith.constant 0 : i32
    return %c0_i32, %c0_i32_0 : i32, i32
  }
  func.func @transform_7(%arg0: i32) -> (i32, i32) {
    %c0_i32 = arith.constant 0 : i32
    %c0_i32_0 = arith.constant 0 : i32
    %c0_i32_1 = arith.constant 0 : i32
    return %c0_i32, %c0_i32_0 : i32, i32
  }
  func.func @transform_8(%arg0: i32) -> (i32, i32) {
    %c0_i32 = arith.constant 0 : i32
    %c0_i32_0 = arith.constant 0 : i32
    %c0_i32_1 = arith.constant 0 : i32
    return %c0_i32, %c0_i32_0 : i32, i32
  }
  func.func @transform_9(%arg0: i32) -> (i32, i32) {
    %c0_i32 = arith.constant 0 : i32
    %c0_i32_0 = arith.constant 0 : i32
    %c0_i32_1 = arith.constant 0 : i32
    return %c0_i32, %c0_i32_0 : i32, i32
  }
  func.func @transform_10(%arg0: i32) -> (i32, i32) {
    %c0_i32 = arith.constant 0 : i32
    %c0_i32_0 = arith.constant 0 : i32
    %c0_i32_1 = arith.constant 0 : i32
    return %c0_i32, %c0_i32_0 : i32, i32
  }
  func.func @transform_11(%arg0: i32) -> (i32, i32, i32, i32) {
    %c0_i32 = arith.constant 0 : i32
    %c0_i32_0 = arith.constant 0 : i32
    %c0_i32_1 = arith.constant 0 : i32
    %c0_i32_2 = arith.constant 0 : i32
    return %arg0, %c0_i32, %c0_i32_0, %c0_i32_1 : i32, i32, i32, i32
  }
  func.func @transform_12(%arg0: i32) -> (i32, i32, i32, i32) {
    %c0_i32 = arith.constant 0 : i32
    %c0_i32_0 = arith.constant 0 : i32
    %c0_i32_1 = arith.constant 0 : i32
    %c0_i32_2 = arith.constant 0 : i32
    return %arg0, %c0_i32, %c0_i32_0, %c0_i32_1 : i32, i32, i32, i32
  }
  func.func @transform_13(%arg0: i32) -> (i32, i32, i32, i32) {
    %c0_i32 = arith.constant 0 : i32
    %c0_i32_0 = arith.constant 0 : i32
    %c0_i32_1 = arith.constant 0 : i32
    %c0_i32_2 = arith.constant 0 : i32
    return %arg0, %c0_i32, %c0_i32_0, %c0_i32_1 : i32, i32, i32, i32
  }
  func.func @transform_14(%arg0: i32) -> (i32, i32, i32, i32) {
    %c0_i32 = arith.constant 0 : i32
    %c0_i32_0 = arith.constant 0 : i32
    %c0_i32_1 = arith.constant 0 : i32
    %c0_i32_2 = arith.constant 0 : i32
    return %arg0, %c0_i32, %c0_i32_0, %c0_i32_1 : i32, i32, i32, i32
  }
  func.func @transform_15(%arg0: i32) -> (i32, i32, i32, i32) {
    %c0_i32 = arith.constant 0 : i32
    %c0_i32_0 = arith.constant 0 : i32
    %c0_i32_1 = arith.constant 0 : i32
    %c0_i32_2 = arith.constant 0 : i32
    return %arg0, %c0_i32, %c0_i32_0, %c0_i32_1 : i32, i32, i32, i32
  }
  func.func @transform_16(%arg0: i32) -> (i32, i32, i32, i32) {
    %c0_i32 = arith.constant 0 : i32
    %c0_i32_0 = arith.constant 0 : i32
    %c0_i32_1 = arith.constant 0 : i32
    %c0_i32_2 = arith.constant 0 : i32
    return %arg0, %c0_i32, %c0_i32_0, %c0_i32_1 : i32, i32, i32, i32
  }
  func.func @transform_17(%arg0: i32) -> (i32, i32, i32, i32) {
    %c0_i32 = arith.constant 0 : i32
    %c0_i32_0 = arith.constant 0 : i32
    %c0_i32_1 = arith.constant 0 : i32
    %c0_i32_2 = arith.constant 0 : i32
    return %arg0, %c0_i32, %c0_i32_0, %c0_i32_1 : i32, i32, i32, i32
  }
  func.func @transform_18(%arg0: i32) -> (i32, i32, i32, i32) {
    %c0_i32 = arith.constant 0 : i32
    %c0_i32_0 = arith.constant 0 : i32
    %c0_i32_1 = arith.constant 0 : i32
    %c0_i32_2 = arith.constant 0 : i32
    return %arg0, %c0_i32, %c0_i32_0, %c0_i32_1 : i32, i32, i32, i32
  }
}

</mosaic_0001>

<llo_original>
// kernel: forward.1
$region0: #{forward.1}
  #allocation0 [shape = 'u32[]', space=smem, size = 0x4, offset = 0x4, fixed_abs, tag = 'smem constant byte address 0x4 - core index']
  #allocation1 [shape = 'u32[144,128]{1,0:T(1,128)}', space=vmem, size = 0x12000, scoped, tag = 'internal scratch']
  #allocation2 [shape = 'f32[18,18,8]{2,1,0:T(8,128)}', space=vmem, size = 0x36000, scoped, tag = 'scratch operand']
  %s0 = inlined_call_operand.vmem [shape: f32[2,18,18,4], index: 0, kind: input, shape index: {}]
  %s1 = inlined_call_operand.vmem [shape: f32[36,8], index: 1, kind: input, shape index: {}]
  %s2 = inlined_call_operand.vmem [shape: f32[1,8], index: 2, kind: input, shape index: {}]
  %s3 = inlined_call_operand.vmem [shape: f32[1,8], index: 3, kind: input, shape index: {}]
  %s4 = inlined_call_operand.vmem [shape: f32[72,8], index: 4, kind: input, shape index: {}]
  %s5 = inlined_call_operand.vmem [shape: f32[1,8], index: 5, kind: input, shape index: {}]
  %s6 = inlined_call_operand.vmem [shape: f32[72,16], index: 6, kind: input, shape index: {}]
  %s7 = inlined_call_operand.vmem [shape: f32[1,16], index: 7, kind: input, shape index: {}]
  %s8 = inlined_call_operand.vmem [shape: f32[16,32], index: 8, kind: input, shape index: {}]
  %s9 = inlined_call_operand.vmem [shape: f32[1,32], index: 9, kind: input, shape index: {}]
  %s10 = inlined_call_operand.vmem [shape: f32[1,32], index: 10, kind: input, shape index: {}]
  %s11 = inlined_call_operand.vmem [shape: f32[2,16,16,8], index: 11, kind: output, shape index: {0}]
  %s12 = inlined_call_operand.vmem [shape: f32[2,16,16,8], index: 12, kind: output, shape index: {1}]
  %s13 = inlined_call_operand.vmem [shape: f32[2,16,16,8], index: 13, kind: output, shape index: {2}]
  %s14 = inlined_call_operand.vmem [shape: f32[2,16,16,8], index: 14, kind: output, shape index: {3}]
  %s15 = inlined_call_operand.vmem [shape: f32[2,16,16,16], index: 15, kind: output, shape index: {4}]
  %s16 = inlined_call_operand.hbm [shape: f32[2,16,16,32], index: 16, kind: output, shape index: {5}]
  %s17 = inlined_call_operand.hbm [shape: f32[2,16,16,32], index: 17, kind: output, shape index: {6}]
  %s18 = inlined_call_operand.hbm [shape: f32[2,16,16,32], index: 18, kind: output, shape index: {7}]
  %19 = xla_tuple %s11, %s12, %s13, %s14, %s15, %s16, %s17, %s18
  %s20 = sld [smem:[#allocation0]]
  $region133: #{forward.1} parent=0
    _
  %s22 = ssub.s32 1, %s20
  %s23 = scalar_select 0, %s22, %s20
  $region1: #{forward.1} parent=0
    #allocation3 [shape = 'u8[262144]{0}', space=vmem, size = 0x40000, scoped, tag = 'output window, operand 5']
    #allocation4 [shape = 's32[2]{0}', space=sflag, size = 0x8, scoped, tag = 'scoped memory for forward.1']
    #allocation5 [shape = 'u8[262144]{0}', space=vmem, size = 0x40000, scoped, tag = 'output window, operand 6']
    #allocation6 [shape = 's32[2]{0}', space=sflag, size = 0x8, scoped, tag = 'scoped memory for forward.1']
    #allocation7 [shape = 'u8[262144]{0}', space=vmem, size = 0x40000, scoped, tag = 'output window, operand 7']
    %24 = vsyncpa [#allocation4], 0
    %s25 = scalar_lea.sflag [#allocation4], 1
    %26 = vsyncpa %s25, 0
    %27 = vsyncpa [#allocation6], 0
    %s28 = scalar_lea.sflag [#allocation6], 1
    %29 = vsyncpa %s28, 0
    loop: start=0, step=1, limit=4
    $region2: #{forward.1} parent=1 // loop_pre_header
      _
    $region3: #{forward.1} parent=1 // loop_header
      %s31 = sphi 0, %s35
      %p32 = scmp.ge.s32.totalorder %s31, 4
      %s41 = sphi 0, %s43
      %s44 = sphi 0, %s41
      %s45 = sphi 0, %s44
      %s61 = sphi 0, %s45
      %s65 = sphi 0, %s65
      %s67 = sphi 0, %s65
      %s68 = sphi 0, %s67
      %s82 = sphi 0, %s68
      %s86 = sphi 0, %s86
      %s88 = sphi 0, %s86
      %s89 = sphi 0, %s88
      %s103 = sphi 0, %s89
      %s107 = sphi 0, %s107
      %s109 = sphi 0, %s107
      %s110 = sphi 0, %s109
      %s124 = sphi 0, %s110
      %s128 = sphi 0, %s128
      %s130 = sphi 0, %s128
      %s131 = sphi 0, %s130
      %s145 = sphi 0, %s131
      %s149 = sphi 0, %s149
      %s151 = sphi 0, %s149
      %s152 = sphi 0, %s151
      %s166 = sphi 0, %s152
      %s170 = sphi 0, %s170
      %s172 = sphi 0, %s170
      %s173 = sphi 0, %s172
      %s187 = sphi 0, %s173
      %s191 = sphi 0, %s191
      %s193 = sphi 0, %s191
      %s194 = sphi 0, %s193
      %s208 = sphi 0, %s194
      %s212 = sphi 0, %s212
      %s214 = sphi 0, %s212
      %s215 = sphi 0, %s214
      %s229 = sphi 0, %s215
      %s233 = sphi 0, %s233
      %s235 = sphi 0, %s233
      %s236 = sphi 0, %s235
      %s250 = sphi 0, %s236
      %s254 = sphi 0, %s254
      %s256 = sphi 0, %s254
      %s257 = sphi 0, %s256
      %s271 = sphi 0, %s257
      %s277 = sphi 0, %s279
      %s280 = sphi 0, %s277
      %s281 = sphi 0, %s280
      %s297 = sphi 0, %s281
      %s303 = sphi 0, %s305
      %s306 = sphi 0, %s303
      %s307 = sphi 0, %s306
      %s323 = sphi 0, %s307
      %s329 = sphi 0, %s331
      %s332 = sphi 0, %s329
      %s333 = sphi 0, %s332
      %s349 = sphi 0, %s333
      %s355 = sphi 0, %s357
      %s358 = sphi 0, %s355
      %s359 = sphi 0, %s358
      %s375 = sphi 0, %s359
      %s381 = sphi 0, %s383
      %s384 = sphi 0, %s381
      %s385 = sphi 0, %s384
      %s401 = sphi 0, %s385
      %s407 = sphi 0, %s409
      %s410 = sphi 0, %s407
      %s411 = sphi 0, %s410
      %s427 = sphi 0, %s411
      %s433 = sphi 0, %s435
      %s436 = sphi 0, %s433
      %s437 = sphi 0, %s436
      %s453 = sphi 0, %s437
      %s459 = sphi 0, %s461
      %s462 = sphi 0, %s459
      %s463 = sphi 0, %s462
      %s479 = sphi 0, %s463
    $region4: #{forward.1} parent=1 // loop_header_branch
      %34 = sbr.rel (%p32) target = $region8
    $region5: #{forward.1} parent=1 // loop_body
      %s36 = ssub.s32 %s31, 1
      %s37 = ssub.s32 %s31, 2
      %s38 = sadd.s32 %s31, 1
      %s39 = ssub.s32 %s31, %s38
      %p40 = scmp.eq.s32.totalorder %s39, 0
      %s42 = sadd.s32 %s41, 1
      %s43 = scalar_select %p40, %s41, %s42
      %p46 = pneg %p40
      %p47 = scmp.eq.s32.totalorder %s31, 1
      %p48 = por %p46, %p47
      %p49 = scmp.ne.s32.totalorder %s41, %s44
      %p50 = scmp.eq.s32.totalorder %s31, 0
      %p51 = por %p49, %p50
      %p52 = scmp.ne.s32.totalorder %s41, %s44
      %p53 = scmp.eq.s32.totalorder %s36, 1
      %p54 = por %p52, %p53
      %p55 = scmp.ne.s32.totalorder %s44, %s45
      %p56 = scmp.eq.s32.totalorder %s36, 0
      %p57 = por %p55, %p56
      %p58 = scmp.ne.s32.totalorder %s44, %s45
      %p59 = scmp.eq.s32.totalorder %s37, 1
      %p60 = por %p58, %p59
      %p62 = scmp.ne.s32.totalorder %s45, %s61
      %p63 = scmp.eq.s32.totalorder %s37, 0
      %p64 = por %p62, %p63
      %s66 = sadd.s32 %s65, 1
      %p69 = scmp.eq.s32.totalorder %s31, 1
      %p70 = scmp.ne.s32.totalorder %s65, %s67
      %p71 = scmp.eq.s32.totalorder %s31, 0
      %p72 = por %p70, %p71
      %p73 = scmp.ne.s32.totalorder %s65, %s67
      %p74 = scmp.eq.s32.totalorder %s36, 1
      %p75 = por %p73, %p74
      %p76 = scmp.ne.s32.totalorder %s67, %s68
      %p77 = scmp.eq.s32.totalorder %s36, 0
      %p78 = por %p76, %p77
      %p79 = scmp.ne.s32.totalorder %s67, %s68
      %p80 = scmp.eq.s32.totalorder %s37, 1
      %p81 = por %p79, %p80
      %p83 = scmp.ne.s32.totalorder %s68, %s82
      %p84 = scmp.eq.s32.totalorder %s37, 0
      %p85 = por %p83, %p84
      %s87 = sadd.s32 %s86, 1
      %p90 = scmp.eq.s32.totalorder %s31, 1
      %p91 = scmp.ne.s32.totalorder %s86, %s88
      %p92 = scmp.eq.s32.totalorder %s31, 0
      %p93 = por %p91, %p92
      %p94 = scmp.ne.s32.totalorder %s86, %s88
      %p95 = scmp.eq.s32.totalorder %s36, 1
      %p96 = por %p94, %p95
      %p97 = scmp.ne.s32.totalorder %s88, %s89
      %p98 = scmp.eq.s32.totalorder %s36, 0
      %p99 = por %p97, %p98
      %p100 = scmp.ne.s32.totalorder %s88, %s89
      %p101 = scmp.eq.s32.totalorder %s37, 1
      %p102 = por %p100, %p101
      %p104 = scmp.ne.s32.totalorder %s89, %s103
      %p105 = scmp.eq.s32.totalorder %s37, 0
      %p106 = por %p104, %p105
      %s108 = sadd.s32 %s107, 1
      %p111 = scmp.eq.s32.totalorder %s31, 1
      %p112 = scmp.ne.s32.totalorder %s107, %s109
      %p113 = scmp.eq.s32.totalorder %s31, 0
      %p114 = por %p112, %p113
      %p115 = scmp.ne.s32.totalorder %s107, %s109
      %p116 = scmp.eq.s32.totalorder %s36, 1
      %p117 = por %p115, %p116
      %p118 = scmp.ne.s32.totalorder %s109, %s110
      %p119 = scmp.eq.s32.totalorder %s36, 0
      %p120 = por %p118, %p119
      %p121 = scmp.ne.s32.totalorder %s109, %s110
      %p122 = scmp.eq.s32.totalorder %s37, 1
      %p123 = por %p121, %p122
      %p125 = scmp.ne.s32.totalorder %s110, %s124
      %p126 = scmp.eq.s32.totalorder %s37, 0
      %p127 = por %p125, %p126
      %s129 = sadd.s32 %s128, 1
      %p132 = scmp.eq.s32.totalorder %s31, 1
      %p133 = scmp.ne.s32.totalorder %s128, %s130
      %p134 = scmp.eq.s32.totalorder %s31, 0
      %p135 = por %p133, %p134
      %p136 = scmp.ne.s32.totalorder %s128, %s130
      %p137 = scmp.eq.s32.totalorder %s36, 1
      %p138 = por %p136, %p137
      %p139 = scmp.ne.s32.totalorder %s130, %s131
      %p140 = scmp.eq.s32.totalorder %s36, 0
      %p141 = por %p139, %p140
      %p142 = scmp.ne.s32.totalorder %s130, %s131
      %p143 = scmp.eq.s32.totalorder %s37, 1
      %p144 = por %p142, %p143
      %p146 = scmp.ne.s32.totalorder %s131, %s145
      %p147 = scmp.eq.s32.totalorder %s37, 0
      %p148 = por %p146, %p147
      %s150 = sadd.s32 %s149, 1
      %p153 = scmp.eq.s32.totalorder %s31, 1
      %p154 = scmp.ne.s32.totalorder %s149, %s151
      %p155 = scmp.eq.s32.totalorder %s31, 0
      %p156 = por %p154, %p155
      %p157 = scmp.ne.s32.totalorder %s149, %s151
      %p158 = scmp.eq.s32.totalorder %s36, 1
      %p159 = por %p157, %p158
      %p160 = scmp.ne.s32.totalorder %s151, %s152
      %p161 = scmp.eq.s32.totalorder %s36, 0
      %p162 = por %p160, %p161
      %p163 = scmp.ne.s32.totalorder %s151, %s152
      %p164 = scmp.eq.s32.totalorder %s37, 1
      %p165 = por %p163, %p164
      %p167 = scmp.ne.s32.totalorder %s152, %s166
      %p168 = scmp.eq.s32.totalorder %s37, 0
      %p169 = por %p167, %p168
      %s171 = sadd.s32 %s170, 1
      %p174 = scmp.eq.s32.totalorder %s31, 1
      %p175 = scmp.ne.s32.totalorder %s170, %s172
      %p176 = scmp.eq.s32.totalorder %s31, 0
      %p177 = por %p175, %p176
      %p178 = scmp.ne.s32.totalorder %s170, %s172
      %p179 = scmp.eq.s32.totalorder %s36, 1
      %p180 = por %p178, %p179
      %p181 = scmp.ne.s32.totalorder %s172, %s173
      %p182 = scmp.eq.s32.totalorder %s36, 0
      %p183 = por %p181, %p182
      %p184 = scmp.ne.s32.totalorder %s172, %s173
      %p185 = scmp.eq.s32.totalorder %s37, 1
      %p186 = por %p184, %p185
      %p188 = scmp.ne.s32.totalorder %s173, %s187
      %p189 = scmp.eq.s32.totalorder %s37, 0
      %p190 = por %p188, %p189
      %s192 = sadd.s32 %s191, 1
      %p195 = scmp.eq.s32.totalorder %s31, 1
      %p196 = scmp.ne.s32.totalorder %s191, %s193
      %p197 = scmp.eq.s32.totalorder %s31, 0
      %p198 = por %p196, %p197
      %p199 = scmp.ne.s32.totalorder %s191, %s193
      %p200 = scmp.eq.s32.totalorder %s36, 1
      %p201 = por %p199, %p200
      %p202 = scmp.ne.s32.totalorder %s193, %s194
      %p203 = scmp.eq.s32.totalorder %s36, 0
      %p204 = por %p202, %p203
      %p205 = scmp.ne.s32.totalorder %s193, %s194
      %p206 = scmp.eq.s32.totalorder %s37, 1
      %p207 = por %p205, %p206
      %p209 = scmp.ne.s32.totalorder %s194, %s208
      %p210 = scmp.eq.s32.totalorder %s37, 0
      %p211 = por %p209, %p210
      %s213 = sadd.s32 %s212, 1
      %p216 = scmp.eq.s32.totalorder %s31, 1
      %p217 = scmp.ne.s32.totalorder %s212, %s214
      %p218 = scmp.eq.s32.totalorder %s31, 0
      %p219 = por %p217, %p218
      %p220 = scmp.ne.s32.totalorder %s212, %s214
      %p221 = scmp.eq.s32.totalorder %s36, 1
      %p222 = por %p220, %p221
      %p223 = scmp.ne.s32.totalorder %s214, %s215
      %p224 = scmp.eq.s32.totalorder %s36, 0
      %p225 = por %p223, %p224
      %p226 = scmp.ne.s32.totalorder %s214, %s215
      %p227 = scmp.eq.s32.totalorder %s37, 1
      %p228 = por %p226, %p227
      %p230 = scmp.ne.s32.totalorder %s215, %s229
      %p231 = scmp.eq.s32.totalorder %s37, 0
      %p232 = por %p230, %p231
      %s234 = sadd.s32 %s233, 1
      %p237 = scmp.eq.s32.totalorder %s31, 1
      %p238 = scmp.ne.s32.totalorder %s233, %s235
      %p239 = scmp.eq.s32.totalorder %s31, 0
      %p240 = por %p238, %p239
      %p241 = scmp.ne.s32.totalorder %s233, %s235
      %p242 = scmp.eq.s32.totalorder %s36, 1
      %p243 = por %p241, %p242
      %p244 = scmp.ne.s32.totalorder %s235, %s236
      %p245 = scmp.eq.s32.totalorder %s36, 0
      %p246 = por %p244, %p245
      %p247 = scmp.ne.s32.totalorder %s235, %s236
      %p248 = scmp.eq.s32.totalorder %s37, 1
      %p249 = por %p247, %p248
      %p251 = scmp.ne.s32.totalorder %s236, %s250
      %p252 = scmp.eq.s32.totalorder %s37, 0
      %p253 = por %p251, %p252
      %s255 = sadd.s32 %s254, 1
      %p258 = scmp.eq.s32.totalorder %s31, 1
      %p259 = scmp.ne.s32.totalorder %s254, %s256
      %p260 = scmp.eq.s32.totalorder %s31, 0
      %p261 = por %p259, %p260
      %p262 = scmp.ne.s32.totalorder %s254, %s256
      %p263 = scmp.eq.s32.totalorder %s36, 1
      %p264 = por %p262, %p263
      %p265 = scmp.ne.s32.totalorder %s256, %s257
      %p266 = scmp.eq.s32.totalorder %s36, 0
      %p267 = por %p265, %p266
      %p268 = scmp.ne.s32.totalorder %s256, %s257
      %p269 = scmp.eq.s32.totalorder %s37, 1
      %p270 = por %p268, %p269
      %p272 = scmp.ne.s32.totalorder %s257, %s271
      %p273 = scmp.eq.s32.totalorder %s37, 0
      %p274 = por %p272, %p273
      %s275 = ssub.s32 %s31, %s38
      %p276 = scmp.eq.s32.totalorder %s275, 0
      %s278 = sadd.s32 %s277, 1
      %s279 = scalar_select %p276, %s277, %s278
      %p282 = pneg %p276
      %p283 = scmp.eq.s32.totalorder %s31, 1
      %p284 = por %p282, %p283
      %p285 = scmp.ne.s32.totalorder %s277, %s280
      %p286 = scmp.eq.s32.totalorder %s31, 0
      %p287 = por %p285, %p286
      %p288 = scmp.ne.s32.totalorder %s277, %s280
      %p289 = scmp.eq.s32.totalorder %s36, 1
      %p290 = por %p288, %p289
      %p291 = scmp.ne.s32.totalorder %s280, %s281
      %p292 = scmp.eq.s32.totalorder %s36, 0
      %p293 = por %p291, %p292
      %p294 = scmp.ne.s32.totalorder %s280, %s281
      %p295 = scmp.eq.s32.totalorder %s37, 1
      %p296 = por %p294, %p295
      %p298 = scmp.ne.s32.totalorder %s281, %s297
      %p299 = scmp.eq.s32.totalorder %s37, 0
      %p300 = por %p298, %p299
      %s301 = ssub.s32 %s31, %s38
      %p302 = scmp.eq.s32.totalorder %s301, 0
      %s304 = sadd.s32 %s303, 1
      %s305 = scalar_select %p302, %s303, %s304
      %p308 = pneg %p302
      %p309 = scmp.eq.s32.totalorder %s31, 1
      %p310 = por %p308, %p309
      %p311 = scmp.ne.s32.totalorder %s303, %s306
      %p312 = scmp.eq.s32.totalorder %s31, 0
      %p313 = por %p311, %p312
      %p314 = scmp.ne.s32.totalorder %s303, %s306
      %p315 = scmp.eq.s32.totalorder %s36, 1
      %p316 = por %p314, %p315
      %p317 = scmp.ne.s32.totalorder %s306, %s307
      %p318 = scmp.eq.s32.totalorder %s36, 0
      %p319 = por %p317, %p318
      %p320 = scmp.ne.s32.totalorder %s306, %s307
      %p321 = scmp.eq.s32.totalorder %s37, 1
      %p322 = por %p320, %p321
      %p324 = scmp.ne.s32.totalorder %s307, %s323
      %p325 = scmp.eq.s32.totalorder %s37, 0
      %p326 = por %p324, %p325
      %s327 = ssub.s32 %s31, %s38
      %p328 = scmp.eq.s32.totalorder %s327, 0
      %s330 = sadd.s32 %s329, 1
      %s331 = scalar_select %p328, %s329, %s330
      %p334 = pneg %p328
      %p335 = scmp.eq.s32.totalorder %s31, 1
      %p336 = por %p334, %p335
      %p337 = scmp.ne.s32.totalorder %s329, %s332
      %p338 = scmp.eq.s32.totalorder %s31, 0
      %p339 = por %p337, %p338
      %p340 = scmp.ne.s32.totalorder %s329, %s332
      %p341 = scmp.eq.s32.totalorder %s36, 1
      %p342 = por %p340, %p341
      %p343 = scmp.ne.s32.totalorder %s332, %s333
      %p344 = scmp.eq.s32.totalorder %s36, 0
      %p345 = por %p343, %p344
      %p346 = scmp.ne.s32.totalorder %s332, %s333
      %p347 = scmp.eq.s32.totalorder %s37, 1
      %p348 = por %p346, %p347
      %p350 = scmp.ne.s32.totalorder %s333, %s349
      %p351 = scmp.eq.s32.totalorder %s37, 0
      %p352 = por %p350, %p351
      %s353 = ssub.s32 %s31, %s38
      %p354 = scmp.eq.s32.totalorder %s353, 0
      %s356 = sadd.s32 %s355, 1
      %s357 = scalar_select %p354, %s355, %s356
      %p360 = pneg %p354
      %p361 = scmp.eq.s32.totalorder %s31, 1
      %p362 = por %p360, %p361
      %p363 = scmp.ne.s32.totalorder %s355, %s358
      %p364 = scmp.eq.s32.totalorder %s31, 0
      %p365 = por %p363, %p364
      %p366 = scmp.ne.s32.totalorder %s355, %s358
      %p367 = scmp.eq.s32.totalorder %s36, 1
      %p368 = por %p366, %p367
      %p369 = scmp.ne.s32.totalorder %s358, %s359
      %p370 = scmp.eq.s32.totalorder %s36, 0
      %p371 = por %p369, %p370
      %p372 = scmp.ne.s32.totalorder %s358, %s359
      %p373 = scmp.eq.s32.totalorder %s37, 1
      %p374 = por %p372, %p373
      %p376 = scmp.ne.s32.totalorder %s359, %s375
      %p377 = scmp.eq.s32.totalorder %s37, 0
      %p378 = por %p376, %p377
      %s379 = ssub.s32 %s31, %s38
      %p380 = scmp.eq.s32.totalorder %s379, 0
      %s382 = sadd.s32 %s381, 1
      %s383 = scalar_select %p380, %s381, %s382
      %p386 = pneg %p380
      %p387 = scmp.eq.s32.totalorder %s31, 1
      %p388 = por %p386, %p387
      %p389 = scmp.ne.s32.totalorder %s381, %s384
      %p390 = scmp.eq.s32.totalorder %s31, 0
      %p391 = por %p389, %p390
      %p392 = scmp.ne.s32.totalorder %s381, %s384
      %p393 = scmp.eq.s32.totalorder %s36, 1
      %p394 = por %p392, %p393
      %p395 = scmp.ne.s32.totalorder %s384, %s385
      %p396 = scmp.eq.s32.totalorder %s36, 0
      %p397 = por %p395, %p396
      %p398 = scmp.ne.s32.totalorder %s384, %s385
      %p399 = scmp.eq.s32.totalorder %s37, 1
      %p400 = por %p398, %p399
      %p402 = scmp.ne.s32.totalorder %s385, %s401
      %p403 = scmp.eq.s32.totalorder %s37, 0
      %p404 = por %p402, %p403
      %s405 = ssub.s32 %s31, %s38
      %p406 = scmp.eq.s32.totalorder %s405, 0
      %s408 = sadd.s32 %s407, 1
      %s409 = scalar_select %p406, %s407, %s408
      %p412 = pneg %p406
      %p413 = scmp.eq.s32.totalorder %s31, 1
      %p414 = por %p412, %p413
      %p415 = scmp.ne.s32.totalorder %s407, %s410
      %p416 = scmp.eq.s32.totalorder %s31, 0
      %p417 = por %p415, %p416
      %p418 = scmp.ne.s32.totalorder %s407, %s410
      %p419 = scmp.eq.s32.totalorder %s36, 1
      %p420 = por %p418, %p419
      %p421 = scmp.ne.s32.totalorder %s410, %s411
      %p422 = scmp.eq.s32.totalorder %s36, 0
      %p423 = por %p421, %p422
      %p424 = scmp.ne.s32.totalorder %s410, %s411
      %p425 = scmp.eq.s32.totalorder %s37, 1
      %p426 = por %p424, %p425
      %p428 = scmp.ne.s32.totalorder %s411, %s427
      %p429 = scmp.eq.s32.totalorder %s37, 0
      %p430 = por %p428, %p429
      %s431 = ssub.s32 %s31, %s38
      %p432 = scmp.eq.s32.totalorder %s431, 0
      %s434 = sadd.s32 %s433, 1
      %s435 = scalar_select %p432, %s433, %s434
      %p438 = pneg %p432
      %p439 = scmp.eq.s32.totalorder %s31, 1
      %p440 = por %p438, %p439
      %p441 = scmp.ne.s32.totalorder %s433, %s436
      %p442 = scmp.eq.s32.totalorder %s31, 0
      %p443 = por %p441, %p442
      %p444 = scmp.ne.s32.totalorder %s433, %s436
      %p445 = scmp.eq.s32.totalorder %s36, 1
      %p446 = por %p444, %p445
      %p447 = scmp.ne.s32.totalorder %s436, %s437
      %p448 = scmp.eq.s32.totalorder %s36, 0
      %p449 = por %p447, %p448
      %p450 = scmp.ne.s32.totalorder %s436, %s437
      %p451 = scmp.eq.s32.totalorder %s37, 1
      %p452 = por %p450, %p451
      %p454 = scmp.ne.s32.totalorder %s437, %s453
      %p455 = scmp.eq.s32.totalorder %s37, 0
      %p456 = por %p454, %p455
      %s457 = ssub.s32 %s31, %s38
      %p458 = scmp.eq.s32.totalorder %s457, 0
      %s460 = sadd.s32 %s459, 1
      %s461 = scalar_select %p458, %s459, %s460
      %p464 = pneg %p458
      %p465 = scmp.eq.s32.totalorder %s31, 1
      %p466 = por %p464, %p465
      %p467 = scmp.ne.s32.totalorder %s459, %s462
      %p468 = scmp.eq.s32.totalorder %s31, 0
      %p469 = por %p467, %p468
      %p470 = scmp.ne.s32.totalorder %s459, %s462
      %p471 = scmp.eq.s32.totalorder %s36, 1
      %p472 = por %p470, %p471
      %p473 = scmp.ne.s32.totalorder %s462, %s463
      %p474 = scmp.eq.s32.totalorder %s36, 0
      %p475 = por %p473, %p474
      %p476 = scmp.ne.s32.totalorder %s462, %s463
      %p477 = scmp.eq.s32.totalorder %s37, 1
      %p478 = por %p476, %p477
      %p480 = scmp.ne.s32.totalorder %s463, %s479
      %p481 = scmp.eq.s32.totalorder %s37, 0
      %p482 = por %p480, %p481
      %p483 = scmp.le.s32.totalorder 1, %s31
      %p484 = scmp.lt.s32.totalorder %s31, 3
      %p485 = pnand %p483, %p484
      %p486 = pneg %p485
      // Predicated region
      $region9: #{forward.1} parent=5 // pred_check
        _
      $region10: #{forward.1} parent=5 // pred_check_branch
        %488 = sbr.rel (%p485) target = $region12
      $region11: #{forward.1} parent=5 // pred_region
        %s489 = ssub.s32 %s31, 1
        // Predicated region
        $region13: #{forward.1} parent=11 // pred_check
          %p490 = pneg %p78
        $region14: #{forward.1} parent=11 // pred_check_branch
          %492 = sbr.rel (%p490) target = $region16
        $region15: #{forward.1} parent=11 // pred_region
          _
        $region16: #{forward.1} parent=11 // pred_fallthru
          _
        // Predicated region
        $region17: #{forward.1} parent=11 // pred_check
          %p493 = pneg %p99
        $region18: #{forward.1} parent=11 // pred_check_branch
          %495 = sbr.rel (%p493) target = $region20
        $region19: #{forward.1} parent=11 // pred_region
          _
        $region20: #{forward.1} parent=11 // pred_fallthru
          _
        // Predicated region
        $region21: #{forward.1} parent=11 // pred_check
          %p496 = pneg %p120
        $region22: #{forward.1} parent=11 // pred_check_branch
          %498 = sbr.rel (%p496) target = $region24
        $region23: #{forward.1} parent=11 // pred_region
          _
        $region24: #{forward.1} parent=11 // pred_fallthru
          _
        // Predicated region
        $region25: #{forward.1} parent=11 // pred_check
          %p499 = pneg %p141
        $region26: #{forward.1} parent=11 // pred_check_branch
          %501 = sbr.rel (%p499) target = $region28
        $region27: #{forward.1} parent=11 // pred_region
          _
        $region28: #{forward.1} parent=11 // pred_fallthru
          _
        // Predicated region
        $region29: #{forward.1} parent=11 // pred_check
          %p502 = pneg %p162
        $region30: #{forward.1} parent=11 // pred_check_branch
          %504 = sbr.rel (%p502) target = $region32
        $region31: #{forward.1} parent=11 // pred_region
          _
        $region32: #{forward.1} parent=11 // pred_fallthru
          _
        // Predicated region
        $region33: #{forward.1} parent=11 // pred_check
          %p505 = pneg %p183
        $region34: #{forward.1} parent=11 // pred_check_branch
          %507 = sbr.rel (%p505) target = $region36
        $region35: #{forward.1} parent=11 // pred_region
          _
        $region36: #{forward.1} parent=11 // pred_fallthru
          _
        // Predicated region
        $region37: #{forward.1} parent=11 // pred_check
          %p508 = pneg %p204
        $region38: #{forward.1} parent=11 // pred_check_branch
          %510 = sbr.rel (%p508) target = $region40
        $region39: #{forward.1} parent=11 // pred_region
          _
        $region40: #{forward.1} parent=11 // pred_fallthru
          _
        // Predicated region
        $region41: #{forward.1} parent=11 // pred_check
          %p511 = pneg %p225
        $region42: #{forward.1} parent=11 // pred_check_branch
          %513 = sbr.rel (%p511) target = $region44
        $region43: #{forward.1} parent=11 // pred_region
          _
        $region44: #{forward.1} parent=11 // pred_fallthru
          _
        // Predicated region
        $region45: #{forward.1} parent=11 // pred_check
          %p514 = pneg %p246
        $region46: #{forward.1} parent=11 // pred_check_branch
          %516 = sbr.rel (%p514) target = $region48
        $region47: #{forward.1} parent=11 // pred_region
          _
        $region48: #{forward.1} parent=11 // pred_fallthru
          _
        // Predicated region
        $region49: #{forward.1} parent=11 // pred_check
          %p517 = pneg %p267
        $region50: #{forward.1} parent=11 // pred_check_branch
          %519 = sbr.rel (%p517) target = $region52
        $region51: #{forward.1} parent=11 // pred_region
          _
        $region52: #{forward.1} parent=11 // pred_fallthru
          _
      $region12: #{forward.1} parent=5 // pred_fallthru
        _
      %p520 = scmp.lt.s32.totalorder %s31, 2
      // Predicated region
      $region53: #{forward.1} parent=5 // pred_check
        %p521 = pneg %p520
      $region54: #{forward.1} parent=5 // pred_check_branch
        %523 = sbr.rel (%p521) target = $region56
      $region55: #{forward.1} parent=5 // pred_region
        // Predicated region
        $region57: #{forward.1} parent=55 // pred_check
          %p524 = pneg %p51
        $region58: #{forward.1} parent=55 // pred_check_branch
          %526 = sbr.rel (%p524) target = $region60
        $region59: #{forward.1} parent=55 // pred_region
          %p527 = scmp.lt.s32.totalorder %s31, 1
          %s528 = scalar_select %p527, %s31, 1
          %s529 = smul.addr %s528, 54
          %s530 = smul.addr %s529, 8
          %s531 = scalar_lea.vmem %s0, %s530
        $region60: #{forward.1} parent=55 // pred_fallthru
          _
      $region56: #{forward.1} parent=5 // pred_fallthru
        _
      %p532 = scmp.le.s32.totalorder 1, %s31
      %p533 = scmp.lt.s32.totalorder %s31, 3
      %p534 = pnand %p532, %p533
      %p535 = pneg %p534
      // Predicated region
      $region61: #{forward.1} parent=5 // pred_check
        _
      $region62: #{forward.1} parent=5 // pred_check_branch
        %537 = sbr.rel (%p534) target = $region64
      $region63: #{forward.1} parent=5 // pred_region
        %s538 = ssub.s32 %s31, 1
        %p539 = scmp.lt.s32.totalorder %s36, 1
        %s540 = scalar_select %p539, %s36, 1
        %s541 = smul.addr %s540, 54
        %s542 = smul.addr %s541, 8
        %s543 = scalar_lea.vmem %s0, %s542
        %p544 = pneg %p57
        %p545 = pneg %p54
        %p546 = pneg %p78
        %p547 = pneg %p75
        %p548 = pneg %p99
        %p549 = pneg %p96
        %p550 = pneg %p120
        %p551 = pneg %p117
        %p552 = pneg %p141
        %p553 = pneg %p138
        %p554 = pneg %p162
        %p555 = pneg %p159
        %p556 = pneg %p183
        %p557 = pneg %p180
        %p558 = pneg %p204
        %p559 = pneg %p201
        %p560 = pneg %p225
        %p561 = pneg %p222
        %p562 = pneg %p246
        %p563 = pneg %p243
        %p564 = pneg %p267
        %p565 = pneg %p264
        %p566 = pneg %p293
        %p567 = pneg %p290
        %p568 = scmp.lt.s32.totalorder %s36, 1
        %s569 = scalar_select %p568, %s36, 1
        %s570 = smul.addr %s569, 32
        %s571 = smul.addr %s570, 8
        %s572 = scalar_lea.vmem %s11, %s571
        %p573 = pneg %p319
        %p574 = pneg %p316
        %p575 = scmp.lt.s32.totalorder %s36, 1
        %s576 = scalar_select %p575, %s36, 1
        %s577 = smul.addr %s576, 32
        %s578 = smul.addr %s577, 8
        %s579 = scalar_lea.vmem %s12, %s578
        %p580 = pneg %p345
        %p581 = pneg %p342
        %p582 = scmp.lt.s32.totalorder %s36, 1
        %s583 = scalar_select %p582, %s36, 1
        %s584 = smul.addr %s583, 32
        %s585 = smul.addr %s584, 8
        %s586 = scalar_lea.vmem %s13, %s585
        %p587 = pneg %p371
        %p588 = pneg %p368
        %p589 = scmp.lt.s32.totalorder %s36, 1
        %s590 = scalar_select %p589, %s36, 1
        %s591 = smul.addr %s590, 32
        %s592 = smul.addr %s591, 8
        %s593 = scalar_lea.vmem %s14, %s592
        %p594 = pneg %p397
        %p595 = pneg %p394
        %p596 = scmp.lt.s32.totalorder %s36, 1
        %s597 = scalar_select %p596, %s36, 1
        %s598 = smul.addr %s597, 32
        %s599 = smul.addr %s598, 8
        %s600 = scalar_lea.vmem %s15, %s599
        %p601 = pneg %p423
        %p602 = pneg %p420
        %s603 = sand.u32 %s410, 1
        %s604 = scalar_lea.sflag [#allocation4], %s603
        %s605 = sand.u32 %s410, 1
        %s606 = smul.addr %s605, 256
        %s607 = scalar_lea.vmem [#allocation3], %s606
        %p608 = pneg %p449
        %p609 = pneg %p446
        %s610 = sand.u32 %s36, 1
        %s611 = scalar_lea.sflag [#allocation6], %s610
        %s612 = sand.u32 %s436, 1
        %s613 = smul.addr %s612, 256
        %s614 = scalar_lea.vmem [#allocation5], %s613
        %p615 = pneg %p475
        %p616 = pneg %p472
        %s617 = sand.u32 %s36, 1
        %s618 = scalar_lea.sflag [#allocation6], %s617
        %s619 = sand.u32 %s462, 1
        %s620 = smul.addr %s619, 256
        %s621 = scalar_lea.vmem [#allocation7], %s620
        %p622 = scmp.lt.s32.totalorder %s36, 1
        %s623 = scalar_select %p622, %s36, 1
        %s624 = smul.addr %s623, 54
        %s625 = smul.addr %s624, 8
        %s626 = scalar_lea.vmem %s0, %s625
        %p627 = scmp.lt.s32.totalorder %s36, 1
        %s628 = scalar_select %p627, %s36, 1
        %s629 = smul.addr %s628, 32
        %s630 = smul.addr %s629, 8
        %s631 = scalar_lea.vmem %s11, %s630
        %p632 = scmp.lt.s32.totalorder %s36, 1
        %s633 = scalar_select %p632, %s36, 1
        %s634 = smul.addr %s633, 32
        %s635 = smul.addr %s634, 8
        %s636 = scalar_lea.vmem %s12, %s635
        %p637 = scmp.lt.s32.totalorder %s36, 1
        %s638 = scalar_select %p637, %s36, 1
        %s639 = smul.addr %s638, 32
        %s640 = smul.addr %s639, 8
        %s641 = scalar_lea.vmem %s13, %s640
        %p642 = scmp.lt.s32.totalorder %s36, 1
        %s643 = scalar_select %p642, %s36, 1
        %s644 = smul.addr %s643, 32
        %s645 = smul.addr %s644, 8
        %s646 = scalar_lea.vmem %s14, %s645
        %p647 = scmp.lt.s32.totalorder %s36, 1
        %s648 = scalar_select %p647, %s36, 1
        %s649 = smul.addr %s648, 32
        %s650 = smul.addr %s649, 8
        %s651 = scalar_lea.vmem %s15, %s650
        %v652 = vld [vmem:[%s626] sm:$0xff]
        %v653 = vld [vmem:[%s626 + $0x8] sm:$0xff]
        %v654 = vld [vmem:[%s626 + $0x18] sm:$0xff]
        %v655 = vld [vmem:[%s626 + $0x20] sm:$0xff]
        %v656 = vld [vmem:[%s626 + $0x30] sm:$0xff]
        %v657 = vld [vmem:[%s626 + $0x38] sm:$0xff]
        %v658 = vld [vmem:[%s626 + $0x48] sm:$0xff]
        %v659 = vld [vmem:[%s626 + $0x50] sm:$0xff]
        %v660 = vld [vmem:[%s626 + $0x60] sm:$0xff]
        %v661 = vld [vmem:[%s626 + $0x68] sm:$0xff]
        %v662 = vld [vmem:[%s626 + $0x78] sm:$0xff]
        %v663 = vld [vmem:[%s626 + $0x80] sm:$0xff]
        %v664 = vld [vmem:[%s626 + $0x90] sm:$0xff]
        %v665 = vld [vmem:[%s626 + $0x98] sm:$0xff]
        %v666 = vld [vmem:[%s626 + $0xa8] sm:$0xff]
        %v667 = vld [vmem:[%s626 + $0xb0] sm:$0xff]
        %v668 = vld [vmem:[%s626 + $0xc0] sm:$0xff]
        %v669 = vld [vmem:[%s626 + $0xc8] sm:$0xff]
        %v670 = vld [vmem:[%s626 + $0xd8] sm:$0xff]
        %v671 = vld [vmem:[%s626 + $0xe0] sm:$0xff]
        %v672 = vld [vmem:[%s626 + $0xf0] sm:$0xff]
        %v673 = vld [vmem:[%s626 + $0xf8] sm:$0xff]
        %v674 = vld [vmem:[%s626 + $0x108] sm:$0xff]
        %v675 = vld [vmem:[%s626 + $0x110] sm:$0xff]
        %v676 = vld [vmem:[%s626 + $0x120] sm:$0xff]
        %v677 = vld [vmem:[%s626 + $0x128] sm:$0xff]
        %v678 = vld [vmem:[%s626 + $0x138] sm:$0xff]
        %v679 = vld [vmem:[%s626 + $0x140] sm:$0xff]
        %v680 = vld [vmem:[%s626 + $0x150] sm:$0xff]
        %v681 = vld [vmem:[%s626 + $0x158] sm:$0xff]
        %v682 = vld [vmem:[%s626 + $0x168] sm:$0xff]
        %v683 = vld [vmem:[%s626 + $0x170] sm:$0xff]
        %v684 = vld [vmem:[%s626 + $0x1] sm:$0xff]
        %v685 = vld [vmem:[%s626 + $0x9] sm:$0xff]
        %v686 = vld [vmem:[%s626 + $0x19] sm:$0xff]
        %v687 = vld [vmem:[%s626 + $0x21] sm:$0xff]
        %v688 = vld [vmem:[%s626 + $0x31] sm:$0xff]
        %v689 = vld [vmem:[%s626 + $0x39] sm:$0xff]
        %v690 = vld [vmem:[%s626 + $0x49] sm:$0xff]
        %v691 = vld [vmem:[%s626 + $0x51] sm:$0xff]
        %v692 = vld [vmem:[%s626 + $0x61] sm:$0xff]
        %v693 = vld [vmem:[%s626 + $0x69] sm:$0xff]
        %v694 = vld [vmem:[%s626 + $0x79] sm:$0xff]
        %v695 = vld [vmem:[%s626 + $0x81] sm:$0xff]
        %v696 = vld [vmem:[%s626 + $0x91] sm:$0xff]
        %v697 = vld [vmem:[%s626 + $0x99] sm:$0xff]
        %v698 = vld [vmem:[%s626 + $0xa9] sm:$0xff]
        %v699 = vld [vmem:[%s626 + $0xb1] sm:$0xff]
        %v700 = vld [vmem:[%s626 + $0xc1] sm:$0xff]
        %v701 = vld [vmem:[%s626 + $0xc9] sm:$0xff]
        %v702 = vld [vmem:[%s626 + $0xd9] sm:$0xff]
        %v703 = vld [vmem:[%s626 + $0xe1] sm:$0xff]
        %v704 = vld [vmem:[%s626 + $0xf1] sm:$0xff]
        %v705 = vld [vmem:[%s626 + $0xf9] sm:$0xff]
        %v706 = vld [vmem:[%s626 + $0x109] sm:$0xff]
        %v707 = vld [vmem:[%s626 + $0x111] sm:$0xff]
        %v708 = vld [vmem:[%s626 + $0x121] sm:$0xff]
        %v709 = vld [vmem:[%s626 + $0x129] sm:$0xff]
        %v710 = vld [vmem:[%s626 + $0x139] sm:$0xff]
        %v711 = vld [vmem:[%s626 + $0x141] sm:$0xff]
        %v712 = vld [vmem:[%s626 + $0x151] sm:$0xff]
        %v713 = vld [vmem:[%s626 + $0x159] sm:$0xff]
        %v714 = vld [vmem:[%s626 + $0x169] sm:$0xff]
        %v715 = vld [vmem:[%s626 + $0x171] sm:$0xff]
        %v716 = vld [vmem:[%s626 + $0x2] sm:$0xff]
        %v717 = vld [vmem:[%s626 + $0xa] sm:$0xff]
        %v718 = vld [vmem:[%s626 + $0x1a] sm:$0xff]
        %v719 = vld [vmem:[%s626 + $0x22] sm:$0xff]
        %v720 = vld [vmem:[%s626 + $0x32] sm:$0xff]
        %v721 = vld [vmem:[%s626 + $0x3a] sm:$0xff]
        %v722 = vld [vmem:[%s626 + $0x4a] sm:$0xff]
        %v723 = vld [vmem:[%s626 + $0x52] sm:$0xff]
        %v724 = vld [vmem:[%s626 + $0x62] sm:$0xff]
        %v725 = vld [vmem:[%s626 + $0x6a] sm:$0xff]
        %v726 = vld [vmem:[%s626 + $0x7a] sm:$0xff]
        %v727 = vld [vmem:[%s626 + $0x82] sm:$0xff]
        %v728 = vld [vmem:[%s626 + $0x92] sm:$0xff]
        %v729 = vld [vmem:[%s626 + $0x9a] sm:$0xff]
        %v730 = vld [vmem:[%s626 + $0xaa] sm:$0xff]
        %v731 = vld [vmem:[%s626 + $0xb2] sm:$0xff]
        %v732 = vld [vmem:[%s626 + $0xc2] sm:$0xff]
        %v733 = vld [vmem:[%s626 + $0xca] sm:$0xff]
        %v734 = vld [vmem:[%s626 + $0xda] sm:$0xff]
        %v735 = vld [vmem:[%s626 + $0xe2] sm:$0xff]
        %v736 = vld [vmem:[%s626 + $0xf2] sm:$0xff]
        %v737 = vld [vmem:[%s626 + $0xfa] sm:$0xff]
        %v738 = vld [vmem:[%s626 + $0x10a] sm:$0xff]
        %v739 = vld [vmem:[%s626 + $0x112] sm:$0xff]
        %v740 = vld [vmem:[%s626 + $0x122] sm:$0xff]
        %v741 = vld [vmem:[%s626 + $0x12a] sm:$0xff]
        %v742 = vld [vmem:[%s626 + $0x13a] sm:$0xff]
        %v743 = vld [vmem:[%s626 + $0x142] sm:$0xff]
        %v744 = vld [vmem:[%s626 + $0x152] sm:$0xff]
        %v745 = vld [vmem:[%s626 + $0x15a] sm:$0xff]
        %v746 = vld [vmem:[%s626 + $0x16a] sm:$0xff]
        %v747 = vld [vmem:[%s626 + $0x172] sm:$0xff]
        %s748 = scalar_lea.vmem %s626, 24
        %v749 = vld [vmem:[%s748] sm:$0xff]
        %v750 = vld [vmem:[%s748 + $0x8] sm:$0xff]
        %v751 = vld [vmem:[%s748 + $0x18] sm:$0xff]
        %v752 = vld [vmem:[%s748 + $0x20] sm:$0xff]
        %v753 = vld [vmem:[%s748 + $0x30] sm:$0xff]
        %v754 = vld [vmem:[%s748 + $0x38] sm:$0xff]
        %v755 = vld [vmem:[%s748 + $0x48] sm:$0xff]
        %v756 = vld [vmem:[%s748 + $0x50] sm:$0xff]
        %v757 = vld [vmem:[%s748 + $0x60] sm:$0xff]
        %v758 = vld [vmem:[%s748 + $0x68] sm:$0xff]
        %v759 = vld [vmem:[%s748 + $0x78] sm:$0xff]
        %v760 = vld [vmem:[%s748 + $0x80] sm:$0xff]
        %v761 = vld [vmem:[%s748 + $0x90] sm:$0xff]
        %v762 = vld [vmem:[%s748 + $0x98] sm:$0xff]
        %v763 = vld [vmem:[%s748 + $0xa8] sm:$0xff]
        %v764 = vld [vmem:[%s748 + $0xb0] sm:$0xff]
        %v765 = vld [vmem:[%s748 + $0xc0] sm:$0xff]
        %v766 = vld [vmem:[%s748 + $0xc8] sm:$0xff]
        %v767 = vld [vmem:[%s748 + $0xd8] sm:$0xff]
        %v768 = vld [vmem:[%s748 + $0xe0] sm:$0xff]
        %v769 = vld [vmem:[%s748 + $0xf0] sm:$0xff]
        %v770 = vld [vmem:[%s748 + $0xf8] sm:$0xff]
        %v771 = vld [vmem:[%s748 + $0x108] sm:$0xff]
        %v772 = vld [vmem:[%s748 + $0x110] sm:$0xff]
        %v773 = vld [vmem:[%s748 + $0x120] sm:$0xff]
        %v774 = vld [vmem:[%s748 + $0x128] sm:$0xff]
        %v775 = vld [vmem:[%s748 + $0x138] sm:$0xff]
        %v776 = vld [vmem:[%s748 + $0x140] sm:$0xff]
        %v777 = vld [vmem:[%s748 + $0x150] sm:$0xff]
        %v778 = vld [vmem:[%s748 + $0x158] sm:$0xff]
        %v779 = vld [vmem:[%s748 + $0x168] sm:$0xff]
        %v780 = vld [vmem:[%s748 + $0x170] sm:$0xff]
        %v781 = vld [vmem:[%s748 + $0x1] sm:$0xff]
        %v782 = vld [vmem:[%s748 + $0x9] sm:$0xff]
        %v783 = vld [vmem:[%s748 + $0x19] sm:$0xff]
        %v784 = vld [vmem:[%s748 + $0x21] sm:$0xff]
        %v785 = vld [vmem:[%s748 + $0x31] sm:$0xff]
        %v786 = vld [vmem:[%s748 + $0x39] sm:$0xff]
        %v787 = vld [vmem:[%s748 + $0x49] sm:$0xff]
        %v788 = vld [vmem:[%s748 + $0x51] sm:$0xff]
        %v789 = vld [vmem:[%s748 + $0x61] sm:$0xff]
        %v790 = vld [vmem:[%s748 + $0x69] sm:$0xff]
        %v791 = vld [vmem:[%s748 + $0x79] sm:$0xff]
        %v792 = vld [vmem:[%s748 + $0x81] sm:$0xff]
        %v793 = vld [vmem:[%s748 + $0x91] sm:$0xff]
        %v794 = vld [vmem:[%s748 + $0x99] sm:$0xff]
        %v795 = vld [vmem:[%s748 + $0xa9] sm:$0xff]
        %v796 = vld [vmem:[%s748 + $0xb1] sm:$0xff]
        %v797 = vld [vmem:[%s748 + $0xc1] sm:$0xff]
        %v798 = vld [vmem:[%s748 + $0xc9] sm:$0xff]
        %v799 = vld [vmem:[%s748 + $0xd9] sm:$0xff]
        %v800 = vld [vmem:[%s748 + $0xe1] sm:$0xff]
        %v801 = vld [vmem:[%s748 + $0xf1] sm:$0xff]
        %v802 = vld [vmem:[%s748 + $0xf9] sm:$0xff]
        %v803 = vld [vmem:[%s748 + $0x109] sm:$0xff]
        %v804 = vld [vmem:[%s748 + $0x111] sm:$0xff]
        %v805 = vld [vmem:[%s748 + $0x121] sm:$0xff]
        %v806 = vld [vmem:[%s748 + $0x129] sm:$0xff]
        %v807 = vld [vmem:[%s748 + $0x139] sm:$0xff]
        %v808 = vld [vmem:[%s748 + $0x141] sm:$0xff]
        %v809 = vld [vmem:[%s748 + $0x151] sm:$0xff]
        %v810 = vld [vmem:[%s748 + $0x159] sm:$0xff]
        %v811 = vld [vmem:[%s748 + $0x169] sm:$0xff]
        %v812 = vld [vmem:[%s748 + $0x171] sm:$0xff]
        %v813 = vld [vmem:[%s748 + $0x2] sm:$0xff]
        %v814 = vld [vmem:[%s748 + $0xa] sm:$0xff]
        %v815 = vld [vmem:[%s748 + $0x1a] sm:$0xff]
        %v816 = vld [vmem:[%s748 + $0x22] sm:$0xff]
        %v817 = vld [vmem:[%s748 + $0x32] sm:$0xff]
        %v818 = vld [vmem:[%s748 + $0x3a] sm:$0xff]
        %v819 = vld [vmem:[%s748 + $0x4a] sm:$0xff]
        %v820 = vld [vmem:[%s748 + $0x52] sm:$0xff]
        %v821 = vld [vmem:[%s748 + $0x62] sm:$0xff]
        %v822 = vld [vmem:[%s748 + $0x6a] sm:$0xff]
        %v823 = vld [vmem:[%s748 + $0x7a] sm:$0xff]
        %v824 = vld [vmem:[%s748 + $0x82] sm:$0xff]
        %v825 = vld [vmem:[%s748 + $0x92] sm:$0xff]
        %v826 = vld [vmem:[%s748 + $0x9a] sm:$0xff]
        %v827 = vld [vmem:[%s748 + $0xaa] sm:$0xff]
        %v828 = vld [vmem:[%s748 + $0xb2] sm:$0xff]
        %v829 = vld [vmem:[%s748 + $0xc2] sm:$0xff]
        %v830 = vld [vmem:[%s748 + $0xca] sm:$0xff]
        %v831 = vld [vmem:[%s748 + $0xda] sm:$0xff]
        %v832 = vld [vmem:[%s748 + $0xe2] sm:$0xff]
        %v833 = vld [vmem:[%s748 + $0xf2] sm:$0xff]
        %v834 = vld [vmem:[%s748 + $0xfa] sm:$0xff]
        %v835 = vld [vmem:[%s748 + $0x10a] sm:$0xff]
        %v836 = vld [vmem:[%s748 + $0x112] sm:$0xff]
        %v837 = vld [vmem:[%s748 + $0x122] sm:$0xff]
        %v838 = vld [vmem:[%s748 + $0x12a] sm:$0xff]
        %v839 = vld [vmem:[%s748 + $0x13a] sm:$0xff]
        %v840 = vld [vmem:[%s748 + $0x142] sm:$0xff]
        %v841 = vld [vmem:[%s748 + $0x152] sm:$0xff]
        %v842 = vld [vmem:[%s748 + $0x15a] sm:$0xff]
        %v843 = vld [vmem:[%s748 + $0x16a] sm:$0xff]
        %v844 = vld [vmem:[%s748 + $0x172] sm:$0xff]
        %s845 = scalar_lea.vmem %s626, 48
        %v846 = vld [vmem:[%s845] sm:$0xff]
        %v847 = vld [vmem:[%s845 + $0x8] sm:$0xff]
        %v848 = vld [vmem:[%s845 + $0x18] sm:$0xff]
        %v849 = vld [vmem:[%s845 + $0x20] sm:$0xff]
        %v850 = vld [vmem:[%s845 + $0x30] sm:$0xff]
        %v851 = vld [vmem:[%s845 + $0x38] sm:$0xff]
        %v852 = vld [vmem:[%s845 + $0x48] sm:$0xff]
        %v853 = vld [vmem:[%s845 + $0x50] sm:$0xff]
        %v854 = vld [vmem:[%s845 + $0x60] sm:$0xff]
        %v855 = vld [vmem:[%s845 + $0x68] sm:$0xff]
        %v856 = vld [vmem:[%s845 + $0x78] sm:$0xff]
        %v857 = vld [vmem:[%s845 + $0x80] sm:$0xff]
        %v858 = vld [vmem:[%s845 + $0x90] sm:$0xff]
        %v859 = vld [vmem:[%s845 + $0x98] sm:$0xff]
        %v860 = vld [vmem:[%s845 + $0xa8] sm:$0xff]
        %v861 = vld [vmem:[%s845 + $0xb0] sm:$0xff]
        %v862 = vld [vmem:[%s845 + $0xc0] sm:$0xff]
        %v863 = vld [vmem:[%s845 + $0xc8] sm:$0xff]
        %v864 = vld [vmem:[%s845 + $0xd8] sm:$0xff]
        %v865 = vld [vmem:[%s845 + $0xe0] sm:$0xff]
        %v866 = vld [vmem:[%s845 + $0xf0] sm:$0xff]
        %v867 = vld [vmem:[%s845 + $0xf8] sm:$0xff]
        %v868 = vld [vmem:[%s845 + $0x108] sm:$0xff]
        %v869 = vld [vmem:[%s845 + $0x110] sm:$0xff]
        %v870 = vld [vmem:[%s845 + $0x120] sm:$0xff]
        %v871 = vld [vmem:[%s845 + $0x128] sm:$0xff]
        %v872 = vld [vmem:[%s845 + $0x138] sm:$0xff]
        %v873 = vld [vmem:[%s845 + $0x140] sm:$0xff]
        %v874 = vld [vmem:[%s845 + $0x150] sm:$0xff]
        %v875 = vld [vmem:[%s845 + $0x158] sm:$0xff]
        %v876 = vld [vmem:[%s845 + $0x168] sm:$0xff]
        %v877 = vld [vmem:[%s845 + $0x170] sm:$0xff]
        %v878 = vld [vmem:[%s845 + $0x1] sm:$0xff]
        %v879 = vld [vmem:[%s845 + $0x9] sm:$0xff]
        %v880 = vld [vmem:[%s845 + $0x19] sm:$0xff]
        %v881 = vld [vmem:[%s845 + $0x21] sm:$0xff]
        %v882 = vld [vmem:[%s845 + $0x31] sm:$0xff]
        %v883 = vld [vmem:[%s845 + $0x39] sm:$0xff]
        %v884 = vld [vmem:[%s845 + $0x49] sm:$0xff]
        %v885 = vld [vmem:[%s845 + $0x51] sm:$0xff]
        %v886 = vld [vmem:[%s845 + $0x61] sm:$0xff]
        %v887 = vld [vmem:[%s845 + $0x69] sm:$0xff]
        %v888 = vld [vmem:[%s845 + $0x79] sm:$0xff]
        %v889 = vld [vmem:[%s845 + $0x81] sm:$0xff]
        %v890 = vld [vmem:[%s845 + $0x91] sm:$0xff]
        %v891 = vld [vmem:[%s845 + $0x99] sm:$0xff]
        %v892 = vld [vmem:[%s845 + $0xa9] sm:$0xff]
        %v893 = vld [vmem:[%s845 + $0xb1] sm:$0xff]
        %v894 = vld [vmem:[%s845 + $0xc1] sm:$0xff]
        %v895 = vld [vmem:[%s845 + $0xc9] sm:$0xff]
        %v896 = vld [vmem:[%s845 + $0xd9] sm:$0xff]
        %v897 = vld [vmem:[%s845 + $0xe1] sm:$0xff]
        %v898 = vld [vmem:[%s845 + $0xf1] sm:$0xff]
        %v899 = vld [vmem:[%s845 + $0xf9] sm:$0xff]
        %v900 = vld [vmem:[%s845 + $0x109] sm:$0xff]
        %v901 = vld [vmem:[%s845 + $0x111] sm:$0xff]
        %v902 = vld [vmem:[%s845 + $0x121] sm:$0xff]
        %v903 = vld [vmem:[%s845 + $0x129] sm:$0xff]
        %v904 = vld [vmem:[%s845 + $0x139] sm:$0xff]
        %v905 = vld [vmem:[%s845 + $0x141] sm:$0xff]
        %v906 = vld [vmem:[%s845 + $0x151] sm:$0xff]
        %v907 = vld [vmem:[%s845 + $0x159] sm:$0xff]
        %v908 = vld [vmem:[%s845 + $0x169] sm:$0xff]
        %v909 = vld [vmem:[%s845 + $0x171] sm:$0xff]
        %v910 = vld [vmem:[%s845 + $0x2] sm:$0xff]
        %v911 = vld [vmem:[%s845 + $0xa] sm:$0xff]
        %v912 = vld [vmem:[%s845 + $0x1a] sm:$0xff]
        %v913 = vld [vmem:[%s845 + $0x22] sm:$0xff]
        %v914 = vld [vmem:[%s845 + $0x32] sm:$0xff]
        %v915 = vld [vmem:[%s845 + $0x3a] sm:$0xff]
        %v916 = vld [vmem:[%s845 + $0x4a] sm:$0xff]
        %v917 = vld [vmem:[%s845 + $0x52] sm:$0xff]
        %v918 = vld [vmem:[%s845 + $0x62] sm:$0xff]
        %v919 = vld [vmem:[%s845 + $0x6a] sm:$0xff]
        %v920 = vld [vmem:[%s845 + $0x7a] sm:$0xff]
        %v921 = vld [vmem:[%s845 + $0x82] sm:$0xff]
        %v922 = vld [vmem:[%s845 + $0x92] sm:$0xff]
        %v923 = vld [vmem:[%s845 + $0x9a] sm:$0xff]
        %v924 = vld [vmem:[%s845 + $0xaa] sm:$0xff]
        %v925 = vld [vmem:[%s845 + $0xb2] sm:$0xff]
        %v926 = vld [vmem:[%s845 + $0xc2] sm:$0xff]
        %v927 = vld [vmem:[%s845 + $0xca] sm:$0xff]
        %v928 = vld [vmem:[%s845 + $0xda] sm:$0xff]
        %v929 = vld [vmem:[%s845 + $0xe2] sm:$0xff]
        %v930 = vld [vmem:[%s845 + $0xf2] sm:$0xff]
        %v931 = vld [vmem:[%s845 + $0xfa] sm:$0xff]
        %v932 = vld [vmem:[%s845 + $0x10a] sm:$0xff]
        %v933 = vld [vmem:[%s845 + $0x112] sm:$0xff]
        %v934 = vld [vmem:[%s845 + $0x122] sm:$0xff]
        %v935 = vld [vmem:[%s845 + $0x12a] sm:$0xff]
        %v936 = vld [vmem:[%s845 + $0x13a] sm:$0xff]
        %v937 = vld [vmem:[%s845 + $0x142] sm:$0xff]
        %v938 = vld [vmem:[%s845 + $0x152] sm:$0xff]
        %v939 = vld [vmem:[%s845 + $0x15a] sm:$0xff]
        %v940 = vld [vmem:[%s845 + $0x16a] sm:$0xff]
        %v941 = vld [vmem:[%s845 + $0x172] sm:$0xff]
        %974 = vrot.lane.b32.xlu0 %v684, 4
        %v975 = vpop.permute.xlu0 %974
        %976 = vrot.lane.b32.xlu0 %v685, 4
        %v977 = vpop.permute.xlu0 %976
        %978 = vrot.lane.b32.xlu0 %v686, 4
        %v979 = vpop.permute.xlu0 %978
        %980 = vrot.lane.b32.xlu0 %v687, 4
        %v981 = vpop.permute.xlu0 %980
        %982 = vrot.lane.b32.xlu0 %v688, 4
        %v983 = vpop.permute.xlu0 %982
        %984 = vrot.lane.b32.xlu0 %v689, 4
        %v985 = vpop.permute.xlu0 %984
        %986 = vrot.lane.b32.xlu0 %v690, 4
        %v987 = vpop.permute.xlu0 %986
        %988 = vrot.lane.b32.xlu0 %v691, 4
        %v989 = vpop.permute.xlu0 %988
        %990 = vrot.lane.b32.xlu0 %v692, 4
        %v991 = vpop.permute.xlu0 %990
        %992 = vrot.lane.b32.xlu0 %v693, 4
        %v993 = vpop.permute.xlu0 %992
        %994 = vrot.lane.b32.xlu0 %v694, 4
        %v995 = vpop.permute.xlu0 %994
        %996 = vrot.lane.b32.xlu0 %v695, 4
        %v997 = vpop.permute.xlu0 %996
        %998 = vrot.lane.b32.xlu0 %v696, 4
        %v999 = vpop.permute.xlu0 %998
        %1000 = vrot.lane.b32.xlu0 %v697, 4
        %v1001 = vpop.permute.xlu0 %1000
        %1002 = vrot.lane.b32.xlu0 %v698, 4
        %v1003 = vpop.permute.xlu0 %1002
        %1004 = vrot.lane.b32.xlu0 %v699, 4
        %v1005 = vpop.permute.xlu0 %1004
        %1006 = vrot.lane.b32.xlu0 %v700, 4
        %v1007 = vpop.permute.xlu0 %1006
        %1008 = vrot.lane.b32.xlu0 %v701, 4
        %v1009 = vpop.permute.xlu0 %1008
        %1010 = vrot.lane.b32.xlu0 %v702, 4
        %v1011 = vpop.permute.xlu0 %1010
        %1012 = vrot.lane.b32.xlu0 %v703, 4
        %v1013 = vpop.permute.xlu0 %1012
        %1014 = vrot.lane.b32.xlu0 %v704, 4
        %v1015 = vpop.permute.xlu0 %1014
        %1016 = vrot.lane.b32.xlu0 %v705, 4
        %v1017 = vpop.permute.xlu0 %1016
        %1018 = vrot.lane.b32.xlu0 %v706, 4
        %v1019 = vpop.permute.xlu0 %1018
        %1020 = vrot.lane.b32.xlu0 %v707, 4
        %v1021 = vpop.permute.xlu0 %1020
        %1022 = vrot.lane.b32.xlu0 %v708, 4
        %v1023 = vpop.permute.xlu0 %1022
        %1024 = vrot.lane.b32.xlu0 %v709, 4
        %v1025 = vpop.permute.xlu0 %1024
        %1026 = vrot.lane.b32.xlu0 %v710, 4
        %v1027 = vpop.permute.xlu0 %1026
        %1028 = vrot.lane.b32.xlu0 %v711, 4
        %v1029 = vpop.permute.xlu0 %1028
        %1030 = vrot.lane.b32.xlu0 %v712, 4
        %v1031 = vpop.permute.xlu0 %1030
        %1032 = vrot.lane.b32.xlu0 %v713, 4
        %v1033 = vpop.permute.xlu0 %1032
        %1034 = vrot.lane.b32.xlu0 %v714, 4
        %v1035 = vpop.permute.xlu0 %1034
        %1036 = vrot.lane.b32.xlu0 %v715, 4
        %v1037 = vpop.permute.xlu0 %1036
        %1102 = vrot.lane.b32.xlu0 %v716, 8
        %v1103 = vpop.permute.xlu0 %1102
        %1104 = vrot.lane.b32.xlu0 %v717, 8
        %v1105 = vpop.permute.xlu0 %1104
        %1106 = vrot.lane.b32.xlu0 %v718, 8
        %v1107 = vpop.permute.xlu0 %1106
        %1108 = vrot.lane.b32.xlu0 %v719, 8
        %v1109 = vpop.permute.xlu0 %1108
        %1110 = vrot.lane.b32.xlu0 %v720, 8
        %v1111 = vpop.permute.xlu0 %1110
        %1112 = vrot.lane.b32.xlu0 %v721, 8
        %v1113 = vpop.permute.xlu0 %1112
        %1114 = vrot.lane.b32.xlu0 %v722, 8
        %v1115 = vpop.permute.xlu0 %1114
        %1116 = vrot.lane.b32.xlu0 %v723, 8
        %v1117 = vpop.permute.xlu0 %1116
        %1118 = vrot.lane.b32.xlu0 %v724, 8
        %v1119 = vpop.permute.xlu0 %1118
        %1120 = vrot.lane.b32.xlu0 %v725, 8
        %v1121 = vpop.permute.xlu0 %1120
        %1122 = vrot.lane.b32.xlu0 %v726, 8
        %v1123 = vpop.permute.xlu0 %1122
        %1124 = vrot.lane.b32.xlu0 %v727, 8
        %v1125 = vpop.permute.xlu0 %1124
        %1126 = vrot.lane.b32.xlu0 %v728, 8
        %v1127 = vpop.permute.xlu0 %1126
        %1128 = vrot.lane.b32.xlu0 %v729, 8
        %v1129 = vpop.permute.xlu0 %1128
        %1130 = vrot.lane.b32.xlu0 %v730, 8
        %v1131 = vpop.permute.xlu0 %1130
        %1132 = vrot.lane.b32.xlu0 %v731, 8
        %v1133 = vpop.permute.xlu0 %1132
        %1134 = vrot.lane.b32.xlu0 %v732, 8
        %v1135 = vpop.permute.xlu0 %1134
        %1136 = vrot.lane.b32.xlu0 %v733, 8
        %v1137 = vpop.permute.xlu0 %1136
        %1138 = vrot.lane.b32.xlu0 %v734, 8
        %v1139 = vpop.permute.xlu0 %1138
        %1140 = vrot.lane.b32.xlu0 %v735, 8
        %v1141 = vpop.permute.xlu0 %1140
        %1142 = vrot.lane.b32.xlu0 %v736, 8
        %v1143 = vpop.permute.xlu0 %1142
        %1144 = vrot.lane.b32.xlu0 %v737, 8
        %v1145 = vpop.permute.xlu0 %1144
        %1146 = vrot.lane.b32.xlu0 %v738, 8
        %v1147 = vpop.permute.xlu0 %1146
        %1148 = vrot.lane.b32.xlu0 %v739, 8
        %v1149 = vpop.permute.xlu0 %1148
        %1150 = vrot.lane.b32.xlu0 %v740, 8
        %v1151 = vpop.permute.xlu0 %1150
        %1152 = vrot.lane.b32.xlu0 %v741, 8
        %v1153 = vpop.permute.xlu0 %1152
        %1154 = vrot.lane.b32.xlu0 %v742, 8
        %v1155 = vpop.permute.xlu0 %1154
        %1156 = vrot.lane.b32.xlu0 %v743, 8
        %v1157 = vpop.permute.xlu0 %1156
        %1158 = vrot.lane.b32.xlu0 %v744, 8
        %v1159 = vpop.permute.xlu0 %1158
        %1160 = vrot.lane.b32.xlu0 %v745, 8
        %v1161 = vpop.permute.xlu0 %1160
        %1162 = vrot.lane.b32.xlu0 %v746, 8
        %v1163 = vpop.permute.xlu0 %1162
        %1164 = vrot.lane.b32.xlu0 %v747, 8
        %v1165 = vpop.permute.xlu0 %1164
        %1230 = vrot.lane.b32.xlu0 %v749, 12
        %v1231 = vpop.permute.xlu0 %1230
        %1232 = vrot.lane.b32.xlu0 %v750, 12
        %v1233 = vpop.permute.xlu0 %1232
        %1234 = vrot.lane.b32.xlu0 %v751, 12
        %v1235 = vpop.permute.xlu0 %1234
        %1236 = vrot.lane.b32.xlu0 %v752, 12
        %v1237 = vpop.permute.xlu0 %1236
        %1238 = vrot.lane.b32.xlu0 %v753, 12
        %v1239 = vpop.permute.xlu0 %1238
        %1240 = vrot.lane.b32.xlu0 %v754, 12
        %v1241 = vpop.permute.xlu0 %1240
        %1242 = vrot.lane.b32.xlu0 %v755, 12
        %v1243 = vpop.permute.xlu0 %1242
        %1244 = vrot.lane.b32.xlu0 %v756, 12
        %v1245 = vpop.permute.xlu0 %1244
        %1246 = vrot.lane.b32.xlu0 %v757, 12
        %v1247 = vpop.permute.xlu0 %1246
        %1248 = vrot.lane.b32.xlu0 %v758, 12
        %v1249 = vpop.permute.xlu0 %1248
        %1250 = vrot.lane.b32.xlu0 %v759, 12
        %v1251 = vpop.permute.xlu0 %1250
        %1252 = vrot.lane.b32.xlu0 %v760, 12
        %v1253 = vpop.permute.xlu0 %1252
        %1254 = vrot.lane.b32.xlu0 %v761, 12
        %v1255 = vpop.permute.xlu0 %1254
        %1256 = vrot.lane.b32.xlu0 %v762, 12
        %v1257 = vpop.permute.xlu0 %1256
        %1258 = vrot.lane.b32.xlu0 %v763, 12
        %v1259 = vpop.permute.xlu0 %1258
        %1260 = vrot.lane.b32.xlu0 %v764, 12
        %v1261 = vpop.permute.xlu0 %1260
        %1262 = vrot.lane.b32.xlu0 %v765, 12
        %v1263 = vpop.permute.xlu0 %1262
        %1264 = vrot.lane.b32.xlu0 %v766, 12
        %v1265 = vpop.permute.xlu0 %1264
        %1266 = vrot.lane.b32.xlu0 %v767, 12
        %v1267 = vpop.permute.xlu0 %1266
        %1268 = vrot.lane.b32.xlu0 %v768, 12
        %v1269 = vpop.permute.xlu0 %1268
        %1270 = vrot.lane.b32.xlu0 %v769, 12
        %v1271 = vpop.permute.xlu0 %1270
        %1272 = vrot.lane.b32.xlu0 %v770, 12
        %v1273 = vpop.permute.xlu0 %1272
        %1274 = vrot.lane.b32.xlu0 %v771, 12
        %v1275 = vpop.permute.xlu0 %1274
        %1276 = vrot.lane.b32.xlu0 %v772, 12
        %v1277 = vpop.permute.xlu0 %1276
        %1278 = vrot.lane.b32.xlu0 %v773, 12
        %v1279 = vpop.permute.xlu0 %1278
        %1280 = vrot.lane.b32.xlu0 %v774, 12
        %v1281 = vpop.permute.xlu0 %1280
        %1282 = vrot.lane.b32.xlu0 %v775, 12
        %v1283 = vpop.permute.xlu0 %1282
        %1284 = vrot.lane.b32.xlu0 %v776, 12
        %v1285 = vpop.permute.xlu0 %1284
        %1286 = vrot.lane.b32.xlu0 %v777, 12
        %v1287 = vpop.permute.xlu0 %1286
        %1288 = vrot.lane.b32.xlu0 %v778, 12
        %v1289 = vpop.permute.xlu0 %1288
        %1290 = vrot.lane.b32.xlu0 %v779, 12
        %v1291 = vpop.permute.xlu0 %1290
        %1292 = vrot.lane.b32.xlu0 %v780, 12
        %v1293 = vpop.permute.xlu0 %1292
        %1358 = vrot.lane.b32.xlu0 %v781, 16
        %v1359 = vpop.permute.xlu0 %1358
        %1360 = vrot.lane.b32.xlu0 %v782, 16
        %v1361 = vpop.permute.xlu0 %1360
        %1362 = vrot.lane.b32.xlu0 %v783, 16
        %v1363 = vpop.permute.xlu0 %1362
        %1364 = vrot.lane.b32.xlu0 %v784, 16
        %v1365 = vpop.permute.xlu0 %1364
        %1366 = vrot.lane.b32.xlu0 %v785, 16
        %v1367 = vpop.permute.xlu0 %1366
        %1368 = vrot.lane.b32.xlu0 %v786, 16
        %v1369 = vpop.permute.xlu0 %1368
        %1370 = vrot.lane.b32.xlu0 %v787, 16
        %v1371 = vpop.permute.xlu0 %1370
        %1372 = vrot.lane.b32.xlu0 %v788, 16
        %v1373 = vpop.permute.xlu0 %1372
        %1374 = vrot.lane.b32.xlu0 %v789, 16
        %v1375 = vpop.permute.xlu0 %1374
        %1376 = vrot.lane.b32.xlu0 %v790, 16
        %v1377 = vpop.permute.xlu0 %1376
        %1378 = vrot.lane.b32.xlu0 %v791, 16
        %v1379 = vpop.permute.xlu0 %1378
        %1380 = vrot.lane.b32.xlu0 %v792, 16
        %v1381 = vpop.permute.xlu0 %1380
        %1382 = vrot.lane.b32.xlu0 %v793, 16
        %v1383 = vpop.permute.xlu0 %1382
        %1384 = vrot.lane.b32.xlu0 %v794, 16
        %v1385 = vpop.permute.xlu0 %1384
        %1386 = vrot.lane.b32.xlu0 %v795, 16
        %v1387 = vpop.permute.xlu0 %1386
        %1388 = vrot.lane.b32.xlu0 %v796, 16
        %v1389 = vpop.permute.xlu0 %1388
        %1390 = vrot.lane.b32.xlu0 %v797, 16
        %v1391 = vpop.permute.xlu0 %1390
        %1392 = vrot.lane.b32.xlu0 %v798, 16
        %v1393 = vpop.permute.xlu0 %1392
        %1394 = vrot.lane.b32.xlu0 %v799, 16
        %v1395 = vpop.permute.xlu0 %1394
        %1396 = vrot.lane.b32.xlu0 %v800, 16
        %v1397 = vpop.permute.xlu0 %1396
        %1398 = vrot.lane.b32.xlu0 %v801, 16
        %v1399 = vpop.permute.xlu0 %1398
        %1400 = vrot.lane.b32.xlu0 %v802, 16
        %v1401 = vpop.permute.xlu0 %1400
        %1402 = vrot.lane.b32.xlu0 %v803, 16
        %v1403 = vpop.permute.xlu0 %1402
        %1404 = vrot.lane.b32.xlu0 %v804, 16
        %v1405 = vpop.permute.xlu0 %1404
        %1406 = vrot.lane.b32.xlu0 %v805, 16
        %v1407 = vpop.permute.xlu0 %1406
        %1408 = vrot.lane.b32.xlu0 %v806, 16
        %v1409 = vpop.permute.xlu0 %1408
        %1410 = vrot.lane.b32.xlu0 %v807, 16
        %v1411 = vpop.permute.xlu0 %1410
        %1412 = vrot.lane.b32.xlu0 %v808, 16
        %v1413 = vpop.permute.xlu0 %1412
        %1414 = vrot.lane.b32.xlu0 %v809, 16
        %v1415 = vpop.permute.xlu0 %1414
        %1416 = vrot.lane.b32.xlu0 %v810, 16
        %v1417 = vpop.permute.xlu0 %1416
        %1418 = vrot.lane.b32.xlu0 %v811, 16
        %v1419 = vpop.permute.xlu0 %1418
        %1420 = vrot.lane.b32.xlu0 %v812, 16
        %v1421 = vpop.permute.xlu0 %1420
        %1486 = vrot.lane.b32.xlu0 %v813, 20
        %v1487 = vpop.permute.xlu0 %1486
        %1488 = vrot.lane.b32.xlu0 %v814, 20
        %v1489 = vpop.permute.xlu0 %1488
        %1490 = vrot.lane.b32.xlu0 %v815, 20
        %v1491 = vpop.permute.xlu0 %1490
        %1492 = vrot.lane.b32.xlu0 %v816, 20
        %v1493 = vpop.permute.xlu0 %1492
        %1494 = vrot.lane.b32.xlu0 %v817, 20
        %v1495 = vpop.permute.xlu0 %1494
        %1496 = vrot.lane.b32.xlu0 %v818, 20
        %v1497 = vpop.permute.xlu0 %1496
        %1498 = vrot.lane.b32.xlu0 %v819, 20
        %v1499 = vpop.permute.xlu0 %1498
        %1500 = vrot.lane.b32.xlu0 %v820, 20
        %v1501 = vpop.permute.xlu0 %1500
        %1502 = vrot.lane.b32.xlu0 %v821, 20
        %v1503 = vpop.permute.xlu0 %1502
        %1504 = vrot.lane.b32.xlu0 %v822, 20
        %v1505 = vpop.permute.xlu0 %1504
        %1506 = vrot.lane.b32.xlu0 %v823, 20
        %v1507 = vpop.permute.xlu0 %1506
        %1508 = vrot.lane.b32.xlu0 %v824, 20
        %v1509 = vpop.permute.xlu0 %1508
        %1510 = vrot.lane.b32.xlu0 %v825, 20
        %v1511 = vpop.permute.xlu0 %1510
        %1512 = vrot.lane.b32.xlu0 %v826, 20
        %v1513 = vpop.permute.xlu0 %1512
        %1514 = vrot.lane.b32.xlu0 %v827, 20
        %v1515 = vpop.permute.xlu0 %1514
        %1516 = vrot.lane.b32.xlu0 %v828, 20
        %v1517 = vpop.permute.xlu0 %1516
        %1518 = vrot.lane.b32.xlu0 %v829, 20
        %v1519 = vpop.permute.xlu0 %1518
        %1520 = vrot.lane.b32.xlu0 %v830, 20
        %v1521 = vpop.permute.xlu0 %1520
        %1522 = vrot.lane.b32.xlu0 %v831, 20
        %v1523 = vpop.permute.xlu0 %1522
        %1524 = vrot.lane.b32.xlu0 %v832, 20
        %v1525 = vpop.permute.xlu0 %1524
        %1526 = vrot.lane.b32.xlu0 %v833, 20
        %v1527 = vpop.permute.xlu0 %1526
        %1528 = vrot.lane.b32.xlu0 %v834, 20
        %v1529 = vpop.permute.xlu0 %1528
        %1530 = vrot.lane.b32.xlu0 %v835, 20
        %v1531 = vpop.permute.xlu0 %1530
        %1532 = vrot.lane.b32.xlu0 %v836, 20
        %v1533 = vpop.permute.xlu0 %1532
        %1534 = vrot.lane.b32.xlu0 %v837, 20
        %v1535 = vpop.permute.xlu0 %1534
        %1536 = vrot.lane.b32.xlu0 %v838, 20
        %v1537 = vpop.permute.xlu0 %1536
        %1538 = vrot.lane.b32.xlu0 %v839, 20
        %v1539 = vpop.permute.xlu0 %1538
        %1540 = vrot.lane.b32.xlu0 %v840, 20
        %v1541 = vpop.permute.xlu0 %1540
        %1542 = vrot.lane.b32.xlu0 %v841, 20
        %v1543 = vpop.permute.xlu0 %1542
        %1544 = vrot.lane.b32.xlu0 %v842, 20
        %v1545 = vpop.permute.xlu0 %1544
        %1546 = vrot.lane.b32.xlu0 %v843, 20
        %v1547 = vpop.permute.xlu0 %1546
        %1548 = vrot.lane.b32.xlu0 %v844, 20
        %v1549 = vpop.permute.xlu0 %1548
        %1614 = vrot.lane.b32.xlu0 %v846, 24
        %v1615 = vpop.permute.xlu0 %1614
        %1616 = vrot.lane.b32.xlu0 %v847, 24
        %v1617 = vpop.permute.xlu0 %1616
        %1618 = vrot.lane.b32.xlu0 %v848, 24
        %v1619 = vpop.permute.xlu0 %1618
        %1620 = vrot.lane.b32.xlu0 %v849, 24
        %v1621 = vpop.permute.xlu0 %1620
        %1622 = vrot.lane.b32.xlu0 %v850, 24
        %v1623 = vpop.permute.xlu0 %1622
        %1624 = vrot.lane.b32.xlu0 %v851, 24
        %v1625 = vpop.permute.xlu0 %1624
        %1626 = vrot.lane.b32.xlu0 %v852, 24
        %v1627 = vpop.permute.xlu0 %1626
        %1628 = vrot.lane.b32.xlu0 %v853, 24
        %v1629 = vpop.permute.xlu0 %1628
        %1630 = vrot.lane.b32.xlu0 %v854, 24
        %v1631 = vpop.permute.xlu0 %1630
        %1632 = vrot.lane.b32.xlu0 %v855, 24
        %v1633 = vpop.permute.xlu0 %1632
        %1634 = vrot.lane.b32.xlu0 %v856, 24
        %v1635 = vpop.permute.xlu0 %1634
        %1636 = vrot.lane.b32.xlu0 %v857, 24
        %v1637 = vpop.permute.xlu0 %1636
        %1638 = vrot.lane.b32.xlu0 %v858, 24
        %v1639 = vpop.permute.xlu0 %1638
        %1640 = vrot.lane.b32.xlu0 %v859, 24
        %v1641 = vpop.permute.xlu0 %1640
        %1642 = vrot.lane.b32.xlu0 %v860, 24
        %v1643 = vpop.permute.xlu0 %1642
        %1644 = vrot.lane.b32.xlu0 %v861, 24
        %v1645 = vpop.permute.xlu0 %1644
        %1646 = vrot.lane.b32.xlu0 %v862, 24
        %v1647 = vpop.permute.xlu0 %1646
        %1648 = vrot.lane.b32.xlu0 %v863, 24
        %v1649 = vpop.permute.xlu0 %1648
        %1650 = vrot.lane.b32.xlu0 %v864, 24
        %v1651 = vpop.permute.xlu0 %1650
        %1652 = vrot.lane.b32.xlu0 %v865, 24
        %v1653 = vpop.permute.xlu0 %1652
        %1654 = vrot.lane.b32.xlu0 %v866, 24
        %v1655 = vpop.permute.xlu0 %1654
        %1656 = vrot.lane.b32.xlu0 %v867, 24
        %v1657 = vpop.permute.xlu0 %1656
        %1658 = vrot.lane.b32.xlu0 %v868, 24
        %v1659 = vpop.permute.xlu0 %1658
        %1660 = vrot.lane.b32.xlu0 %v869, 24
        %v1661 = vpop.permute.xlu0 %1660
        %1662 = vrot.lane.b32.xlu0 %v870, 24
        %v1663 = vpop.permute.xlu0 %1662
        %1664 = vrot.lane.b32.xlu0 %v871, 24
        %v1665 = vpop.permute.xlu0 %1664
        %1666 = vrot.lane.b32.xlu0 %v872, 24
        %v1667 = vpop.permute.xlu0 %1666
        %1668 = vrot.lane.b32.xlu0 %v873, 24
        %v1669 = vpop.permute.xlu0 %1668
        %1670 = vrot.lane.b32.xlu0 %v874, 24
        %v1671 = vpop.permute.xlu0 %1670
        %1672 = vrot.lane.b32.xlu0 %v875, 24
        %v1673 = vpop.permute.xlu0 %1672
        %1674 = vrot.lane.b32.xlu0 %v876, 24
        %v1675 = vpop.permute.xlu0 %1674
        %1676 = vrot.lane.b32.xlu0 %v877, 24
        %v1677 = vpop.permute.xlu0 %1676
        %1742 = vrot.lane.b32.xlu0 %v878, 28
        %v1743 = vpop.permute.xlu0 %1742
        %1744 = vrot.lane.b32.xlu0 %v879, 28
        %v1745 = vpop.permute.xlu0 %1744
        %1746 = vrot.lane.b32.xlu0 %v880, 28
        %v1747 = vpop.permute.xlu0 %1746
        %1748 = vrot.lane.b32.xlu0 %v881, 28
        %v1749 = vpop.permute.xlu0 %1748
        %1750 = vrot.lane.b32.xlu0 %v882, 28
        %v1751 = vpop.permute.xlu0 %1750
        %1752 = vrot.lane.b32.xlu0 %v883, 28
        %v1753 = vpop.permute.xlu0 %1752
        %1754 = vrot.lane.b32.xlu0 %v884, 28
        %v1755 = vpop.permute.xlu0 %1754
        %1756 = vrot.lane.b32.xlu0 %v885, 28
        %v1757 = vpop.permute.xlu0 %1756
        %1758 = vrot.lane.b32.xlu0 %v886, 28
        %v1759 = vpop.permute.xlu0 %1758
        %1760 = vrot.lane.b32.xlu0 %v887, 28
        %v1761 = vpop.permute.xlu0 %1760
        %1762 = vrot.lane.b32.xlu0 %v888, 28
        %v1763 = vpop.permute.xlu0 %1762
        %1764 = vrot.lane.b32.xlu0 %v889, 28
        %v1765 = vpop.permute.xlu0 %1764
        %1766 = vrot.lane.b32.xlu0 %v890, 28
        %v1767 = vpop.permute.xlu0 %1766
        %1768 = vrot.lane.b32.xlu0 %v891, 28
        %v1769 = vpop.permute.xlu0 %1768
        %1770 = vrot.lane.b32.xlu0 %v892, 28
        %v1771 = vpop.permute.xlu0 %1770
        %1772 = vrot.lane.b32.xlu0 %v893, 28
        %v1773 = vpop.permute.xlu0 %1772
        %1774 = vrot.lane.b32.xlu0 %v894, 28
        %v1775 = vpop.permute.xlu0 %1774
        %1776 = vrot.lane.b32.xlu0 %v895, 28
        %v1777 = vpop.permute.xlu0 %1776
        %1778 = vrot.lane.b32.xlu0 %v896, 28
        %v1779 = vpop.permute.xlu0 %1778
        %1780 = vrot.lane.b32.xlu0 %v897, 28
        %v1781 = vpop.permute.xlu0 %1780
        %1782 = vrot.lane.b32.xlu0 %v898, 28
        %v1783 = vpop.permute.xlu0 %1782
        %1784 = vrot.lane.b32.xlu0 %v899, 28
        %v1785 = vpop.permute.xlu0 %1784
        %1786 = vrot.lane.b32.xlu0 %v900, 28
        %v1787 = vpop.permute.xlu0 %1786
        %1788 = vrot.lane.b32.xlu0 %v901, 28
        %v1789 = vpop.permute.xlu0 %1788
        %1790 = vrot.lane.b32.xlu0 %v902, 28
        %v1791 = vpop.permute.xlu0 %1790
        %1792 = vrot.lane.b32.xlu0 %v903, 28
        %v1793 = vpop.permute.xlu0 %1792
        %1794 = vrot.lane.b32.xlu0 %v904, 28
        %v1795 = vpop.permute.xlu0 %1794
        %1796 = vrot.lane.b32.xlu0 %v905, 28
        %v1797 = vpop.permute.xlu0 %1796
        %1798 = vrot.lane.b32.xlu0 %v906, 28
        %v1799 = vpop.permute.xlu0 %1798
        %1800 = vrot.lane.b32.xlu0 %v907, 28
        %v1801 = vpop.permute.xlu0 %1800
        %1802 = vrot.lane.b32.xlu0 %v908, 28
        %v1803 = vpop.permute.xlu0 %1802
        %1804 = vrot.lane.b32.xlu0 %v909, 28
        %v1805 = vpop.permute.xlu0 %1804
        %1870 = vrot.lane.b32.xlu0 %v910, 32
        %v1871 = vpop.permute.xlu0 %1870
        %1872 = vrot.lane.b32.xlu0 %v911, 32
        %v1873 = vpop.permute.xlu0 %1872
        %1874 = vrot.lane.b32.xlu0 %v912, 32
        %v1875 = vpop.permute.xlu0 %1874
        %1876 = vrot.lane.b32.xlu0 %v913, 32
        %v1877 = vpop.permute.xlu0 %1876
        %1878 = vrot.lane.b32.xlu0 %v914, 32
        %v1879 = vpop.permute.xlu0 %1878
        %1880 = vrot.lane.b32.xlu0 %v915, 32
        %v1881 = vpop.permute.xlu0 %1880
        %1882 = vrot.lane.b32.xlu0 %v916, 32
        %v1883 = vpop.permute.xlu0 %1882
        %1884 = vrot.lane.b32.xlu0 %v917, 32
        %v1885 = vpop.permute.xlu0 %1884
        %1886 = vrot.lane.b32.xlu0 %v918, 32
        %v1887 = vpop.permute.xlu0 %1886
        %1888 = vrot.lane.b32.xlu0 %v919, 32
        %v1889 = vpop.permute.xlu0 %1888
        %1890 = vrot.lane.b32.xlu0 %v920, 32
        %v1891 = vpop.permute.xlu0 %1890
        %1892 = vrot.lane.b32.xlu0 %v921, 32
        %v1893 = vpop.permute.xlu0 %1892
        %1894 = vrot.lane.b32.xlu0 %v922, 32
        %v1895 = vpop.permute.xlu0 %1894
        %1896 = vrot.lane.b32.xlu0 %v923, 32
        %v1897 = vpop.permute.xlu0 %1896
        %1898 = vrot.lane.b32.xlu0 %v924, 32
        %v1899 = vpop.permute.xlu0 %1898
        %1900 = vrot.lane.b32.xlu0 %v925, 32
        %v1901 = vpop.permute.xlu0 %1900
        %1902 = vrot.lane.b32.xlu0 %v926, 32
        %v1903 = vpop.permute.xlu0 %1902
        %1904 = vrot.lane.b32.xlu0 %v927, 32
        %v1905 = vpop.permute.xlu0 %1904
        %1906 = vrot.lane.b32.xlu0 %v928, 32
        %v1907 = vpop.permute.xlu0 %1906
        %1908 = vrot.lane.b32.xlu0 %v929, 32
        %v1909 = vpop.permute.xlu0 %1908
        %1910 = vrot.lane.b32.xlu0 %v930, 32
        %v1911 = vpop.permute.xlu0 %1910
        %1912 = vrot.lane.b32.xlu0 %v931, 32
        %v1913 = vpop.permute.xlu0 %1912
        %1914 = vrot.lane.b32.xlu0 %v932, 32
        %v1915 = vpop.permute.xlu0 %1914
        %1916 = vrot.lane.b32.xlu0 %v933, 32
        %v1917 = vpop.permute.xlu0 %1916
        %1918 = vrot.lane.b32.xlu0 %v934, 32
        %v1919 = vpop.permute.xlu0 %1918
        %1920 = vrot.lane.b32.xlu0 %v935, 32
        %v1921 = vpop.permute.xlu0 %1920
        %1922 = vrot.lane.b32.xlu0 %v936, 32
        %v1923 = vpop.permute.xlu0 %1922
        %1924 = vrot.lane.b32.xlu0 %v937, 32
        %v1925 = vpop.permute.xlu0 %1924
        %1926 = vrot.lane.b32.xlu0 %v938, 32
        %v1927 = vpop.permute.xlu0 %1926
        %1928 = vrot.lane.b32.xlu0 %v939, 32
        %v1929 = vpop.permute.xlu0 %1928
        %1930 = vrot.lane.b32.xlu0 %v940, 32
        %v1931 = vpop.permute.xlu0 %1930
        %1932 = vrot.lane.b32.xlu0 %v941, 32
        %v1933 = vpop.permute.xlu0 %1932
        %vm1966 = vcmask 31744
        %v1967 = vsel %vm1966, %v652, %v975
        %v1968 = vsel %vm1966, %v653, %v977
        %v1969 = vsel %vm1966, %v654, %v979
        %v1970 = vsel %vm1966, %v655, %v981
        %v1971 = vsel %vm1966, %v656, %v983
        %v1972 = vsel %vm1966, %v657, %v985
        %v1973 = vsel %vm1966, %v658, %v987
        %v1974 = vsel %vm1966, %v659, %v989
        %v1975 = vsel %vm1966, %v660, %v991
        %v1976 = vsel %vm1966, %v661, %v993
        %v1977 = vsel %vm1966, %v662, %v995
        %v1978 = vsel %vm1966, %v663, %v997
        %v1979 = vsel %vm1966, %v664, %v999
        %v1980 = vsel %vm1966, %v665, %v1001
        %v1981 = vsel %vm1966, %v666, %v1003
        %v1982 = vsel %vm1966, %v667, %v1005
        %v1983 = vsel %vm1966, %v668, %v1007
        %v1984 = vsel %vm1966, %v669, %v1009
        %v1985 = vsel %vm1966, %v670, %v1011
        %v1986 = vsel %vm1966, %v671, %v1013
        %v1987 = vsel %vm1966, %v672, %v1015
        %v1988 = vsel %vm1966, %v673, %v1017
        %v1989 = vsel %vm1966, %v674, %v1019
        %v1990 = vsel %vm1966, %v675, %v1021
        %v1991 = vsel %vm1966, %v676, %v1023
        %v1992 = vsel %vm1966, %v677, %v1025
        %v1993 = vsel %vm1966, %v678, %v1027
        %v1994 = vsel %vm1966, %v679, %v1029
        %v1995 = vsel %vm1966, %v680, %v1031
        %v1996 = vsel %vm1966, %v681, %v1033
        %v1997 = vsel %vm1966, %v682, %v1035
        %v1998 = vsel %vm1966, %v683, %v1037
        %vm1999 = vcmask 64512
        %v2000 = vsel %vm1999, %v1967, %v1103
        %v2001 = vsel %vm1999, %v1968, %v1105
        %v2002 = vsel %vm1999, %v1969, %v1107
        %v2003 = vsel %vm1999, %v1970, %v1109
        %v2004 = vsel %vm1999, %v1971, %v1111
        %v2005 = vsel %vm1999, %v1972, %v1113
        %v2006 = vsel %vm1999, %v1973, %v1115
        %v2007 = vsel %vm1999, %v1974, %v1117
        %v2008 = vsel %vm1999, %v1975, %v1119
        %v2009 = vsel %vm1999, %v1976, %v1121
        %v2010 = vsel %vm1999, %v1977, %v1123
        %v2011 = vsel %vm1999, %v1978, %v1125
        %v2012 = vsel %vm1999, %v1979, %v1127
        %v2013 = vsel %vm1999, %v1980, %v1129
        %v2014 = vsel %vm1999, %v1981, %v1131
        %v2015 = vsel %vm1999, %v1982, %v1133
        %v2016 = vsel %vm1999, %v1983, %v1135
        %v2017 = vsel %vm1999, %v1984, %v1137
        %v2018 = vsel %vm1999, %v1985, %v1139
        %v2019 = vsel %vm1999, %v1986, %v1141
        %v2020 = vsel %vm1999, %v1987, %v1143
        %v2021 = vsel %vm1999, %v1988, %v1145
        %v2022 = vsel %vm1999, %v1989, %v1147
        %v2023 = vsel %vm1999, %v1990, %v1149
        %v2024 = vsel %vm1999, %v1991, %v1151
        %v2025 = vsel %vm1999, %v1992, %v1153
        %v2026 = vsel %vm1999, %v1993, %v1155
        %v2027 = vsel %vm1999, %v1994, %v1157
        %v2028 = vsel %vm1999, %v1995, %v1159
        %v2029 = vsel %vm1999, %v1996, %v1161
        %v2030 = vsel %vm1999, %v1997, %v1163
        %v2031 = vsel %vm1999, %v1998, %v1165
        %vm2032 = vcmask 97280
        %v2033 = vsel %vm2032, %v2000, %v1231
        %v2034 = vsel %vm2032, %v2001, %v1233
        %v2035 = vsel %vm2032, %v2002, %v1235
        %v2036 = vsel %vm2032, %v2003, %v1237
        %v2037 = vsel %vm2032, %v2004, %v1239
        %v2038 = vsel %vm2032, %v2005, %v1241
        %v2039 = vsel %vm2032, %v2006, %v1243
        %v2040 = vsel %vm2032, %v2007, %v1245
        %v2041 = vsel %vm2032, %v2008, %v1247
        %v2042 = vsel %vm2032, %v2009, %v1249
        %v2043 = vsel %vm2032, %v2010, %v1251
        %v2044 = vsel %vm2032, %v2011, %v1253
        %v2045 = vsel %vm2032, %v2012, %v1255
        %v2046 = vsel %vm2032, %v2013, %v1257
        %v2047 = vsel %vm2032, %v2014, %v1259
        %v2048 = vsel %vm2032, %v2015, %v1261
        %v2049 = vsel %vm2032, %v2016, %v1263
        %v2050 = vsel %vm2032, %v2017, %v1265
        %v2051 = vsel %vm2032, %v2018, %v1267
        %v2052 = vsel %vm2032, %v2019, %v1269
        %v2053 = vsel %vm2032, %v2020, %v1271
        %v2054 = vsel %vm2032, %v2021, %v1273
        %v2055 = vsel %vm2032, %v2022, %v1275
        %v2056 = vsel %vm2032, %v2023, %v1277
        %v2057 = vsel %vm2032, %v2024, %v1279
        %v2058 = vsel %vm2032, %v2025, %v1281
        %v2059 = vsel %vm2032, %v2026, %v1283
        %v2060 = vsel %vm2032, %v2027, %v1285
        %v2061 = vsel %vm2032, %v2028, %v1287
        %v2062 = vsel %vm2032, %v2029, %v1289
        %v2063 = vsel %vm2032, %v2030, %v1291
        %v2064 = vsel %vm2032, %v2031, %v1293
        %vm2065 = vcmask 130048
        %v2066 = vsel %vm2065, %v2033, %v1359
        %v2067 = vsel %vm2065, %v2034, %v1361
        %v2068 = vsel %vm2065, %v2035, %v1363
        %v2069 = vsel %vm2065, %v2036, %v1365
        %v2070 = vsel %vm2065, %v2037, %v1367
        %v2071 = vsel %vm2065, %v2038, %v1369
        %v2072 = vsel %vm2065, %v2039, %v1371
        %v2073 = vsel %vm2065, %v2040, %v1373
        %v2074 = vsel %vm2065, %v2041, %v1375
        %v2075 = vsel %vm2065, %v2042, %v1377
        %v2076 = vsel %vm2065, %v2043, %v1379
        %v2077 = vsel %vm2065, %v2044, %v1381
        %v2078 = vsel %vm2065, %v2045, %v1383
        %v2079 = vsel %vm2065, %v2046, %v1385
        %v2080 = vsel %vm2065, %v2047, %v1387
        %v2081 = vsel %vm2065, %v2048, %v1389
        %v2082 = vsel %vm2065, %v2049, %v1391
        %v2083 = vsel %vm2065, %v2050, %v1393
        %v2084 = vsel %vm2065, %v2051, %v1395
        %v2085 = vsel %vm2065, %v2052, %v1397
        %v2086 = vsel %vm2065, %v2053, %v1399
        %v2087 = vsel %vm2065, %v2054, %v1401
        %v2088 = vsel %vm2065, %v2055, %v1403
        %v2089 = vsel %vm2065, %v2056, %v1405
        %v2090 = vsel %vm2065, %v2057, %v1407
        %v2091 = vsel %vm2065, %v2058, %v1409
        %v2092 = vsel %vm2065, %v2059, %v1411
        %v2093 = vsel %vm2065, %v2060, %v1413
        %v2094 = vsel %vm2065, %v2061, %v1415
        %v2095 = vsel %vm2065, %v2062, %v1417
        %v2096 = vsel %vm2065, %v2063, %v1419
        %v2097 = vsel %vm2065, %v2064, %v1421
        %vm2098 = vcmask 162816
        %v2099 = vsel %vm2098, %v2066, %v1487
        %v2100 = vsel %vm2098, %v2067, %v1489
        %v2101 = vsel %vm2098, %v2068, %v1491
        %v2102 = vsel %vm2098, %v2069, %v1493
        %v2103 = vsel %vm2098, %v2070, %v1495
        %v2104 = vsel %vm2098, %v2071, %v1497
        %v2105 = vsel %vm2098, %v2072, %v1499
        %v2106 = vsel %vm2098, %v2073, %v1501
        %v2107 = vsel %vm2098, %v2074, %v1503
        %v2108 = vsel %vm2098, %v2075, %v1505
        %v2109 = vsel %vm2098, %v2076, %v1507
        %v2110 = vsel %vm2098, %v2077, %v1509
        %v2111 = vsel %vm2098, %v2078, %v1511
        %v2112 = vsel %vm2098, %v2079, %v1513
        %v2113 = vsel %vm2098, %v2080, %v1515
        %v2114 = vsel %vm2098, %v2081, %v1517
        %v2115 = vsel %vm2098, %v2082, %v1519
        %v2116 = vsel %vm2098, %v2083, %v1521
        %v2117 = vsel %vm2098, %v2084, %v1523
        %v2118 = vsel %vm2098, %v2085, %v1525
        %v2119 = vsel %vm2098, %v2086, %v1527
        %v2120 = vsel %vm2098, %v2087, %v1529
        %v2121 = vsel %vm2098, %v2088, %v1531
        %v2122 = vsel %vm2098, %v2089, %v1533
        %v2123 = vsel %vm2098, %v2090, %v1535
        %v2124 = vsel %vm2098, %v2091, %v1537
        %v2125 = vsel %vm2098, %v2092, %v1539
        %v2126 = vsel %vm2098, %v2093, %v1541
        %v2127 = vsel %vm2098, %v2094, %v1543
        %v2128 = vsel %vm2098, %v2095, %v1545
        %v2129 = vsel %vm2098, %v2096, %v1547
        %v2130 = vsel %vm2098, %v2097, %v1549
        %vm2131 = vcmask 195584
        %v2132 = vsel %vm2131, %v2099, %v1615
        %v2133 = vsel %vm2131, %v2100, %v1617
        %v2134 = vsel %vm2131, %v2101, %v1619
        %v2135 = vsel %vm2131, %v2102, %v1621
        %v2136 = vsel %vm2131, %v2103, %v1623
        %v2137 = vsel %vm2131, %v2104, %v1625
        %v2138 = vsel %vm2131, %v2105, %v1627
        %v2139 = vsel %vm2131, %v2106, %v1629
        %v2140 = vsel %vm2131, %v2107, %v1631
        %v2141 = vsel %vm2131, %v2108, %v1633
        %v2142 = vsel %vm2131, %v2109, %v1635
        %v2143 = vsel %vm2131, %v2110, %v1637
        %v2144 = vsel %vm2131, %v2111, %v1639
        %v2145 = vsel %vm2131, %v2112, %v1641
        %v2146 = vsel %vm2131, %v2113, %v1643
        %v2147 = vsel %vm2131, %v2114, %v1645
        %v2148 = vsel %vm2131, %v2115, %v1647
        %v2149 = vsel %vm2131, %v2116, %v1649
        %v2150 = vsel %vm2131, %v2117, %v1651
        %v2151 = vsel %vm2131, %v2118, %v1653
        %v2152 = vsel %vm2131, %v2119, %v1655
        %v2153 = vsel %vm2131, %v2120, %v1657
        %v2154 = vsel %vm2131, %v2121, %v1659
        %v2155 = vsel %vm2131, %v2122, %v1661
        %v2156 = vsel %vm2131, %v2123, %v1663
        %v2157 = vsel %vm2131, %v2124, %v1665
        %v2158 = vsel %vm2131, %v2125, %v1667
        %v2159 = vsel %vm2131, %v2126, %v1669
        %v2160 = vsel %vm2131, %v2127, %v1671
        %v2161 = vsel %vm2131, %v2128, %v1673
        %v2162 = vsel %vm2131, %v2129, %v1675
        %v2163 = vsel %vm2131, %v2130, %v1677
        %vm2164 = vcmask 228352
        %v2165 = vsel %vm2164, %v2132, %v1743
        %v2166 = vsel %vm2164, %v2133, %v1745
        %v2167 = vsel %vm2164, %v2134, %v1747
        %v2168 = vsel %vm2164, %v2135, %v1749
        %v2169 = vsel %vm2164, %v2136, %v1751
        %v2170 = vsel %vm2164, %v2137, %v1753
        %v2171 = vsel %vm2164, %v2138, %v1755
        %v2172 = vsel %vm2164, %v2139, %v1757
        %v2173 = vsel %vm2164, %v2140, %v1759
        %v2174 = vsel %vm2164, %v2141, %v1761
        %v2175 = vsel %vm2164, %v2142, %v1763
        %v2176 = vsel %vm2164, %v2143, %v1765
        %v2177 = vsel %vm2164, %v2144, %v1767
        %v2178 = vsel %vm2164, %v2145, %v1769
        %v2179 = vsel %vm2164, %v2146, %v1771
        %v2180 = vsel %vm2164, %v2147, %v1773
        %v2181 = vsel %vm2164, %v2148, %v1775
        %v2182 = vsel %vm2164, %v2149, %v1777
        %v2183 = vsel %vm2164, %v2150, %v1779
        %v2184 = vsel %vm2164, %v2151, %v1781
        %v2185 = vsel %vm2164, %v2152, %v1783
        %v2186 = vsel %vm2164, %v2153, %v1785
        %v2187 = vsel %vm2164, %v2154, %v1787
        %v2188 = vsel %vm2164, %v2155, %v1789
        %v2189 = vsel %vm2164, %v2156, %v1791
        %v2190 = vsel %vm2164, %v2157, %v1793
        %v2191 = vsel %vm2164, %v2158, %v1795
        %v2192 = vsel %vm2164, %v2159, %v1797
        %v2193 = vsel %vm2164, %v2160, %v1799
        %v2194 = vsel %vm2164, %v2161, %v1801
        %v2195 = vsel %vm2164, %v2162, %v1803
        %v2196 = vsel %vm2164, %v2163, %v1805
        %vm2197 = vcmask 261120
        %v2198 = vsel %vm2197, %v2165, %v1871
        %v2199 = vsel %vm2197, %v2166, %v1873
        %v2200 = vsel %vm2197, %v2167, %v1875
        %v2201 = vsel %vm2197, %v2168, %v1877
        %v2202 = vsel %vm2197, %v2169, %v1879
        %v2203 = vsel %vm2197, %v2170, %v1881
        %v2204 = vsel %vm2197, %v2171, %v1883
        %v2205 = vsel %vm2197, %v2172, %v1885
        %v2206 = vsel %vm2197, %v2173, %v1887
        %v2207 = vsel %vm2197, %v2174, %v1889
        %v2208 = vsel %vm2197, %v2175, %v1891
        %v2209 = vsel %vm2197, %v2176, %v1893
        %v2210 = vsel %vm2197, %v2177, %v1895
        %v2211 = vsel %vm2197, %v2178, %v1897
        %v2212 = vsel %vm2197, %v2179, %v1899
        %v2213 = vsel %vm2197, %v2180, %v1901
        %v2214 = vsel %vm2197, %v2181, %v1903
        %v2215 = vsel %vm2197, %v2182, %v1905
        %v2216 = vsel %vm2197, %v2183, %v1907
        %v2217 = vsel %vm2197, %v2184, %v1909
        %v2218 = vsel %vm2197, %v2185, %v1911
        %v2219 = vsel %vm2197, %v2186, %v1913
        %v2220 = vsel %vm2197, %v2187, %v1915
        %v2221 = vsel %vm2197, %v2188, %v1917
        %v2222 = vsel %vm2197, %v2189, %v1919
        %v2223 = vsel %vm2197, %v2190, %v1921
        %v2224 = vsel %vm2197, %v2191, %v1923
        %v2225 = vsel %vm2197, %v2192, %v1925
        %v2226 = vsel %vm2197, %v2193, %v1927
        %v2227 = vsel %vm2197, %v2194, %v1929
        %v2228 = vsel %vm2197, %v2195, %v1931
        %v2229 = vsel %vm2197, %v2196, %v1933
        %v2230 = vld [vmem:[%s1] sm:$0xff]
        %v2231 = vld [vmem:[%s1 + $0x8] sm:$0xff]
        %v2232 = vld [vmem:[%s1 + $0x10] sm:$0xff]
        %v2233 = vld [vmem:[%s1 + $0x18] sm:$0xff]
        %v2234 = vld [vmem:[%s1 + $0x20] sm:$0xf]
        %vm2235 = vcmask 293888
        %v2237 = vsel %vm2235, %v2198, 0
        %v2240 = vsel %vm2235, %v2199, 0
        %v2243 = vsel %vm2235, %v2200, 0
        %v2246 = vsel %vm2235, %v2201, 0
        %v2249 = vsel %vm2235, %v2202, 0
        %v2252 = vsel %vm2235, %v2203, 0
        %v2255 = vsel %vm2235, %v2204, 0
        %v2258 = vsel %vm2235, %v2205, 0
        %v2261 = vsel %vm2235, %v2206, 0
        %v2264 = vsel %vm2235, %v2207, 0
        %v2267 = vsel %vm2235, %v2208, 0
        %v2270 = vsel %vm2235, %v2209, 0
        %v2273 = vsel %vm2235, %v2210, 0
        %v2276 = vsel %vm2235, %v2211, 0
        %v2279 = vsel %vm2235, %v2212, 0
        %v2282 = vsel %vm2235, %v2213, 0
        %v2285 = vsel %vm2235, %v2214, 0
        %v2288 = vsel %vm2235, %v2215, 0
        %v2291 = vsel %vm2235, %v2216, 0
        %v2294 = vsel %vm2235, %v2217, 0
        %v2297 = vsel %vm2235, %v2218, 0
        %v2300 = vsel %vm2235, %v2219, 0
        %v2303 = vsel %vm2235, %v2220, 0
        %v2306 = vsel %vm2235, %v2221, 0
        %v2309 = vsel %vm2235, %v2222, 0
        %v2312 = vsel %vm2235, %v2223, 0
        %v2315 = vsel %vm2235, %v2224, 0
        %v2318 = vsel %vm2235, %v2225, 0
        %v2321 = vsel %vm2235, %v2226, 0
        %v2324 = vsel %vm2235, %v2227, 0
        %v2327 = vsel %vm2235, %v2228, 0
        %v2330 = vsel %vm2235, %v2229, 0
        %vm2332 = vcmask 1043456
        %v2334 = vsel %vm2332, %v2234, 0
        %2336 = vmatprep.subr.mxu0 0.0
        %2337 = vmatpush1.msra.mxu0 0.0
        %2338 = vmatprep.subr.mxu0 0.0
        %2339 = vmatpush1.msra.mxu0 0.0
        %2340 = vmatprep.subr.mxu0 0.0
        %2341 = vmatpush1.msra.mxu0 0.0
        %2342 = vmatprep.subr.mxu0 0.0
        %2343 = vmatpush1.msra.mxu0 0.0
        %2344 = vmatprep.subr.mxu0 0.0
        %2345 = vmatpush1.msra.mxu0 0.0
        %2346 = vmatprep.subr.mxu0 0.0
        %2347 = vmatpush1.msra.mxu0 0.0
        %2348 = vmatprep.subr.mxu0 0.0
        %2349 = vmatpush1.msra.mxu0 0.0
        %2350 = vmatprep.subr.mxu0 0.0
        %2351 = vmatpush1.msra.mxu0 0.0
        %2352 = vmatprep.subr.mxu0 0.0
        %2353 = vmatpush1.msra.mxu0 0.0
        %2354 = vmatprep.subr.mxu0 0.0
        %2355 = vmatpush1.msra.mxu0 0.0
        %2356 = vmatprep.subr.mxu0 0.0
        %2357 = vmatpush1.msra.mxu0 0.0
        %2358 = vmatprep.subr.mxu0 0.0
        %2359 = vmatpush1.msra.mxu0 %v2334
        %2360 = vmatprep.subr.mxu0 0.0
        %2361 = vmatpush1.msra.mxu0 %v2233
        %2362 = vmatprep.subr.mxu0 0.0
        %2363 = vmatpush1.msra.mxu0 %v2232
        %2364 = vmatprep.subr.mxu0 0.0
        %2365 = vmatpush1.msra.mxu0 %v2231
        %2366 = vmatprep.subr.mxu0 0.0
        %2367 = vmatpush1.msra.mxu0 %v2230
        %2368 = vmatprep.subr.mxu0 0.0
        %2369 = vmatpush2.msra.mxu0 0.0
        %2370 = vmatprep.subr.mxu0 0.0
        %2371 = vmatpush2.msra.mxu0 0.0
        %2372 = vmatprep.subr.mxu0 0.0
        %2373 = vmatpush2.msra.mxu0 0.0
        %2374 = vmatprep.subr.mxu0 0.0
        %2375 = vmatpush2.msra.mxu0 0.0
        %2376 = vmatprep.subr.mxu0 0.0
        %2377 = vmatpush2.msra.mxu0 0.0
        %2378 = vmatprep.subr.mxu0 0.0
        %2379 = vmatpush2.msra.mxu0 0.0
        %2380 = vmatprep.subr.mxu0 0.0
        %2381 = vmatpush2.msra.mxu0 0.0
        %2382 = vmatprep.subr.mxu0 0.0
        %2383 = vmatpush2.msra.mxu0 0.0
        %2384 = vmatprep.subr.mxu0 0.0
        %2385 = vmatpush2.msra.mxu0 0.0
        %2386 = vmatprep.subr.mxu0 0.0
        %2387 = vmatpush2.msra.mxu0 0.0
        %2388 = vmatprep.subr.mxu0 0.0
        %2389 = vmatpush2.msra.mxu0 0.0
        %2390 = vmatprep.subr.mxu0 0.0
        %2391 = vmatpush2.msra.mxu0 0.0
        %2392 = vmatprep.subr.mxu0 0.0
        %2393 = vmatpush2.msra.mxu0 0.0
        %2394 = vmatprep.subr.mxu0 0.0
        %2395 = vmatpush2.msra.mxu0 0.0
        %2396 = vmatprep.subr.mxu0 0.0
        %2397 = vmatpush2.msra.mxu0 0.0
        %2398 = vmatprep.subr.mxu0 0.0
        %2399 = vmatpush2.msra.mxu0 0.0
        %2400 = vmatprep.mubr.f32.mxu0 0.0
        %2401 = vmatmul.mubr.f32.gmra.mxu0 %v2237
        %v2402 = vpop.f32.mrf.mxu0
        %v2403 = vadd.f32 0.0, %v2402
        %v2404 = vpop.f32.mrf.mxu0
        %2405 = vmatprep.mubr.f32.mxu0 0.0
        %2406 = vmatmul.mubr.f32.gmra.mxu0 %v2240
        %v2407 = vpop.f32.mrf.mxu0
        %v2408 = vadd.f32 0.0, %v2407
        %v2409 = vpop.f32.mrf.mxu0
        %2410 = vmatprep.mubr.f32.mxu0 0.0
        %2411 = vmatmul.mubr.f32.gmra.mxu0 %v2243
        %v2412 = vpop.f32.mrf.mxu0
        %v2413 = vadd.f32 0.0, %v2412
        %v2414 = vpop.f32.mrf.mxu0
        %2415 = vmatprep.mubr.f32.mxu0 0.0
        %2416 = vmatmul.mubr.f32.gmra.mxu0 %v2246
        %v2417 = vpop.f32.mrf.mxu0
        %v2418 = vadd.f32 0.0, %v2417
        %v2419 = vpop.f32.mrf.mxu0
        %2420 = vmatprep.mubr.f32.mxu0 0.0
        %2421 = vmatmul.mubr.f32.gmra.mxu0 %v2249
        %v2422 = vpop.f32.mrf.mxu0
        %v2423 = vadd.f32 0.0, %v2422
        %v2424 = vpop.f32.mrf.mxu0
        %2425 = vmatprep.mubr.f32.mxu0 0.0
        %2426 = vmatmul.mubr.f32.gmra.mxu0 %v2252
        %v2427 = vpop.f32.mrf.mxu0
        %v2428 = vadd.f32 0.0, %v2427
        %v2429 = vpop.f32.mrf.mxu0
        %2430 = vmatprep.mubr.f32.mxu0 0.0
        %2431 = vmatmul.mubr.f32.gmra.mxu0 %v2255
        %v2432 = vpop.f32.mrf.mxu0
        %v2433 = vadd.f32 0.0, %v2432
        %v2434 = vpop.f32.mrf.mxu0
        %2435 = vmatprep.mubr.f32.mxu0 0.0
        %2436 = vmatmul.mubr.f32.gmra.mxu0 %v2258
        %v2437 = vpop.f32.mrf.mxu0
        %v2438 = vadd.f32 0.0, %v2437
        %v2439 = vpop.f32.mrf.mxu0
        %2440 = vmatprep.mubr.f32.mxu0 0.0
        %2441 = vmatmul.mubr.f32.gmra.mxu0 %v2261
        %v2442 = vpop.f32.mrf.mxu0
        %v2443 = vadd.f32 0.0, %v2442
        %v2444 = vpop.f32.mrf.mxu0
        %2445 = vmatprep.mubr.f32.mxu0 0.0
        %2446 = vmatmul.mubr.f32.gmra.mxu0 %v2264
        %v2447 = vpop.f32.mrf.mxu0
        %v2448 = vadd.f32 0.0, %v2447
        %v2449 = vpop.f32.mrf.mxu0
        %2450 = vmatprep.mubr.f32.mxu0 0.0
        %2451 = vmatmul.mubr.f32.gmra.mxu0 %v2267
        %v2452 = vpop.f32.mrf.mxu0
        %v2453 = vadd.f32 0.0, %v2452
        %v2454 = vpop.f32.mrf.mxu0
        %2455 = vmatprep.mubr.f32.mxu0 0.0
        %2456 = vmatmul.mubr.f32.gmra.mxu0 %v2270
        %v2457 = vpop.f32.mrf.mxu0
        %v2458 = vadd.f32 0.0, %v2457
        %v2459 = vpop.f32.mrf.mxu0
        %2460 = vmatprep.mubr.f32.mxu0 0.0
        %2461 = vmatmul.mubr.f32.gmra.mxu0 %v2273
        %v2462 = vpop.f32.mrf.mxu0
        %v2463 = vadd.f32 0.0, %v2462
        %v2464 = vpop.f32.mrf.mxu0
        %2465 = vmatprep.mubr.f32.mxu0 0.0
        %2466 = vmatmul.mubr.f32.gmra.mxu0 %v2276
        %v2467 = vpop.f32.mrf.mxu0
        %v2468 = vadd.f32 0.0, %v2467
        %v2469 = vpop.f32.mrf.mxu0
        %2470 = vmatprep.mubr.f32.mxu0 0.0
        %2471 = vmatmul.mubr.f32.gmra.mxu0 %v2279
        %v2472 = vpop.f32.mrf.mxu0
        %v2473 = vadd.f32 0.0, %v2472
        %v2474 = vpop.f32.mrf.mxu0
        %2475 = vmatprep.mubr.f32.mxu0 0.0
        %2476 = vmatmul.mubr.f32.gmra.mxu0 %v2282
        %v2477 = vpop.f32.mrf.mxu0
        %v2478 = vadd.f32 0.0, %v2477
        %v2479 = vpop.f32.mrf.mxu0
        %2480 = vmatprep.mubr.f32.mxu0 0.0
        %2481 = vmatmul.mubr.f32.gmra.mxu0 %v2285
        %v2482 = vpop.f32.mrf.mxu0
        %v2483 = vadd.f32 0.0, %v2482
        %v2484 = vpop.f32.mrf.mxu0
        %2485 = vmatprep.mubr.f32.mxu0 0.0
        %2486 = vmatmul.mubr.f32.gmra.mxu0 %v2288
        %v2487 = vpop.f32.mrf.mxu0
        %v2488 = vadd.f32 0.0, %v2487
        %v2489 = vpop.f32.mrf.mxu0
        %2490 = vmatprep.mubr.f32.mxu0 0.0
        %2491 = vmatmul.mubr.f32.gmra.mxu0 %v2291
        %v2492 = vpop.f32.mrf.mxu0
        %v2493 = vadd.f32 0.0, %v2492
        %v2494 = vpop.f32.mrf.mxu0
        %2495 = vmatprep.mubr.f32.mxu0 0.0
        %2496 = vmatmul.mubr.f32.gmra.mxu0 %v2294
        %v2497 = vpop.f32.mrf.mxu0
        %v2498 = vadd.f32 0.0, %v2497
        %v2499 = vpop.f32.mrf.mxu0
        %2500 = vmatprep.mubr.f32.mxu0 0.0
        %2501 = vmatmul.mubr.f32.gmra.mxu0 %v2297
        %v2502 = vpop.f32.mrf.mxu0
        %v2503 = vadd.f32 0.0, %v2502
        %v2504 = vpop.f32.mrf.mxu0
        %2505 = vmatprep.mubr.f32.mxu0 0.0
        %2506 = vmatmul.mubr.f32.gmra.mxu0 %v2300
        %v2507 = vpop.f32.mrf.mxu0
        %v2508 = vadd.f32 0.0, %v2507
        %v2509 = vpop.f32.mrf.mxu0
        %2510 = vmatprep.mubr.f32.mxu0 0.0
        %2511 = vmatmul.mubr.f32.gmra.mxu0 %v2303
        %v2512 = vpop.f32.mrf.mxu0
        %v2513 = vadd.f32 0.0, %v2512
        %v2514 = vpop.f32.mrf.mxu0
        %2515 = vmatprep.mubr.f32.mxu0 0.0
        %2516 = vmatmul.mubr.f32.gmra.mxu0 %v2306
        %v2517 = vpop.f32.mrf.mxu0
        %v2518 = vadd.f32 0.0, %v2517
        %v2519 = vpop.f32.mrf.mxu0
        %2520 = vmatprep.mubr.f32.mxu0 0.0
        %2521 = vmatmul.mubr.f32.gmra.mxu0 %v2309
        %v2522 = vpop.f32.mrf.mxu0
        %v2523 = vadd.f32 0.0, %v2522
        %v2524 = vpop.f32.mrf.mxu0
        %2525 = vmatprep.mubr.f32.mxu0 0.0
        %2526 = vmatmul.mubr.f32.gmra.mxu0 %v2312
        %v2527 = vpop.f32.mrf.mxu0
        %v2528 = vadd.f32 0.0, %v2527
        %v2529 = vpop.f32.mrf.mxu0
        %2530 = vmatprep.mubr.f32.mxu0 0.0
        %2531 = vmatmul.mubr.f32.gmra.mxu0 %v2315
        %v2532 = vpop.f32.mrf.mxu0
        %v2533 = vadd.f32 0.0, %v2532
        %v2534 = vpop.f32.mrf.mxu0
        %2535 = vmatprep.mubr.f32.mxu0 0.0
        %2536 = vmatmul.mubr.f32.gmra.mxu0 %v2318
        %v2537 = vpop.f32.mrf.mxu0
        %v2538 = vadd.f32 0.0, %v2537
        %v2539 = vpop.f32.mrf.mxu0
        %2540 = vmatprep.mubr.f32.mxu0 0.0
        %2541 = vmatmul.mubr.f32.gmra.mxu0 %v2321
        %v2542 = vpop.f32.mrf.mxu0
        %v2543 = vadd.f32 0.0, %v2542
        %v2544 = vpop.f32.mrf.mxu0
        %2545 = vmatprep.mubr.f32.mxu0 0.0
        %2546 = vmatmul.mubr.f32.gmra.mxu0 %v2324
        %v2547 = vpop.f32.mrf.mxu0
        %v2548 = vadd.f32 0.0, %v2547
        %v2549 = vpop.f32.mrf.mxu0
        %2550 = vmatprep.mubr.f32.mxu0 0.0
        %2551 = vmatmul.mubr.f32.gmra.mxu0 %v2327
        %v2552 = vpop.f32.mrf.mxu0
        %v2553 = vadd.f32 0.0, %v2552
        %v2554 = vpop.f32.mrf.mxu0
        %2555 = vmatprep.mubr.f32.mxu0 0.0
        %2556 = vmatmul.mubr.f32.gmra.mxu0 %v2330
        %v2557 = vpop.f32.mrf.mxu0
        %v2558 = vadd.f32 0.0, %v2557
        %v2559 = vpop.f32.mrf.mxu0
        %2560 = vdwg.mxu0
        %2561 = vst.msk [vmem:[%s631] sm:$0xff] %vm1999, %v2403
        %2562 = vst.msk [vmem:[%s631 + $0x8] sm:$0xff] %vm1999, %v2408
        %2563 = vst.msk [vmem:[%s631 + $0x10] sm:$0xff] %vm1999, %v2413
        %2564 = vst.msk [vmem:[%s631 + $0x18] sm:$0xff] %vm1999, %v2418
        %2565 = vst.msk [vmem:[%s631 + $0x20] sm:$0xff] %vm1999, %v2423
        %2566 = vst.msk [vmem:[%s631 + $0x28] sm:$0xff] %vm1999, %v2428
        %2567 = vst.msk [vmem:[%s631 + $0x30] sm:$0xff] %vm1999, %v2433
        %2568 = vst.msk [vmem:[%s631 + $0x38] sm:$0xff] %vm1999, %v2438
        %2569 = vst.msk [vmem:[%s631 + $0x40] sm:$0xff] %vm1999, %v2443
        %2570 = vst.msk [vmem:[%s631 + $0x48] sm:$0xff] %vm1999, %v2448
        %2571 = vst.msk [vmem:[%s631 + $0x50] sm:$0xff] %vm1999, %v2453
        %2572 = vst.msk [vmem:[%s631 + $0x58] sm:$0xff] %vm1999, %v2458
        %2573 = vst.msk [vmem:[%s631 + $0x60] sm:$0xff] %vm1999, %v2463
        %2574 = vst.msk [vmem:[%s631 + $0x68] sm:$0xff] %vm1999, %v2468
        %2575 = vst.msk [vmem:[%s631 + $0x70] sm:$0xff] %vm1999, %v2473
        %2576 = vst.msk [vmem:[%s631 + $0x78] sm:$0xff] %vm1999, %v2478
        %2577 = vst.msk [vmem:[%s631 + $0x80] sm:$0xff] %vm1999, %v2483
        %2578 = vst.msk [vmem:[%s631 + $0x88] sm:$0xff] %vm1999, %v2488
        %2579 = vst.msk [vmem:[%s631 + $0x90] sm:$0xff] %vm1999, %v2493
        %2580 = vst.msk [vmem:[%s631 + $0x98] sm:$0xff] %vm1999, %v2498
        %2581 = vst.msk [vmem:[%s631 + $0xa0] sm:$0xff] %vm1999, %v2503
        %2582 = vst.msk [vmem:[%s631 + $0xa8] sm:$0xff] %vm1999, %v2508
        %2583 = vst.msk [vmem:[%s631 + $0xb0] sm:$0xff] %vm1999, %v2513
        %2584 = vst.msk [vmem:[%s631 + $0xb8] sm:$0xff] %vm1999, %v2518
        %2585 = vst.msk [vmem:[%s631 + $0xc0] sm:$0xff] %vm1999, %v2523
        %2586 = vst.msk [vmem:[%s631 + $0xc8] sm:$0xff] %vm1999, %v2528
        %2587 = vst.msk [vmem:[%s631 + $0xd0] sm:$0xff] %vm1999, %v2533
        %2588 = vst.msk [vmem:[%s631 + $0xd8] sm:$0xff] %vm1999, %v2538
        %2589 = vst.msk [vmem:[%s631 + $0xe0] sm:$0xff] %vm1999, %v2543
        %2590 = vst.msk [vmem:[%s631 + $0xe8] sm:$0xff] %vm1999, %v2548
        %2591 = vst.msk [vmem:[%s631 + $0xf0] sm:$0xff] %vm1999, %v2553
        %2592 = vst.msk [vmem:[%s631 + $0xf8] sm:$0xff] %vm1999, %v2558
        %v2593 = vld [vmem:[%s2] sm:$0x1]
        %v2595 = vlaneseq
        %v2596 = vshrl.u32 %v2595, 7
        %v2597 = vsub.s32 0, %v2596
        %v2598 = vrot.slane %v2593, %v2597
        %v2600 = vmul.f32 %v2403, %v2598
        %v2601 = vmul.f32 %v2408, %v2598
        %v2602 = vmul.f32 %v2413, %v2598
        %v2603 = vmul.f32 %v2418, %v2598
        %v2604 = vmul.f32 %v2423, %v2598
        %v2605 = vmul.f32 %v2428, %v2598
        %v2606 = vmul.f32 %v2433, %v2598
        %v2607 = vmul.f32 %v2438, %v2598
        %v2608 = vmul.f32 %v2443, %v2598
        %v2609 = vmul.f32 %v2448, %v2598
        %v2610 = vmul.f32 %v2453, %v2598
        %v2611 = vmul.f32 %v2458, %v2598
        %v2612 = vmul.f32 %v2463, %v2598
        %v2613 = vmul.f32 %v2468, %v2598
        %v2614 = vmul.f32 %v2473, %v2598
        %v2615 = vmul.f32 %v2478, %v2598
        %v2616 = vmul.f32 %v2483, %v2598
        %v2617 = vmul.f32 %v2488, %v2598
        %v2618 = vmul.f32 %v2493, %v2598
        %v2619 = vmul.f32 %v2498, %v2598
        %v2620 = vmul.f32 %v2503, %v2598
        %v2621 = vmul.f32 %v2508, %v2598
        %v2622 = vmul.f32 %v2513, %v2598
        %v2623 = vmul.f32 %v2518, %v2598
        %v2624 = vmul.f32 %v2523, %v2598
        %v2625 = vmul.f32 %v2528, %v2598
        %v2626 = vmul.f32 %v2533, %v2598
        %v2627 = vmul.f32 %v2538, %v2598
        %v2628 = vmul.f32 %v2543, %v2598
        %v2629 = vmul.f32 %v2548, %v2598
        %v2630 = vmul.f32 %v2553, %v2598
        %v2631 = vmul.f32 %v2558, %v2598
        %v2632 = vld [vmem:[%s3] sm:$0x1]
        %v2634 = vlaneseq
        %v2635 = vshrl.u32 %v2634, 7
        %v2636 = vsub.s32 0, %v2635
        %v2637 = vrot.slane %v2632, %v2636
        %v2639 = vadd.f32 %v2600, %v2637
        %v2640 = vadd.f32 %v2601, %v2637
        %v2641 = vadd.f32 %v2602, %v2637
        %v2642 = vadd.f32 %v2603, %v2637
        %v2643 = vadd.f32 %v2604, %v2637
        %v2644 = vadd.f32 %v2605, %v2637
        %v2645 = vadd.f32 %v2606, %v2637
        %v2646 = vadd.f32 %v2607, %v2637
        %v2647 = vadd.f32 %v2608, %v2637
        %v2648 = vadd.f32 %v2609, %v2637
        %v2649 = vadd.f32 %v2610, %v2637
        %v2650 = vadd.f32 %v2611, %v2637
        %v2651 = vadd.f32 %v2612, %v2637
        %v2652 = vadd.f32 %v2613, %v2637
        %v2653 = vadd.f32 %v2614, %v2637
        %v2654 = vadd.f32 %v2615, %v2637
        %v2655 = vadd.f32 %v2616, %v2637
        %v2656 = vadd.f32 %v2617, %v2637
        %v2657 = vadd.f32 %v2618, %v2637
        %v2658 = vadd.f32 %v2619, %v2637
        %v2659 = vadd.f32 %v2620, %v2637
        %v2660 = vadd.f32 %v2621, %v2637
        %v2661 = vadd.f32 %v2622, %v2637
        %v2662 = vadd.f32 %v2623, %v2637
        %v2663 = vadd.f32 %v2624, %v2637
        %v2664 = vadd.f32 %v2625, %v2637
        %v2665 = vadd.f32 %v2626, %v2637
        %v2666 = vadd.f32 %v2627, %v2637
        %v2667 = vadd.f32 %v2628, %v2637
        %v2668 = vadd.f32 %v2629, %v2637
        %v2669 = vadd.f32 %v2630, %v2637
        %v2670 = vadd.f32 %v2631, %v2637
        %2671 = vst.msk [vmem:[%s636] sm:$0xff] %vm1999, %v2639
        %2672 = vst.msk [vmem:[%s636 + $0x8] sm:$0xff] %vm1999, %v2640
        %2673 = vst.msk [vmem:[%s636 + $0x10] sm:$0xff] %vm1999, %v2641
        %2674 = vst.msk [vmem:[%s636 + $0x18] sm:$0xff] %vm1999, %v2642
        %2675 = vst.msk [vmem:[%s636 + $0x20] sm:$0xff] %vm1999, %v2643
        %2676 = vst.msk [vmem:[%s636 + $0x28] sm:$0xff] %vm1999, %v2644
        %2677 = vst.msk [vmem:[%s636 + $0x30] sm:$0xff] %vm1999, %v2645
        %2678 = vst.msk [vmem:[%s636 + $0x38] sm:$0xff] %vm1999, %v2646
        %2679 = vst.msk [vmem:[%s636 + $0x40] sm:$0xff] %vm1999, %v2647
        %2680 = vst.msk [vmem:[%s636 + $0x48] sm:$0xff] %vm1999, %v2648
        %2681 = vst.msk [vmem:[%s636 + $0x50] sm:$0xff] %vm1999, %v2649
        %2682 = vst.msk [vmem:[%s636 + $0x58] sm:$0xff] %vm1999, %v2650
        %2683 = vst.msk [vmem:[%s636 + $0x60] sm:$0xff] %vm1999, %v2651
        %2684 = vst.msk [vmem:[%s636 + $0x68] sm:$0xff] %vm1999, %v2652
        %2685 = vst.msk [vmem:[%s636 + $0x70] sm:$0xff] %vm1999, %v2653
        %2686 = vst.msk [vmem:[%s636 + $0x78] sm:$0xff] %vm1999, %v2654
        %2687 = vst.msk [vmem:[%s636 + $0x80] sm:$0xff] %vm1999, %v2655
        %2688 = vst.msk [vmem:[%s636 + $0x88] sm:$0xff] %vm1999, %v2656
        %2689 = vst.msk [vmem:[%s636 + $0x90] sm:$0xff] %vm1999, %v2657
        %2690 = vst.msk [vmem:[%s636 + $0x98] sm:$0xff] %vm1999, %v2658
        %2691 = vst.msk [vmem:[%s636 + $0xa0] sm:$0xff] %vm1999, %v2659
        %2692 = vst.msk [vmem:[%s636 + $0xa8] sm:$0xff] %vm1999, %v2660
        %2693 = vst.msk [vmem:[%s636 + $0xb0] sm:$0xff] %vm1999, %v2661
        %2694 = vst.msk [vmem:[%s636 + $0xb8] sm:$0xff] %vm1999, %v2662
        %2695 = vst.msk [vmem:[%s636 + $0xc0] sm:$0xff] %vm1999, %v2663
        %2696 = vst.msk [vmem:[%s636 + $0xc8] sm:$0xff] %vm1999, %v2664
        %2697 = vst.msk [vmem:[%s636 + $0xd0] sm:$0xff] %vm1999, %v2665
        %2698 = vst.msk [vmem:[%s636 + $0xd8] sm:$0xff] %vm1999, %v2666
        %2699 = vst.msk [vmem:[%s636 + $0xe0] sm:$0xff] %vm1999, %v2667
        %2700 = vst.msk [vmem:[%s636 + $0xe8] sm:$0xff] %vm1999, %v2668
        %2701 = vst.msk [vmem:[%s636 + $0xf0] sm:$0xff] %vm1999, %v2669
        %2702 = vst.msk [vmem:[%s636 + $0xf8] sm:$0xff] %vm1999, %v2670
        %v2703 = vxor.u32 %v2639, 2147483648
        %v2704 = vxor.u32 %v2640, 2147483648
        %v2705 = vxor.u32 %v2641, 2147483648
        %v2706 = vxor.u32 %v2642, 2147483648
        %v2707 = vxor.u32 %v2643, 2147483648
        %v2708 = vxor.u32 %v2644, 2147483648
        %v2709 = vxor.u32 %v2645, 2147483648
        %v2710 = vxor.u32 %v2646, 2147483648
        %v2711 = vxor.u32 %v2647, 2147483648
        %v2712 = vxor.u32 %v2648, 2147483648
        %v2713 = vxor.u32 %v2649, 2147483648
        %v2714 = vxor.u32 %v2650, 2147483648
        %v2715 = vxor.u32 %v2651, 2147483648
        %v2716 = vxor.u32 %v2652, 2147483648
        %v2717 = vxor.u32 %v2653, 2147483648
        %v2718 = vxor.u32 %v2654, 2147483648
        %v2719 = vxor.u32 %v2655, 2147483648
        %v2720 = vxor.u32 %v2656, 2147483648
        %v2721 = vxor.u32 %v2657, 2147483648
        %v2722 = vxor.u32 %v2658, 2147483648
        %v2723 = vxor.u32 %v2659, 2147483648
        %v2724 = vxor.u32 %v2660, 2147483648
        %v2725 = vxor.u32 %v2661, 2147483648
        %v2726 = vxor.u32 %v2662, 2147483648
        %v2727 = vxor.u32 %v2663, 2147483648
        %v2728 = vxor.u32 %v2664, 2147483648
        %v2729 = vxor.u32 %v2665, 2147483648
        %v2730 = vxor.u32 %v2666, 2147483648
        %v2731 = vxor.u32 %v2667, 2147483648
        %v2732 = vxor.u32 %v2668, 2147483648
        %v2733 = vxor.u32 %v2669, 2147483648
        %v2734 = vxor.u32 %v2670, 2147483648
        %v2735 = vmul.f32 %v2703, 1.442695
        %v2736 = vpow.pop %v2735
        %v2737 = vmul.f32 %v2704, 1.442695
        %v2738 = vpow.pop %v2737
        %v2739 = vmul.f32 %v2705, 1.442695
        %v2740 = vpow.pop %v2739
        %v2741 = vmul.f32 %v2706, 1.442695
        %v2742 = vpow.pop %v2741
        %v2743 = vmul.f32 %v2707, 1.442695
        %v2744 = vpow.pop %v2743
        %v2745 = vmul.f32 %v2708, 1.442695
        %v2746 = vpow.pop %v2745
        %v2747 = vmul.f32 %v2709, 1.442695
        %v2748 = vpow.pop %v2747
        %v2749 = vmul.f32 %v2710, 1.442695
        %v2750 = vpow.pop %v2749
        %v2751 = vmul.f32 %v2711, 1.442695
        %v2752 = vpow.pop %v2751
        %v2753 = vmul.f32 %v2712, 1.442695
        %v2754 = vpow.pop %v2753
        %v2755 = vmul.f32 %v2713, 1.442695
        %v2756 = vpow.pop %v2755
        %v2757 = vmul.f32 %v2714, 1.442695
        %v2758 = vpow.pop %v2757
        %v2759 = vmul.f32 %v2715, 1.442695
        %v2760 = vpow.pop %v2759
        %v2761 = vmul.f32 %v2716, 1.442695
        %v2762 = vpow.pop %v2761
        %v2763 = vmul.f32 %v2717, 1.442695
        %v2764 = vpow.pop %v2763
        %v2765 = vmul.f32 %v2718, 1.442695
        %v2766 = vpow.pop %v2765
        %v2767 = vmul.f32 %v2719, 1.442695
        %v2768 = vpow.pop %v2767
        %v2769 = vmul.f32 %v2720, 1.442695
        %v2770 = vpow.pop %v2769
        %v2771 = vmul.f32 %v2721, 1.442695
        %v2772 = vpow.pop %v2771
        %v2773 = vmul.f32 %v2722, 1.442695
        %v2774 = vpow.pop %v2773
        %v2775 = vmul.f32 %v2723, 1.442695
        %v2776 = vpow.pop %v2775
        %v2777 = vmul.f32 %v2724, 1.442695
        %v2778 = vpow.pop %v2777
        %v2779 = vmul.f32 %v2725, 1.442695
        %v2780 = vpow.pop %v2779
        %v2781 = vmul.f32 %v2726, 1.442695
        %v2782 = vpow.pop %v2781
        %v2783 = vmul.f32 %v2727, 1.442695
        %v2784 = vpow.pop %v2783
        %v2785 = vmul.f32 %v2728, 1.442695
        %v2786 = vpow.pop %v2785
        %v2787 = vmul.f32 %v2729, 1.442695
        %v2788 = vpow.pop %v2787
        %v2789 = vmul.f32 %v2730, 1.442695
        %v2790 = vpow.pop %v2789
        %v2791 = vmul.f32 %v2731, 1.442695
        %v2792 = vpow.pop %v2791
        %v2793 = vmul.f32 %v2732, 1.442695
        %v2794 = vpow.pop %v2793
        %v2795 = vmul.f32 %v2733, 1.442695
        %v2796 = vpow.pop %v2795
        %v2797 = vmul.f32 %v2734, 1.442695
        %v2798 = vpow.pop %v2797
        %v2799 = vadd.f32 %v2736, 1.0
        %v2800 = vadd.f32 %v2738, 1.0
        %v2801 = vadd.f32 %v2740, 1.0
        %v2802 = vadd.f32 %v2742, 1.0
        %v2803 = vadd.f32 %v2744, 1.0
        %v2804 = vadd.f32 %v2746, 1.0
        %v2805 = vadd.f32 %v2748, 1.0
        %v2806 = vadd.f32 %v2750, 1.0
        %v2807 = vadd.f32 %v2752, 1.0
        %v2808 = vadd.f32 %v2754, 1.0
        %v2809 = vadd.f32 %v2756, 1.0
        %v2810 = vadd.f32 %v2758, 1.0
        %v2811 = vadd.f32 %v2760, 1.0
        %v2812 = vadd.f32 %v2762, 1.0
        %v2813 = vadd.f32 %v2764, 1.0
        %v2814 = vadd.f32 %v2766, 1.0
        %v2815 = vadd.f32 %v2768, 1.0
        %v2816 = vadd.f32 %v2770, 1.0
        %v2817 = vadd.f32 %v2772, 1.0
        %v2818 = vadd.f32 %v2774, 1.0
        %v2819 = vadd.f32 %v2776, 1.0
        %v2820 = vadd.f32 %v2778, 1.0
        %v2821 = vadd.f32 %v2780, 1.0
        %v2822 = vadd.f32 %v2782, 1.0
        %v2823 = vadd.f32 %v2784, 1.0
        %v2824 = vadd.f32 %v2786, 1.0
        %v2825 = vadd.f32 %v2788, 1.0
        %v2826 = vadd.f32 %v2790, 1.0
        %v2827 = vadd.f32 %v2792, 1.0
        %v2828 = vadd.f32 %v2794, 1.0
        %v2829 = vadd.f32 %v2796, 1.0
        %v2830 = vadd.f32 %v2798, 1.0
        %v2831 = vrcp.pop %v2799
        %v2832 = vmul.f32 1.0, %v2831
        %v2833 = vrcp.pop %v2800
        %v2834 = vmul.f32 1.0, %v2833
        %v2835 = vrcp.pop %v2801
        %v2836 = vmul.f32 1.0, %v2835
        %v2837 = vrcp.pop %v2802
        %v2838 = vmul.f32 1.0, %v2837
        %v2839 = vrcp.pop %v2803
        %v2840 = vmul.f32 1.0, %v2839
        %v2841 = vrcp.pop %v2804
        %v2842 = vmul.f32 1.0, %v2841
        %v2843 = vrcp.pop %v2805
        %v2844 = vmul.f32 1.0, %v2843
        %v2845 = vrcp.pop %v2806
        %v2846 = vmul.f32 1.0, %v2845
        %v2847 = vrcp.pop %v2807
        %v2848 = vmul.f32 1.0, %v2847
        %v2849 = vrcp.pop %v2808
        %v2850 = vmul.f32 1.0, %v2849
        %v2851 = vrcp.pop %v2809
        %v2852 = vmul.f32 1.0, %v2851
        %v2853 = vrcp.pop %v2810
        %v2854 = vmul.f32 1.0, %v2853
        %v2855 = vrcp.pop %v2811
        %v2856 = vmul.f32 1.0, %v2855
        %v2857 = vrcp.pop %v2812
        %v2858 = vmul.f32 1.0, %v2857
        %v2859 = vrcp.pop %v2813
        %v2860 = vmul.f32 1.0, %v2859
        %v2861 = vrcp.pop %v2814
        %v2862 = vmul.f32 1.0, %v2861
        %v2863 = vrcp.pop %v2815
        %v2864 = vmul.f32 1.0, %v2863
        %v2865 = vrcp.pop %v2816
        %v2866 = vmul.f32 1.0, %v2865
        %v2867 = vrcp.pop %v2817
        %v2868 = vmul.f32 1.0, %v2867
        %v2869 = vrcp.pop %v2818
        %v2870 = vmul.f32 1.0, %v2869
        %v2871 = vrcp.pop %v2819
        %v2872 = vmul.f32 1.0, %v2871
        %v2873 = vrcp.pop %v2820
        %v2874 = vmul.f32 1.0, %v2873
        %v2875 = vrcp.pop %v2821
        %v2876 = vmul.f32 1.0, %v2875
        %v2877 = vrcp.pop %v2822
        %v2878 = vmul.f32 1.0, %v2877
        %v2879 = vrcp.pop %v2823
        %v2880 = vmul.f32 1.0, %v2879
        %v2881 = vrcp.pop %v2824
        %v2882 = vmul.f32 1.0, %v2881
        %v2883 = vrcp.pop %v2825
        %v2884 = vmul.f32 1.0, %v2883
        %v2885 = vrcp.pop %v2826
        %v2886 = vmul.f32 1.0, %v2885
        %v2887 = vrcp.pop %v2827
        %v2888 = vmul.f32 1.0, %v2887
        %v2889 = vrcp.pop %v2828
        %v2890 = vmul.f32 1.0, %v2889
        %v2891 = vrcp.pop %v2829
        %v2892 = vmul.f32 1.0, %v2891
        %v2893 = vrcp.pop %v2830
        %v2894 = vmul.f32 1.0, %v2893
        %v2895 = vmul.f32 %v2639, %v2832
        %v2896 = vmul.f32 %v2640, %v2834
        %v2897 = vmul.f32 %v2641, %v2836
        %v2898 = vmul.f32 %v2642, %v2838
        %v2899 = vmul.f32 %v2643, %v2840
        %v2900 = vmul.f32 %v2644, %v2842
        %v2901 = vmul.f32 %v2645, %v2844
        %v2902 = vmul.f32 %v2646, %v2846
        %v2903 = vmul.f32 %v2647, %v2848
        %v2904 = vmul.f32 %v2648, %v2850
        %v2905 = vmul.f32 %v2649, %v2852
        %v2906 = vmul.f32 %v2650, %v2854
        %v2907 = vmul.f32 %v2651, %v2856
        %v2908 = vmul.f32 %v2652, %v2858
        %v2909 = vmul.f32 %v2653, %v2860
        %v2910 = vmul.f32 %v2654, %v2862
        %v2911 = vmul.f32 %v2655, %v2864
        %v2912 = vmul.f32 %v2656, %v2866
        %v2913 = vmul.f32 %v2657, %v2868
        %v2914 = vmul.f32 %v2658, %v2870
        %v2915 = vmul.f32 %v2659, %v2872
        %v2916 = vmul.f32 %v2660, %v2874
        %v2917 = vmul.f32 %v2661, %v2876
        %v2918 = vmul.f32 %v2662, %v2878
        %v2919 = vmul.f32 %v2663, %v2880
        %v2920 = vmul.f32 %v2664, %v2882
        %v2921 = vmul.f32 %v2665, %v2884
        %v2922 = vmul.f32 %v2666, %v2886
        %v2923 = vmul.f32 %v2667, %v2888
        %v2924 = vmul.f32 %v2668, %v2890
        %v2925 = vmul.f32 %v2669, %v2892
        %v2926 = vmul.f32 %v2670, %v2894
        %2927 = vst.msk [vmem:[%s641] sm:$0xff] %vm1999, %v2895
        %2928 = vst.msk [vmem:[%s641 + $0x8] sm:$0xff] %vm1999, %v2896
        %2929 = vst.msk [vmem:[%s641 + $0x10] sm:$0xff] %vm1999, %v2897
        %2930 = vst.msk [vmem:[%s641 + $0x18] sm:$0xff] %vm1999, %v2898
        %2931 = vst.msk [vmem:[%s641 + $0x20] sm:$0xff] %vm1999, %v2899
        %2932 = vst.msk [vmem:[%s641 + $0x28] sm:$0xff] %vm1999, %v2900
        %2933 = vst.msk [vmem:[%s641 + $0x30] sm:$0xff] %vm1999, %v2901
        %2934 = vst.msk [vmem:[%s641 + $0x38] sm:$0xff] %vm1999, %v2902
        %2935 = vst.msk [vmem:[%s641 + $0x40] sm:$0xff] %vm1999, %v2903
        %2936 = vst.msk [vmem:[%s641 + $0x48] sm:$0xff] %vm1999, %v2904
        %2937 = vst.msk [vmem:[%s641 + $0x50] sm:$0xff] %vm1999, %v2905
        %2938 = vst.msk [vmem:[%s641 + $0x58] sm:$0xff] %vm1999, %v2906
        %2939 = vst.msk [vmem:[%s641 + $0x60] sm:$0xff] %vm1999, %v2907
        %2940 = vst.msk [vmem:[%s641 + $0x68] sm:$0xff] %vm1999, %v2908
        %2941 = vst.msk [vmem:[%s641 + $0x70] sm:$0xff] %vm1999, %v2909
        %2942 = vst.msk [vmem:[%s641 + $0x78] sm:$0xff] %vm1999, %v2910
        %2943 = vst.msk [vmem:[%s641 + $0x80] sm:$0xff] %vm1999, %v2911
        %2944 = vst.msk [vmem:[%s641 + $0x88] sm:$0xff] %vm1999, %v2912
        %2945 = vst.msk [vmem:[%s641 + $0x90] sm:$0xff] %vm1999, %v2913
        %2946 = vst.msk [vmem:[%s641 + $0x98] sm:$0xff] %vm1999, %v2914
        %2947 = vst.msk [vmem:[%s641 + $0xa0] sm:$0xff] %vm1999, %v2915
        %2948 = vst.msk [vmem:[%s641 + $0xa8] sm:$0xff] %vm1999, %v2916
        %2949 = vst.msk [vmem:[%s641 + $0xb0] sm:$0xff] %vm1999, %v2917
        %2950 = vst.msk [vmem:[%s641 + $0xb8] sm:$0xff] %vm1999, %v2918
        %2951 = vst.msk [vmem:[%s641 + $0xc0] sm:$0xff] %vm1999, %v2919
        %2952 = vst.msk [vmem:[%s641 + $0xc8] sm:$0xff] %vm1999, %v2920
        %2953 = vst.msk [vmem:[%s641 + $0xd0] sm:$0xff] %vm1999, %v2921
        %2954 = vst.msk [vmem:[%s641 + $0xd8] sm:$0xff] %vm1999, %v2922
        %2955 = vst.msk [vmem:[%s641 + $0xe0] sm:$0xff] %vm1999, %v2923
        %2956 = vst.msk [vmem:[%s641 + $0xe8] sm:$0xff] %vm1999, %v2924
        %2957 = vst.msk [vmem:[%s641 + $0xf0] sm:$0xff] %vm1999, %v2925
        %2958 = vst.msk [vmem:[%s641 + $0xf8] sm:$0xff] %vm1999, %v2926
        %2959 = vst.msk [vmem:[#allocation2] sm:$0xff] %vm1999, 0.0
        %2960 = vst.msk [vmem:[#allocation2 + $0x8] sm:$0xff] %vm1999, 0.0
        %vm2961 = vcmask 58368
        %2962 = vst.msk [vmem:[#allocation2 + $0x10] sm:$0x3] %vm2961, 0.0
        %2963 = vst.msk [vmem:[#allocation2 + $0x18] sm:$0xff] %vm1999, 0.0
        %2964 = vst.msk [vmem:[#allocation2 + $0x20] sm:$0xff] %vm1999, 0.0
        %2965 = vst.msk [vmem:[#allocation2 + $0x28] sm:$0x3] %vm2961, 0.0
        %2966 = vst.msk [vmem:[#allocation2 + $0x30] sm:$0xff] %vm1999, 0.0
        %2967 = vst.msk [vmem:[#allocation2 + $0x38] sm:$0xff] %vm1999, 0.0
        %2968 = vst.msk [vmem:[#allocation2 + $0x40] sm:$0x3] %vm2961, 0.0
        %2969 = vst.msk [vmem:[#allocation2 + $0x48] sm:$0xff] %vm1999, 0.0
        %2970 = vst.msk [vmem:[#allocation2 + $0x50] sm:$0xff] %vm1999, 0.0
        %2971 = vst.msk [vmem:[#allocation2 + $0x58] sm:$0x3] %vm2961, 0.0
        %2972 = vst.msk [vmem:[#allocation2 + $0x60] sm:$0xff] %vm1999, 0.0
        %2973 = vst.msk [vmem:[#allocation2 + $0x68] sm:$0xff] %vm1999, 0.0
        %2974 = vst.msk [vmem:[#allocation2 + $0x70] sm:$0x3] %vm2961, 0.0
        %2975 = vst.msk [vmem:[#allocation2 + $0x78] sm:$0xff] %vm1999, 0.0
        %2976 = vst.msk [vmem:[#allocation2 + $0x80] sm:$0xff] %vm1999, 0.0
        %2977 = vst.msk [vmem:[#allocation2 + $0x88] sm:$0x3] %vm2961, 0.0
        %2978 = vst.msk [vmem:[#allocation2 + $0x90] sm:$0xff] %vm1999, 0.0
        %2979 = vst.msk [vmem:[#allocation2 + $0x98] sm:$0xff] %vm1999, 0.0
        %2980 = vst.msk [vmem:[#allocation2 + $0xa0] sm:$0x3] %vm2961, 0.0
        %2981 = vst.msk [vmem:[#allocation2 + $0xa8] sm:$0xff] %vm1999, 0.0
        %2982 = vst.msk [vmem:[#allocation2 + $0xb0] sm:$0xff] %vm1999, 0.0
        %2983 = vst.msk [vmem:[#allocation2 + $0xb8] sm:$0x3] %vm2961, 0.0
        %2984 = vst.msk [vmem:[#allocation2 + $0xc0] sm:$0xff] %vm1999, 0.0
        %2985 = vst.msk [vmem:[#allocation2 + $0xc8] sm:$0xff] %vm1999, 0.0
        %2986 = vst.msk [vmem:[#allocation2 + $0xd0] sm:$0x3] %vm2961, 0.0
        %2987 = vst.msk [vmem:[#allocation2 + $0xd8] sm:$0xff] %vm1999, 0.0
        %2988 = vst.msk [vmem:[#allocation2 + $0xe0] sm:$0xff] %vm1999, 0.0
        %2989 = vst.msk [vmem:[#allocation2 + $0xe8] sm:$0x3] %vm2961, 0.0
        %2990 = vst.msk [vmem:[#allocation2 + $0xf0] sm:$0xff] %vm1999, 0.0
        %2991 = vst.msk [vmem:[#allocation2 + $0xf8] sm:$0xff] %vm1999, 0.0
        %2992 = vst.msk [vmem:[#allocation2 + $0x100] sm:$0x3] %vm2961, 0.0
        %2993 = vst.msk [vmem:[#allocation2 + $0x108] sm:$0xff] %vm1999, 0.0
        %2994 = vst.msk [vmem:[#allocation2 + $0x110] sm:$0xff] %vm1999, 0.0
        %2995 = vst.msk [vmem:[#allocation2 + $0x118] sm:$0x3] %vm2961, 0.0
        %2996 = vst.msk [vmem:[#allocation2 + $0x120] sm:$0xff] %vm1999, 0.0
        %2997 = vst.msk [vmem:[#allocation2 + $0x128] sm:$0xff] %vm1999, 0.0
        %2998 = vst.msk [vmem:[#allocation2 + $0x130] sm:$0x3] %vm2961, 0.0
        %2999 = vst.msk [vmem:[#allocation2 + $0x138] sm:$0xff] %vm1999, 0.0
        %3000 = vst.msk [vmem:[#allocation2 + $0x140] sm:$0xff] %vm1999, 0.0
        %3001 = vst.msk [vmem:[#allocation2 + $0x148] sm:$0x3] %vm2961, 0.0
        %3002 = vst.msk [vmem:[#allocation2 + $0x150] sm:$0xff] %vm1999, 0.0
        %3003 = vst.msk [vmem:[#allocation2 + $0x158] sm:$0xff] %vm1999, 0.0
        %3004 = vst.msk [vmem:[#allocation2 + $0x160] sm:$0x3] %vm2961, 0.0
        %3005 = vst.msk [vmem:[#allocation2 + $0x168] sm:$0xff] %vm1999, 0.0
        %3006 = vst.msk [vmem:[#allocation2 + $0x170] sm:$0xff] %vm1999, 0.0
        %3007 = vst.msk [vmem:[#allocation2 + $0x178] sm:$0x3] %vm2961, 0.0
        %3008 = vst.msk [vmem:[#allocation2 + $0x180] sm:$0xff] %vm1999, 0.0
        %3009 = vst.msk [vmem:[#allocation2 + $0x188] sm:$0xff] %vm1999, 0.0
        %3010 = vst.msk [vmem:[#allocation2 + $0x190] sm:$0x3] %vm2961, 0.0
        %3011 = vst.msk [vmem:[#allocation2 + $0x198] sm:$0xff] %vm1999, 0.0
        %3012 = vst.msk [vmem:[#allocation2 + $0x1a0] sm:$0xff] %vm1999, 0.0
        %3013 = vst.msk [vmem:[#allocation2 + $0x1a8] sm:$0x3] %vm2961, 0.0
        %s3014 = scalar_lea.vmem [#allocation2], 24
        %3015 = vst.msk [vmem:[%s3014 + $0x1] sm:$0xff] %vm1999, %v2895
        %3016 = vst.msk [vmem:[%s3014 + $0x9] sm:$0xff] %vm1999, %v2896
        %3017 = vst.msk [vmem:[%s3014 + $0x19] sm:$0xff] %vm1999, %v2897
        %3018 = vst.msk [vmem:[%s3014 + $0x21] sm:$0xff] %vm1999, %v2898
        %3019 = vst.msk [vmem:[%s3014 + $0x31] sm:$0xff] %vm1999, %v2899
        %3020 = vst.msk [vmem:[%s3014 + $0x39] sm:$0xff] %vm1999, %v2900
        %3021 = vst.msk [vmem:[%s3014 + $0x49] sm:$0xff] %vm1999, %v2901
        %3022 = vst.msk [vmem:[%s3014 + $0x51] sm:$0xff] %vm1999, %v2902
        %3023 = vst.msk [vmem:[%s3014 + $0x61] sm:$0xff] %vm1999, %v2903
        %3024 = vst.msk [vmem:[%s3014 + $0x69] sm:$0xff] %vm1999, %v2904
        %3025 = vst.msk [vmem:[%s3014 + $0x79] sm:$0xff] %vm1999, %v2905
        %3026 = vst.msk [vmem:[%s3014 + $0x81] sm:$0xff] %vm1999, %v2906
        %3027 = vst.msk [vmem:[%s3014 + $0x91] sm:$0xff] %vm1999, %v2907
        %3028 = vst.msk [vmem:[%s3014 + $0x99] sm:$0xff] %vm1999, %v2908
        %3029 = vst.msk [vmem:[%s3014 + $0xa9] sm:$0xff] %vm1999, %v2909
        %3030 = vst.msk [vmem:[%s3014 + $0xb1] sm:$0xff] %vm1999, %v2910
        %3031 = vst.msk [vmem:[%s3014 + $0xc1] sm:$0xff] %vm1999, %v2911
        %3032 = vst.msk [vmem:[%s3014 + $0xc9] sm:$0xff] %vm1999, %v2912
        %3033 = vst.msk [vmem:[%s3014 + $0xd9] sm:$0xff] %vm1999, %v2913
        %3034 = vst.msk [vmem:[%s3014 + $0xe1] sm:$0xff] %vm1999, %v2914
        %3035 = vst.msk [vmem:[%s3014 + $0xf1] sm:$0xff] %vm1999, %v2915
        %3036 = vst.msk [vmem:[%s3014 + $0xf9] sm:$0xff] %vm1999, %v2916
        %3037 = vst.msk [vmem:[%s3014 + $0x109] sm:$0xff] %vm1999, %v2917
        %3038 = vst.msk [vmem:[%s3014 + $0x111] sm:$0xff] %vm1999, %v2918
        %3039 = vst.msk [vmem:[%s3014 + $0x121] sm:$0xff] %vm1999, %v2919
        %3040 = vst.msk [vmem:[%s3014 + $0x129] sm:$0xff] %vm1999, %v2920
        %3041 = vst.msk [vmem:[%s3014 + $0x139] sm:$0xff] %vm1999, %v2921
        %3042 = vst.msk [vmem:[%s3014 + $0x141] sm:$0xff] %vm1999, %v2922
        %3043 = vst.msk [vmem:[%s3014 + $0x151] sm:$0xff] %vm1999, %v2923
        %3044 = vst.msk [vmem:[%s3014 + $0x159] sm:$0xff] %vm1999, %v2924
        %3045 = vst.msk [vmem:[%s3014 + $0x169] sm:$0xff] %vm1999, %v2925
        %3046 = vst.msk [vmem:[%s3014 + $0x171] sm:$0xff] %vm1999, %v2926
        %v3047 = vld [vmem:[#allocation2] sm:$0xff]
        %v3048 = vld [vmem:[#allocation2 + $0x8] sm:$0xff]
        %v3049 = vld [vmem:[#allocation2 + $0x18] sm:$0xff]
        %v3050 = vld [vmem:[#allocation2 + $0x20] sm:$0xff]
        %v3051 = vld [vmem:[#allocation2 + $0x30] sm:$0xff]
        %v3052 = vld [vmem:[#allocation2 + $0x38] sm:$0xff]
        %v3053 = vld [vmem:[#allocation2 + $0x48] sm:$0xff]
        %v3054 = vld [vmem:[#allocation2 + $0x50] sm:$0xff]
        %v3055 = vld [vmem:[#allocation2 + $0x60] sm:$0xff]
        %v3056 = vld [vmem:[#allocation2 + $0x68] sm:$0xff]
        %v3057 = vld [vmem:[#allocation2 + $0x78] sm:$0xff]
        %v3058 = vld [vmem:[#allocation2 + $0x80] sm:$0xff]
        %v3059 = vld [vmem:[#allocation2 + $0x90] sm:$0xff]
        %v3060 = vld [vmem:[#allocation2 + $0x98] sm:$0xff]
        %v3061 = vld [vmem:[#allocation2 + $0xa8] sm:$0xff]
        %v3062 = vld [vmem:[#allocation2 + $0xb0] sm:$0xff]
        %v3063 = vld [vmem:[#allocation2 + $0xc0] sm:$0xff]
        %v3064 = vld [vmem:[#allocation2 + $0xc8] sm:$0xff]
        %v3065 = vld [vmem:[#allocation2 + $0xd8] sm:$0xff]
        %v3066 = vld [vmem:[#allocation2 + $0xe0] sm:$0xff]
        %v3067 = vld [vmem:[#allocation2 + $0xf0] sm:$0xff]
        %v3068 = vld [vmem:[#allocation2 + $0xf8] sm:$0xff]
        %v3069 = vld [vmem:[#allocation2 + $0x108] sm:$0xff]
        %v3070 = vld [vmem:[#allocation2 + $0x110] sm:$0xff]
        %v3071 = vld [vmem:[#allocation2 + $0x120] sm:$0xff]
        %v3072 = vld [vmem:[#allocation2 + $0x128] sm:$0xff]
        %v3073 = vld [vmem:[#allocation2 + $0x138] sm:$0xff]
        %v3074 = vld [vmem:[#allocation2 + $0x140] sm:$0xff]
        %v3075 = vld [vmem:[#allocation2 + $0x150] sm:$0xff]
        %v3076 = vld [vmem:[#allocation2 + $0x158] sm:$0xff]
        %v3077 = vld [vmem:[#allocation2 + $0x168] sm:$0xff]
        %v3078 = vld [vmem:[#allocation2 + $0x170] sm:$0xff]
        %v3079 = vld [vmem:[#allocation2 + $0x1] sm:$0xff]
        %v3080 = vld [vmem:[#allocation2 + $0x9] sm:$0xff]
        %v3081 = vld [vmem:[#allocation2 + $0x19] sm:$0xff]
        %v3082 = vld [vmem:[#allocation2 + $0x21] sm:$0xff]
        %v3083 = vld [vmem:[#allocation2 + $0x31] sm:$0xff]
        %v3084 = vld [vmem:[#allocation2 + $0x39] sm:$0xff]
        %v3085 = vld [vmem:[#allocation2 + $0x49] sm:$0xff]
        %v3086 = vld [vmem:[#allocation2 + $0x51] sm:$0xff]
        %v3087 = vld [vmem:[#allocation2 + $0x61] sm:$0xff]
        %v3088 = vld [vmem:[#allocation2 + $0x69] sm:$0xff]
        %v3089 = vld [vmem:[#allocation2 + $0x79] sm:$0xff]
        %v3090 = vld [vmem:[#allocation2 + $0x81] sm:$0xff]
        %v3091 = vld [vmem:[#allocation2 + $0x91] sm:$0xff]
        %v3092 = vld [vmem:[#allocation2 + $0x99] sm:$0xff]
        %v3093 = vld [vmem:[#allocation2 + $0xa9] sm:$0xff]
        %v3094 = vld [vmem:[#allocation2 + $0xb1] sm:$0xff]
        %v3095 = vld [vmem:[#allocation2 + $0xc1] sm:$0xff]
        %v3096 = vld [vmem:[#allocation2 + $0xc9] sm:$0xff]
        %v3097 = vld [vmem:[#allocation2 + $0xd9] sm:$0xff]
        %v3098 = vld [vmem:[#allocation2 + $0xe1] sm:$0xff]
        %v3099 = vld [vmem:[#allocation2 + $0xf1] sm:$0xff]
        %v3100 = vld [vmem:[#allocation2 + $0xf9] sm:$0xff]
        %v3101 = vld [vmem:[#allocation2 + $0x109] sm:$0xff]
        %v3102 = vld [vmem:[#allocation2 + $0x111] sm:$0xff]
        %v3103 = vld [vmem:[#allocation2 + $0x121] sm:$0xff]
        %v3104 = vld [vmem:[#allocation2 + $0x129] sm:$0xff]
        %v3105 = vld [vmem:[#allocation2 + $0x139] sm:$0xff]
        %v3106 = vld [vmem:[#allocation2 + $0x141] sm:$0xff]
        %v3107 = vld [vmem:[#allocation2 + $0x151] sm:$0xff]
        %v3108 = vld [vmem:[#allocation2 + $0x159] sm:$0xff]
        %v3109 = vld [vmem:[#allocation2 + $0x169] sm:$0xff]
        %v3110 = vld [vmem:[#allocation2 + $0x171] sm:$0xff]
        %v3111 = vld [vmem:[#allocation2 + $0x2] sm:$0xff]
        %v3112 = vld [vmem:[#allocation2 + $0xa] sm:$0xff]
        %v3113 = vld [vmem:[#allocation2 + $0x1a] sm:$0xff]
        %v3114 = vld [vmem:[#allocation2 + $0x22] sm:$0xff]
        %v3115 = vld [vmem:[#allocation2 + $0x32] sm:$0xff]
        %v3116 = vld [vmem:[#allocation2 + $0x3a] sm:$0xff]
        %v3117 = vld [vmem:[#allocation2 + $0x4a] sm:$0xff]
        %v3118 = vld [vmem:[#allocation2 + $0x52] sm:$0xff]
        %v3119 = vld [vmem:[#allocation2 + $0x62] sm:$0xff]
        %v3120 = vld [vmem:[#allocation2 + $0x6a] sm:$0xff]
        %v3121 = vld [vmem:[#allocation2 + $0x7a] sm:$0xff]
        %v3122 = vld [vmem:[#allocation2 + $0x82] sm:$0xff]
        %v3123 = vld [vmem:[#allocation2 + $0x92] sm:$0xff]
        %v3124 = vld [vmem:[#allocation2 + $0x9a] sm:$0xff]
        %v3125 = vld [vmem:[#allocation2 + $0xaa] sm:$0xff]
        %v3126 = vld [vmem:[#allocation2 + $0xb2] sm:$0xff]
        %v3127 = vld [vmem:[#allocation2 + $0xc2] sm:$0xff]
        %v3128 = vld [vmem:[#allocation2 + $0xca] sm:$0xff]
        %v3129 = vld [vmem:[#allocation2 + $0xda] sm:$0xff]
        %v3130 = vld [vmem:[#allocation2 + $0xe2] sm:$0xff]
        %v3131 = vld [vmem:[#allocation2 + $0xf2] sm:$0xff]
        %v3132 = vld [vmem:[#allocation2 + $0xfa] sm:$0xff]
        %v3133 = vld [vmem:[#allocation2 + $0x10a] sm:$0xff]
        %v3134 = vld [vmem:[#allocation2 + $0x112] sm:$0xff]
        %v3135 = vld [vmem:[#allocation2 + $0x122] sm:$0xff]
        %v3136 = vld [vmem:[#allocation2 + $0x12a] sm:$0xff]
        %v3137 = vld [vmem:[#allocation2 + $0x13a] sm:$0xff]
        %v3138 = vld [vmem:[#allocation2 + $0x142] sm:$0xff]
        %v3139 = vld [vmem:[#allocation2 + $0x152] sm:$0xff]
        %v3140 = vld [vmem:[#allocation2 + $0x15a] sm:$0xff]
        %v3141 = vld [vmem:[#allocation2 + $0x16a] sm:$0xff]
        %v3142 = vld [vmem:[#allocation2 + $0x172] sm:$0xff]
        %v3143 = vld [vmem:[%s3014] sm:$0xff]
        %v3144 = vld [vmem:[%s3014 + $0x8] sm:$0xff]
        %v3145 = vld [vmem:[%s3014 + $0x18] sm:$0xff]
        %v3146 = vld [vmem:[%s3014 + $0x20] sm:$0xff]
        %v3147 = vld [vmem:[%s3014 + $0x30] sm:$0xff]
        %v3148 = vld [vmem:[%s3014 + $0x38] sm:$0xff]
        %v3149 = vld [vmem:[%s3014 + $0x48] sm:$0xff]
        %v3150 = vld [vmem:[%s3014 + $0x50] sm:$0xff]
        %v3151 = vld [vmem:[%s3014 + $0x60] sm:$0xff]
        %v3152 = vld [vmem:[%s3014 + $0x68] sm:$0xff]
        %v3153 = vld [vmem:[%s3014 + $0x78] sm:$0xff]
        %v3154 = vld [vmem:[%s3014 + $0x80] sm:$0xff]
        %v3155 = vld [vmem:[%s3014 + $0x90] sm:$0xff]
        %v3156 = vld [vmem:[%s3014 + $0x98] sm:$0xff]
        %v3157 = vld [vmem:[%s3014 + $0xa8] sm:$0xff]
        %v3158 = vld [vmem:[%s3014 + $0xb0] sm:$0xff]
        %v3159 = vld [vmem:[%s3014 + $0xc0] sm:$0xff]
        %v3160 = vld [vmem:[%s3014 + $0xc8] sm:$0xff]
        %v3161 = vld [vmem:[%s3014 + $0xd8] sm:$0xff]
        %v3162 = vld [vmem:[%s3014 + $0xe0] sm:$0xff]
        %v3163 = vld [vmem:[%s3014 + $0xf0] sm:$0xff]
        %v3164 = vld [vmem:[%s3014 + $0xf8] sm:$0xff]
        %v3165 = vld [vmem:[%s3014 + $0x108] sm:$0xff]
        %v3166 = vld [vmem:[%s3014 + $0x110] sm:$0xff]
        %v3167 = vld [vmem:[%s3014 + $0x120] sm:$0xff]
        %v3168 = vld [vmem:[%s3014 + $0x128] sm:$0xff]
        %v3169 = vld [vmem:[%s3014 + $0x138] sm:$0xff]
        %v3170 = vld [vmem:[%s3014 + $0x140] sm:$0xff]
        %v3171 = vld [vmem:[%s3014 + $0x150] sm:$0xff]
        %v3172 = vld [vmem:[%s3014 + $0x158] sm:$0xff]
        %v3173 = vld [vmem:[%s3014 + $0x168] sm:$0xff]
        %v3174 = vld [vmem:[%s3014 + $0x170] sm:$0xff]
        %v3175 = vld [vmem:[%s3014 + $0x1] sm:$0xff]
        %v3176 = vld [vmem:[%s3014 + $0x9] sm:$0xff]
        %v3177 = vld [vmem:[%s3014 + $0x19] sm:$0xff]
        %v3178 = vld [vmem:[%s3014 + $0x21] sm:$0xff]
        %v3179 = vld [vmem:[%s3014 + $0x31] sm:$0xff]
        %v3180 = vld [vmem:[%s3014 + $0x39] sm:$0xff]
        %v3181 = vld [vmem:[%s3014 + $0x49] sm:$0xff]
        %v3182 = vld [vmem:[%s3014 + $0x51] sm:$0xff]
        %v3183 = vld [vmem:[%s3014 + $0x61] sm:$0xff]
        %v3184 = vld [vmem:[%s3014 + $0x69] sm:$0xff]
        %v3185 = vld [vmem:[%s3014 + $0x79] sm:$0xff]
        %v3186 = vld [vmem:[%s3014 + $0x81] sm:$0xff]
        %v3187 = vld [vmem:[%s3014 + $0x91] sm:$0xff]
        %v3188 = vld [vmem:[%s3014 + $0x99] sm:$0xff]
        %v3189 = vld [vmem:[%s3014 + $0xa9] sm:$0xff]
        %v3190 = vld [vmem:[%s3014 + $0xb1] sm:$0xff]
        %v3191 = vld [vmem:[%s3014 + $0xc1] sm:$0xff]
        %v3192 = vld [vmem:[%s3014 + $0xc9] sm:$0xff]
        %v3193 = vld [vmem:[%s3014 + $0xd9] sm:$0xff]
        %v3194 = vld [vmem:[%s3014 + $0xe1] sm:$0xff]
        %v3195 = vld [vmem:[%s3014 + $0xf1] sm:$0xff]
        %v3196 = vld [vmem:[%s3014 + $0xf9] sm:$0xff]
        %v3197 = vld [vmem:[%s3014 + $0x109] sm:$0xff]
        %v3198 = vld [vmem:[%s3014 + $0x111] sm:$0xff]
        %v3199 = vld [vmem:[%s3014 + $0x121] sm:$0xff]
        %v3200 = vld [vmem:[%s3014 + $0x129] sm:$0xff]
        %v3201 = vld [vmem:[%s3014 + $0x139] sm:$0xff]
        %v3202 = vld [vmem:[%s3014 + $0x141] sm:$0xff]
        %v3203 = vld [vmem:[%s3014 + $0x151] sm:$0xff]
        %v3204 = vld [vmem:[%s3014 + $0x159] sm:$0xff]
        %v3205 = vld [vmem:[%s3014 + $0x169] sm:$0xff]
        %v3206 = vld [vmem:[%s3014 + $0x171] sm:$0xff]
        %v3207 = vld [vmem:[%s3014 + $0x2] sm:$0xff]
        %v3208 = vld [vmem:[%s3014 + $0xa] sm:$0xff]
        %v3209 = vld [vmem:[%s3014 + $0x1a] sm:$0xff]
        %v3210 = vld [vmem:[%s3014 + $0x22] sm:$0xff]
        %v3211 = vld [vmem:[%s3014 + $0x32] sm:$0xff]
        %v3212 = vld [vmem:[%s3014 + $0x3a] sm:$0xff]
        %v3213 = vld [vmem:[%s3014 + $0x4a] sm:$0xff]
        %v3214 = vld [vmem:[%s3014 + $0x52] sm:$0xff]
        %v3215 = vld [vmem:[%s3014 + $0x62] sm:$0xff]
        %v3216 = vld [vmem:[%s3014 + $0x6a] sm:$0xff]
        %v3217 = vld [vmem:[%s3014 + $0x7a] sm:$0xff]
        %v3218 = vld [vmem:[%s3014 + $0x82] sm:$0xff]
        %v3219 = vld [vmem:[%s3014 + $0x92] sm:$0xff]
        %v3220 = vld [vmem:[%s3014 + $0x9a] sm:$0xff]
        %v3221 = vld [vmem:[%s3014 + $0xaa] sm:$0xff]
        %v3222 = vld [vmem:[%s3014 + $0xb2] sm:$0xff]
        %v3223 = vld [vmem:[%s3014 + $0xc2] sm:$0xff]
        %v3224 = vld [vmem:[%s3014 + $0xca] sm:$0xff]
        %v3225 = vld [vmem:[%s3014 + $0xda] sm:$0xff]
        %v3226 = vld [vmem:[%s3014 + $0xe2] sm:$0xff]
        %v3227 = vld [vmem:[%s3014 + $0xf2] sm:$0xff]
        %v3228 = vld [vmem:[%s3014 + $0xfa] sm:$0xff]
        %v3229 = vld [vmem:[%s3014 + $0x10a] sm:$0xff]
        %v3230 = vld [vmem:[%s3014 + $0x112] sm:$0xff]
        %v3231 = vld [vmem:[%s3014 + $0x122] sm:$0xff]
        %v3232 = vld [vmem:[%s3014 + $0x12a] sm:$0xff]
        %v3233 = vld [vmem:[%s3014 + $0x13a] sm:$0xff]
        %v3234 = vld [vmem:[%s3014 + $0x142] sm:$0xff]
        %v3235 = vld [vmem:[%s3014 + $0x152] sm:$0xff]
        %v3236 = vld [vmem:[%s3014 + $0x15a] sm:$0xff]
        %v3237 = vld [vmem:[%s3014 + $0x16a] sm:$0xff]
        %v3238 = vld [vmem:[%s3014 + $0x172] sm:$0xff]
        %s3239 = scalar_lea.vmem [#allocation2], 48
        %v3240 = vld [vmem:[%s3239] sm:$0xff]
        %v3241 = vld [vmem:[%s3239 + $0x8] sm:$0xff]
        %v3242 = vld [vmem:[%s3239 + $0x18] sm:$0xff]
        %v3243 = vld [vmem:[%s3239 + $0x20] sm:$0xff]
        %v3244 = vld [vmem:[%s3239 + $0x30] sm:$0xff]
        %v3245 = vld [vmem:[%s3239 + $0x38] sm:$0xff]
        %v3246 = vld [vmem:[%s3239 + $0x48] sm:$0xff]
        %v3247 = vld [vmem:[%s3239 + $0x50] sm:$0xff]
        %v3248 = vld [vmem:[%s3239 + $0x60] sm:$0xff]
        %v3249 = vld [vmem:[%s3239 + $0x68] sm:$0xff]
        %v3250 = vld [vmem:[%s3239 + $0x78] sm:$0xff]
        %v3251 = vld [vmem:[%s3239 + $0x80] sm:$0xff]
        %v3252 = vld [vmem:[%s3239 + $0x90] sm:$0xff]
        %v3253 = vld [vmem:[%s3239 + $0x98] sm:$0xff]
        %v3254 = vld [vmem:[%s3239 + $0xa8] sm:$0xff]
        %v3255 = vld [vmem:[%s3239 + $0xb0] sm:$0xff]
        %v3256 = vld [vmem:[%s3239 + $0xc0] sm:$0xff]
        %v3257 = vld [vmem:[%s3239 + $0xc8] sm:$0xff]
        %v3258 = vld [vmem:[%s3239 + $0xd8] sm:$0xff]
        %v3259 = vld [vmem:[%s3239 + $0xe0] sm:$0xff]
        %v3260 = vld [vmem:[%s3239 + $0xf0] sm:$0xff]
        %v3261 = vld [vmem:[%s3239 + $0xf8] sm:$0xff]
        %v3262 = vld [vmem:[%s3239 + $0x108] sm:$0xff]
        %v3263 = vld [vmem:[%s3239 + $0x110] sm:$0xff]
        %v3264 = vld [vmem:[%s3239 + $0x120] sm:$0xff]
        %v3265 = vld [vmem:[%s3239 + $0x128] sm:$0xff]
        %v3266 = vld [vmem:[%s3239 + $0x138] sm:$0xff]
        %v3267 = vld [vmem:[%s3239 + $0x140] sm:$0xff]
        %v3268 = vld [vmem:[%s3239 + $0x150] sm:$0xff]
        %v3269 = vld [vmem:[%s3239 + $0x158] sm:$0xff]
        %v3270 = vld [vmem:[%s3239 + $0x168] sm:$0xff]
        %v3271 = vld [vmem:[%s3239 + $0x170] sm:$0xff]
        %v3272 = vld [vmem:[%s3239 + $0x1] sm:$0xff]
        %v3273 = vld [vmem:[%s3239 + $0x9] sm:$0xff]
        %v3274 = vld [vmem:[%s3239 + $0x19] sm:$0xff]
        %v3275 = vld [vmem:[%s3239 + $0x21] sm:$0xff]
        %v3276 = vld [vmem:[%s3239 + $0x31] sm:$0xff]
        %v3277 = vld [vmem:[%s3239 + $0x39] sm:$0xff]
        %v3278 = vld [vmem:[%s3239 + $0x49] sm:$0xff]
        %v3279 = vld [vmem:[%s3239 + $0x51] sm:$0xff]
        %v3280 = vld [vmem:[%s3239 + $0x61] sm:$0xff]
        %v3281 = vld [vmem:[%s3239 + $0x69] sm:$0xff]
        %v3282 = vld [vmem:[%s3239 + $0x79] sm:$0xff]
        %v3283 = vld [vmem:[%s3239 + $0x81] sm:$0xff]
        %v3284 = vld [vmem:[%s3239 + $0x91] sm:$0xff]
        %v3285 = vld [vmem:[%s3239 + $0x99] sm:$0xff]
        %v3286 = vld [vmem:[%s3239 + $0xa9] sm:$0xff]
        %v3287 = vld [vmem:[%s3239 + $0xb1] sm:$0xff]
        %v3288 = vld [vmem:[%s3239 + $0xc1] sm:$0xff]
        %v3289 = vld [vmem:[%s3239 + $0xc9] sm:$0xff]
        %v3290 = vld [vmem:[%s3239 + $0xd9] sm:$0xff]
        %v3291 = vld [vmem:[%s3239 + $0xe1] sm:$0xff]
        %v3292 = vld [vmem:[%s3239 + $0xf1] sm:$0xff]
        %v3293 = vld [vmem:[%s3239 + $0xf9] sm:$0xff]
        %v3294 = vld [vmem:[%s3239 + $0x109] sm:$0xff]
        %v3295 = vld [vmem:[%s3239 + $0x111] sm:$0xff]
        %v3296 = vld [vmem:[%s3239 + $0x121] sm:$0xff]
        %v3297 = vld [vmem:[%s3239 + $0x129] sm:$0xff]
        %v3298 = vld [vmem:[%s3239 + $0x139] sm:$0xff]
        %v3299 = vld [vmem:[%s3239 + $0x141] sm:$0xff]
        %v3300 = vld [vmem:[%s3239 + $0x151] sm:$0xff]
        %v3301 = vld [vmem:[%s3239 + $0x159] sm:$0xff]
        %v3302 = vld [vmem:[%s3239 + $0x169] sm:$0xff]
        %v3303 = vld [vmem:[%s3239 + $0x171] sm:$0xff]
        %v3304 = vld [vmem:[%s3239 + $0x2] sm:$0xff]
        %v3305 = vld [vmem:[%s3239 + $0xa] sm:$0xff]
        %v3306 = vld [vmem:[%s3239 + $0x1a] sm:$0xff]
        %v3307 = vld [vmem:[%s3239 + $0x22] sm:$0xff]
        %v3308 = vld [vmem:[%s3239 + $0x32] sm:$0xff]
        %v3309 = vld [vmem:[%s3239 + $0x3a] sm:$0xff]
        %v3310 = vld [vmem:[%s3239 + $0x4a] sm:$0xff]
        %v3311 = vld [vmem:[%s3239 + $0x52] sm:$0xff]
        %v3312 = vld [vmem:[%s3239 + $0x62] sm:$0xff]
        %v3313 = vld [vmem:[%s3239 + $0x6a] sm:$0xff]
        %v3314 = vld [vmem:[%s3239 + $0x7a] sm:$0xff]
        %v3315 = vld [vmem:[%s3239 + $0x82] sm:$0xff]
        %v3316 = vld [vmem:[%s3239 + $0x92] sm:$0xff]
        %v3317 = vld [vmem:[%s3239 + $0x9a] sm:$0xff]
        %v3318 = vld [vmem:[%s3239 + $0xaa] sm:$0xff]
        %v3319 = vld [vmem:[%s3239 + $0xb2] sm:$0xff]
        %v3320 = vld [vmem:[%s3239 + $0xc2] sm:$0xff]
        %v3321 = vld [vmem:[%s3239 + $0xca] sm:$0xff]
        %v3322 = vld [vmem:[%s3239 + $0xda] sm:$0xff]
        %v3323 = vld [vmem:[%s3239 + $0xe2] sm:$0xff]
        %v3324 = vld [vmem:[%s3239 + $0xf2] sm:$0xff]
        %v3325 = vld [vmem:[%s3239 + $0xfa] sm:$0xff]
        %v3326 = vld [vmem:[%s3239 + $0x10a] sm:$0xff]
        %v3327 = vld [vmem:[%s3239 + $0x112] sm:$0xff]
        %v3328 = vld [vmem:[%s3239 + $0x122] sm:$0xff]
        %v3329 = vld [vmem:[%s3239 + $0x12a] sm:$0xff]
        %v3330 = vld [vmem:[%s3239 + $0x13a] sm:$0xff]
        %v3331 = vld [vmem:[%s3239 + $0x142] sm:$0xff]
        %v3332 = vld [vmem:[%s3239 + $0x152] sm:$0xff]
        %v3333 = vld [vmem:[%s3239 + $0x15a] sm:$0xff]
        %v3334 = vld [vmem:[%s3239 + $0x16a] sm:$0xff]
        %v3335 = vld [vmem:[%s3239 + $0x172] sm:$0xff]
        %3368 = vrot.lane.b32.xlu0 %v3079, 8
        %v3369 = vpop.permute.xlu0 %3368
        %3370 = vrot.lane.b32.xlu0 %v3080, 8
        %v3371 = vpop.permute.xlu0 %3370
        %3372 = vrot.lane.b32.xlu0 %v3081, 8
        %v3373 = vpop.permute.xlu0 %3372
        %3374 = vrot.lane.b32.xlu0 %v3082, 8
        %v3375 = vpop.permute.xlu0 %3374
        %3376 = vrot.lane.b32.xlu0 %v3083, 8
        %v3377 = vpop.permute.xlu0 %3376
        %3378 = vrot.lane.b32.xlu0 %v3084, 8
        %v3379 = vpop.permute.xlu0 %3378
        %3380 = vrot.lane.b32.xlu0 %v3085, 8
        %v3381 = vpop.permute.xlu0 %3380
        %3382 = vrot.lane.b32.xlu0 %v3086, 8
        %v3383 = vpop.permute.xlu0 %3382
        %3384 = vrot.lane.b32.xlu0 %v3087, 8
        %v3385 = vpop.permute.xlu0 %3384
        %3386 = vrot.lane.b32.xlu0 %v3088, 8
        %v3387 = vpop.permute.xlu0 %3386
        %3388 = vrot.lane.b32.xlu0 %v3089, 8
        %v3389 = vpop.permute.xlu0 %3388
        %3390 = vrot.lane.b32.xlu0 %v3090, 8
        %v3391 = vpop.permute.xlu0 %3390
        %3392 = vrot.lane.b32.xlu0 %v3091, 8
        %v3393 = vpop.permute.xlu0 %3392
        %3394 = vrot.lane.b32.xlu0 %v3092, 8
        %v3395 = vpop.permute.xlu0 %3394
        %3396 = vrot.lane.b32.xlu0 %v3093, 8
        %v3397 = vpop.permute.xlu0 %3396
        %3398 = vrot.lane.b32.xlu0 %v3094, 8
        %v3399 = vpop.permute.xlu0 %3398
        %3400 = vrot.lane.b32.xlu0 %v3095, 8
        %v3401 = vpop.permute.xlu0 %3400
        %3402 = vrot.lane.b32.xlu0 %v3096, 8
        %v3403 = vpop.permute.xlu0 %3402
        %3404 = vrot.lane.b32.xlu0 %v3097, 8
        %v3405 = vpop.permute.xlu0 %3404
        %3406 = vrot.lane.b32.xlu0 %v3098, 8
        %v3407 = vpop.permute.xlu0 %3406
        %3408 = vrot.lane.b32.xlu0 %v3099, 8
        %v3409 = vpop.permute.xlu0 %3408
        %3410 = vrot.lane.b32.xlu0 %v3100, 8
        %v3411 = vpop.permute.xlu0 %3410
        %3412 = vrot.lane.b32.xlu0 %v3101, 8
        %v3413 = vpop.permute.xlu0 %3412
        %3414 = vrot.lane.b32.xlu0 %v3102, 8
        %v3415 = vpop.permute.xlu0 %3414
        %3416 = vrot.lane.b32.xlu0 %v3103, 8
        %v3417 = vpop.permute.xlu0 %3416
        %3418 = vrot.lane.b32.xlu0 %v3104, 8
        %v3419 = vpop.permute.xlu0 %3418
        %3420 = vrot.lane.b32.xlu0 %v3105, 8
        %v3421 = vpop.permute.xlu0 %3420
        %3422 = vrot.lane.b32.xlu0 %v3106, 8
        %v3423 = vpop.permute.xlu0 %3422
        %3424 = vrot.lane.b32.xlu0 %v3107, 8
        %v3425 = vpop.permute.xlu0 %3424
        %3426 = vrot.lane.b32.xlu0 %v3108, 8
        %v3427 = vpop.permute.xlu0 %3426
        %3428 = vrot.lane.b32.xlu0 %v3109, 8
        %v3429 = vpop.permute.xlu0 %3428
        %3430 = vrot.lane.b32.xlu0 %v3110, 8
        %v3431 = vpop.permute.xlu0 %3430
        %3496 = vrot.lane.b32.xlu0 %v3111, 16
        %v3497 = vpop.permute.xlu0 %3496
        %3498 = vrot.lane.b32.xlu0 %v3112, 16
        %v3499 = vpop.permute.xlu0 %3498
        %3500 = vrot.lane.b32.xlu0 %v3113, 16
        %v3501 = vpop.permute.xlu0 %3500
        %3502 = vrot.lane.b32.xlu0 %v3114, 16
        %v3503 = vpop.permute.xlu0 %3502
        %3504 = vrot.lane.b32.xlu0 %v3115, 16
        %v3505 = vpop.permute.xlu0 %3504
        %3506 = vrot.lane.b32.xlu0 %v3116, 16
        %v3507 = vpop.permute.xlu0 %3506
        %3508 = vrot.lane.b32.xlu0 %v3117, 16
        %v3509 = vpop.permute.xlu0 %3508
        %3510 = vrot.lane.b32.xlu0 %v3118, 16
        %v3511 = vpop.permute.xlu0 %3510
        %3512 = vrot.lane.b32.xlu0 %v3119, 16
        %v3513 = vpop.permute.xlu0 %3512
        %3514 = vrot.lane.b32.xlu0 %v3120, 16
        %v3515 = vpop.permute.xlu0 %3514
        %3516 = vrot.lane.b32.xlu0 %v3121, 16
        %v3517 = vpop.permute.xlu0 %3516
        %3518 = vrot.lane.b32.xlu0 %v3122, 16
        %v3519 = vpop.permute.xlu0 %3518
        %3520 = vrot.lane.b32.xlu0 %v3123, 16
        %v3521 = vpop.permute.xlu0 %3520
        %3522 = vrot.lane.b32.xlu0 %v3124, 16
        %v3523 = vpop.permute.xlu0 %3522
        %3524 = vrot.lane.b32.xlu0 %v3125, 16
        %v3525 = vpop.permute.xlu0 %3524
        %3526 = vrot.lane.b32.xlu0 %v3126, 16
        %v3527 = vpop.permute.xlu0 %3526
        %3528 = vrot.lane.b32.xlu0 %v3127, 16
        %v3529 = vpop.permute.xlu0 %3528
        %3530 = vrot.lane.b32.xlu0 %v3128, 16
        %v3531 = vpop.permute.xlu0 %3530
        %3532 = vrot.lane.b32.xlu0 %v3129, 16
        %v3533 = vpop.permute.xlu0 %3532
        %3534 = vrot.lane.b32.xlu0 %v3130, 16
        %v3535 = vpop.permute.xlu0 %3534
        %3536 = vrot.lane.b32.xlu0 %v3131, 16
        %v3537 = vpop.permute.xlu0 %3536
        %3538 = vrot.lane.b32.xlu0 %v3132, 16
        %v3539 = vpop.permute.xlu0 %3538
        %3540 = vrot.lane.b32.xlu0 %v3133, 16
        %v3541 = vpop.permute.xlu0 %3540
        %3542 = vrot.lane.b32.xlu0 %v3134, 16
        %v3543 = vpop.permute.xlu0 %3542
        %3544 = vrot.lane.b32.xlu0 %v3135, 16
        %v3545 = vpop.permute.xlu0 %3544
        %3546 = vrot.lane.b32.xlu0 %v3136, 16
        %v3547 = vpop.permute.xlu0 %3546
        %3548 = vrot.lane.b32.xlu0 %v3137, 16
        %v3549 = vpop.permute.xlu0 %3548
        %3550 = vrot.lane.b32.xlu0 %v3138, 16
        %v3551 = vpop.permute.xlu0 %3550
        %3552 = vrot.lane.b32.xlu0 %v3139, 16
        %v3553 = vpop.permute.xlu0 %3552
        %3554 = vrot.lane.b32.xlu0 %v3140, 16
        %v3555 = vpop.permute.xlu0 %3554
        %3556 = vrot.lane.b32.xlu0 %v3141, 16
        %v3557 = vpop.permute.xlu0 %3556
        %3558 = vrot.lane.b32.xlu0 %v3142, 16
        %v3559 = vpop.permute.xlu0 %3558
        %3624 = vrot.lane.b32.xlu0 %v3143, 24
        %v3625 = vpop.permute.xlu0 %3624
        %3626 = vrot.lane.b32.xlu0 %v3144, 24
        %v3627 = vpop.permute.xlu0 %3626
        %3628 = vrot.lane.b32.xlu0 %v3145, 24
        %v3629 = vpop.permute.xlu0 %3628
        %3630 = vrot.lane.b32.xlu0 %v3146, 24
        %v3631 = vpop.permute.xlu0 %3630
        %3632 = vrot.lane.b32.xlu0 %v3147, 24
        %v3633 = vpop.permute.xlu0 %3632
        %3634 = vrot.lane.b32.xlu0 %v3148, 24
        %v3635 = vpop.permute.xlu0 %3634
        %3636 = vrot.lane.b32.xlu0 %v3149, 24
        %v3637 = vpop.permute.xlu0 %3636
        %3638 = vrot.lane.b32.xlu0 %v3150, 24
        %v3639 = vpop.permute.xlu0 %3638
        %3640 = vrot.lane.b32.xlu0 %v3151, 24
        %v3641 = vpop.permute.xlu0 %3640
        %3642 = vrot.lane.b32.xlu0 %v3152, 24
        %v3643 = vpop.permute.xlu0 %3642
        %3644 = vrot.lane.b32.xlu0 %v3153, 24
        %v3645 = vpop.permute.xlu0 %3644
        %3646 = vrot.lane.b32.xlu0 %v3154, 24
        %v3647 = vpop.permute.xlu0 %3646
        %3648 = vrot.lane.b32.xlu0 %v3155, 24
        %v3649 = vpop.permute.xlu0 %3648
        %3650 = vrot.lane.b32.xlu0 %v3156, 24
        %v3651 = vpop.permute.xlu0 %3650
        %3652 = vrot.lane.b32.xlu0 %v3157, 24
        %v3653 = vpop.permute.xlu0 %3652
        %3654 = vrot.lane.b32.xlu0 %v3158, 24
        %v3655 = vpop.permute.xlu0 %3654
        %3656 = vrot.lane.b32.xlu0 %v3159, 24
        %v3657 = vpop.permute.xlu0 %3656
        %3658 = vrot.lane.b32.xlu0 %v3160, 24
        %v3659 = vpop.permute.xlu0 %3658
        %3660 = vrot.lane.b32.xlu0 %v3161, 24
        %v3661 = vpop.permute.xlu0 %3660
        %3662 = vrot.lane.b32.xlu0 %v3162, 24
        %v3663 = vpop.permute.xlu0 %3662
        %3664 = vrot.lane.b32.xlu0 %v3163, 24
        %v3665 = vpop.permute.xlu0 %3664
        %3666 = vrot.lane.b32.xlu0 %v3164, 24
        %v3667 = vpop.permute.xlu0 %3666
        %3668 = vrot.lane.b32.xlu0 %v3165, 24
        %v3669 = vpop.permute.xlu0 %3668
        %3670 = vrot.lane.b32.xlu0 %v3166, 24
        %v3671 = vpop.permute.xlu0 %3670
        %3672 = vrot.lane.b32.xlu0 %v3167, 24
        %v3673 = vpop.permute.xlu0 %3672
        %3674 = vrot.lane.b32.xlu0 %v3168, 24
        %v3675 = vpop.permute.xlu0 %3674
        %3676 = vrot.lane.b32.xlu0 %v3169, 24
        %v3677 = vpop.permute.xlu0 %3676
        %3678 = vrot.lane.b32.xlu0 %v3170, 24
        %v3679 = vpop.permute.xlu0 %3678
        %3680 = vrot.lane.b32.xlu0 %v3171, 24
        %v3681 = vpop.permute.xlu0 %3680
        %3682 = vrot.lane.b32.xlu0 %v3172, 24
        %v3683 = vpop.permute.xlu0 %3682
        %3684 = vrot.lane.b32.xlu0 %v3173, 24
        %v3685 = vpop.permute.xlu0 %3684
        %3686 = vrot.lane.b32.xlu0 %v3174, 24
        %v3687 = vpop.permute.xlu0 %3686
        %3752 = vrot.lane.b32.xlu0 %v3175, 32
        %v3753 = vpop.permute.xlu0 %3752
        %3754 = vrot.lane.b32.xlu0 %v3176, 32
        %v3755 = vpop.permute.xlu0 %3754
        %3756 = vrot.lane.b32.xlu0 %v3177, 32
        %v3757 = vpop.permute.xlu0 %3756
        %3758 = vrot.lane.b32.xlu0 %v3178, 32
        %v3759 = vpop.permute.xlu0 %3758
        %3760 = vrot.lane.b32.xlu0 %v3179, 32
        %v3761 = vpop.permute.xlu0 %3760
        %3762 = vrot.lane.b32.xlu0 %v3180, 32
        %v3763 = vpop.permute.xlu0 %3762
        %3764 = vrot.lane.b32.xlu0 %v3181, 32
        %v3765 = vpop.permute.xlu0 %3764
        %3766 = vrot.lane.b32.xlu0 %v3182, 32
        %v3767 = vpop.permute.xlu0 %3766
        %3768 = vrot.lane.b32.xlu0 %v3183, 32
        %v3769 = vpop.permute.xlu0 %3768
        %3770 = vrot.lane.b32.xlu0 %v3184, 32
        %v3771 = vpop.permute.xlu0 %3770
        %3772 = vrot.lane.b32.xlu0 %v3185, 32
        %v3773 = vpop.permute.xlu0 %3772
        %3774 = vrot.lane.b32.xlu0 %v3186, 32
        %v3775 = vpop.permute.xlu0 %3774
        %3776 = vrot.lane.b32.xlu0 %v3187, 32
        %v3777 = vpop.permute.xlu0 %3776
        %3778 = vrot.lane.b32.xlu0 %v3188, 32
        %v3779 = vpop.permute.xlu0 %3778
        %3780 = vrot.lane.b32.xlu0 %v3189, 32
        %v3781 = vpop.permute.xlu0 %3780
        %3782 = vrot.lane.b32.xlu0 %v3190, 32
        %v3783 = vpop.permute.xlu0 %3782
        %3784 = vrot.lane.b32.xlu0 %v3191, 32
        %v3785 = vpop.permute.xlu0 %3784
        %3786 = vrot.lane.b32.xlu0 %v3192, 32
        %v3787 = vpop.permute.xlu0 %3786
        %3788 = vrot.lane.b32.xlu0 %v3193, 32
        %v3789 = vpop.permute.xlu0 %3788
        %3790 = vrot.lane.b32.xlu0 %v3194, 32
        %v3791 = vpop.permute.xlu0 %3790
        %3792 = vrot.lane.b32.xlu0 %v3195, 32
        %v3793 = vpop.permute.xlu0 %3792
        %3794 = vrot.lane.b32.xlu0 %v3196, 32
        %v3795 = vpop.permute.xlu0 %3794
        %3796 = vrot.lane.b32.xlu0 %v3197, 32
        %v3797 = vpop.permute.xlu0 %3796
        %3798 = vrot.lane.b32.xlu0 %v3198, 32
        %v3799 = vpop.permute.xlu0 %3798
        %3800 = vrot.lane.b32.xlu0 %v3199, 32
        %v3801 = vpop.permute.xlu0 %3800
        %3802 = vrot.lane.b32.xlu0 %v3200, 32
        %v3803 = vpop.permute.xlu0 %3802
        %3804 = vrot.lane.b32.xlu0 %v3201, 32
        %v3805 = vpop.permute.xlu0 %3804
        %3806 = vrot.lane.b32.xlu0 %v3202, 32
        %v3807 = vpop.permute.xlu0 %3806
        %3808 = vrot.lane.b32.xlu0 %v3203, 32
        %v3809 = vpop.permute.xlu0 %3808
        %3810 = vrot.lane.b32.xlu0 %v3204, 32
        %v3811 = vpop.permute.xlu0 %3810
        %3812 = vrot.lane.b32.xlu0 %v3205, 32
        %v3813 = vpop.permute.xlu0 %3812
        %3814 = vrot.lane.b32.xlu0 %v3206, 32
        %v3815 = vpop.permute.xlu0 %3814
        %3880 = vrot.lane.b32.xlu0 %v3207, 40
        %v3881 = vpop.permute.xlu0 %3880
        %3882 = vrot.lane.b32.xlu0 %v3208, 40
        %v3883 = vpop.permute.xlu0 %3882
        %3884 = vrot.lane.b32.xlu0 %v3209, 40
        %v3885 = vpop.permute.xlu0 %3884
        %3886 = vrot.lane.b32.xlu0 %v3210, 40
        %v3887 = vpop.permute.xlu0 %3886
        %3888 = vrot.lane.b32.xlu0 %v3211, 40
        %v3889 = vpop.permute.xlu0 %3888
        %3890 = vrot.lane.b32.xlu0 %v3212, 40
        %v3891 = vpop.permute.xlu0 %3890
        %3892 = vrot.lane.b32.xlu0 %v3213, 40
        %v3893 = vpop.permute.xlu0 %3892
        %3894 = vrot.lane.b32.xlu0 %v3214, 40
        %v3895 = vpop.permute.xlu0 %3894
        %3896 = vrot.lane.b32.xlu0 %v3215, 40
        %v3897 = vpop.permute.xlu0 %3896
        %3898 = vrot.lane.b32.xlu0 %v3216, 40
        %v3899 = vpop.permute.xlu0 %3898
        %3900 = vrot.lane.b32.xlu0 %v3217, 40
        %v3901 = vpop.permute.xlu0 %3900
        %3902 = vrot.lane.b32.xlu0 %v3218, 40
        %v3903 = vpop.permute.xlu0 %3902
        %3904 = vrot.lane.b32.xlu0 %v3219, 40
        %v3905 = vpop.permute.xlu0 %3904
        %3906 = vrot.lane.b32.xlu0 %v3220, 40
        %v3907 = vpop.permute.xlu0 %3906
        %3908 = vrot.lane.b32.xlu0 %v3221, 40
        %v3909 = vpop.permute.xlu0 %3908
        %3910 = vrot.lane.b32.xlu0 %v3222, 40
        %v3911 = vpop.permute.xlu0 %3910
        %3912 = vrot.lane.b32.xlu0 %v3223, 40
        %v3913 = vpop.permute.xlu0 %3912
        %3914 = vrot.lane.b32.xlu0 %v3224, 40
        %v3915 = vpop.permute.xlu0 %3914
        %3916 = vrot.lane.b32.xlu0 %v3225, 40
        %v3917 = vpop.permute.xlu0 %3916
        %3918 = vrot.lane.b32.xlu0 %v3226, 40
        %v3919 = vpop.permute.xlu0 %3918
        %3920 = vrot.lane.b32.xlu0 %v3227, 40
        %v3921 = vpop.permute.xlu0 %3920
        %3922 = vrot.lane.b32.xlu0 %v3228, 40
        %v3923 = vpop.permute.xlu0 %3922
        %3924 = vrot.lane.b32.xlu0 %v3229, 40
        %v3925 = vpop.permute.xlu0 %3924
        %3926 = vrot.lane.b32.xlu0 %v3230, 40
        %v3927 = vpop.permute.xlu0 %3926
        %3928 = vrot.lane.b32.xlu0 %v3231, 40
        %v3929 = vpop.permute.xlu0 %3928
        %3930 = vrot.lane.b32.xlu0 %v3232, 40
        %v3931 = vpop.permute.xlu0 %3930
        %3932 = vrot.lane.b32.xlu0 %v3233, 40
        %v3933 = vpop.permute.xlu0 %3932
        %3934 = vrot.lane.b32.xlu0 %v3234, 40
        %v3935 = vpop.permute.xlu0 %3934
        %3936 = vrot.lane.b32.xlu0 %v3235, 40
        %v3937 = vpop.permute.xlu0 %3936
        %3938 = vrot.lane.b32.xlu0 %v3236, 40
        %v3939 = vpop.permute.xlu0 %3938
        %3940 = vrot.lane.b32.xlu0 %v3237, 40
        %v3941 = vpop.permute.xlu0 %3940
        %3942 = vrot.lane.b32.xlu0 %v3238, 40
        %v3943 = vpop.permute.xlu0 %3942
        %4008 = vrot.lane.b32.xlu0 %v3240, 48
        %v4009 = vpop.permute.xlu0 %4008
        %4010 = vrot.lane.b32.xlu0 %v3241, 48
        %v4011 = vpop.permute.xlu0 %4010
        %4012 = vrot.lane.b32.xlu0 %v3242, 48
        %v4013 = vpop.permute.xlu0 %4012
        %4014 = vrot.lane.b32.xlu0 %v3243, 48
        %v4015 = vpop.permute.xlu0 %4014
        %4016 = vrot.lane.b32.xlu0 %v3244, 48
        %v4017 = vpop.permute.xlu0 %4016
        %4018 = vrot.lane.b32.xlu0 %v3245, 48
        %v4019 = vpop.permute.xlu0 %4018
        %4020 = vrot.lane.b32.xlu0 %v3246, 48
        %v4021 = vpop.permute.xlu0 %4020
        %4022 = vrot.lane.b32.xlu0 %v3247, 48
        %v4023 = vpop.permute.xlu0 %4022
        %4024 = vrot.lane.b32.xlu0 %v3248, 48
        %v4025 = vpop.permute.xlu0 %4024
        %4026 = vrot.lane.b32.xlu0 %v3249, 48
        %v4027 = vpop.permute.xlu0 %4026
        %4028 = vrot.lane.b32.xlu0 %v3250, 48
        %v4029 = vpop.permute.xlu0 %4028
        %4030 = vrot.lane.b32.xlu0 %v3251, 48
        %v4031 = vpop.permute.xlu0 %4030
        %4032 = vrot.lane.b32.xlu0 %v3252, 48
        %v4033 = vpop.permute.xlu0 %4032
        %4034 = vrot.lane.b32.xlu0 %v3253, 48
        %v4035 = vpop.permute.xlu0 %4034
        %4036 = vrot.lane.b32.xlu0 %v3254, 48
        %v4037 = vpop.permute.xlu0 %4036
        %4038 = vrot.lane.b32.xlu0 %v3255, 48
        %v4039 = vpop.permute.xlu0 %4038
        %4040 = vrot.lane.b32.xlu0 %v3256, 48
        %v4041 = vpop.permute.xlu0 %4040
        %4042 = vrot.lane.b32.xlu0 %v3257, 48
        %v4043 = vpop.permute.xlu0 %4042
        %4044 = vrot.lane.b32.xlu0 %v3258, 48
        %v4045 = vpop.permute.xlu0 %4044
        %4046 = vrot.lane.b32.xlu0 %v3259, 48
        %v4047 = vpop.permute.xlu0 %4046
        %4048 = vrot.lane.b32.xlu0 %v3260, 48
        %v4049 = vpop.permute.xlu0 %4048
        %4050 = vrot.lane.b32.xlu0 %v3261, 48
        %v4051 = vpop.permute.xlu0 %4050
        %4052 = vrot.lane.b32.xlu0 %v3262, 48
        %v4053 = vpop.permute.xlu0 %4052
        %4054 = vrot.lane.b32.xlu0 %v3263, 48
        %v4055 = vpop.permute.xlu0 %4054
        %4056 = vrot.lane.b32.xlu0 %v3264, 48
        %v4057 = vpop.permute.xlu0 %4056
        %4058 = vrot.lane.b32.xlu0 %v3265, 48
        %v4059 = vpop.permute.xlu0 %4058
        %4060 = vrot.lane.b32.xlu0 %v3266, 48
        %v4061 = vpop.permute.xlu0 %4060
        %4062 = vrot.lane.b32.xlu0 %v3267, 48
        %v4063 = vpop.permute.xlu0 %4062
        %4064 = vrot.lane.b32.xlu0 %v3268, 48
        %v4065 = vpop.permute.xlu0 %4064
        %4066 = vrot.lane.b32.xlu0 %v3269, 48
        %v4067 = vpop.permute.xlu0 %4066
        %4068 = vrot.lane.b32.xlu0 %v3270, 48
        %v4069 = vpop.permute.xlu0 %4068
        %4070 = vrot.lane.b32.xlu0 %v3271, 48
        %v4071 = vpop.permute.xlu0 %4070
        %4136 = vrot.lane.b32.xlu0 %v3272, 56
        %v4137 = vpop.permute.xlu0 %4136
        %4138 = vrot.lane.b32.xlu0 %v3273, 56
        %v4139 = vpop.permute.xlu0 %4138
        %4140 = vrot.lane.b32.xlu0 %v3274, 56
        %v4141 = vpop.permute.xlu0 %4140
        %4142 = vrot.lane.b32.xlu0 %v3275, 56
        %v4143 = vpop.permute.xlu0 %4142
        %4144 = vrot.lane.b32.xlu0 %v3276, 56
        %v4145 = vpop.permute.xlu0 %4144
        %4146 = vrot.lane.b32.xlu0 %v3277, 56
        %v4147 = vpop.permute.xlu0 %4146
        %4148 = vrot.lane.b32.xlu0 %v3278, 56
        %v4149 = vpop.permute.xlu0 %4148
        %4150 = vrot.lane.b32.xlu0 %v3279, 56
        %v4151 = vpop.permute.xlu0 %4150
        %4152 = vrot.lane.b32.xlu0 %v3280, 56
        %v4153 = vpop.permute.xlu0 %4152
        %4154 = vrot.lane.b32.xlu0 %v3281, 56
        %v4155 = vpop.permute.xlu0 %4154
        %4156 = vrot.lane.b32.xlu0 %v3282, 56
        %v4157 = vpop.permute.xlu0 %4156
        %4158 = vrot.lane.b32.xlu0 %v3283, 56
        %v4159 = vpop.permute.xlu0 %4158
        %4160 = vrot.lane.b32.xlu0 %v3284, 56
        %v4161 = vpop.permute.xlu0 %4160
        %4162 = vrot.lane.b32.xlu0 %v3285, 56
        %v4163 = vpop.permute.xlu0 %4162
        %4164 = vrot.lane.b32.xlu0 %v3286, 56
        %v4165 = vpop.permute.xlu0 %4164
        %4166 = vrot.lane.b32.xlu0 %v3287, 56
        %v4167 = vpop.permute.xlu0 %4166
        %4168 = vrot.lane.b32.xlu0 %v3288, 56
        %v4169 = vpop.permute.xlu0 %4168
        %4170 = vrot.lane.b32.xlu0 %v3289, 56
        %v4171 = vpop.permute.xlu0 %4170
        %4172 = vrot.lane.b32.xlu0 %v3290, 56
        %v4173 = vpop.permute.xlu0 %4172
        %4174 = vrot.lane.b32.xlu0 %v3291, 56
        %v4175 = vpop.permute.xlu0 %4174
        %4176 = vrot.lane.b32.xlu0 %v3292, 56
        %v4177 = vpop.permute.xlu0 %4176
        %4178 = vrot.lane.b32.xlu0 %v3293, 56
        %v4179 = vpop.permute.xlu0 %4178
        %4180 = vrot.lane.b32.xlu0 %v3294, 56
        %v4181 = vpop.permute.xlu0 %4180
        %4182 = vrot.lane.b32.xlu0 %v3295, 56
        %v4183 = vpop.permute.xlu0 %4182
        %4184 = vrot.lane.b32.xlu0 %v3296, 56
        %v4185 = vpop.permute.xlu0 %4184
        %4186 = vrot.lane.b32.xlu0 %v3297, 56
        %v4187 = vpop.permute.xlu0 %4186
        %4188 = vrot.lane.b32.xlu0 %v3298, 56
        %v4189 = vpop.permute.xlu0 %4188
        %4190 = vrot.lane.b32.xlu0 %v3299, 56
        %v4191 = vpop.permute.xlu0 %4190
        %4192 = vrot.lane.b32.xlu0 %v3300, 56
        %v4193 = vpop.permute.xlu0 %4192
        %4194 = vrot.lane.b32.xlu0 %v3301, 56
        %v4195 = vpop.permute.xlu0 %4194
        %4196 = vrot.lane.b32.xlu0 %v3302, 56
        %v4197 = vpop.permute.xlu0 %4196
        %4198 = vrot.lane.b32.xlu0 %v3303, 56
        %v4199 = vpop.permute.xlu0 %4198
        %4264 = vrot.lane.b32.xlu0 %v3304, 64
        %v4265 = vpop.permute.xlu0 %4264
        %4266 = vrot.lane.b32.xlu0 %v3305, 64
        %v4267 = vpop.permute.xlu0 %4266
        %4268 = vrot.lane.b32.xlu0 %v3306, 64
        %v4269 = vpop.permute.xlu0 %4268
        %4270 = vrot.lane.b32.xlu0 %v3307, 64
        %v4271 = vpop.permute.xlu0 %4270
        %4272 = vrot.lane.b32.xlu0 %v3308, 64
        %v4273 = vpop.permute.xlu0 %4272
        %4274 = vrot.lane.b32.xlu0 %v3309, 64
        %v4275 = vpop.permute.xlu0 %4274
        %4276 = vrot.lane.b32.xlu0 %v3310, 64
        %v4277 = vpop.permute.xlu0 %4276
        %4278 = vrot.lane.b32.xlu0 %v3311, 64
        %v4279 = vpop.permute.xlu0 %4278
        %4280 = vrot.lane.b32.xlu0 %v3312, 64
        %v4281 = vpop.permute.xlu0 %4280
        %4282 = vrot.lane.b32.xlu0 %v3313, 64
        %v4283 = vpop.permute.xlu0 %4282
        %4284 = vrot.lane.b32.xlu0 %v3314, 64
        %v4285 = vpop.permute.xlu0 %4284
        %4286 = vrot.lane.b32.xlu0 %v3315, 64
        %v4287 = vpop.permute.xlu0 %4286
        %4288 = vrot.lane.b32.xlu0 %v3316, 64
        %v4289 = vpop.permute.xlu0 %4288
        %4290 = vrot.lane.b32.xlu0 %v3317, 64
        %v4291 = vpop.permute.xlu0 %4290
        %4292 = vrot.lane.b32.xlu0 %v3318, 64
        %v4293 = vpop.permute.xlu0 %4292
        %4294 = vrot.lane.b32.xlu0 %v3319, 64
        %v4295 = vpop.permute.xlu0 %4294
        %4296 = vrot.lane.b32.xlu0 %v3320, 64
        %v4297 = vpop.permute.xlu0 %4296
        %4298 = vrot.lane.b32.xlu0 %v3321, 64
        %v4299 = vpop.permute.xlu0 %4298
        %4300 = vrot.lane.b32.xlu0 %v3322, 64
        %v4301 = vpop.permute.xlu0 %4300
        %4302 = vrot.lane.b32.xlu0 %v3323, 64
        %v4303 = vpop.permute.xlu0 %4302
        %4304 = vrot.lane.b32.xlu0 %v3324, 64
        %v4305 = vpop.permute.xlu0 %4304
        %4306 = vrot.lane.b32.xlu0 %v3325, 64
        %v4307 = vpop.permute.xlu0 %4306
        %4308 = vrot.lane.b32.xlu0 %v3326, 64
        %v4309 = vpop.permute.xlu0 %4308
        %4310 = vrot.lane.b32.xlu0 %v3327, 64
        %v4311 = vpop.permute.xlu0 %4310
        %4312 = vrot.lane.b32.xlu0 %v3328, 64
        %v4313 = vpop.permute.xlu0 %4312
        %4314 = vrot.lane.b32.xlu0 %v3329, 64
        %v4315 = vpop.permute.xlu0 %4314
        %4316 = vrot.lane.b32.xlu0 %v3330, 64
        %v4317 = vpop.permute.xlu0 %4316
        %4318 = vrot.lane.b32.xlu0 %v3331, 64
        %v4319 = vpop.permute.xlu0 %4318
        %4320 = vrot.lane.b32.xlu0 %v3332, 64
        %v4321 = vpop.permute.xlu0 %4320
        %4322 = vrot.lane.b32.xlu0 %v3333, 64
        %v4323 = vpop.permute.xlu0 %4322
        %4324 = vrot.lane.b32.xlu0 %v3334, 64
        %v4325 = vpop.permute.xlu0 %4324
        %4326 = vrot.lane.b32.xlu0 %v3335, 64
        %v4327 = vpop.permute.xlu0 %4326
        %v4360 = vsel %vm1999, %v3047, %v3369
        %v4361 = vsel %vm1999, %v3048, %v3371
        %v4362 = vsel %vm1999, %v3049, %v3373
        %v4363 = vsel %vm1999, %v3050, %v3375
        %v4364 = vsel %vm1999, %v3051, %v3377
        %v4365 = vsel %vm1999, %v3052, %v3379
        %v4366 = vsel %vm1999, %v3053, %v3381
        %v4367 = vsel %vm1999, %v3054, %v3383
        %v4368 = vsel %vm1999, %v3055, %v3385
        %v4369 = vsel %vm1999, %v3056, %v3387
        %v4370 = vsel %vm1999, %v3057, %v3389
        %v4371 = vsel %vm1999, %v3058, %v3391
        %v4372 = vsel %vm1999, %v3059, %v3393
        %v4373 = vsel %vm1999, %v3060, %v3395
        %v4374 = vsel %vm1999, %v3061, %v3397
        %v4375 = vsel %vm1999, %v3062, %v3399
        %v4376 = vsel %vm1999, %v3063, %v3401
        %v4377 = vsel %vm1999, %v3064, %v3403
        %v4378 = vsel %vm1999, %v3065, %v3405
        %v4379 = vsel %vm1999, %v3066, %v3407
        %v4380 = vsel %vm1999, %v3067, %v3409
        %v4381 = vsel %vm1999, %v3068, %v3411
        %v4382 = vsel %vm1999, %v3069, %v3413
        %v4383 = vsel %vm1999, %v3070, %v3415
        %v4384 = vsel %vm1999, %v3071, %v3417
        %v4385 = vsel %vm1999, %v3072, %v3419
        %v4386 = vsel %vm1999, %v3073, %v3421
        %v4387 = vsel %vm1999, %v3074, %v3423
        %v4388 = vsel %vm1999, %v3075, %v3425
        %v4389 = vsel %vm1999, %v3076, %v3427
        %v4390 = vsel %vm1999, %v3077, %v3429
        %v4391 = vsel %vm1999, %v3078, %v3431
        %v4392 = vsel %vm2065, %v4360, %v3497
        %v4393 = vsel %vm2065, %v4361, %v3499
        %v4394 = vsel %vm2065, %v4362, %v3501
        %v4395 = vsel %vm2065, %v4363, %v3503
        %v4396 = vsel %vm2065, %v4364, %v3505
        %v4397 = vsel %vm2065, %v4365, %v3507
        %v4398 = vsel %vm2065, %v4366, %v3509
        %v4399 = vsel %vm2065, %v4367, %v3511
        %v4400 = vsel %vm2065, %v4368, %v3513
        %v4401 = vsel %vm2065, %v4369, %v3515
        %v4402 = vsel %vm2065, %v4370, %v3517
        %v4403 = vsel %vm2065, %v4371, %v3519
        %v4404 = vsel %vm2065, %v4372, %v3521
        %v4405 = vsel %vm2065, %v4373, %v3523
        %v4406 = vsel %vm2065, %v4374, %v3525
        %v4407 = vsel %vm2065, %v4375, %v3527
        %v4408 = vsel %vm2065, %v4376, %v3529
        %v4409 = vsel %vm2065, %v4377, %v3531
        %v4410 = vsel %vm2065, %v4378, %v3533
        %v4411 = vsel %vm2065, %v4379, %v3535
        %v4412 = vsel %vm2065, %v4380, %v3537
        %v4413 = vsel %vm2065, %v4381, %v3539
        %v4414 = vsel %vm2065, %v4382, %v3541
        %v4415 = vsel %vm2065, %v4383, %v3543
        %v4416 = vsel %vm2065, %v4384, %v3545
        %v4417 = vsel %vm2065, %v4385, %v3547
        %v4418 = vsel %vm2065, %v4386, %v3549
        %v4419 = vsel %vm2065, %v4387, %v3551
        %v4420 = vsel %vm2065, %v4388, %v3553
        %v4421 = vsel %vm2065, %v4389, %v3555
        %v4422 = vsel %vm2065, %v4390, %v3557
        %v4423 = vsel %vm2065, %v4391, %v3559
        %v4424 = vsel %vm2131, %v4392, %v3625
        %v4425 = vsel %vm2131, %v4393, %v3627
        %v4426 = vsel %vm2131, %v4394, %v3629
        %v4427 = vsel %vm2131, %v4395, %v3631
        %v4428 = vsel %vm2131, %v4396, %v3633
        %v4429 = vsel %vm2131, %v4397, %v3635
        %v4430 = vsel %vm2131, %v4398, %v3637
        %v4431 = vsel %vm2131, %v4399, %v3639
        %v4432 = vsel %vm2131, %v4400, %v3641
        %v4433 = vsel %vm2131, %v4401, %v3643
        %v4434 = vsel %vm2131, %v4402, %v3645
        %v4435 = vsel %vm2131, %v4403, %v3647
        %v4436 = vsel %vm2131, %v4404, %v3649
        %v4437 = vsel %vm2131, %v4405, %v3651
        %v4438 = vsel %vm2131, %v4406, %v3653
        %v4439 = vsel %vm2131, %v4407, %v3655
        %v4440 = vsel %vm2131, %v4408, %v3657
        %v4441 = vsel %vm2131, %v4409, %v3659
        %v4442 = vsel %vm2131, %v4410, %v3661
        %v4443 = vsel %vm2131, %v4411, %v3663
        %v4444 = vsel %vm2131, %v4412, %v3665
        %v4445 = vsel %vm2131, %v4413, %v3667
        %v4446 = vsel %vm2131, %v4414, %v3669
        %v4447 = vsel %vm2131, %v4415, %v3671
        %v4448 = vsel %vm2131, %v4416, %v3673
        %v4449 = vsel %vm2131, %v4417, %v3675
        %v4450 = vsel %vm2131, %v4418, %v3677
        %v4451 = vsel %vm2131, %v4419, %v3679
        %v4452 = vsel %vm2131, %v4420, %v3681
        %v4453 = vsel %vm2131, %v4421, %v3683
        %v4454 = vsel %vm2131, %v4422, %v3685
        %v4455 = vsel %vm2131, %v4423, %v3687
        %v4456 = vsel %vm2197, %v4424, %v3753
        %v4457 = vsel %vm2197, %v4425, %v3755
        %v4458 = vsel %vm2197, %v4426, %v3757
        %v4459 = vsel %vm2197, %v4427, %v3759
        %v4460 = vsel %vm2197, %v4428, %v3761
        %v4461 = vsel %vm2197, %v4429, %v3763
        %v4462 = vsel %vm2197, %v4430, %v3765
        %v4463 = vsel %vm2197, %v4431, %v3767
        %v4464 = vsel %vm2197, %v4432, %v3769
        %v4465 = vsel %vm2197, %v4433, %v3771
        %v4466 = vsel %vm2197, %v4434, %v3773
        %v4467 = vsel %vm2197, %v4435, %v3775
        %v4468 = vsel %vm2197, %v4436, %v3777
        %v4469 = vsel %vm2197, %v4437, %v3779
        %v4470 = vsel %vm2197, %v4438, %v3781
        %v4471 = vsel %vm2197, %v4439, %v3783
        %v4472 = vsel %vm2197, %v4440, %v3785
        %v4473 = vsel %vm2197, %v4441, %v3787
        %v4474 = vsel %vm2197, %v4442, %v3789
        %v4475 = vsel %vm2197, %v4443, %v3791
        %v4476 = vsel %vm2197, %v4444, %v3793
        %v4477 = vsel %vm2197, %v4445, %v3795
        %v4478 = vsel %vm2197, %v4446, %v3797
        %v4479 = vsel %vm2197, %v4447, %v3799
        %v4480 = vsel %vm2197, %v4448, %v3801
        %v4481 = vsel %vm2197, %v4449, %v3803
        %v4482 = vsel %vm2197, %v4450, %v3805
        %v4483 = vsel %vm2197, %v4451, %v3807
        %v4484 = vsel %vm2197, %v4452, %v3809
        %v4485 = vsel %vm2197, %v4453, %v3811
        %v4486 = vsel %vm2197, %v4454, %v3813
        %v4487 = vsel %vm2197, %v4455, %v3815
        %vm4488 = vcmask 326656
        %v4489 = vsel %vm4488, %v4456, %v3881
        %v4490 = vsel %vm4488, %v4457, %v3883
        %v4491 = vsel %vm4488, %v4458, %v3885
        %v4492 = vsel %vm4488, %v4459, %v3887
        %v4493 = vsel %vm4488, %v4460, %v3889
        %v4494 = vsel %vm4488, %v4461, %v3891
        %v4495 = vsel %vm4488, %v4462, %v3893
        %v4496 = vsel %vm4488, %v4463, %v3895
        %v4497 = vsel %vm4488, %v4464, %v3897
        %v4498 = vsel %vm4488, %v4465, %v3899
        %v4499 = vsel %vm4488, %v4466, %v3901
        %v4500 = vsel %vm4488, %v4467, %v3903
        %v4501 = vsel %vm4488, %v4468, %v3905
        %v4502 = vsel %vm4488, %v4469, %v3907
        %v4503 = vsel %vm4488, %v4470, %v3909
        %v4504 = vsel %vm4488, %v4471, %v3911
        %v4505 = vsel %vm4488, %v4472, %v3913
        %v4506 = vsel %vm4488, %v4473, %v3915
        %v4507 = vsel %vm4488, %v4474, %v3917
        %v4508 = vsel %vm4488, %v4475, %v3919
        %v4509 = vsel %vm4488, %v4476, %v3921
        %v4510 = vsel %vm4488, %v4477, %v3923
        %v4511 = vsel %vm4488, %v4478, %v3925
        %v4512 = vsel %vm4488, %v4479, %v3927
        %v4513 = vsel %vm4488, %v4480, %v3929
        %v4514 = vsel %vm4488, %v4481, %v3931
        %v4515 = vsel %vm4488, %v4482, %v3933
        %v4516 = vsel %vm4488, %v4483, %v3935
        %v4517 = vsel %vm4488, %v4484, %v3937
        %v4518 = vsel %vm4488, %v4485, %v3939
        %v4519 = vsel %vm4488, %v4486, %v3941
        %v4520 = vsel %vm4488, %v4487, %v3943
        %vm4521 = vcmask 392192
        %v4522 = vsel %vm4521, %v4489, %v4009
        %v4523 = vsel %vm4521, %v4490, %v4011
        %v4524 = vsel %vm4521, %v4491, %v4013
        %v4525 = vsel %vm4521, %v4492, %v4015
        %v4526 = vsel %vm4521, %v4493, %v4017
        %v4527 = vsel %vm4521, %v4494, %v4019
        %v4528 = vsel %vm4521, %v4495, %v4021
        %v4529 = vsel %vm4521, %v4496, %v4023
        %v4530 = vsel %vm4521, %v4497, %v4025
        %v4531 = vsel %vm4521, %v4498, %v4027
        %v4532 = vsel %vm4521, %v4499, %v4029
        %v4533 = vsel %vm4521, %v4500, %v4031
        %v4534 = vsel %vm4521, %v4501, %v4033
        %v4535 = vsel %vm4521, %v4502, %v4035
        %v4536 = vsel %vm4521, %v4503, %v4037
        %v4537 = vsel %vm4521, %v4504, %v4039
        %v4538 = vsel %vm4521, %v4505, %v4041
        %v4539 = vsel %vm4521, %v4506, %v4043
        %v4540 = vsel %vm4521, %v4507, %v4045
        %v4541 = vsel %vm4521, %v4508, %v4047
        %v4542 = vsel %vm4521, %v4509, %v4049
        %v4543 = vsel %vm4521, %v4510, %v4051
        %v4544 = vsel %vm4521, %v4511, %v4053
        %v4545 = vsel %vm4521, %v4512, %v4055
        %v4546 = vsel %vm4521, %v4513, %v4057
        %v4547 = vsel %vm4521, %v4514, %v4059
        %v4548 = vsel %vm4521, %v4515, %v4061
        %v4549 = vsel %vm4521, %v4516, %v4063
        %v4550 = vsel %vm4521, %v4517, %v4065
        %v4551 = vsel %vm4521, %v4518, %v4067
        %v4552 = vsel %vm4521, %v4519, %v4069
        %v4553 = vsel %vm4521, %v4520, %v4071
        %vm4554 = vcmask 457728
        %v4555 = vsel %vm4554, %v4522, %v4137
        %v4556 = vsel %vm4554, %v4523, %v4139
        %v4557 = vsel %vm4554, %v4524, %v4141
        %v4558 = vsel %vm4554, %v4525, %v4143
        %v4559 = vsel %vm4554, %v4526, %v4145
        %v4560 = vsel %vm4554, %v4527, %v4147
        %v4561 = vsel %vm4554, %v4528, %v4149
        %v4562 = vsel %vm4554, %v4529, %v4151
        %v4563 = vsel %vm4554, %v4530, %v4153
        %v4564 = vsel %vm4554, %v4531, %v4155
        %v4565 = vsel %vm4554, %v4532, %v4157
        %v4566 = vsel %vm4554, %v4533, %v4159
        %v4567 = vsel %vm4554, %v4534, %v4161
        %v4568 = vsel %vm4554, %v4535, %v4163
        %v4569 = vsel %vm4554, %v4536, %v4165
        %v4570 = vsel %vm4554, %v4537, %v4167
        %v4571 = vsel %vm4554, %v4538, %v4169
        %v4572 = vsel %vm4554, %v4539, %v4171
        %v4573 = vsel %vm4554, %v4540, %v4173
        %v4574 = vsel %vm4554, %v4541, %v4175
        %v4575 = vsel %vm4554, %v4542, %v4177
        %v4576 = vsel %vm4554, %v4543, %v4179
        %v4577 = vsel %vm4554, %v4544, %v4181
        %v4578 = vsel %vm4554, %v4545, %v4183
        %v4579 = vsel %vm4554, %v4546, %v4185
        %v4580 = vsel %vm4554, %v4547, %v4187
        %v4581 = vsel %vm4554, %v4548, %v4189
        %v4582 = vsel %vm4554, %v4549, %v4191
        %v4583 = vsel %vm4554, %v4550, %v4193
        %v4584 = vsel %vm4554, %v4551, %v4195
        %v4585 = vsel %vm4554, %v4552, %v4197
        %v4586 = vsel %vm4554, %v4553, %v4199
        %vm4587 = vcmask 523264
        %v4588 = vsel %vm4587, %v4555, %v4265
        %v4589 = vsel %vm4587, %v4556, %v4267
        %v4590 = vsel %vm4587, %v4557, %v4269
        %v4591 = vsel %vm4587, %v4558, %v4271
        %v4592 = vsel %vm4587, %v4559, %v4273
        %v4593 = vsel %vm4587, %v4560, %v4275
        %v4594 = vsel %vm4587, %v4561, %v4277
        %v4595 = vsel %vm4587, %v4562, %v4279
        %v4596 = vsel %vm4587, %v4563, %v4281
        %v4597 = vsel %vm4587, %v4564, %v4283
        %v4598 = vsel %vm4587, %v4565, %v4285
        %v4599 = vsel %vm4587, %v4566, %v4287
        %v4600 = vsel %vm4587, %v4567, %v4289
        %v4601 = vsel %vm4587, %v4568, %v4291
        %v4602 = vsel %vm4587, %v4569, %v4293
        %v4603 = vsel %vm4587, %v4570, %v4295
        %v4604 = vsel %vm4587, %v4571, %v4297
        %v4605 = vsel %vm4587, %v4572, %v4299
        %v4606 = vsel %vm4587, %v4573, %v4301
        %v4607 = vsel %vm4587, %v4574, %v4303
        %v4608 = vsel %vm4587, %v4575, %v4305
        %v4609 = vsel %vm4587, %v4576, %v4307
        %v4610 = vsel %vm4587, %v4577, %v4309
        %v4611 = vsel %vm4587, %v4578, %v4311
        %v4612 = vsel %vm4587, %v4579, %v4313
        %v4613 = vsel %vm4587, %v4580, %v4315
        %v4614 = vsel %vm4587, %v4581, %v4317
        %v4615 = vsel %vm4587, %v4582, %v4319
        %v4616 = vsel %vm4587, %v4583, %v4321
        %v4617 = vsel %vm4587, %v4584, %v4323
        %v4618 = vsel %vm4587, %v4585, %v4325
        %v4619 = vsel %vm4587, %v4586, %v4327
        %v4620 = vld [vmem:[%s4] sm:$0xff]
        %v4621 = vld [vmem:[%s4 + $0x8] sm:$0xff]
        %v4622 = vld [vmem:[%s4 + $0x10] sm:$0xff]
        %v4623 = vld [vmem:[%s4 + $0x18] sm:$0xff]
        %v4624 = vld [vmem:[%s4 + $0x20] sm:$0xff]
        %v4625 = vld [vmem:[%s4 + $0x28] sm:$0xff]
        %v4626 = vld [vmem:[%s4 + $0x30] sm:$0xff]
        %v4627 = vld [vmem:[%s4 + $0x38] sm:$0xff]
        %v4628 = vld [vmem:[%s4 + $0x40] sm:$0xff]
        %v4629 = vld [vmem:[%s5] sm:$0x1]
        %v4631 = vlaneseq
        %v4632 = vshrl.u32 %v4631, 7
        %v4633 = vsub.s32 0, %v4632
        %v4634 = vrot.slane %v4629, %v4633
        %vm4636 = vcmask 588800
        %v4638 = vsel %vm4636, %v4588, 0
        %v4641 = vsel %vm4636, %v4589, 0
        %v4644 = vsel %vm4636, %v4590, 0
        %v4647 = vsel %vm4636, %v4591, 0
        %v4650 = vsel %vm4636, %v4592, 0
        %v4653 = vsel %vm4636, %v4593, 0
        %v4656 = vsel %vm4636, %v4594, 0
        %v4659 = vsel %vm4636, %v4595, 0
        %v4662 = vsel %vm4636, %v4596, 0
        %v4665 = vsel %vm4636, %v4597, 0
        %v4668 = vsel %vm4636, %v4598, 0
        %v4671 = vsel %vm4636, %v4599, 0
        %v4674 = vsel %vm4636, %v4600, 0
        %v4677 = vsel %vm4636, %v4601, 0
        %v4680 = vsel %vm4636, %v4602, 0
        %v4683 = vsel %vm4636, %v4603, 0
        %v4686 = vsel %vm4636, %v4604, 0
        %v4689 = vsel %vm4636, %v4605, 0
        %v4692 = vsel %vm4636, %v4606, 0
        %v4695 = vsel %vm4636, %v4607, 0
        %v4698 = vsel %vm4636, %v4608, 0
        %v4701 = vsel %vm4636, %v4609, 0
        %v4704 = vsel %vm4636, %v4610, 0
        %v4707 = vsel %vm4636, %v4611, 0
        %v4710 = vsel %vm4636, %v4612, 0
        %v4713 = vsel %vm4636, %v4613, 0
        %v4716 = vsel %vm4636, %v4614, 0
        %v4719 = vsel %vm4636, %v4615, 0
        %v4722 = vsel %vm4636, %v4616, 0
        %v4725 = vsel %vm4636, %v4617, 0
        %v4728 = vsel %vm4636, %v4618, 0
        %v4731 = vsel %vm4636, %v4619, 0
        %4733 = vmatprep.subr.mxu0 0.0
        %4734 = vmatpush1.msra.mxu0 0.0
        %4735 = vmatprep.subr.mxu0 0.0
        %4736 = vmatpush1.msra.mxu0 0.0
        %4737 = vmatprep.subr.mxu0 0.0
        %4738 = vmatpush1.msra.mxu0 0.0
        %4739 = vmatprep.subr.mxu0 0.0
        %4740 = vmatpush1.msra.mxu0 0.0
        %4741 = vmatprep.subr.mxu0 0.0
        %4742 = vmatpush1.msra.mxu0 0.0
        %4743 = vmatprep.subr.mxu0 0.0
        %4744 = vmatpush1.msra.mxu0 0.0
        %4745 = vmatprep.subr.mxu0 0.0
        %4746 = vmatpush1.msra.mxu0 0.0
        %4747 = vmatprep.subr.mxu0 0.0
        %4748 = vmatpush1.msra.mxu0 %v4628
        %4749 = vmatprep.subr.mxu0 0.0
        %4750 = vmatpush1.msra.mxu0 %v4627
        %4751 = vmatprep.subr.mxu0 0.0
        %4752 = vmatpush1.msra.mxu0 %v4626
        %4753 = vmatprep.subr.mxu0 0.0
        %4754 = vmatpush1.msra.mxu0 %v4625
        %4755 = vmatprep.subr.mxu0 0.0
        %4756 = vmatpush1.msra.mxu0 %v4624
        %4757 = vmatprep.subr.mxu0 0.0
        %4758 = vmatpush1.msra.mxu0 %v4623
        %4759 = vmatprep.subr.mxu0 0.0
        %4760 = vmatpush1.msra.mxu0 %v4622
        %4761 = vmatprep.subr.mxu0 0.0
        %4762 = vmatpush1.msra.mxu0 %v4621
        %4763 = vmatprep.subr.mxu0 0.0
        %4764 = vmatpush1.msra.mxu0 %v4620
        %4765 = vmatprep.subr.mxu0 0.0
        %4766 = vmatpush2.msra.mxu0 0.0
        %4767 = vmatprep.subr.mxu0 0.0
        %4768 = vmatpush2.msra.mxu0 0.0
        %4769 = vmatprep.subr.mxu0 0.0
        %4770 = vmatpush2.msra.mxu0 0.0
        %4771 = vmatprep.subr.mxu0 0.0
        %4772 = vmatpush2.msra.mxu0 0.0
        %4773 = vmatprep.subr.mxu0 0.0
        %4774 = vmatpush2.msra.mxu0 0.0
        %4775 = vmatprep.subr.mxu0 0.0
        %4776 = vmatpush2.msra.mxu0 0.0
        %4777 = vmatprep.subr.mxu0 0.0
        %4778 = vmatpush2.msra.mxu0 0.0
        %4779 = vmatprep.subr.mxu0 0.0
        %4780 = vmatpush2.msra.mxu0 0.0
        %4781 = vmatprep.subr.mxu0 0.0
        %4782 = vmatpush2.msra.mxu0 0.0
        %4783 = vmatprep.subr.mxu0 0.0
        %4784 = vmatpush2.msra.mxu0 0.0
        %4785 = vmatprep.subr.mxu0 0.0
        %4786 = vmatpush2.msra.mxu0 0.0
        %4787 = vmatprep.subr.mxu0 0.0
        %4788 = vmatpush2.msra.mxu0 0.0
        %4789 = vmatprep.subr.mxu0 0.0
        %4790 = vmatpush2.msra.mxu0 0.0
        %4791 = vmatprep.subr.mxu0 0.0
        %4792 = vmatpush2.msra.mxu0 0.0
        %4793 = vmatprep.subr.mxu0 0.0
        %4794 = vmatpush2.msra.mxu0 0.0
        %4795 = vmatprep.subr.mxu0 0.0
        %4796 = vmatpush2.msra.mxu0 0.0
        %4797 = vmatprep.mubr.f32.mxu0 0.0
        %4798 = vmatmul.mubr.f32.gmra.mxu0 %v4638
        %v4799 = vpop.f32.mrf.mxu0
        %v4800 = vadd.f32 %v4634, %v4799
        %v4801 = vpop.f32.mrf.mxu0
        %4802 = vmatprep.mubr.f32.mxu0 0.0
        %4803 = vmatmul.mubr.f32.gmra.mxu0 %v4641
        %v4804 = vpop.f32.mrf.mxu0
        %v4805 = vadd.f32 %v4634, %v4804
        %v4806 = vpop.f32.mrf.mxu0
        %4807 = vmatprep.mubr.f32.mxu0 0.0
        %4808 = vmatmul.mubr.f32.gmra.mxu0 %v4644
        %v4809 = vpop.f32.mrf.mxu0
        %v4810 = vadd.f32 %v4634, %v4809
        %v4811 = vpop.f32.mrf.mxu0
        %4812 = vmatprep.mubr.f32.mxu0 0.0
        %4813 = vmatmul.mubr.f32.gmra.mxu0 %v4647
        %v4814 = vpop.f32.mrf.mxu0
        %v4815 = vadd.f32 %v4634, %v4814
        %v4816 = vpop.f32.mrf.mxu0
        %4817 = vmatprep.mubr.f32.mxu0 0.0
        %4818 = vmatmul.mubr.f32.gmra.mxu0 %v4650
        %v4819 = vpop.f32.mrf.mxu0
        %v4820 = vadd.f32 %v4634, %v4819
        %v4821 = vpop.f32.mrf.mxu0
        %4822 = vmatprep.mubr.f32.mxu0 0.0
        %4823 = vmatmul.mubr.f32.gmra.mxu0 %v4653
        %v4824 = vpop.f32.mrf.mxu0
        %v4825 = vadd.f32 %v4634, %v4824
        %v4826 = vpop.f32.mrf.mxu0
        %4827 = vmatprep.mubr.f32.mxu0 0.0
        %4828 = vmatmul.mubr.f32.gmra.mxu0 %v4656
        %v4829 = vpop.f32.mrf.mxu0
        %v4830 = vadd.f32 %v4634, %v4829
        %v4831 = vpop.f32.mrf.mxu0
        %4832 = vmatprep.mubr.f32.mxu0 0.0
        %4833 = vmatmul.mubr.f32.gmra.mxu0 %v4659
        %v4834 = vpop.f32.mrf.mxu0
        %v4835 = vadd.f32 %v4634, %v4834
        %v4836 = vpop.f32.mrf.mxu0
        %4837 = vmatprep.mubr.f32.mxu0 0.0
        %4838 = vmatmul.mubr.f32.gmra.mxu0 %v4662
        %v4839 = vpop.f32.mrf.mxu0
        %v4840 = vadd.f32 %v4634, %v4839
        %v4841 = vpop.f32.mrf.mxu0
        %4842 = vmatprep.mubr.f32.mxu0 0.0
        %4843 = vmatmul.mubr.f32.gmra.mxu0 %v4665
        %v4844 = vpop.f32.mrf.mxu0
        %v4845 = vadd.f32 %v4634, %v4844
        %v4846 = vpop.f32.mrf.mxu0
        %4847 = vmatprep.mubr.f32.mxu0 0.0
        %4848 = vmatmul.mubr.f32.gmra.mxu0 %v4668
        %v4849 = vpop.f32.mrf.mxu0
        %v4850 = vadd.f32 %v4634, %v4849
        %v4851 = vpop.f32.mrf.mxu0
        %4852 = vmatprep.mubr.f32.mxu0 0.0
        %4853 = vmatmul.mubr.f32.gmra.mxu0 %v4671
        %v4854 = vpop.f32.mrf.mxu0
        %v4855 = vadd.f32 %v4634, %v4854
        %v4856 = vpop.f32.mrf.mxu0
        %4857 = vmatprep.mubr.f32.mxu0 0.0
        %4858 = vmatmul.mubr.f32.gmra.mxu0 %v4674
        %v4859 = vpop.f32.mrf.mxu0
        %v4860 = vadd.f32 %v4634, %v4859
        %v4861 = vpop.f32.mrf.mxu0
        %4862 = vmatprep.mubr.f32.mxu0 0.0
        %4863 = vmatmul.mubr.f32.gmra.mxu0 %v4677
        %v4864 = vpop.f32.mrf.mxu0
        %v4865 = vadd.f32 %v4634, %v4864
        %v4866 = vpop.f32.mrf.mxu0
        %4867 = vmatprep.mubr.f32.mxu0 0.0
        %4868 = vmatmul.mubr.f32.gmra.mxu0 %v4680
        %v4869 = vpop.f32.mrf.mxu0
        %v4870 = vadd.f32 %v4634, %v4869
        %v4871 = vpop.f32.mrf.mxu0
        %4872 = vmatprep.mubr.f32.mxu0 0.0
        %4873 = vmatmul.mubr.f32.gmra.mxu0 %v4683
        %v4874 = vpop.f32.mrf.mxu0
        %v4875 = vadd.f32 %v4634, %v4874
        %v4876 = vpop.f32.mrf.mxu0
        %4877 = vmatprep.mubr.f32.mxu0 0.0
        %4878 = vmatmul.mubr.f32.gmra.mxu0 %v4686
        %v4879 = vpop.f32.mrf.mxu0
        %v4880 = vadd.f32 %v4634, %v4879
        %v4881 = vpop.f32.mrf.mxu0
        %4882 = vmatprep.mubr.f32.mxu0 0.0
        %4883 = vmatmul.mubr.f32.gmra.mxu0 %v4689
        %v4884 = vpop.f32.mrf.mxu0
        %v4885 = vadd.f32 %v4634, %v4884
        %v4886 = vpop.f32.mrf.mxu0
        %4887 = vmatprep.mubr.f32.mxu0 0.0
        %4888 = vmatmul.mubr.f32.gmra.mxu0 %v4692
        %v4889 = vpop.f32.mrf.mxu0
        %v4890 = vadd.f32 %v4634, %v4889
        %v4891 = vpop.f32.mrf.mxu0
        %4892 = vmatprep.mubr.f32.mxu0 0.0
        %4893 = vmatmul.mubr.f32.gmra.mxu0 %v4695
        %v4894 = vpop.f32.mrf.mxu0
        %v4895 = vadd.f32 %v4634, %v4894
        %v4896 = vpop.f32.mrf.mxu0
        %4897 = vmatprep.mubr.f32.mxu0 0.0
        %4898 = vmatmul.mubr.f32.gmra.mxu0 %v4698
        %v4899 = vpop.f32.mrf.mxu0
        %v4900 = vadd.f32 %v4634, %v4899
        %v4901 = vpop.f32.mrf.mxu0
        %4902 = vmatprep.mubr.f32.mxu0 0.0
        %4903 = vmatmul.mubr.f32.gmra.mxu0 %v4701
        %v4904 = vpop.f32.mrf.mxu0
        %v4905 = vadd.f32 %v4634, %v4904
        %v4906 = vpop.f32.mrf.mxu0
        %4907 = vmatprep.mubr.f32.mxu0 0.0
        %4908 = vmatmul.mubr.f32.gmra.mxu0 %v4704
        %v4909 = vpop.f32.mrf.mxu0
        %v4910 = vadd.f32 %v4634, %v4909
        %v4911 = vpop.f32.mrf.mxu0
        %4912 = vmatprep.mubr.f32.mxu0 0.0
        %4913 = vmatmul.mubr.f32.gmra.mxu0 %v4707
        %v4914 = vpop.f32.mrf.mxu0
        %v4915 = vadd.f32 %v4634, %v4914
        %v4916 = vpop.f32.mrf.mxu0
        %4917 = vmatprep.mubr.f32.mxu0 0.0
        %4918 = vmatmul.mubr.f32.gmra.mxu0 %v4710
        %v4919 = vpop.f32.mrf.mxu0
        %v4920 = vadd.f32 %v4634, %v4919
        %v4921 = vpop.f32.mrf.mxu0
        %4922 = vmatprep.mubr.f32.mxu0 0.0
        %4923 = vmatmul.mubr.f32.gmra.mxu0 %v4713
        %v4924 = vpop.f32.mrf.mxu0
        %v4925 = vadd.f32 %v4634, %v4924
        %v4926 = vpop.f32.mrf.mxu0
        %4927 = vmatprep.mubr.f32.mxu0 0.0
        %4928 = vmatmul.mubr.f32.gmra.mxu0 %v4716
        %v4929 = vpop.f32.mrf.mxu0
        %v4930 = vadd.f32 %v4634, %v4929
        %v4931 = vpop.f32.mrf.mxu0
        %4932 = vmatprep.mubr.f32.mxu0 0.0
        %4933 = vmatmul.mubr.f32.gmra.mxu0 %v4719
        %v4934 = vpop.f32.mrf.mxu0
        %v4935 = vadd.f32 %v4634, %v4934
        %v4936 = vpop.f32.mrf.mxu0
        %4937 = vmatprep.mubr.f32.mxu0 0.0
        %4938 = vmatmul.mubr.f32.gmra.mxu0 %v4722
        %v4939 = vpop.f32.mrf.mxu0
        %v4940 = vadd.f32 %v4634, %v4939
        %v4941 = vpop.f32.mrf.mxu0
        %4942 = vmatprep.mubr.f32.mxu0 0.0
        %4943 = vmatmul.mubr.f32.gmra.mxu0 %v4725
        %v4944 = vpop.f32.mrf.mxu0
        %v4945 = vadd.f32 %v4634, %v4944
        %v4946 = vpop.f32.mrf.mxu0
        %4947 = vmatprep.mubr.f32.mxu0 0.0
        %4948 = vmatmul.mubr.f32.gmra.mxu0 %v4728
        %v4949 = vpop.f32.mrf.mxu0
        %v4950 = vadd.f32 %v4634, %v4949
        %v4951 = vpop.f32.mrf.mxu0
        %4952 = vmatprep.mubr.f32.mxu0 0.0
        %4953 = vmatmul.mubr.f32.gmra.mxu0 %v4731
        %v4954 = vpop.f32.mrf.mxu0
        %v4955 = vadd.f32 %v4634, %v4954
        %v4956 = vpop.f32.mrf.mxu0
        %4957 = vdwg.mxu0
        %v4958 = vxor.u32 %v4800, 2147483648
        %v4959 = vxor.u32 %v4805, 2147483648
        %v4960 = vxor.u32 %v4810, 2147483648
        %v4961 = vxor.u32 %v4815, 2147483648
        %v4962 = vxor.u32 %v4820, 2147483648
        %v4963 = vxor.u32 %v4825, 2147483648
        %v4964 = vxor.u32 %v4830, 2147483648
        %v4965 = vxor.u32 %v4835, 2147483648
        %v4966 = vxor.u32 %v4840, 2147483648
        %v4967 = vxor.u32 %v4845, 2147483648
        %v4968 = vxor.u32 %v4850, 2147483648
        %v4969 = vxor.u32 %v4855, 2147483648
        %v4970 = vxor.u32 %v4860, 2147483648
        %v4971 = vxor.u32 %v4865, 2147483648
        %v4972 = vxor.u32 %v4870, 2147483648
        %v4973 = vxor.u32 %v4875, 2147483648
        %v4974 = vxor.u32 %v4880, 2147483648
        %v4975 = vxor.u32 %v4885, 2147483648
        %v4976 = vxor.u32 %v4890, 2147483648
        %v4977 = vxor.u32 %v4895, 2147483648
        %v4978 = vxor.u32 %v4900, 2147483648
        %v4979 = vxor.u32 %v4905, 2147483648
        %v4980 = vxor.u32 %v4910, 2147483648
        %v4981 = vxor.u32 %v4915, 2147483648
        %v4982 = vxor.u32 %v4920, 2147483648
        %v4983 = vxor.u32 %v4925, 2147483648
        %v4984 = vxor.u32 %v4930, 2147483648
        %v4985 = vxor.u32 %v4935, 2147483648
        %v4986 = vxor.u32 %v4940, 2147483648
        %v4987 = vxor.u32 %v4945, 2147483648
        %v4988 = vxor.u32 %v4950, 2147483648
        %v4989 = vxor.u32 %v4955, 2147483648
        %v4990 = vmul.f32 %v4958, 1.442695
        %v4991 = vpow.pop %v4990
        %v4992 = vmul.f32 %v4959, 1.442695
        %v4993 = vpow.pop %v4992
        %v4994 = vmul.f32 %v4960, 1.442695
        %v4995 = vpow.pop %v4994
        %v4996 = vmul.f32 %v4961, 1.442695
        %v4997 = vpow.pop %v4996
        %v4998 = vmul.f32 %v4962, 1.442695
        %v4999 = vpow.pop %v4998
        %v5000 = vmul.f32 %v4963, 1.442695
        %v5001 = vpow.pop %v5000
        %v5002 = vmul.f32 %v4964, 1.442695
        %v5003 = vpow.pop %v5002
        %v5004 = vmul.f32 %v4965, 1.442695
        %v5005 = vpow.pop %v5004
        %v5006 = vmul.f32 %v4966, 1.442695
        %v5007 = vpow.pop %v5006
        %v5008 = vmul.f32 %v4967, 1.442695
        %v5009 = vpow.pop %v5008
        %v5010 = vmul.f32 %v4968, 1.442695
        %v5011 = vpow.pop %v5010
        %v5012 = vmul.f32 %v4969, 1.442695
        %v5013 = vpow.pop %v5012
        %v5014 = vmul.f32 %v4970, 1.442695
        %v5015 = vpow.pop %v5014
        %v5016 = vmul.f32 %v4971, 1.442695
        %v5017 = vpow.pop %v5016
        %v5018 = vmul.f32 %v4972, 1.442695
        %v5019 = vpow.pop %v5018
        %v5020 = vmul.f32 %v4973, 1.442695
        %v5021 = vpow.pop %v5020
        %v5022 = vmul.f32 %v4974, 1.442695
        %v5023 = vpow.pop %v5022
        %v5024 = vmul.f32 %v4975, 1.442695
        %v5025 = vpow.pop %v5024
        %v5026 = vmul.f32 %v4976, 1.442695
        %v5027 = vpow.pop %v5026
        %v5028 = vmul.f32 %v4977, 1.442695
        %v5029 = vpow.pop %v5028
        %v5030 = vmul.f32 %v4978, 1.442695
        %v5031 = vpow.pop %v5030
        %v5032 = vmul.f32 %v4979, 1.442695
        %v5033 = vpow.pop %v5032
        %v5034 = vmul.f32 %v4980, 1.442695
        %v5035 = vpow.pop %v5034
        %v5036 = vmul.f32 %v4981, 1.442695
        %v5037 = vpow.pop %v5036
        %v5038 = vmul.f32 %v4982, 1.442695
        %v5039 = vpow.pop %v5038
        %v5040 = vmul.f32 %v4983, 1.442695
        %v5041 = vpow.pop %v5040
        %v5042 = vmul.f32 %v4984, 1.442695
        %v5043 = vpow.pop %v5042
        %v5044 = vmul.f32 %v4985, 1.442695
        %v5045 = vpow.pop %v5044
        %v5046 = vmul.f32 %v4986, 1.442695
        %v5047 = vpow.pop %v5046
        %v5048 = vmul.f32 %v4987, 1.442695
        %v5049 = vpow.pop %v5048
        %v5050 = vmul.f32 %v4988, 1.442695
        %v5051 = vpow.pop %v5050
        %v5052 = vmul.f32 %v4989, 1.442695
        %v5053 = vpow.pop %v5052
        %v5054 = vadd.f32 %v4991, 1.0
        %v5055 = vadd.f32 %v4993, 1.0
        %v5056 = vadd.f32 %v4995, 1.0
        %v5057 = vadd.f32 %v4997, 1.0
        %v5058 = vadd.f32 %v4999, 1.0
        %v5059 = vadd.f32 %v5001, 1.0
        %v5060 = vadd.f32 %v5003, 1.0
        %v5061 = vadd.f32 %v5005, 1.0
        %v5062 = vadd.f32 %v5007, 1.0
        %v5063 = vadd.f32 %v5009, 1.0
        %v5064 = vadd.f32 %v5011, 1.0
        %v5065 = vadd.f32 %v5013, 1.0
        %v5066 = vadd.f32 %v5015, 1.0
        %v5067 = vadd.f32 %v5017, 1.0
        %v5068 = vadd.f32 %v5019, 1.0
        %v5069 = vadd.f32 %v5021, 1.0
        %v5070 = vadd.f32 %v5023, 1.0
        %v5071 = vadd.f32 %v5025, 1.0
        %v5072 = vadd.f32 %v5027, 1.0
        %v5073 = vadd.f32 %v5029, 1.0
        %v5074 = vadd.f32 %v5031, 1.0
        %v5075 = vadd.f32 %v5033, 1.0
        %v5076 = vadd.f32 %v5035, 1.0
        %v5077 = vadd.f32 %v5037, 1.0
        %v5078 = vadd.f32 %v5039, 1.0
        %v5079 = vadd.f32 %v5041, 1.0
        %v5080 = vadd.f32 %v5043, 1.0
        %v5081 = vadd.f32 %v5045, 1.0
        %v5082 = vadd.f32 %v5047, 1.0
        %v5083 = vadd.f32 %v5049, 1.0
        %v5084 = vadd.f32 %v5051, 1.0
        %v5085 = vadd.f32 %v5053, 1.0
        %v5086 = vrcp.pop %v5054
        %v5087 = vmul.f32 1.0, %v5086
        %v5088 = vrcp.pop %v5055
        %v5089 = vmul.f32 1.0, %v5088
        %v5090 = vrcp.pop %v5056
        %v5091 = vmul.f32 1.0, %v5090
        %v5092 = vrcp.pop %v5057
        %v5093 = vmul.f32 1.0, %v5092
        %v5094 = vrcp.pop %v5058
        %v5095 = vmul.f32 1.0, %v5094
        %v5096 = vrcp.pop %v5059
        %v5097 = vmul.f32 1.0, %v5096
        %v5098 = vrcp.pop %v5060
        %v5099 = vmul.f32 1.0, %v5098
        %v5100 = vrcp.pop %v5061
        %v5101 = vmul.f32 1.0, %v5100
        %v5102 = vrcp.pop %v5062
        %v5103 = vmul.f32 1.0, %v5102
        %v5104 = vrcp.pop %v5063
        %v5105 = vmul.f32 1.0, %v5104
        %v5106 = vrcp.pop %v5064
        %v5107 = vmul.f32 1.0, %v5106
        %v5108 = vrcp.pop %v5065
        %v5109 = vmul.f32 1.0, %v5108
        %v5110 = vrcp.pop %v5066
        %v5111 = vmul.f32 1.0, %v5110
        %v5112 = vrcp.pop %v5067
        %v5113 = vmul.f32 1.0, %v5112
        %v5114 = vrcp.pop %v5068
        %v5115 = vmul.f32 1.0, %v5114
        %v5116 = vrcp.pop %v5069
        %v5117 = vmul.f32 1.0, %v5116
        %v5118 = vrcp.pop %v5070
        %v5119 = vmul.f32 1.0, %v5118
        %v5120 = vrcp.pop %v5071
        %v5121 = vmul.f32 1.0, %v5120
        %v5122 = vrcp.pop %v5072
        %v5123 = vmul.f32 1.0, %v5122
        %v5124 = vrcp.pop %v5073
        %v5125 = vmul.f32 1.0, %v5124
        %v5126 = vrcp.pop %v5074
        %v5127 = vmul.f32 1.0, %v5126
        %v5128 = vrcp.pop %v5075
        %v5129 = vmul.f32 1.0, %v5128
        %v5130 = vrcp.pop %v5076
        %v5131 = vmul.f32 1.0, %v5130
        %v5132 = vrcp.pop %v5077
        %v5133 = vmul.f32 1.0, %v5132
        %v5134 = vrcp.pop %v5078
        %v5135 = vmul.f32 1.0, %v5134
        %v5136 = vrcp.pop %v5079
        %v5137 = vmul.f32 1.0, %v5136
        %v5138 = vrcp.pop %v5080
        %v5139 = vmul.f32 1.0, %v5138
        %v5140 = vrcp.pop %v5081
        %v5141 = vmul.f32 1.0, %v5140
        %v5142 = vrcp.pop %v5082
        %v5143 = vmul.f32 1.0, %v5142
        %v5144 = vrcp.pop %v5083
        %v5145 = vmul.f32 1.0, %v5144
        %v5146 = vrcp.pop %v5084
        %v5147 = vmul.f32 1.0, %v5146
        %v5148 = vrcp.pop %v5085
        %v5149 = vmul.f32 1.0, %v5148
        %v5150 = vmul.f32 %v4800, %v5087
        %v5151 = vmul.f32 %v4805, %v5089
        %v5152 = vmul.f32 %v4810, %v5091
        %v5153 = vmul.f32 %v4815, %v5093
        %v5154 = vmul.f32 %v4820, %v5095
        %v5155 = vmul.f32 %v4825, %v5097
        %v5156 = vmul.f32 %v4830, %v5099
        %v5157 = vmul.f32 %v4835, %v5101
        %v5158 = vmul.f32 %v4840, %v5103
        %v5159 = vmul.f32 %v4845, %v5105
        %v5160 = vmul.f32 %v4850, %v5107
        %v5161 = vmul.f32 %v4855, %v5109
        %v5162 = vmul.f32 %v4860, %v5111
        %v5163 = vmul.f32 %v4865, %v5113
        %v5164 = vmul.f32 %v4870, %v5115
        %v5165 = vmul.f32 %v4875, %v5117
        %v5166 = vmul.f32 %v4880, %v5119
        %v5167 = vmul.f32 %v4885, %v5121
        %v5168 = vmul.f32 %v4890, %v5123
        %v5169 = vmul.f32 %v4895, %v5125
        %v5170 = vmul.f32 %v4900, %v5127
        %v5171 = vmul.f32 %v4905, %v5129
        %v5172 = vmul.f32 %v4910, %v5131
        %v5173 = vmul.f32 %v4915, %v5133
        %v5174 = vmul.f32 %v4920, %v5135
        %v5175 = vmul.f32 %v4925, %v5137
        %v5176 = vmul.f32 %v4930, %v5139
        %v5177 = vmul.f32 %v4935, %v5141
        %v5178 = vmul.f32 %v4940, %v5143
        %v5179 = vmul.f32 %v4945, %v5145
        %v5180 = vmul.f32 %v4950, %v5147
        %v5181 = vmul.f32 %v4955, %v5149
        %5182 = vst.msk [vmem:[%s646] sm:$0xff] %vm1999, %v5150
        %5183 = vst.msk [vmem:[%s646 + $0x8] sm:$0xff] %vm1999, %v5151
        %5184 = vst.msk [vmem:[%s646 + $0x10] sm:$0xff] %vm1999, %v5152
        %5185 = vst.msk [vmem:[%s646 + $0x18] sm:$0xff] %vm1999, %v5153
        %5186 = vst.msk [vmem:[%s646 + $0x20] sm:$0xff] %vm1999, %v5154
        %5187 = vst.msk [vmem:[%s646 + $0x28] sm:$0xff] %vm1999, %v5155
        %5188 = vst.msk [vmem:[%s646 + $0x30] sm:$0xff] %vm1999, %v5156
        %5189 = vst.msk [vmem:[%s646 + $0x38] sm:$0xff] %vm1999, %v5157
        %5190 = vst.msk [vmem:[%s646 + $0x40] sm:$0xff] %vm1999, %v5158
        %5191 = vst.msk [vmem:[%s646 + $0x48] sm:$0xff] %vm1999, %v5159
        %5192 = vst.msk [vmem:[%s646 + $0x50] sm:$0xff] %vm1999, %v5160
        %5193 = vst.msk [vmem:[%s646 + $0x58] sm:$0xff] %vm1999, %v5161
        %5194 = vst.msk [vmem:[%s646 + $0x60] sm:$0xff] %vm1999, %v5162
        %5195 = vst.msk [vmem:[%s646 + $0x68] sm:$0xff] %vm1999, %v5163
        %5196 = vst.msk [vmem:[%s646 + $0x70] sm:$0xff] %vm1999, %v5164
        %5197 = vst.msk [vmem:[%s646 + $0x78] sm:$0xff] %vm1999, %v5165
        %5198 = vst.msk [vmem:[%s646 + $0x80] sm:$0xff] %vm1999, %v5166
        %5199 = vst.msk [vmem:[%s646 + $0x88] sm:$0xff] %vm1999, %v5167
        %5200 = vst.msk [vmem:[%s646 + $0x90] sm:$0xff] %vm1999, %v5168
        %5201 = vst.msk [vmem:[%s646 + $0x98] sm:$0xff] %vm1999, %v5169
        %5202 = vst.msk [vmem:[%s646 + $0xa0] sm:$0xff] %vm1999, %v5170
        %5203 = vst.msk [vmem:[%s646 + $0xa8] sm:$0xff] %vm1999, %v5171
        %5204 = vst.msk [vmem:[%s646 + $0xb0] sm:$0xff] %vm1999, %v5172
        %5205 = vst.msk [vmem:[%s646 + $0xb8] sm:$0xff] %vm1999, %v5173
        %5206 = vst.msk [vmem:[%s646 + $0xc0] sm:$0xff] %vm1999, %v5174
        %5207 = vst.msk [vmem:[%s646 + $0xc8] sm:$0xff] %vm1999, %v5175
        %5208 = vst.msk [vmem:[%s646 + $0xd0] sm:$0xff] %vm1999, %v5176
        %5209 = vst.msk [vmem:[%s646 + $0xd8] sm:$0xff] %vm1999, %v5177
        %5210 = vst.msk [vmem:[%s646 + $0xe0] sm:$0xff] %vm1999, %v5178
        %5211 = vst.msk [vmem:[%s646 + $0xe8] sm:$0xff] %vm1999, %v5179
        %5212 = vst.msk [vmem:[%s646 + $0xf0] sm:$0xff] %vm1999, %v5180
        %5213 = vst.msk [vmem:[%s646 + $0xf8] sm:$0xff] %vm1999, %v5181
        %5214 = vst.msk [vmem:[%s3014 + $0x1] sm:$0xff] %vm1999, %v5150
        %5215 = vst.msk [vmem:[%s3014 + $0x9] sm:$0xff] %vm1999, %v5151
        %5216 = vst.msk [vmem:[%s3014 + $0x19] sm:$0xff] %vm1999, %v5152
        %5217 = vst.msk [vmem:[%s3014 + $0x21] sm:$0xff] %vm1999, %v5153
        %5218 = vst.msk [vmem:[%s3014 + $0x31] sm:$0xff] %vm1999, %v5154
        %5219 = vst.msk [vmem:[%s3014 + $0x39] sm:$0xff] %vm1999, %v5155
        %5220 = vst.msk [vmem:[%s3014 + $0x49] sm:$0xff] %vm1999, %v5156
        %5221 = vst.msk [vmem:[%s3014 + $0x51] sm:$0xff] %vm1999, %v5157
        %5222 = vst.msk [vmem:[%s3014 + $0x61] sm:$0xff] %vm1999, %v5158
        %5223 = vst.msk [vmem:[%s3014 + $0x69] sm:$0xff] %vm1999, %v5159
        %5224 = vst.msk [vmem:[%s3014 + $0x79] sm:$0xff] %vm1999, %v5160
        %5225 = vst.msk [vmem:[%s3014 + $0x81] sm:$0xff] %vm1999, %v5161
        %5226 = vst.msk [vmem:[%s3014 + $0x91] sm:$0xff] %vm1999, %v5162
        %5227 = vst.msk [vmem:[%s3014 + $0x99] sm:$0xff] %vm1999, %v5163
        %5228 = vst.msk [vmem:[%s3014 + $0xa9] sm:$0xff] %vm1999, %v5164
        %5229 = vst.msk [vmem:[%s3014 + $0xb1] sm:$0xff] %vm1999, %v5165
        %5230 = vst.msk [vmem:[%s3014 + $0xc1] sm:$0xff] %vm1999, %v5166
        %5231 = vst.msk [vmem:[%s3014 + $0xc9] sm:$0xff] %vm1999, %v5167
        %5232 = vst.msk [vmem:[%s3014 + $0xd9] sm:$0xff] %vm1999, %v5168
        %5233 = vst.msk [vmem:[%s3014 + $0xe1] sm:$0xff] %vm1999, %v5169
        %5234 = vst.msk [vmem:[%s3014 + $0xf1] sm:$0xff] %vm1999, %v5170
        %5235 = vst.msk [vmem:[%s3014 + $0xf9] sm:$0xff] %vm1999, %v5171
        %5236 = vst.msk [vmem:[%s3014 + $0x109] sm:$0xff] %vm1999, %v5172
        %5237 = vst.msk [vmem:[%s3014 + $0x111] sm:$0xff] %vm1999, %v5173
        %5238 = vst.msk [vmem:[%s3014 + $0x121] sm:$0xff] %vm1999, %v5174
        %5239 = vst.msk [vmem:[%s3014 + $0x129] sm:$0xff] %vm1999, %v5175
        %5240 = vst.msk [vmem:[%s3014 + $0x139] sm:$0xff] %vm1999, %v5176
        %5241 = vst.msk [vmem:[%s3014 + $0x141] sm:$0xff] %vm1999, %v5177
        %5242 = vst.msk [vmem:[%s3014 + $0x151] sm:$0xff] %vm1999, %v5178
        %5243 = vst.msk [vmem:[%s3014 + $0x159] sm:$0xff] %vm1999, %v5179
        %5244 = vst.msk [vmem:[%s3014 + $0x169] sm:$0xff] %vm1999, %v5180
        %5245 = vst.msk [vmem:[%s3014 + $0x171] sm:$0xff] %vm1999, %v5181
        %v5246 = vld [vmem:[#allocation2] sm:$0xff]
        %v5247 = vld [vmem:[#allocation2 + $0x8] sm:$0xff]
        %v5248 = vld [vmem:[#allocation2 + $0x18] sm:$0xff]
        %v5249 = vld [vmem:[#allocation2 + $0x20] sm:$0xff]
        %v5250 = vld [vmem:[#allocation2 + $0x30] sm:$0xff]
        %v5251 = vld [vmem:[#allocation2 + $0x38] sm:$0xff]
        %v5252 = vld [vmem:[#allocation2 + $0x48] sm:$0xff]
        %v5253 = vld [vmem:[#allocation2 + $0x50] sm:$0xff]
        %v5254 = vld [vmem:[#allocation2 + $0x60] sm:$0xff]
        %v5255 = vld [vmem:[#allocation2 + $0x68] sm:$0xff]
        %v5256 = vld [vmem:[#allocation2 + $0x78] sm:$0xff]
        %v5257 = vld [vmem:[#allocation2 + $0x80] sm:$0xff]
        %v5258 = vld [vmem:[#allocation2 + $0x90] sm:$0xff]
        %v5259 = vld [vmem:[#allocation2 + $0x98] sm:$0xff]
        %v5260 = vld [vmem:[#allocation2 + $0xa8] sm:$0xff]
        %v5261 = vld [vmem:[#allocation2 + $0xb0] sm:$0xff]
        %v5262 = vld [vmem:[#allocation2 + $0xc0] sm:$0xff]
        %v5263 = vld [vmem:[#allocation2 + $0xc8] sm:$0xff]
        %v5264 = vld [vmem:[#allocation2 + $0xd8] sm:$0xff]
        %v5265 = vld [vmem:[#allocation2 + $0xe0] sm:$0xff]
        %v5266 = vld [vmem:[#allocation2 + $0xf0] sm:$0xff]
        %v5267 = vld [vmem:[#allocation2 + $0xf8] sm:$0xff]
        %v5268 = vld [vmem:[#allocation2 + $0x108] sm:$0xff]
        %v5269 = vld [vmem:[#allocation2 + $0x110] sm:$0xff]
        %v5270 = vld [vmem:[#allocation2 + $0x120] sm:$0xff]
        %v5271 = vld [vmem:[#allocation2 + $0x128] sm:$0xff]
        %v5272 = vld [vmem:[#allocation2 + $0x138] sm:$0xff]
        %v5273 = vld [vmem:[#allocation2 + $0x140] sm:$0xff]
        %v5274 = vld [vmem:[#allocation2 + $0x150] sm:$0xff]
        %v5275 = vld [vmem:[#allocation2 + $0x158] sm:$0xff]
        %v5276 = vld [vmem:[#allocation2 + $0x168] sm:$0xff]
        %v5277 = vld [vmem:[#allocation2 + $0x170] sm:$0xff]
        %v5278 = vld [vmem:[#allocation2 + $0x1] sm:$0xff]
        %v5279 = vld [vmem:[#allocation2 + $0x9] sm:$0xff]
        %v5280 = vld [vmem:[#allocation2 + $0x19] sm:$0xff]
        %v5281 = vld [vmem:[#allocation2 + $0x21] sm:$0xff]
        %v5282 = vld [vmem:[#allocation2 + $0x31] sm:$0xff]
        %v5283 = vld [vmem:[#allocation2 + $0x39] sm:$0xff]
        %v5284 = vld [vmem:[#allocation2 + $0x49] sm:$0xff]
        %v5285 = vld [vmem:[#allocation2 + $0x51] sm:$0xff]
        %v5286 = vld [vmem:[#allocation2 + $0x61] sm:$0xff]
        %v5287 = vld [vmem:[#allocation2 + $0x69] sm:$0xff]
        %v5288 = vld [vmem:[#allocation2 + $0x79] sm:$0xff]
        %v5289 = vld [vmem:[#allocation2 + $0x81] sm:$0xff]
        %v5290 = vld [vmem:[#allocation2 + $0x91] sm:$0xff]
        %v5291 = vld [vmem:[#allocation2 + $0x99] sm:$0xff]
        %v5292 = vld [vmem:[#allocation2 + $0xa9] sm:$0xff]
        %v5293 = vld [vmem:[#allocation2 + $0xb1] sm:$0xff]
        %v5294 = vld [vmem:[#allocation2 + $0xc1] sm:$0xff]
        %v5295 = vld [vmem:[#allocation2 + $0xc9] sm:$0xff]
        %v5296 = vld [vmem:[#allocation2 + $0xd9] sm:$0xff]
        %v5297 = vld [vmem:[#allocation2 + $0xe1] sm:$0xff]
        %v5298 = vld [vmem:[#allocation2 + $0xf1] sm:$0xff]
        %v5299 = vld [vmem:[#allocation2 + $0xf9] sm:$0xff]
        %v5300 = vld [vmem:[#allocation2 + $0x109] sm:$0xff]
        %v5301 = vld [vmem:[#allocation2 + $0x111] sm:$0xff]
        %v5302 = vld [vmem:[#allocation2 + $0x121] sm:$0xff]
        %v5303 = vld [vmem:[#allocation2 + $0x129] sm:$0xff]
        %v5304 = vld [vmem:[#allocation2 + $0x139] sm:$0xff]
        %v5305 = vld [vmem:[#allocation2 + $0x141] sm:$0xff]
        %v5306 = vld [vmem:[#allocation2 + $0x151] sm:$0xff]
        %v5307 = vld [vmem:[#allocation2 + $0x159] sm:$0xff]
        %v5308 = vld [vmem:[#allocation2 + $0x169] sm:$0xff]
        %v5309 = vld [vmem:[#allocation2 + $0x171] sm:$0xff]
        %v5310 = vld [vmem:[#allocation2 + $0x2] sm:$0xff]
        %v5311 = vld [vmem:[#allocation2 + $0xa] sm:$0xff]
        %v5312 = vld [vmem:[#allocation2 + $0x1a] sm:$0xff]
        %v5313 = vld [vmem:[#allocation2 + $0x22] sm:$0xff]
        %v5314 = vld [vmem:[#allocation2 + $0x32] sm:$0xff]
        %v5315 = vld [vmem:[#allocation2 + $0x3a] sm:$0xff]
        %v5316 = vld [vmem:[#allocation2 + $0x4a] sm:$0xff]
        %v5317 = vld [vmem:[#allocation2 + $0x52] sm:$0xff]
        %v5318 = vld [vmem:[#allocation2 + $0x62] sm:$0xff]
        %v5319 = vld [vmem:[#allocation2 + $0x6a] sm:$0xff]
        %v5320 = vld [vmem:[#allocation2 + $0x7a] sm:$0xff]
        %v5321 = vld [vmem:[#allocation2 + $0x82] sm:$0xff]
        %v5322 = vld [vmem:[#allocation2 + $0x92] sm:$0xff]
        %v5323 = vld [vmem:[#allocation2 + $0x9a] sm:$0xff]
        %v5324 = vld [vmem:[#allocation2 + $0xaa] sm:$0xff]
        %v5325 = vld [vmem:[#allocation2 + $0xb2] sm:$0xff]
        %v5326 = vld [vmem:[#allocation2 + $0xc2] sm:$0xff]
        %v5327 = vld [vmem:[#allocation2 + $0xca] sm:$0xff]
        %v5328 = vld [vmem:[#allocation2 + $0xda] sm:$0xff]
        %v5329 = vld [vmem:[#allocation2 + $0xe2] sm:$0xff]
        %v5330 = vld [vmem:[#allocation2 + $0xf2] sm:$0xff]
        %v5331 = vld [vmem:[#allocation2 + $0xfa] sm:$0xff]
        %v5332 = vld [vmem:[#allocation2 + $0x10a] sm:$0xff]
        %v5333 = vld [vmem:[#allocation2 + $0x112] sm:$0xff]
        %v5334 = vld [vmem:[#allocation2 + $0x122] sm:$0xff]
        %v5335 = vld [vmem:[#allocation2 + $0x12a] sm:$0xff]
        %v5336 = vld [vmem:[#allocation2 + $0x13a] sm:$0xff]
        %v5337 = vld [vmem:[#allocation2 + $0x142] sm:$0xff]
        %v5338 = vld [vmem:[#allocation2 + $0x152] sm:$0xff]
        %v5339 = vld [vmem:[#allocation2 + $0x15a] sm:$0xff]
        %v5340 = vld [vmem:[#allocation2 + $0x16a] sm:$0xff]
        %v5341 = vld [vmem:[#allocation2 + $0x172] sm:$0xff]
        %v5342 = vld [vmem:[%s3014] sm:$0xff]
        %v5343 = vld [vmem:[%s3014 + $0x8] sm:$0xff]
        %v5344 = vld [vmem:[%s3014 + $0x18] sm:$0xff]
        %v5345 = vld [vmem:[%s3014 + $0x20] sm:$0xff]
        %v5346 = vld [vmem:[%s3014 + $0x30] sm:$0xff]
        %v5347 = vld [vmem:[%s3014 + $0x38] sm:$0xff]
        %v5348 = vld [vmem:[%s3014 + $0x48] sm:$0xff]
        %v5349 = vld [vmem:[%s3014 + $0x50] sm:$0xff]
        %v5350 = vld [vmem:[%s3014 + $0x60] sm:$0xff]
        %v5351 = vld [vmem:[%s3014 + $0x68] sm:$0xff]
        %v5352 = vld [vmem:[%s3014 + $0x78] sm:$0xff]
        %v5353 = vld [vmem:[%s3014 + $0x80] sm:$0xff]
        %v5354 = vld [vmem:[%s3014 + $0x90] sm:$0xff]
        %v5355 = vld [vmem:[%s3014 + $0x98] sm:$0xff]
        %v5356 = vld [vmem:[%s3014 + $0xa8] sm:$0xff]
        %v5357 = vld [vmem:[%s3014 + $0xb0] sm:$0xff]
        %v5358 = vld [vmem:[%s3014 + $0xc0] sm:$0xff]
        %v5359 = vld [vmem:[%s3014 + $0xc8] sm:$0xff]
        %v5360 = vld [vmem:[%s3014 + $0xd8] sm:$0xff]
        %v5361 = vld [vmem:[%s3014 + $0xe0] sm:$0xff]
        %v5362 = vld [vmem:[%s3014 + $0xf0] sm:$0xff]
        %v5363 = vld [vmem:[%s3014 + $0xf8] sm:$0xff]
        %v5364 = vld [vmem:[%s3014 + $0x108] sm:$0xff]
        %v5365 = vld [vmem:[%s3014 + $0x110] sm:$0xff]
        %v5366 = vld [vmem:[%s3014 + $0x120] sm:$0xff]
        %v5367 = vld [vmem:[%s3014 + $0x128] sm:$0xff]
        %v5368 = vld [vmem:[%s3014 + $0x138] sm:$0xff]
        %v5369 = vld [vmem:[%s3014 + $0x140] sm:$0xff]
        %v5370 = vld [vmem:[%s3014 + $0x150] sm:$0xff]
        %v5371 = vld [vmem:[%s3014 + $0x158] sm:$0xff]
        %v5372 = vld [vmem:[%s3014 + $0x168] sm:$0xff]
        %v5373 = vld [vmem:[%s3014 + $0x170] sm:$0xff]
        %v5374 = vld [vmem:[%s3014 + $0x1] sm:$0xff]
        %v5375 = vld [vmem:[%s3014 + $0x9] sm:$0xff]
        %v5376 = vld [vmem:[%s3014 + $0x19] sm:$0xff]
        %v5377 = vld [vmem:[%s3014 + $0x21] sm:$0xff]
        %v5378 = vld [vmem:[%s3014 + $0x31] sm:$0xff]
        %v5379 = vld [vmem:[%s3014 + $0x39] sm:$0xff]
        %v5380 = vld [vmem:[%s3014 + $0x49] sm:$0xff]
        %v5381 = vld [vmem:[%s3014 + $0x51] sm:$0xff]
        %v5382 = vld [vmem:[%s3014 + $0x61] sm:$0xff]
        %v5383 = vld [vmem:[%s3014 + $0x69] sm:$0xff]
        %v5384 = vld [vmem:[%s3014 + $0x79] sm:$0xff]
        %v5385 = vld [vmem:[%s3014 + $0x81] sm:$0xff]
        %v5386 = vld [vmem:[%s3014 + $0x91] sm:$0xff]
        %v5387 = vld [vmem:[%s3014 + $0x99] sm:$0xff]
        %v5388 = vld [vmem:[%s3014 + $0xa9] sm:$0xff]
        %v5389 = vld [vmem:[%s3014 + $0xb1] sm:$0xff]
        %v5390 = vld [vmem:[%s3014 + $0xc1] sm:$0xff]
        %v5391 = vld [vmem:[%s3014 + $0xc9] sm:$0xff]
        %v5392 = vld [vmem:[%s3014 + $0xd9] sm:$0xff]
        %v5393 = vld [vmem:[%s3014 + $0xe1] sm:$0xff]
        %v5394 = vld [vmem:[%s3014 + $0xf1] sm:$0xff]
        %v5395 = vld [vmem:[%s3014 + $0xf9] sm:$0xff]
        %v5396 = vld [vmem:[%s3014 + $0x109] sm:$0xff]
        %v5397 = vld [vmem:[%s3014 + $0x111] sm:$0xff]
        %v5398 = vld [vmem:[%s3014 + $0x121] sm:$0xff]
        %v5399 = vld [vmem:[%s3014 + $0x129] sm:$0xff]
        %v5400 = vld [vmem:[%s3014 + $0x139] sm:$0xff]
        %v5401 = vld [vmem:[%s3014 + $0x141] sm:$0xff]
        %v5402 = vld [vmem:[%s3014 + $0x151] sm:$0xff]
        %v5403 = vld [vmem:[%s3014 + $0x159] sm:$0xff]
        %v5404 = vld [vmem:[%s3014 + $0x169] sm:$0xff]
        %v5405 = vld [vmem:[%s3014 + $0x171] sm:$0xff]
        %v5406 = vld [vmem:[%s3014 + $0x2] sm:$0xff]
        %v5407 = vld [vmem:[%s3014 + $0xa] sm:$0xff]
        %v5408 = vld [vmem:[%s3014 + $0x1a] sm:$0xff]
        %v5409 = vld [vmem:[%s3014 + $0x22] sm:$0xff]
        %v5410 = vld [vmem:[%s3014 + $0x32] sm:$0xff]
        %v5411 = vld [vmem:[%s3014 + $0x3a] sm:$0xff]
        %v5412 = vld [vmem:[%s3014 + $0x4a] sm:$0xff]
        %v5413 = vld [vmem:[%s3014 + $0x52] sm:$0xff]
        %v5414 = vld [vmem:[%s3014 + $0x62] sm:$0xff]
        %v5415 = vld [vmem:[%s3014 + $0x6a] sm:$0xff]
        %v5416 = vld [vmem:[%s3014 + $0x7a] sm:$0xff]
        %v5417 = vld [vmem:[%s3014 + $0x82] sm:$0xff]
        %v5418 = vld [vmem:[%s3014 + $0x92] sm:$0xff]
        %v5419 = vld [vmem:[%s3014 + $0x9a] sm:$0xff]
        %v5420 = vld [vmem:[%s3014 + $0xaa] sm:$0xff]
        %v5421 = vld [vmem:[%s3014 + $0xb2] sm:$0xff]
        %v5422 = vld [vmem:[%s3014 + $0xc2] sm:$0xff]
        %v5423 = vld [vmem:[%s3014 + $0xca] sm:$0xff]
        %v5424 = vld [vmem:[%s3014 + $0xda] sm:$0xff]
        %v5425 = vld [vmem:[%s3014 + $0xe2] sm:$0xff]
        %v5426 = vld [vmem:[%s3014 + $0xf2] sm:$0xff]
        %v5427 = vld [vmem:[%s3014 + $0xfa] sm:$0xff]
        %v5428 = vld [vmem:[%s3014 + $0x10a] sm:$0xff]
        %v5429 = vld [vmem:[%s3014 + $0x112] sm:$0xff]
        %v5430 = vld [vmem:[%s3014 + $0x122] sm:$0xff]
        %v5431 = vld [vmem:[%s3014 + $0x12a] sm:$0xff]
        %v5432 = vld [vmem:[%s3014 + $0x13a] sm:$0xff]
        %v5433 = vld [vmem:[%s3014 + $0x142] sm:$0xff]
        %v5434 = vld [vmem:[%s3014 + $0x152] sm:$0xff]
        %v5435 = vld [vmem:[%s3014 + $0x15a] sm:$0xff]
        %v5436 = vld [vmem:[%s3014 + $0x16a] sm:$0xff]
        %v5437 = vld [vmem:[%s3014 + $0x172] sm:$0xff]
        %v5438 = vld [vmem:[%s3239] sm:$0xff]
        %v5439 = vld [vmem:[%s3239 + $0x8] sm:$0xff]
        %v5440 = vld [vmem:[%s3239 + $0x18] sm:$0xff]
        %v5441 = vld [vmem:[%s3239 + $0x20] sm:$0xff]
        %v5442 = vld [vmem:[%s3239 + $0x30] sm:$0xff]
        %v5443 = vld [vmem:[%s3239 + $0x38] sm:$0xff]
        %v5444 = vld [vmem:[%s3239 + $0x48] sm:$0xff]
        %v5445 = vld [vmem:[%s3239 + $0x50] sm:$0xff]
        %v5446 = vld [vmem:[%s3239 + $0x60] sm:$0xff]
        %v5447 = vld [vmem:[%s3239 + $0x68] sm:$0xff]
        %v5448 = vld [vmem:[%s3239 + $0x78] sm:$0xff]
        %v5449 = vld [vmem:[%s3239 + $0x80] sm:$0xff]
        %v5450 = vld [vmem:[%s3239 + $0x90] sm:$0xff]
        %v5451 = vld [vmem:[%s3239 + $0x98] sm:$0xff]
        %v5452 = vld [vmem:[%s3239 + $0xa8] sm:$0xff]
        %v5453 = vld [vmem:[%s3239 + $0xb0] sm:$0xff]
        %v5454 = vld [vmem:[%s3239 + $0xc0] sm:$0xff]
        %v5455 = vld [vmem:[%s3239 + $0xc8] sm:$0xff]
        %v5456 = vld [vmem:[%s3239 + $0xd8] sm:$0xff]
        %v5457 = vld [vmem:[%s3239 + $0xe0] sm:$0xff]
        %v5458 = vld [vmem:[%s3239 + $0xf0] sm:$0xff]
        %v5459 = vld [vmem:[%s3239 + $0xf8] sm:$0xff]
        %v5460 = vld [vmem:[%s3239 + $0x108] sm:$0xff]
        %v5461 = vld [vmem:[%s3239 + $0x110] sm:$0xff]
        %v5462 = vld [vmem:[%s3239 + $0x120] sm:$0xff]
        %v5463 = vld [vmem:[%s3239 + $0x128] sm:$0xff]
        %v5464 = vld [vmem:[%s3239 + $0x138] sm:$0xff]
        %v5465 = vld [vmem:[%s3239 + $0x140] sm:$0xff]
        %v5466 = vld [vmem:[%s3239 + $0x150] sm:$0xff]
        %v5467 = vld [vmem:[%s3239 + $0x158] sm:$0xff]
        %v5468 = vld [vmem:[%s3239 + $0x168] sm:$0xff]
        %v5469 = vld [vmem:[%s3239 + $0x170] sm:$0xff]
        %v5470 = vld [vmem:[%s3239 + $0x1] sm:$0xff]
        %v5471 = vld [vmem:[%s3239 + $0x9] sm:$0xff]
        %v5472 = vld [vmem:[%s3239 + $0x19] sm:$0xff]
        %v5473 = vld [vmem:[%s3239 + $0x21] sm:$0xff]
        %v5474 = vld [vmem:[%s3239 + $0x31] sm:$0xff]
        %v5475 = vld [vmem:[%s3239 + $0x39] sm:$0xff]
        %v5476 = vld [vmem:[%s3239 + $0x49] sm:$0xff]
        %v5477 = vld [vmem:[%s3239 + $0x51] sm:$0xff]
        %v5478 = vld [vmem:[%s3239 + $0x61] sm:$0xff]
        %v5479 = vld [vmem:[%s3239 + $0x69] sm:$0xff]
        %v5480 = vld [vmem:[%s3239 + $0x79] sm:$0xff]
        %v5481 = vld [vmem:[%s3239 + $0x81] sm:$0xff]
        %v5482 = vld [vmem:[%s3239 + $0x91] sm:$0xff]
        %v5483 = vld [vmem:[%s3239 + $0x99] sm:$0xff]
        %v5484 = vld [vmem:[%s3239 + $0xa9] sm:$0xff]
        %v5485 = vld [vmem:[%s3239 + $0xb1] sm:$0xff]
        %v5486 = vld [vmem:[%s3239 + $0xc1] sm:$0xff]
        %v5487 = vld [vmem:[%s3239 + $0xc9] sm:$0xff]
        %v5488 = vld [vmem:[%s3239 + $0xd9] sm:$0xff]
        %v5489 = vld [vmem:[%s3239 + $0xe1] sm:$0xff]
        %v5490 = vld [vmem:[%s3239 + $0xf1] sm:$0xff]
        %v5491 = vld [vmem:[%s3239 + $0xf9] sm:$0xff]
        %v5492 = vld [vmem:[%s3239 + $0x109] sm:$0xff]
        %v5493 = vld [vmem:[%s3239 + $0x111] sm:$0xff]
        %v5494 = vld [vmem:[%s3239 + $0x121] sm:$0xff]
        %v5495 = vld [vmem:[%s3239 + $0x129] sm:$0xff]
        %v5496 = vld [vmem:[%s3239 + $0x139] sm:$0xff]
        %v5497 = vld [vmem:[%s3239 + $0x141] sm:$0xff]
        %v5498 = vld [vmem:[%s3239 + $0x151] sm:$0xff]
        %v5499 = vld [vmem:[%s3239 + $0x159] sm:$0xff]
        %v5500 = vld [vmem:[%s3239 + $0x169] sm:$0xff]
        %v5501 = vld [vmem:[%s3239 + $0x171] sm:$0xff]
        %v5502 = vld [vmem:[%s3239 + $0x2] sm:$0xff]
        %v5503 = vld [vmem:[%s3239 + $0xa] sm:$0xff]
        %v5504 = vld [vmem:[%s3239 + $0x1a] sm:$0xff]
        %v5505 = vld [vmem:[%s3239 + $0x22] sm:$0xff]
        %v5506 = vld [vmem:[%s3239 + $0x32] sm:$0xff]
        %v5507 = vld [vmem:[%s3239 + $0x3a] sm:$0xff]
        %v5508 = vld [vmem:[%s3239 + $0x4a] sm:$0xff]
        %v5509 = vld [vmem:[%s3239 + $0x52] sm:$0xff]
        %v5510 = vld [vmem:[%s3239 + $0x62] sm:$0xff]
        %v5511 = vld [vmem:[%s3239 + $0x6a] sm:$0xff]
        %v5512 = vld [vmem:[%s3239 + $0x7a] sm:$0xff]
        %v5513 = vld [vmem:[%s3239 + $0x82] sm:$0xff]
        %v5514 = vld [vmem:[%s3239 + $0x92] sm:$0xff]
        %v5515 = vld [vmem:[%s3239 + $0x9a] sm:$0xff]
        %v5516 = vld [vmem:[%s3239 + $0xaa] sm:$0xff]
        %v5517 = vld [vmem:[%s3239 + $0xb2] sm:$0xff]
        %v5518 = vld [vmem:[%s3239 + $0xc2] sm:$0xff]
        %v5519 = vld [vmem:[%s3239 + $0xca] sm:$0xff]
        %v5520 = vld [vmem:[%s3239 + $0xda] sm:$0xff]
        %v5521 = vld [vmem:[%s3239 + $0xe2] sm:$0xff]
        %v5522 = vld [vmem:[%s3239 + $0xf2] sm:$0xff]
        %v5523 = vld [vmem:[%s3239 + $0xfa] sm:$0xff]
        %v5524 = vld [vmem:[%s3239 + $0x10a] sm:$0xff]
        %v5525 = vld [vmem:[%s3239 + $0x112] sm:$0xff]
        %v5526 = vld [vmem:[%s3239 + $0x122] sm:$0xff]
        %v5527 = vld [vmem:[%s3239 + $0x12a] sm:$0xff]
        %v5528 = vld [vmem:[%s3239 + $0x13a] sm:$0xff]
        %v5529 = vld [vmem:[%s3239 + $0x142] sm:$0xff]
        %v5530 = vld [vmem:[%s3239 + $0x152] sm:$0xff]
        %v5531 = vld [vmem:[%s3239 + $0x15a] sm:$0xff]
        %v5532 = vld [vmem:[%s3239 + $0x16a] sm:$0xff]
        %v5533 = vld [vmem:[%s3239 + $0x172] sm:$0xff]
        %5566 = vrot.lane.b32.xlu0 %v5278, 8
        %v5567 = vpop.permute.xlu0 %5566
        %5568 = vrot.lane.b32.xlu0 %v5279, 8
        %v5569 = vpop.permute.xlu0 %5568
        %5570 = vrot.lane.b32.xlu0 %v5280, 8
        %v5571 = vpop.permute.xlu0 %5570
        %5572 = vrot.lane.b32.xlu0 %v5281, 8
        %v5573 = vpop.permute.xlu0 %5572
        %5574 = vrot.lane.b32.xlu0 %v5282, 8
        %v5575 = vpop.permute.xlu0 %5574
        %5576 = vrot.lane.b32.xlu0 %v5283, 8
        %v5577 = vpop.permute.xlu0 %5576
        %5578 = vrot.lane.b32.xlu0 %v5284, 8
        %v5579 = vpop.permute.xlu0 %5578
        %5580 = vrot.lane.b32.xlu0 %v5285, 8
        %v5581 = vpop.permute.xlu0 %5580
        %5582 = vrot.lane.b32.xlu0 %v5286, 8
        %v5583 = vpop.permute.xlu0 %5582
        %5584 = vrot.lane.b32.xlu0 %v5287, 8
        %v5585 = vpop.permute.xlu0 %5584
        %5586 = vrot.lane.b32.xlu0 %v5288, 8
        %v5587 = vpop.permute.xlu0 %5586
        %5588 = vrot.lane.b32.xlu0 %v5289, 8
        %v5589 = vpop.permute.xlu0 %5588
        %5590 = vrot.lane.b32.xlu0 %v5290, 8
        %v5591 = vpop.permute.xlu0 %5590
        %5592 = vrot.lane.b32.xlu0 %v5291, 8
        %v5593 = vpop.permute.xlu0 %5592
        %5594 = vrot.lane.b32.xlu0 %v5292, 8
        %v5595 = vpop.permute.xlu0 %5594
        %5596 = vrot.lane.b32.xlu0 %v5293, 8
        %v5597 = vpop.permute.xlu0 %5596
        %5598 = vrot.lane.b32.xlu0 %v5294, 8
        %v5599 = vpop.permute.xlu0 %5598
        %5600 = vrot.lane.b32.xlu0 %v5295, 8
        %v5601 = vpop.permute.xlu0 %5600
        %5602 = vrot.lane.b32.xlu0 %v5296, 8
        %v5603 = vpop.permute.xlu0 %5602
        %5604 = vrot.lane.b32.xlu0 %v5297, 8
        %v5605 = vpop.permute.xlu0 %5604
        %5606 = vrot.lane.b32.xlu0 %v5298, 8
        %v5607 = vpop.permute.xlu0 %5606
        %5608 = vrot.lane.b32.xlu0 %v5299, 8
        %v5609 = vpop.permute.xlu0 %5608
        %5610 = vrot.lane.b32.xlu0 %v5300, 8
        %v5611 = vpop.permute.xlu0 %5610
        %5612 = vrot.lane.b32.xlu0 %v5301, 8
        %v5613 = vpop.permute.xlu0 %5612
        %5614 = vrot.lane.b32.xlu0 %v5302, 8
        %v5615 = vpop.permute.xlu0 %5614
        %5616 = vrot.lane.b32.xlu0 %v5303, 8
        %v5617 = vpop.permute.xlu0 %5616
        %5618 = vrot.lane.b32.xlu0 %v5304, 8
        %v5619 = vpop.permute.xlu0 %5618
        %5620 = vrot.lane.b32.xlu0 %v5305, 8
        %v5621 = vpop.permute.xlu0 %5620
        %5622 = vrot.lane.b32.xlu0 %v5306, 8
        %v5623 = vpop.permute.xlu0 %5622
        %5624 = vrot.lane.b32.xlu0 %v5307, 8
        %v5625 = vpop.permute.xlu0 %5624
        %5626 = vrot.lane.b32.xlu0 %v5308, 8
        %v5627 = vpop.permute.xlu0 %5626
        %5628 = vrot.lane.b32.xlu0 %v5309, 8
        %v5629 = vpop.permute.xlu0 %5628
        %5694 = vrot.lane.b32.xlu0 %v5310, 16
        %v5695 = vpop.permute.xlu0 %5694
        %5696 = vrot.lane.b32.xlu0 %v5311, 16
        %v5697 = vpop.permute.xlu0 %5696
        %5698 = vrot.lane.b32.xlu0 %v5312, 16
        %v5699 = vpop.permute.xlu0 %5698
        %5700 = vrot.lane.b32.xlu0 %v5313, 16
        %v5701 = vpop.permute.xlu0 %5700
        %5702 = vrot.lane.b32.xlu0 %v5314, 16
        %v5703 = vpop.permute.xlu0 %5702
        %5704 = vrot.lane.b32.xlu0 %v5315, 16
        %v5705 = vpop.permute.xlu0 %5704
        %5706 = vrot.lane.b32.xlu0 %v5316, 16
        %v5707 = vpop.permute.xlu0 %5706
        %5708 = vrot.lane.b32.xlu0 %v5317, 16
        %v5709 = vpop.permute.xlu0 %5708
        %5710 = vrot.lane.b32.xlu0 %v5318, 16
        %v5711 = vpop.permute.xlu0 %5710
        %5712 = vrot.lane.b32.xlu0 %v5319, 16
        %v5713 = vpop.permute.xlu0 %5712
        %5714 = vrot.lane.b32.xlu0 %v5320, 16
        %v5715 = vpop.permute.xlu0 %5714
        %5716 = vrot.lane.b32.xlu0 %v5321, 16
        %v5717 = vpop.permute.xlu0 %5716
        %5718 = vrot.lane.b32.xlu0 %v5322, 16
        %v5719 = vpop.permute.xlu0 %5718
        %5720 = vrot.lane.b32.xlu0 %v5323, 16
        %v5721 = vpop.permute.xlu0 %5720
        %5722 = vrot.lane.b32.xlu0 %v5324, 16
        %v5723 = vpop.permute.xlu0 %5722
        %5724 = vrot.lane.b32.xlu0 %v5325, 16
        %v5725 = vpop.permute.xlu0 %5724
        %5726 = vrot.lane.b32.xlu0 %v5326, 16
        %v5727 = vpop.permute.xlu0 %5726
        %5728 = vrot.lane.b32.xlu0 %v5327, 16
        %v5729 = vpop.permute.xlu0 %5728
        %5730 = vrot.lane.b32.xlu0 %v5328, 16
        %v5731 = vpop.permute.xlu0 %5730
        %5732 = vrot.lane.b32.xlu0 %v5329, 16
        %v5733 = vpop.permute.xlu0 %5732
        %5734 = vrot.lane.b32.xlu0 %v5330, 16
        %v5735 = vpop.permute.xlu0 %5734
        %5736 = vrot.lane.b32.xlu0 %v5331, 16
        %v5737 = vpop.permute.xlu0 %5736
        %5738 = vrot.lane.b32.xlu0 %v5332, 16
        %v5739 = vpop.permute.xlu0 %5738
        %5740 = vrot.lane.b32.xlu0 %v5333, 16
        %v5741 = vpop.permute.xlu0 %5740
        %5742 = vrot.lane.b32.xlu0 %v5334, 16
        %v5743 = vpop.permute.xlu0 %5742
        %5744 = vrot.lane.b32.xlu0 %v5335, 16
        %v5745 = vpop.permute.xlu0 %5744
        %5746 = vrot.lane.b32.xlu0 %v5336, 16
        %v5747 = vpop.permute.xlu0 %5746
        %5748 = vrot.lane.b32.xlu0 %v5337, 16
        %v5749 = vpop.permute.xlu0 %5748
        %5750 = vrot.lane.b32.xlu0 %v5338, 16
        %v5751 = vpop.permute.xlu0 %5750
        %5752 = vrot.lane.b32.xlu0 %v5339, 16
        %v5753 = vpop.permute.xlu0 %5752
        %5754 = vrot.lane.b32.xlu0 %v5340, 16
        %v5755 = vpop.permute.xlu0 %5754
        %5756 = vrot.lane.b32.xlu0 %v5341, 16
        %v5757 = vpop.permute.xlu0 %5756
        %5822 = vrot.lane.b32.xlu0 %v5342, 24
        %v5823 = vpop.permute.xlu0 %5822
        %5824 = vrot.lane.b32.xlu0 %v5343, 24
        %v5825 = vpop.permute.xlu0 %5824
        %5826 = vrot.lane.b32.xlu0 %v5344, 24
        %v5827 = vpop.permute.xlu0 %5826
        %5828 = vrot.lane.b32.xlu0 %v5345, 24
        %v5829 = vpop.permute.xlu0 %5828
        %5830 = vrot.lane.b32.xlu0 %v5346, 24
        %v5831 = vpop.permute.xlu0 %5830
        %5832 = vrot.lane.b32.xlu0 %v5347, 24
        %v5833 = vpop.permute.xlu0 %5832
        %5834 = vrot.lane.b32.xlu0 %v5348, 24
        %v5835 = vpop.permute.xlu0 %5834
        %5836 = vrot.lane.b32.xlu0 %v5349, 24
        %v5837 = vpop.permute.xlu0 %5836
        %5838 = vrot.lane.b32.xlu0 %v5350, 24
        %v5839 = vpop.permute.xlu0 %5838
        %5840 = vrot.lane.b32.xlu0 %v5351, 24
        %v5841 = vpop.permute.xlu0 %5840
        %5842 = vrot.lane.b32.xlu0 %v5352, 24
        %v5843 = vpop.permute.xlu0 %5842
        %5844 = vrot.lane.b32.xlu0 %v5353, 24
        %v5845 = vpop.permute.xlu0 %5844
        %5846 = vrot.lane.b32.xlu0 %v5354, 24
        %v5847 = vpop.permute.xlu0 %5846
        %5848 = vrot.lane.b32.xlu0 %v5355, 24
        %v5849 = vpop.permute.xlu0 %5848
        %5850 = vrot.lane.b32.xlu0 %v5356, 24
        %v5851 = vpop.permute.xlu0 %5850
        %5852 = vrot.lane.b32.xlu0 %v5357, 24
        %v5853 = vpop.permute.xlu0 %5852
        %5854 = vrot.lane.b32.xlu0 %v5358, 24
        %v5855 = vpop.permute.xlu0 %5854
        %5856 = vrot.lane.b32.xlu0 %v5359, 24
        %v5857 = vpop.permute.xlu0 %5856
        %5858 = vrot.lane.b32.xlu0 %v5360, 24
        %v5859 = vpop.permute.xlu0 %5858
        %5860 = vrot.lane.b32.xlu0 %v5361, 24
        %v5861 = vpop.permute.xlu0 %5860
        %5862 = vrot.lane.b32.xlu0 %v5362, 24
        %v5863 = vpop.permute.xlu0 %5862
        %5864 = vrot.lane.b32.xlu0 %v5363, 24
        %v5865 = vpop.permute.xlu0 %5864
        %5866 = vrot.lane.b32.xlu0 %v5364, 24
        %v5867 = vpop.permute.xlu0 %5866
        %5868 = vrot.lane.b32.xlu0 %v5365, 24
        %v5869 = vpop.permute.xlu0 %5868
        %5870 = vrot.lane.b32.xlu0 %v5366, 24
        %v5871 = vpop.permute.xlu0 %5870
        %5872 = vrot.lane.b32.xlu0 %v5367, 24
        %v5873 = vpop.permute.xlu0 %5872
        %5874 = vrot.lane.b32.xlu0 %v5368, 24
        %v5875 = vpop.permute.xlu0 %5874
        %5876 = vrot.lane.b32.xlu0 %v5369, 24
        %v5877 = vpop.permute.xlu0 %5876
        %5878 = vrot.lane.b32.xlu0 %v5370, 24
        %v5879 = vpop.permute.xlu0 %5878
        %5880 = vrot.lane.b32.xlu0 %v5371, 24
        %v5881 = vpop.permute.xlu0 %5880
        %5882 = vrot.lane.b32.xlu0 %v5372, 24
        %v5883 = vpop.permute.xlu0 %5882
        %5884 = vrot.lane.b32.xlu0 %v5373, 24
        %v5885 = vpop.permute.xlu0 %5884
        %5950 = vrot.lane.b32.xlu0 %v5374, 32
        %v5951 = vpop.permute.xlu0 %5950
        %5952 = vrot.lane.b32.xlu0 %v5375, 32
        %v5953 = vpop.permute.xlu0 %5952
        %5954 = vrot.lane.b32.xlu0 %v5376, 32
        %v5955 = vpop.permute.xlu0 %5954
        %5956 = vrot.lane.b32.xlu0 %v5377, 32
        %v5957 = vpop.permute.xlu0 %5956
        %5958 = vrot.lane.b32.xlu0 %v5378, 32
        %v5959 = vpop.permute.xlu0 %5958
        %5960 = vrot.lane.b32.xlu0 %v5379, 32
        %v5961 = vpop.permute.xlu0 %5960
        %5962 = vrot.lane.b32.xlu0 %v5380, 32
        %v5963 = vpop.permute.xlu0 %5962
        %5964 = vrot.lane.b32.xlu0 %v5381, 32
        %v5965 = vpop.permute.xlu0 %5964
        %5966 = vrot.lane.b32.xlu0 %v5382, 32
        %v5967 = vpop.permute.xlu0 %5966
        %5968 = vrot.lane.b32.xlu0 %v5383, 32
        %v5969 = vpop.permute.xlu0 %5968
        %5970 = vrot.lane.b32.xlu0 %v5384, 32
        %v5971 = vpop.permute.xlu0 %5970
        %5972 = vrot.lane.b32.xlu0 %v5385, 32
        %v5973 = vpop.permute.xlu0 %5972
        %5974 = vrot.lane.b32.xlu0 %v5386, 32
        %v5975 = vpop.permute.xlu0 %5974
        %5976 = vrot.lane.b32.xlu0 %v5387, 32
        %v5977 = vpop.permute.xlu0 %5976
        %5978 = vrot.lane.b32.xlu0 %v5388, 32
        %v5979 = vpop.permute.xlu0 %5978
        %5980 = vrot.lane.b32.xlu0 %v5389, 32
        %v5981 = vpop.permute.xlu0 %5980
        %5982 = vrot.lane.b32.xlu0 %v5390, 32
        %v5983 = vpop.permute.xlu0 %5982
        %5984 = vrot.lane.b32.xlu0 %v5391, 32
        %v5985 = vpop.permute.xlu0 %5984
        %5986 = vrot.lane.b32.xlu0 %v5392, 32
        %v5987 = vpop.permute.xlu0 %5986
        %5988 = vrot.lane.b32.xlu0 %v5393, 32
        %v5989 = vpop.permute.xlu0 %5988
        %5990 = vrot.lane.b32.xlu0 %v5394, 32
        %v5991 = vpop.permute.xlu0 %5990
        %5992 = vrot.lane.b32.xlu0 %v5395, 32
        %v5993 = vpop.permute.xlu0 %5992
        %5994 = vrot.lane.b32.xlu0 %v5396, 32
        %v5995 = vpop.permute.xlu0 %5994
        %5996 = vrot.lane.b32.xlu0 %v5397, 32
        %v5997 = vpop.permute.xlu0 %5996
        %5998 = vrot.lane.b32.xlu0 %v5398, 32
        %v5999 = vpop.permute.xlu0 %5998
        %6000 = vrot.lane.b32.xlu0 %v5399, 32
        %v6001 = vpop.permute.xlu0 %6000
        %6002 = vrot.lane.b32.xlu0 %v5400, 32
        %v6003 = vpop.permute.xlu0 %6002
        %6004 = vrot.lane.b32.xlu0 %v5401, 32
        %v6005 = vpop.permute.xlu0 %6004
        %6006 = vrot.lane.b32.xlu0 %v5402, 32
        %v6007 = vpop.permute.xlu0 %6006
        %6008 = vrot.lane.b32.xlu0 %v5403, 32
        %v6009 = vpop.permute.xlu0 %6008
        %6010 = vrot.lane.b32.xlu0 %v5404, 32
        %v6011 = vpop.permute.xlu0 %6010
        %6012 = vrot.lane.b32.xlu0 %v5405, 32
        %v6013 = vpop.permute.xlu0 %6012
        %6078 = vrot.lane.b32.xlu0 %v5406, 40
        %v6079 = vpop.permute.xlu0 %6078
        %6080 = vrot.lane.b32.xlu0 %v5407, 40
        %v6081 = vpop.permute.xlu0 %6080
        %6082 = vrot.lane.b32.xlu0 %v5408, 40
        %v6083 = vpop.permute.xlu0 %6082
        %6084 = vrot.lane.b32.xlu0 %v5409, 40
        %v6085 = vpop.permute.xlu0 %6084
        %6086 = vrot.lane.b32.xlu0 %v5410, 40
        %v6087 = vpop.permute.xlu0 %6086
        %6088 = vrot.lane.b32.xlu0 %v5411, 40
        %v6089 = vpop.permute.xlu0 %6088
        %6090 = vrot.lane.b32.xlu0 %v5412, 40
        %v6091 = vpop.permute.xlu0 %6090
        %6092 = vrot.lane.b32.xlu0 %v5413, 40
        %v6093 = vpop.permute.xlu0 %6092
        %6094 = vrot.lane.b32.xlu0 %v5414, 40
        %v6095 = vpop.permute.xlu0 %6094
        %6096 = vrot.lane.b32.xlu0 %v5415, 40
        %v6097 = vpop.permute.xlu0 %6096
        %6098 = vrot.lane.b32.xlu0 %v5416, 40
        %v6099 = vpop.permute.xlu0 %6098
        %6100 = vrot.lane.b32.xlu0 %v5417, 40
        %v6101 = vpop.permute.xlu0 %6100
        %6102 = vrot.lane.b32.xlu0 %v5418, 40
        %v6103 = vpop.permute.xlu0 %6102
        %6104 = vrot.lane.b32.xlu0 %v5419, 40
        %v6105 = vpop.permute.xlu0 %6104
        %6106 = vrot.lane.b32.xlu0 %v5420, 40
        %v6107 = vpop.permute.xlu0 %6106
        %6108 = vrot.lane.b32.xlu0 %v5421, 40
        %v6109 = vpop.permute.xlu0 %6108
        %6110 = vrot.lane.b32.xlu0 %v5422, 40
        %v6111 = vpop.permute.xlu0 %6110
        %6112 = vrot.lane.b32.xlu0 %v5423, 40
        %v6113 = vpop.permute.xlu0 %6112
        %6114 = vrot.lane.b32.xlu0 %v5424, 40
        %v6115 = vpop.permute.xlu0 %6114
        %6116 = vrot.lane.b32.xlu0 %v5425, 40
        %v6117 = vpop.permute.xlu0 %6116
        %6118 = vrot.lane.b32.xlu0 %v5426, 40
        %v6119 = vpop.permute.xlu0 %6118
        %6120 = vrot.lane.b32.xlu0 %v5427, 40
        %v6121 = vpop.permute.xlu0 %6120
        %6122 = vrot.lane.b32.xlu0 %v5428, 40
        %v6123 = vpop.permute.xlu0 %6122
        %6124 = vrot.lane.b32.xlu0 %v5429, 40
        %v6125 = vpop.permute.xlu0 %6124
        %6126 = vrot.lane.b32.xlu0 %v5430, 40
        %v6127 = vpop.permute.xlu0 %6126
        %6128 = vrot.lane.b32.xlu0 %v5431, 40
        %v6129 = vpop.permute.xlu0 %6128
        %6130 = vrot.lane.b32.xlu0 %v5432, 40
        %v6131 = vpop.permute.xlu0 %6130
        %6132 = vrot.lane.b32.xlu0 %v5433, 40
        %v6133 = vpop.permute.xlu0 %6132
        %6134 = vrot.lane.b32.xlu0 %v5434, 40
        %v6135 = vpop.permute.xlu0 %6134
        %6136 = vrot.lane.b32.xlu0 %v5435, 40
        %v6137 = vpop.permute.xlu0 %6136
        %6138 = vrot.lane.b32.xlu0 %v5436, 40
        %v6139 = vpop.permute.xlu0 %6138
        %6140 = vrot.lane.b32.xlu0 %v5437, 40
        %v6141 = vpop.permute.xlu0 %6140
        %6206 = vrot.lane.b32.xlu0 %v5438, 48
        %v6207 = vpop.permute.xlu0 %6206
        %6208 = vrot.lane.b32.xlu0 %v5439, 48
        %v6209 = vpop.permute.xlu0 %6208
        %6210 = vrot.lane.b32.xlu0 %v5440, 48
        %v6211 = vpop.permute.xlu0 %6210
        %6212 = vrot.lane.b32.xlu0 %v5441, 48
        %v6213 = vpop.permute.xlu0 %6212
        %6214 = vrot.lane.b32.xlu0 %v5442, 48
        %v6215 = vpop.permute.xlu0 %6214
        %6216 = vrot.lane.b32.xlu0 %v5443, 48
        %v6217 = vpop.permute.xlu0 %6216
        %6218 = vrot.lane.b32.xlu0 %v5444, 48
        %v6219 = vpop.permute.xlu0 %6218
        %6220 = vrot.lane.b32.xlu0 %v5445, 48
        %v6221 = vpop.permute.xlu0 %6220
        %6222 = vrot.lane.b32.xlu0 %v5446, 48
        %v6223 = vpop.permute.xlu0 %6222
        %6224 = vrot.lane.b32.xlu0 %v5447, 48
        %v6225 = vpop.permute.xlu0 %6224
        %6226 = vrot.lane.b32.xlu0 %v5448, 48
        %v6227 = vpop.permute.xlu0 %6226
        %6228 = vrot.lane.b32.xlu0 %v5449, 48
        %v6229 = vpop.permute.xlu0 %6228
        %6230 = vrot.lane.b32.xlu0 %v5450, 48
        %v6231 = vpop.permute.xlu0 %6230
        %6232 = vrot.lane.b32.xlu0 %v5451, 48
        %v6233 = vpop.permute.xlu0 %6232
        %6234 = vrot.lane.b32.xlu0 %v5452, 48
        %v6235 = vpop.permute.xlu0 %6234
        %6236 = vrot.lane.b32.xlu0 %v5453, 48
        %v6237 = vpop.permute.xlu0 %6236
        %6238 = vrot.lane.b32.xlu0 %v5454, 48
        %v6239 = vpop.permute.xlu0 %6238
        %6240 = vrot.lane.b32.xlu0 %v5455, 48
        %v6241 = vpop.permute.xlu0 %6240
        %6242 = vrot.lane.b32.xlu0 %v5456, 48
        %v6243 = vpop.permute.xlu0 %6242
        %6244 = vrot.lane.b32.xlu0 %v5457, 48
        %v6245 = vpop.permute.xlu0 %6244
        %6246 = vrot.lane.b32.xlu0 %v5458, 48
        %v6247 = vpop.permute.xlu0 %6246
        %6248 = vrot.lane.b32.xlu0 %v5459, 48
        %v6249 = vpop.permute.xlu0 %6248
        %6250 = vrot.lane.b32.xlu0 %v5460, 48
        %v6251 = vpop.permute.xlu0 %6250
        %6252 = vrot.lane.b32.xlu0 %v5461, 48
        %v6253 = vpop.permute.xlu0 %6252
        %6254 = vrot.lane.b32.xlu0 %v5462, 48
        %v6255 = vpop.permute.xlu0 %6254
        %6256 = vrot.lane.b32.xlu0 %v5463, 48
        %v6257 = vpop.permute.xlu0 %6256
        %6258 = vrot.lane.b32.xlu0 %v5464, 48
        %v6259 = vpop.permute.xlu0 %6258
        %6260 = vrot.lane.b32.xlu0 %v5465, 48
        %v6261 = vpop.permute.xlu0 %6260
        %6262 = vrot.lane.b32.xlu0 %v5466, 48
        %v6263 = vpop.permute.xlu0 %6262
        %6264 = vrot.lane.b32.xlu0 %v5467, 48
        %v6265 = vpop.permute.xlu0 %6264
        %6266 = vrot.lane.b32.xlu0 %v5468, 48
        %v6267 = vpop.permute.xlu0 %6266
        %6268 = vrot.lane.b32.xlu0 %v5469, 48
        %v6269 = vpop.permute.xlu0 %6268
        %6334 = vrot.lane.b32.xlu0 %v5470, 56
        %v6335 = vpop.permute.xlu0 %6334
        %6336 = vrot.lane.b32.xlu0 %v5471, 56
        %v6337 = vpop.permute.xlu0 %6336
        %6338 = vrot.lane.b32.xlu0 %v5472, 56
        %v6339 = vpop.permute.xlu0 %6338
        %6340 = vrot.lane.b32.xlu0 %v5473, 56
        %v6341 = vpop.permute.xlu0 %6340
        %6342 = vrot.lane.b32.xlu0 %v5474, 56
        %v6343 = vpop.permute.xlu0 %6342
        %6344 = vrot.lane.b32.xlu0 %v5475, 56
        %v6345 = vpop.permute.xlu0 %6344
        %6346 = vrot.lane.b32.xlu0 %v5476, 56
        %v6347 = vpop.permute.xlu0 %6346
        %6348 = vrot.lane.b32.xlu0 %v5477, 56
        %v6349 = vpop.permute.xlu0 %6348
        %6350 = vrot.lane.b32.xlu0 %v5478, 56
        %v6351 = vpop.permute.xlu0 %6350
        %6352 = vrot.lane.b32.xlu0 %v5479, 56
        %v6353 = vpop.permute.xlu0 %6352
        %6354 = vrot.lane.b32.xlu0 %v5480, 56
        %v6355 = vpop.permute.xlu0 %6354
        %6356 = vrot.lane.b32.xlu0 %v5481, 56
        %v6357 = vpop.permute.xlu0 %6356
        %6358 = vrot.lane.b32.xlu0 %v5482, 56
        %v6359 = vpop.permute.xlu0 %6358
        %6360 = vrot.lane.b32.xlu0 %v5483, 56
        %v6361 = vpop.permute.xlu0 %6360
        %6362 = vrot.lane.b32.xlu0 %v5484, 56
        %v6363 = vpop.permute.xlu0 %6362
        %6364 = vrot.lane.b32.xlu0 %v5485, 56
        %v6365 = vpop.permute.xlu0 %6364
        %6366 = vrot.lane.b32.xlu0 %v5486, 56
        %v6367 = vpop.permute.xlu0 %6366
        %6368 = vrot.lane.b32.xlu0 %v5487, 56
        %v6369 = vpop.permute.xlu0 %6368
        %6370 = vrot.lane.b32.xlu0 %v5488, 56
        %v6371 = vpop.permute.xlu0 %6370
        %6372 = vrot.lane.b32.xlu0 %v5489, 56
        %v6373 = vpop.permute.xlu0 %6372
        %6374 = vrot.lane.b32.xlu0 %v5490, 56
        %v6375 = vpop.permute.xlu0 %6374
        %6376 = vrot.lane.b32.xlu0 %v5491, 56
        %v6377 = vpop.permute.xlu0 %6376
        %6378 = vrot.lane.b32.xlu0 %v5492, 56
        %v6379 = vpop.permute.xlu0 %6378
        %6380 = vrot.lane.b32.xlu0 %v5493, 56
        %v6381 = vpop.permute.xlu0 %6380
        %6382 = vrot.lane.b32.xlu0 %v5494, 56
        %v6383 = vpop.permute.xlu0 %6382
        %6384 = vrot.lane.b32.xlu0 %v5495, 56
        %v6385 = vpop.permute.xlu0 %6384
        %6386 = vrot.lane.b32.xlu0 %v5496, 56
        %v6387 = vpop.permute.xlu0 %6386
        %6388 = vrot.lane.b32.xlu0 %v5497, 56
        %v6389 = vpop.permute.xlu0 %6388
        %6390 = vrot.lane.b32.xlu0 %v5498, 56
        %v6391 = vpop.permute.xlu0 %6390
        %6392 = vrot.lane.b32.xlu0 %v5499, 56
        %v6393 = vpop.permute.xlu0 %6392
        %6394 = vrot.lane.b32.xlu0 %v5500, 56
        %v6395 = vpop.permute.xlu0 %6394
        %6396 = vrot.lane.b32.xlu0 %v5501, 56
        %v6397 = vpop.permute.xlu0 %6396
        %6462 = vrot.lane.b32.xlu0 %v5502, 64
        %v6463 = vpop.permute.xlu0 %6462
        %6464 = vrot.lane.b32.xlu0 %v5503, 64
        %v6465 = vpop.permute.xlu0 %6464
        %6466 = vrot.lane.b32.xlu0 %v5504, 64
        %v6467 = vpop.permute.xlu0 %6466
        %6468 = vrot.lane.b32.xlu0 %v5505, 64
        %v6469 = vpop.permute.xlu0 %6468
        %6470 = vrot.lane.b32.xlu0 %v5506, 64
        %v6471 = vpop.permute.xlu0 %6470
        %6472 = vrot.lane.b32.xlu0 %v5507, 64
        %v6473 = vpop.permute.xlu0 %6472
        %6474 = vrot.lane.b32.xlu0 %v5508, 64
        %v6475 = vpop.permute.xlu0 %6474
        %6476 = vrot.lane.b32.xlu0 %v5509, 64
        %v6477 = vpop.permute.xlu0 %6476
        %6478 = vrot.lane.b32.xlu0 %v5510, 64
        %v6479 = vpop.permute.xlu0 %6478
        %6480 = vrot.lane.b32.xlu0 %v5511, 64
        %v6481 = vpop.permute.xlu0 %6480
        %6482 = vrot.lane.b32.xlu0 %v5512, 64
        %v6483 = vpop.permute.xlu0 %6482
        %6484 = vrot.lane.b32.xlu0 %v5513, 64
        %v6485 = vpop.permute.xlu0 %6484
        %6486 = vrot.lane.b32.xlu0 %v5514, 64
        %v6487 = vpop.permute.xlu0 %6486
        %6488 = vrot.lane.b32.xlu0 %v5515, 64
        %v6489 = vpop.permute.xlu0 %6488
        %6490 = vrot.lane.b32.xlu0 %v5516, 64
        %v6491 = vpop.permute.xlu0 %6490
        %6492 = vrot.lane.b32.xlu0 %v5517, 64
        %v6493 = vpop.permute.xlu0 %6492
        %6494 = vrot.lane.b32.xlu0 %v5518, 64
        %v6495 = vpop.permute.xlu0 %6494
        %6496 = vrot.lane.b32.xlu0 %v5519, 64
        %v6497 = vpop.permute.xlu0 %6496
        %6498 = vrot.lane.b32.xlu0 %v5520, 64
        %v6499 = vpop.permute.xlu0 %6498
        %6500 = vrot.lane.b32.xlu0 %v5521, 64
        %v6501 = vpop.permute.xlu0 %6500
        %6502 = vrot.lane.b32.xlu0 %v5522, 64
        %v6503 = vpop.permute.xlu0 %6502
        %6504 = vrot.lane.b32.xlu0 %v5523, 64
        %v6505 = vpop.permute.xlu0 %6504
        %6506 = vrot.lane.b32.xlu0 %v5524, 64
        %v6507 = vpop.permute.xlu0 %6506
        %6508 = vrot.lane.b32.xlu0 %v5525, 64
        %v6509 = vpop.permute.xlu0 %6508
        %6510 = vrot.lane.b32.xlu0 %v5526, 64
        %v6511 = vpop.permute.xlu0 %6510
        %6512 = vrot.lane.b32.xlu0 %v5527, 64
        %v6513 = vpop.permute.xlu0 %6512
        %6514 = vrot.lane.b32.xlu0 %v5528, 64
        %v6515 = vpop.permute.xlu0 %6514
        %6516 = vrot.lane.b32.xlu0 %v5529, 64
        %v6517 = vpop.permute.xlu0 %6516
        %6518 = vrot.lane.b32.xlu0 %v5530, 64
        %v6519 = vpop.permute.xlu0 %6518
        %6520 = vrot.lane.b32.xlu0 %v5531, 64
        %v6521 = vpop.permute.xlu0 %6520
        %6522 = vrot.lane.b32.xlu0 %v5532, 64
        %v6523 = vpop.permute.xlu0 %6522
        %6524 = vrot.lane.b32.xlu0 %v5533, 64
        %v6525 = vpop.permute.xlu0 %6524
        %v6558 = vsel %vm1999, %v5246, %v5567
        %v6559 = vsel %vm1999, %v5247, %v5569
        %v6560 = vsel %vm1999, %v5248, %v5571
        %v6561 = vsel %vm1999, %v5249, %v5573
        %v6562 = vsel %vm1999, %v5250, %v5575
        %v6563 = vsel %vm1999, %v5251, %v5577
        %v6564 = vsel %vm1999, %v5252, %v5579
        %v6565 = vsel %vm1999, %v5253, %v5581
        %v6566 = vsel %vm1999, %v5254, %v5583
        %v6567 = vsel %vm1999, %v5255, %v5585
        %v6568 = vsel %vm1999, %v5256, %v5587
        %v6569 = vsel %vm1999, %v5257, %v5589
        %v6570 = vsel %vm1999, %v5258, %v5591
        %v6571 = vsel %vm1999, %v5259, %v5593
        %v6572 = vsel %vm1999, %v5260, %v5595
        %v6573 = vsel %vm1999, %v5261, %v5597
        %v6574 = vsel %vm1999, %v5262, %v5599
        %v6575 = vsel %vm1999, %v5263, %v5601
        %v6576 = vsel %vm1999, %v5264, %v5603
        %v6577 = vsel %vm1999, %v5265, %v5605
        %v6578 = vsel %vm1999, %v5266, %v5607
        %v6579 = vsel %vm1999, %v5267, %v5609
        %v6580 = vsel %vm1999, %v5268, %v5611
        %v6581 = vsel %vm1999, %v5269, %v5613
        %v6582 = vsel %vm1999, %v5270, %v5615
        %v6583 = vsel %vm1999, %v5271, %v5617
        %v6584 = vsel %vm1999, %v5272, %v5619
        %v6585 = vsel %vm1999, %v5273, %v5621
        %v6586 = vsel %vm1999, %v5274, %v5623
        %v6587 = vsel %vm1999, %v5275, %v5625
        %v6588 = vsel %vm1999, %v5276, %v5627
        %v6589 = vsel %vm1999, %v5277, %v5629
        %v6590 = vsel %vm2065, %v6558, %v5695
        %v6591 = vsel %vm2065, %v6559, %v5697
        %v6592 = vsel %vm2065, %v6560, %v5699
        %v6593 = vsel %vm2065, %v6561, %v5701
        %v6594 = vsel %vm2065, %v6562, %v5703
        %v6595 = vsel %vm2065, %v6563, %v5705
        %v6596 = vsel %vm2065, %v6564, %v5707
        %v6597 = vsel %vm2065, %v6565, %v5709
        %v6598 = vsel %vm2065, %v6566, %v5711
        %v6599 = vsel %vm2065, %v6567, %v5713
        %v6600 = vsel %vm2065, %v6568, %v5715
        %v6601 = vsel %vm2065, %v6569, %v5717
        %v6602 = vsel %vm2065, %v6570, %v5719
        %v6603 = vsel %vm2065, %v6571, %v5721
        %v6604 = vsel %vm2065, %v6572, %v5723
        %v6605 = vsel %vm2065, %v6573, %v5725
        %v6606 = vsel %vm2065, %v6574, %v5727
        %v6607 = vsel %vm2065, %v6575, %v5729
        %v6608 = vsel %vm2065, %v6576, %v5731
        %v6609 = vsel %vm2065, %v6577, %v5733
        %v6610 = vsel %vm2065, %v6578, %v5735
        %v6611 = vsel %vm2065, %v6579, %v5737
        %v6612 = vsel %vm2065, %v6580, %v5739
        %v6613 = vsel %vm2065, %v6581, %v5741
        %v6614 = vsel %vm2065, %v6582, %v5743
        %v6615 = vsel %vm2065, %v6583, %v5745
        %v6616 = vsel %vm2065, %v6584, %v5747
        %v6617 = vsel %vm2065, %v6585, %v5749
        %v6618 = vsel %vm2065, %v6586, %v5751
        %v6619 = vsel %vm2065, %v6587, %v5753
        %v6620 = vsel %vm2065, %v6588, %v5755
        %v6621 = vsel %vm2065, %v6589, %v5757
        %v6622 = vsel %vm2131, %v6590, %v5823
        %v6623 = vsel %vm2131, %v6591, %v5825
        %v6624 = vsel %vm2131, %v6592, %v5827
        %v6625 = vsel %vm2131, %v6593, %v5829
        %v6626 = vsel %vm2131, %v6594, %v5831
        %v6627 = vsel %vm2131, %v6595, %v5833
        %v6628 = vsel %vm2131, %v6596, %v5835
        %v6629 = vsel %vm2131, %v6597, %v5837
        %v6630 = vsel %vm2131, %v6598, %v5839
        %v6631 = vsel %vm2131, %v6599, %v5841
        %v6632 = vsel %vm2131, %v6600, %v5843
        %v6633 = vsel %vm2131, %v6601, %v5845
        %v6634 = vsel %vm2131, %v6602, %v5847
        %v6635 = vsel %vm2131, %v6603, %v5849
        %v6636 = vsel %vm2131, %v6604, %v5851
        %v6637 = vsel %vm2131, %v6605, %v5853
        %v6638 = vsel %vm2131, %v6606, %v5855
        %v6639 = vsel %vm2131, %v6607, %v5857
        %v6640 = vsel %vm2131, %v6608, %v5859
        %v6641 = vsel %vm2131, %v6609, %v5861
        %v6642 = vsel %vm2131, %v6610, %v5863
        %v6643 = vsel %vm2131, %v6611, %v5865
        %v6644 = vsel %vm2131, %v6612, %v5867
        %v6645 = vsel %vm2131, %v6613, %v5869
        %v6646 = vsel %vm2131, %v6614, %v5871
        %v6647 = vsel %vm2131, %v6615, %v5873
        %v6648 = vsel %vm2131, %v6616, %v5875
        %v6649 = vsel %vm2131, %v6617, %v5877
        %v6650 = vsel %vm2131, %v6618, %v5879
        %v6651 = vsel %vm2131, %v6619, %v5881
        %v6652 = vsel %vm2131, %v6620, %v5883
        %v6653 = vsel %vm2131, %v6621, %v5885
        %v6654 = vsel %vm2197, %v6622, %v5951
        %v6655 = vsel %vm2197, %v6623, %v5953
        %v6656 = vsel %vm2197, %v6624, %v5955
        %v6657 = vsel %vm2197, %v6625, %v5957
        %v6658 = vsel %vm2197, %v6626, %v5959
        %v6659 = vsel %vm2197, %v6627, %v5961
        %v6660 = vsel %vm2197, %v6628, %v5963
        %v6661 = vsel %vm2197, %v6629, %v5965
        %v6662 = vsel %vm2197, %v6630, %v5967
        %v6663 = vsel %vm2197, %v6631, %v5969
        %v6664 = vsel %vm2197, %v6632, %v5971
        %v6665 = vsel %vm2197, %v6633, %v5973
        %v6666 = vsel %vm2197, %v6634, %v5975
        %v6667 = vsel %vm2197, %v6635, %v5977
        %v6668 = vsel %vm2197, %v6636, %v5979
        %v6669 = vsel %vm2197, %v6637, %v5981
        %v6670 = vsel %vm2197, %v6638, %v5983
        %v6671 = vsel %vm2197, %v6639, %v5985
        %v6672 = vsel %vm2197, %v6640, %v5987
        %v6673 = vsel %vm2197, %v6641, %v5989
        %v6674 = vsel %vm2197, %v6642, %v5991
        %v6675 = vsel %vm2197, %v6643, %v5993
        %v6676 = vsel %vm2197, %v6644, %v5995
        %v6677 = vsel %vm2197, %v6645, %v5997
        %v6678 = vsel %vm2197, %v6646, %v5999
        %v6679 = vsel %vm2197, %v6647, %v6001
        %v6680 = vsel %vm2197, %v6648, %v6003
        %v6681 = vsel %vm2197, %v6649, %v6005
        %v6682 = vsel %vm2197, %v6650, %v6007
        %v6683 = vsel %vm2197, %v6651, %v6009
        %v6684 = vsel %vm2197, %v6652, %v6011
        %v6685 = vsel %vm2197, %v6653, %v6013
        %v6686 = vsel %vm4488, %v6654, %v6079
        %v6687 = vsel %vm4488, %v6655, %v6081
        %v6688 = vsel %vm4488, %v6656, %v6083
        %v6689 = vsel %vm4488, %v6657, %v6085
        %v6690 = vsel %vm4488, %v6658, %v6087
        %v6691 = vsel %vm4488, %v6659, %v6089
        %v6692 = vsel %vm4488, %v6660, %v6091
        %v6693 = vsel %vm4488, %v6661, %v6093
        %v6694 = vsel %vm4488, %v6662, %v6095
        %v6695 = vsel %vm4488, %v6663, %v6097
        %v6696 = vsel %vm4488, %v6664, %v6099
        %v6697 = vsel %vm4488, %v6665, %v6101
        %v6698 = vsel %vm4488, %v6666, %v6103
        %v6699 = vsel %vm4488, %v6667, %v6105
        %v6700 = vsel %vm4488, %v6668, %v6107
        %v6701 = vsel %vm4488, %v6669, %v6109
        %v6702 = vsel %vm4488, %v6670, %v6111
        %v6703 = vsel %vm4488, %v6671, %v6113
        %v6704 = vsel %vm4488, %v6672, %v6115
        %v6705 = vsel %vm4488, %v6673, %v6117
        %v6706 = vsel %vm4488, %v6674, %v6119
        %v6707 = vsel %vm4488, %v6675, %v6121
        %v6708 = vsel %vm4488, %v6676, %v6123
        %v6709 = vsel %vm4488, %v6677, %v6125
        %v6710 = vsel %vm4488, %v6678, %v6127
        %v6711 = vsel %vm4488, %v6679, %v6129
        %v6712 = vsel %vm4488, %v6680, %v6131
        %v6713 = vsel %vm4488, %v6681, %v6133
        %v6714 = vsel %vm4488, %v6682, %v6135
        %v6715 = vsel %vm4488, %v6683, %v6137
        %v6716 = vsel %vm4488, %v6684, %v6139
        %v6717 = vsel %vm4488, %v6685, %v6141
        %v6718 = vsel %vm4521, %v6686, %v6207
        %v6719 = vsel %vm4521, %v6687, %v6209
        %v6720 = vsel %vm4521, %v6688, %v6211
        %v6721 = vsel %vm4521, %v6689, %v6213
        %v6722 = vsel %vm4521, %v6690, %v6215
        %v6723 = vsel %vm4521, %v6691, %v6217
        %v6724 = vsel %vm4521, %v6692, %v6219
        %v6725 = vsel %vm4521, %v6693, %v6221
        %v6726 = vsel %vm4521, %v6694, %v6223
        %v6727 = vsel %vm4521, %v6695, %v6225
        %v6728 = vsel %vm4521, %v6696, %v6227
        %v6729 = vsel %vm4521, %v6697, %v6229
        %v6730 = vsel %vm4521, %v6698, %v6231
        %v6731 = vsel %vm4521, %v6699, %v6233
        %v6732 = vsel %vm4521, %v6700, %v6235
        %v6733 = vsel %vm4521, %v6701, %v6237
        %v6734 = vsel %vm4521, %v6702, %v6239
        %v6735 = vsel %vm4521, %v6703, %v6241
        %v6736 = vsel %vm4521, %v6704, %v6243
        %v6737 = vsel %vm4521, %v6705, %v6245
        %v6738 = vsel %vm4521, %v6706, %v6247
        %v6739 = vsel %vm4521, %v6707, %v6249
        %v6740 = vsel %vm4521, %v6708, %v6251
        %v6741 = vsel %vm4521, %v6709, %v6253
        %v6742 = vsel %vm4521, %v6710, %v6255
        %v6743 = vsel %vm4521, %v6711, %v6257
        %v6744 = vsel %vm4521, %v6712, %v6259
        %v6745 = vsel %vm4521, %v6713, %v6261
        %v6746 = vsel %vm4521, %v6714, %v6263
        %v6747 = vsel %vm4521, %v6715, %v6265
        %v6748 = vsel %vm4521, %v6716, %v6267
        %v6749 = vsel %vm4521, %v6717, %v6269
        %v6750 = vsel %vm4554, %v6718, %v6335
        %v6751 = vsel %vm4554, %v6719, %v6337
        %v6752 = vsel %vm4554, %v6720, %v6339
        %v6753 = vsel %vm4554, %v6721, %v6341
        %v6754 = vsel %vm4554, %v6722, %v6343
        %v6755 = vsel %vm4554, %v6723, %v6345
        %v6756 = vsel %vm4554, %v6724, %v6347
        %v6757 = vsel %vm4554, %v6725, %v6349
        %v6758 = vsel %vm4554, %v6726, %v6351
        %v6759 = vsel %vm4554, %v6727, %v6353
        %v6760 = vsel %vm4554, %v6728, %v6355
        %v6761 = vsel %vm4554, %v6729, %v6357
        %v6762 = vsel %vm4554, %v6730, %v6359
        %v6763 = vsel %vm4554, %v6731, %v6361
        %v6764 = vsel %vm4554, %v6732, %v6363
        %v6765 = vsel %vm4554, %v6733, %v6365
        %v6766 = vsel %vm4554, %v6734, %v6367
        %v6767 = vsel %vm4554, %v6735, %v6369
        %v6768 = vsel %vm4554, %v6736, %v6371
        %v6769 = vsel %vm4554, %v6737, %v6373
        %v6770 = vsel %vm4554, %v6738, %v6375
        %v6771 = vsel %vm4554, %v6739, %v6377
        %v6772 = vsel %vm4554, %v6740, %v6379
        %v6773 = vsel %vm4554, %v6741, %v6381
        %v6774 = vsel %vm4554, %v6742, %v6383
        %v6775 = vsel %vm4554, %v6743, %v6385
        %v6776 = vsel %vm4554, %v6744, %v6387
        %v6777 = vsel %vm4554, %v6745, %v6389
        %v6778 = vsel %vm4554, %v6746, %v6391
        %v6779 = vsel %vm4554, %v6747, %v6393
        %v6780 = vsel %vm4554, %v6748, %v6395
        %v6781 = vsel %vm4554, %v6749, %v6397
        %v6782 = vsel %vm4587, %v6750, %v6463
        %v6783 = vsel %vm4587, %v6751, %v6465
        %v6784 = vsel %vm4587, %v6752, %v6467
        %v6785 = vsel %vm4587, %v6753, %v6469
        %v6786 = vsel %vm4587, %v6754, %v6471
        %v6787 = vsel %vm4587, %v6755, %v6473
        %v6788 = vsel %vm4587, %v6756, %v6475
        %v6789 = vsel %vm4587, %v6757, %v6477
        %v6790 = vsel %vm4587, %v6758, %v6479
        %v6791 = vsel %vm4587, %v6759, %v6481
        %v6792 = vsel %vm4587, %v6760, %v6483
        %v6793 = vsel %vm4587, %v6761, %v6485
        %v6794 = vsel %vm4587, %v6762, %v6487
        %v6795 = vsel %vm4587, %v6763, %v6489
        %v6796 = vsel %vm4587, %v6764, %v6491
        %v6797 = vsel %vm4587, %v6765, %v6493
        %v6798 = vsel %vm4587, %v6766, %v6495
        %v6799 = vsel %vm4587, %v6767, %v6497
        %v6800 = vsel %vm4587, %v6768, %v6499
        %v6801 = vsel %vm4587, %v6769, %v6501
        %v6802 = vsel %vm4587, %v6770, %v6503
        %v6803 = vsel %vm4587, %v6771, %v6505
        %v6804 = vsel %vm4587, %v6772, %v6507
        %v6805 = vsel %vm4587, %v6773, %v6509
        %v6806 = vsel %vm4587, %v6774, %v6511
        %v6807 = vsel %vm4587, %v6775, %v6513
        %v6808 = vsel %vm4587, %v6776, %v6515
        %v6809 = vsel %vm4587, %v6777, %v6517
        %v6810 = vsel %vm4587, %v6778, %v6519
        %v6811 = vsel %vm4587, %v6779, %v6521
        %v6812 = vsel %vm4587, %v6780, %v6523
        %v6813 = vsel %vm4587, %v6781, %v6525
        %v6814 = vld [vmem:[%s6] sm:$0xff]
        %v6815 = vld [vmem:[%s6 + $0x8] sm:$0xff]
        %v6816 = vld [vmem:[%s6 + $0x10] sm:$0xff]
        %v6817 = vld [vmem:[%s6 + $0x18] sm:$0xff]
        %v6818 = vld [vmem:[%s6 + $0x20] sm:$0xff]
        %v6819 = vld [vmem:[%s6 + $0x28] sm:$0xff]
        %v6820 = vld [vmem:[%s6 + $0x30] sm:$0xff]
        %v6821 = vld [vmem:[%s6 + $0x38] sm:$0xff]
        %v6822 = vld [vmem:[%s6 + $0x40] sm:$0xff]
        %v6823 = vld [vmem:[%s7] sm:$0x1]
        %v6825 = vlaneseq
        %v6826 = vshrl.u32 %v6825, 7
        %v6827 = vsub.s32 0, %v6826
        %v6828 = vrot.slane %v6823, %v6827
        %v6831 = vsel %vm4636, %v6782, 0
        %v6834 = vsel %vm4636, %v6783, 0
        %v6837 = vsel %vm4636, %v6784, 0
        %v6840 = vsel %vm4636, %v6785, 0
        %v6843 = vsel %vm4636, %v6786, 0
        %v6846 = vsel %vm4636, %v6787, 0
        %v6849 = vsel %vm4636, %v6788, 0
        %v6852 = vsel %vm4636, %v6789, 0
        %v6855 = vsel %vm4636, %v6790, 0
        %v6858 = vsel %vm4636, %v6791, 0
        %v6861 = vsel %vm4636, %v6792, 0
        %v6864 = vsel %vm4636, %v6793, 0
        %v6867 = vsel %vm4636, %v6794, 0
        %v6870 = vsel %vm4636, %v6795, 0
        %v6873 = vsel %vm4636, %v6796, 0
        %v6876 = vsel %vm4636, %v6797, 0
        %v6879 = vsel %vm4636, %v6798, 0
        %v6882 = vsel %vm4636, %v6799, 0
        %v6885 = vsel %vm4636, %v6800, 0
        %v6888 = vsel %vm4636, %v6801, 0
        %v6891 = vsel %vm4636, %v6802, 0
        %v6894 = vsel %vm4636, %v6803, 0
        %v6897 = vsel %vm4636, %v6804, 0
        %v6900 = vsel %vm4636, %v6805, 0
        %v6903 = vsel %vm4636, %v6806, 0
        %v6906 = vsel %vm4636, %v6807, 0
        %v6909 = vsel %vm4636, %v6808, 0
        %v6912 = vsel %vm4636, %v6809, 0
        %v6915 = vsel %vm4636, %v6810, 0
        %v6918 = vsel %vm4636, %v6811, 0
        %v6921 = vsel %vm4636, %v6812, 0
        %v6924 = vsel %vm4636, %v6813, 0
        %6926 = vmatprep.subr.mxu0 0.0
        %6927 = vmatpush1.msra.mxu0 0.0
        %6928 = vmatprep.subr.mxu0 0.0
        %6929 = vmatpush1.msra.mxu0 0.0
        %6930 = vmatprep.subr.mxu0 0.0
        %6931 = vmatpush1.msra.mxu0 0.0
        %6932 = vmatprep.subr.mxu0 0.0
        %6933 = vmatpush1.msra.mxu0 0.0
        %6934 = vmatprep.subr.mxu0 0.0
        %6935 = vmatpush1.msra.mxu0 0.0
        %6936 = vmatprep.subr.mxu0 0.0
        %6937 = vmatpush1.msra.mxu0 0.0
        %6938 = vmatprep.subr.mxu0 0.0
        %6939 = vmatpush1.msra.mxu0 0.0
        %6940 = vmatprep.subr.mxu0 0.0
        %6941 = vmatpush1.msra.mxu0 %v6822
        %6942 = vmatprep.subr.mxu0 0.0
        %6943 = vmatpush1.msra.mxu0 %v6821
        %6944 = vmatprep.subr.mxu0 0.0
        %6945 = vmatpush1.msra.mxu0 %v6820
        %6946 = vmatprep.subr.mxu0 0.0
        %6947 = vmatpush1.msra.mxu0 %v6819
        %6948 = vmatprep.subr.mxu0 0.0
        %6949 = vmatpush1.msra.mxu0 %v6818
        %6950 = vmatprep.subr.mxu0 0.0
        %6951 = vmatpush1.msra.mxu0 %v6817
        %6952 = vmatprep.subr.mxu0 0.0
        %6953 = vmatpush1.msra.mxu0 %v6816
        %6954 = vmatprep.subr.mxu0 0.0
        %6955 = vmatpush1.msra.mxu0 %v6815
        %6956 = vmatprep.subr.mxu0 0.0
        %6957 = vmatpush1.msra.mxu0 %v6814
        %6958 = vmatprep.subr.mxu0 0.0
        %6959 = vmatpush2.msra.mxu0 0.0
        %6960 = vmatprep.subr.mxu0 0.0
        %6961 = vmatpush2.msra.mxu0 0.0
        %6962 = vmatprep.subr.mxu0 0.0
        %6963 = vmatpush2.msra.mxu0 0.0
        %6964 = vmatprep.subr.mxu0 0.0
        %6965 = vmatpush2.msra.mxu0 0.0
        %6966 = vmatprep.subr.mxu0 0.0
        %6967 = vmatpush2.msra.mxu0 0.0
        %6968 = vmatprep.subr.mxu0 0.0
        %6969 = vmatpush2.msra.mxu0 0.0
        %6970 = vmatprep.subr.mxu0 0.0
        %6971 = vmatpush2.msra.mxu0 0.0
        %6972 = vmatprep.subr.mxu0 0.0
        %6973 = vmatpush2.msra.mxu0 0.0
        %6974 = vmatprep.subr.mxu0 0.0
        %6975 = vmatpush2.msra.mxu0 0.0
        %6976 = vmatprep.subr.mxu0 0.0
        %6977 = vmatpush2.msra.mxu0 0.0
        %6978 = vmatprep.subr.mxu0 0.0
        %6979 = vmatpush2.msra.mxu0 0.0
        %6980 = vmatprep.subr.mxu0 0.0
        %6981 = vmatpush2.msra.mxu0 0.0
        %6982 = vmatprep.subr.mxu0 0.0
        %6983 = vmatpush2.msra.mxu0 0.0
        %6984 = vmatprep.subr.mxu0 0.0
        %6985 = vmatpush2.msra.mxu0 0.0
        %6986 = vmatprep.subr.mxu0 0.0
        %6987 = vmatpush2.msra.mxu0 0.0
        %6988 = vmatprep.subr.mxu0 0.0
        %6989 = vmatpush2.msra.mxu0 0.0
        %6990 = vmatprep.mubr.f32.mxu0 0.0
        %6991 = vmatmul.mubr.f32.gmra.mxu0 %v6831
        %v6992 = vpop.f32.mrf.mxu0
        %v6993 = vadd.f32 %v6828, %v6992
        %v6994 = vpop.f32.mrf.mxu0
        %6995 = vmatprep.mubr.f32.mxu0 0.0
        %6996 = vmatmul.mubr.f32.gmra.mxu0 %v6834
        %v6997 = vpop.f32.mrf.mxu0
        %v6998 = vadd.f32 %v6828, %v6997
        %v6999 = vpop.f32.mrf.mxu0
        %7000 = vmatprep.mubr.f32.mxu0 0.0
        %7001 = vmatmul.mubr.f32.gmra.mxu0 %v6837
        %v7002 = vpop.f32.mrf.mxu0
        %v7003 = vadd.f32 %v6828, %v7002
        %v7004 = vpop.f32.mrf.mxu0
        %7005 = vmatprep.mubr.f32.mxu0 0.0
        %7006 = vmatmul.mubr.f32.gmra.mxu0 %v6840
        %v7007 = vpop.f32.mrf.mxu0
        %v7008 = vadd.f32 %v6828, %v7007
        %v7009 = vpop.f32.mrf.mxu0
        %7010 = vmatprep.mubr.f32.mxu0 0.0
        %7011 = vmatmul.mubr.f32.gmra.mxu0 %v6843
        %v7012 = vpop.f32.mrf.mxu0
        %v7013 = vadd.f32 %v6828, %v7012
        %v7014 = vpop.f32.mrf.mxu0
        %7015 = vmatprep.mubr.f32.mxu0 0.0
        %7016 = vmatmul.mubr.f32.gmra.mxu0 %v6846
        %v7017 = vpop.f32.mrf.mxu0
        %v7018 = vadd.f32 %v6828, %v7017
        %v7019 = vpop.f32.mrf.mxu0
        %7020 = vmatprep.mubr.f32.mxu0 0.0
        %7021 = vmatmul.mubr.f32.gmra.mxu0 %v6849
        %v7022 = vpop.f32.mrf.mxu0
        %v7023 = vadd.f32 %v6828, %v7022
        %v7024 = vpop.f32.mrf.mxu0
        %7025 = vmatprep.mubr.f32.mxu0 0.0
        %7026 = vmatmul.mubr.f32.gmra.mxu0 %v6852
        %v7027 = vpop.f32.mrf.mxu0
        %v7028 = vadd.f32 %v6828, %v7027
        %v7029 = vpop.f32.mrf.mxu0
        %7030 = vmatprep.mubr.f32.mxu0 0.0
        %7031 = vmatmul.mubr.f32.gmra.mxu0 %v6855
        %v7032 = vpop.f32.mrf.mxu0
        %v7033 = vadd.f32 %v6828, %v7032
        %v7034 = vpop.f32.mrf.mxu0
        %7035 = vmatprep.mubr.f32.mxu0 0.0
        %7036 = vmatmul.mubr.f32.gmra.mxu0 %v6858
        %v7037 = vpop.f32.mrf.mxu0
        %v7038 = vadd.f32 %v6828, %v7037
        %v7039 = vpop.f32.mrf.mxu0
        %7040 = vmatprep.mubr.f32.mxu0 0.0
        %7041 = vmatmul.mubr.f32.gmra.mxu0 %v6861
        %v7042 = vpop.f32.mrf.mxu0
        %v7043 = vadd.f32 %v6828, %v7042
        %v7044 = vpop.f32.mrf.mxu0
        %7045 = vmatprep.mubr.f32.mxu0 0.0
        %7046 = vmatmul.mubr.f32.gmra.mxu0 %v6864
        %v7047 = vpop.f32.mrf.mxu0
        %v7048 = vadd.f32 %v6828, %v7047
        %v7049 = vpop.f32.mrf.mxu0
        %7050 = vmatprep.mubr.f32.mxu0 0.0
        %7051 = vmatmul.mubr.f32.gmra.mxu0 %v6867
        %v7052 = vpop.f32.mrf.mxu0
        %v7053 = vadd.f32 %v6828, %v7052
        %v7054 = vpop.f32.mrf.mxu0
        %7055 = vmatprep.mubr.f32.mxu0 0.0
        %7056 = vmatmul.mubr.f32.gmra.mxu0 %v6870
        %v7057 = vpop.f32.mrf.mxu0
        %v7058 = vadd.f32 %v6828, %v7057
        %v7059 = vpop.f32.mrf.mxu0
        %7060 = vmatprep.mubr.f32.mxu0 0.0
        %7061 = vmatmul.mubr.f32.gmra.mxu0 %v6873
        %v7062 = vpop.f32.mrf.mxu0
        %v7063 = vadd.f32 %v6828, %v7062
        %v7064 = vpop.f32.mrf.mxu0
        %7065 = vmatprep.mubr.f32.mxu0 0.0
        %7066 = vmatmul.mubr.f32.gmra.mxu0 %v6876
        %v7067 = vpop.f32.mrf.mxu0
        %v7068 = vadd.f32 %v6828, %v7067
        %v7069 = vpop.f32.mrf.mxu0
        %7070 = vmatprep.mubr.f32.mxu0 0.0
        %7071 = vmatmul.mubr.f32.gmra.mxu0 %v6879
        %v7072 = vpop.f32.mrf.mxu0
        %v7073 = vadd.f32 %v6828, %v7072
        %v7074 = vpop.f32.mrf.mxu0
        %7075 = vmatprep.mubr.f32.mxu0 0.0
        %7076 = vmatmul.mubr.f32.gmra.mxu0 %v6882
        %v7077 = vpop.f32.mrf.mxu0
        %v7078 = vadd.f32 %v6828, %v7077
        %v7079 = vpop.f32.mrf.mxu0
        %7080 = vmatprep.mubr.f32.mxu0 0.0
        %7081 = vmatmul.mubr.f32.gmra.mxu0 %v6885
        %v7082 = vpop.f32.mrf.mxu0
        %v7083 = vadd.f32 %v6828, %v7082
        %v7084 = vpop.f32.mrf.mxu0
        %7085 = vmatprep.mubr.f32.mxu0 0.0
        %7086 = vmatmul.mubr.f32.gmra.mxu0 %v6888
        %v7087 = vpop.f32.mrf.mxu0
        %v7088 = vadd.f32 %v6828, %v7087
        %v7089 = vpop.f32.mrf.mxu0
        %7090 = vmatprep.mubr.f32.mxu0 0.0
        %7091 = vmatmul.mubr.f32.gmra.mxu0 %v6891
        %v7092 = vpop.f32.mrf.mxu0
        %v7093 = vadd.f32 %v6828, %v7092
        %v7094 = vpop.f32.mrf.mxu0
        %7095 = vmatprep.mubr.f32.mxu0 0.0
        %7096 = vmatmul.mubr.f32.gmra.mxu0 %v6894
        %v7097 = vpop.f32.mrf.mxu0
        %v7098 = vadd.f32 %v6828, %v7097
        %v7099 = vpop.f32.mrf.mxu0
        %7100 = vmatprep.mubr.f32.mxu0 0.0
        %7101 = vmatmul.mubr.f32.gmra.mxu0 %v6897
        %v7102 = vpop.f32.mrf.mxu0
        %v7103 = vadd.f32 %v6828, %v7102
        %v7104 = vpop.f32.mrf.mxu0
        %7105 = vmatprep.mubr.f32.mxu0 0.0
        %7106 = vmatmul.mubr.f32.gmra.mxu0 %v6900
        %v7107 = vpop.f32.mrf.mxu0
        %v7108 = vadd.f32 %v6828, %v7107
        %v7109 = vpop.f32.mrf.mxu0
        %7110 = vmatprep.mubr.f32.mxu0 0.0
        %7111 = vmatmul.mubr.f32.gmra.mxu0 %v6903
        %v7112 = vpop.f32.mrf.mxu0
        %v7113 = vadd.f32 %v6828, %v7112
        %v7114 = vpop.f32.mrf.mxu0
        %7115 = vmatprep.mubr.f32.mxu0 0.0
        %7116 = vmatmul.mubr.f32.gmra.mxu0 %v6906
        %v7117 = vpop.f32.mrf.mxu0
        %v7118 = vadd.f32 %v6828, %v7117
        %v7119 = vpop.f32.mrf.mxu0
        %7120 = vmatprep.mubr.f32.mxu0 0.0
        %7121 = vmatmul.mubr.f32.gmra.mxu0 %v6909
        %v7122 = vpop.f32.mrf.mxu0
        %v7123 = vadd.f32 %v6828, %v7122
        %v7124 = vpop.f32.mrf.mxu0
        %7125 = vmatprep.mubr.f32.mxu0 0.0
        %7126 = vmatmul.mubr.f32.gmra.mxu0 %v6912
        %v7127 = vpop.f32.mrf.mxu0
        %v7128 = vadd.f32 %v6828, %v7127
        %v7129 = vpop.f32.mrf.mxu0
        %7130 = vmatprep.mubr.f32.mxu0 0.0
        %7131 = vmatmul.mubr.f32.gmra.mxu0 %v6915
        %v7132 = vpop.f32.mrf.mxu0
        %v7133 = vadd.f32 %v6828, %v7132
        %v7134 = vpop.f32.mrf.mxu0
        %7135 = vmatprep.mubr.f32.mxu0 0.0
        %7136 = vmatmul.mubr.f32.gmra.mxu0 %v6918
        %v7137 = vpop.f32.mrf.mxu0
        %v7138 = vadd.f32 %v6828, %v7137
        %v7139 = vpop.f32.mrf.mxu0
        %7140 = vmatprep.mubr.f32.mxu0 0.0
        %7141 = vmatmul.mubr.f32.gmra.mxu0 %v6921
        %v7142 = vpop.f32.mrf.mxu0
        %v7143 = vadd.f32 %v6828, %v7142
        %v7144 = vpop.f32.mrf.mxu0
        %7145 = vmatprep.mubr.f32.mxu0 0.0
        %7146 = vmatmul.mubr.f32.gmra.mxu0 %v6924
        %v7147 = vpop.f32.mrf.mxu0
        %v7148 = vadd.f32 %v6828, %v7147
        %v7149 = vpop.f32.mrf.mxu0
        %7150 = vdwg.mxu0
        %v7151 = vxor.u32 %v6993, 2147483648
        %v7152 = vxor.u32 %v6998, 2147483648
        %v7153 = vxor.u32 %v7003, 2147483648
        %v7154 = vxor.u32 %v7008, 2147483648
        %v7155 = vxor.u32 %v7013, 2147483648
        %v7156 = vxor.u32 %v7018, 2147483648
        %v7157 = vxor.u32 %v7023, 2147483648
        %v7158 = vxor.u32 %v7028, 2147483648
        %v7159 = vxor.u32 %v7033, 2147483648
        %v7160 = vxor.u32 %v7038, 2147483648
        %v7161 = vxor.u32 %v7043, 2147483648
        %v7162 = vxor.u32 %v7048, 2147483648
        %v7163 = vxor.u32 %v7053, 2147483648
        %v7164 = vxor.u32 %v7058, 2147483648
        %v7165 = vxor.u32 %v7063, 2147483648
        %v7166 = vxor.u32 %v7068, 2147483648
        %v7167 = vxor.u32 %v7073, 2147483648
        %v7168 = vxor.u32 %v7078, 2147483648
        %v7169 = vxor.u32 %v7083, 2147483648
        %v7170 = vxor.u32 %v7088, 2147483648
        %v7171 = vxor.u32 %v7093, 2147483648
        %v7172 = vxor.u32 %v7098, 2147483648
        %v7173 = vxor.u32 %v7103, 2147483648
        %v7174 = vxor.u32 %v7108, 2147483648
        %v7175 = vxor.u32 %v7113, 2147483648
        %v7176 = vxor.u32 %v7118, 2147483648
        %v7177 = vxor.u32 %v7123, 2147483648
        %v7178 = vxor.u32 %v7128, 2147483648
        %v7179 = vxor.u32 %v7133, 2147483648
        %v7180 = vxor.u32 %v7138, 2147483648
        %v7181 = vxor.u32 %v7143, 2147483648
        %v7182 = vxor.u32 %v7148, 2147483648
        %v7183 = vmul.f32 %v7151, 1.442695
        %v7184 = vpow.pop %v7183
        %v7185 = vmul.f32 %v7152, 1.442695
        %v7186 = vpow.pop %v7185
        %v7187 = vmul.f32 %v7153, 1.442695
        %v7188 = vpow.pop %v7187
        %v7189 = vmul.f32 %v7154, 1.442695
        %v7190 = vpow.pop %v7189
        %v7191 = vmul.f32 %v7155, 1.442695
        %v7192 = vpow.pop %v7191
        %v7193 = vmul.f32 %v7156, 1.442695
        %v7194 = vpow.pop %v7193
        %v7195 = vmul.f32 %v7157, 1.442695
        %v7196 = vpow.pop %v7195
        %v7197 = vmul.f32 %v7158, 1.442695
        %v7198 = vpow.pop %v7197
        %v7199 = vmul.f32 %v7159, 1.442695
        %v7200 = vpow.pop %v7199
        %v7201 = vmul.f32 %v7160, 1.442695
        %v7202 = vpow.pop %v7201
        %v7203 = vmul.f32 %v7161, 1.442695
        %v7204 = vpow.pop %v7203
        %v7205 = vmul.f32 %v7162, 1.442695
        %v7206 = vpow.pop %v7205
        %v7207 = vmul.f32 %v7163, 1.442695
        %v7208 = vpow.pop %v7207
        %v7209 = vmul.f32 %v7164, 1.442695
        %v7210 = vpow.pop %v7209
        %v7211 = vmul.f32 %v7165, 1.442695
        %v7212 = vpow.pop %v7211
        %v7213 = vmul.f32 %v7166, 1.442695
        %v7214 = vpow.pop %v7213
        %v7215 = vmul.f32 %v7167, 1.442695
        %v7216 = vpow.pop %v7215
        %v7217 = vmul.f32 %v7168, 1.442695
        %v7218 = vpow.pop %v7217
        %v7219 = vmul.f32 %v7169, 1.442695
        %v7220 = vpow.pop %v7219
        %v7221 = vmul.f32 %v7170, 1.442695
        %v7222 = vpow.pop %v7221
        %v7223 = vmul.f32 %v7171, 1.442695
        %v7224 = vpow.pop %v7223
        %v7225 = vmul.f32 %v7172, 1.442695
        %v7226 = vpow.pop %v7225
        %v7227 = vmul.f32 %v7173, 1.442695
        %v7228 = vpow.pop %v7227
        %v7229 = vmul.f32 %v7174, 1.442695
        %v7230 = vpow.pop %v7229
        %v7231 = vmul.f32 %v7175, 1.442695
        %v7232 = vpow.pop %v7231
        %v7233 = vmul.f32 %v7176, 1.442695
        %v7234 = vpow.pop %v7233
        %v7235 = vmul.f32 %v7177, 1.442695
        %v7236 = vpow.pop %v7235
        %v7237 = vmul.f32 %v7178, 1.442695
        %v7238 = vpow.pop %v7237
        %v7239 = vmul.f32 %v7179, 1.442695
        %v7240 = vpow.pop %v7239
        %v7241 = vmul.f32 %v7180, 1.442695
        %v7242 = vpow.pop %v7241
        %v7243 = vmul.f32 %v7181, 1.442695
        %v7244 = vpow.pop %v7243
        %v7245 = vmul.f32 %v7182, 1.442695
        %v7246 = vpow.pop %v7245
        %v7247 = vadd.f32 %v7184, 1.0
        %v7248 = vadd.f32 %v7186, 1.0
        %v7249 = vadd.f32 %v7188, 1.0
        %v7250 = vadd.f32 %v7190, 1.0
        %v7251 = vadd.f32 %v7192, 1.0
        %v7252 = vadd.f32 %v7194, 1.0
        %v7253 = vadd.f32 %v7196, 1.0
        %v7254 = vadd.f32 %v7198, 1.0
        %v7255 = vadd.f32 %v7200, 1.0
        %v7256 = vadd.f32 %v7202, 1.0
        %v7257 = vadd.f32 %v7204, 1.0
        %v7258 = vadd.f32 %v7206, 1.0
        %v7259 = vadd.f32 %v7208, 1.0
        %v7260 = vadd.f32 %v7210, 1.0
        %v7261 = vadd.f32 %v7212, 1.0
        %v7262 = vadd.f32 %v7214, 1.0
        %v7263 = vadd.f32 %v7216, 1.0
        %v7264 = vadd.f32 %v7218, 1.0
        %v7265 = vadd.f32 %v7220, 1.0
        %v7266 = vadd.f32 %v7222, 1.0
        %v7267 = vadd.f32 %v7224, 1.0
        %v7268 = vadd.f32 %v7226, 1.0
        %v7269 = vadd.f32 %v7228, 1.0
        %v7270 = vadd.f32 %v7230, 1.0
        %v7271 = vadd.f32 %v7232, 1.0
        %v7272 = vadd.f32 %v7234, 1.0
        %v7273 = vadd.f32 %v7236, 1.0
        %v7274 = vadd.f32 %v7238, 1.0
        %v7275 = vadd.f32 %v7240, 1.0
        %v7276 = vadd.f32 %v7242, 1.0
        %v7277 = vadd.f32 %v7244, 1.0
        %v7278 = vadd.f32 %v7246, 1.0
        %v7279 = vrcp.pop %v7247
        %v7280 = vmul.f32 1.0, %v7279
        %v7281 = vrcp.pop %v7248
        %v7282 = vmul.f32 1.0, %v7281
        %v7283 = vrcp.pop %v7249
        %v7284 = vmul.f32 1.0, %v7283
        %v7285 = vrcp.pop %v7250
        %v7286 = vmul.f32 1.0, %v7285
        %v7287 = vrcp.pop %v7251
        %v7288 = vmul.f32 1.0, %v7287
        %v7289 = vrcp.pop %v7252
        %v7290 = vmul.f32 1.0, %v7289
        %v7291 = vrcp.pop %v7253
        %v7292 = vmul.f32 1.0, %v7291
        %v7293 = vrcp.pop %v7254
        %v7294 = vmul.f32 1.0, %v7293
        %v7295 = vrcp.pop %v7255
        %v7296 = vmul.f32 1.0, %v7295
        %v7297 = vrcp.pop %v7256
        %v7298 = vmul.f32 1.0, %v7297
        %v7299 = vrcp.pop %v7257
        %v7300 = vmul.f32 1.0, %v7299
        %v7301 = vrcp.pop %v7258
        %v7302 = vmul.f32 1.0, %v7301
        %v7303 = vrcp.pop %v7259
        %v7304 = vmul.f32 1.0, %v7303
        %v7305 = vrcp.pop %v7260
        %v7306 = vmul.f32 1.0, %v7305
        %v7307 = vrcp.pop %v7261
        %v7308 = vmul.f32 1.0, %v7307
        %v7309 = vrcp.pop %v7262
        %v7310 = vmul.f32 1.0, %v7309
        %v7311 = vrcp.pop %v7263
        %v7312 = vmul.f32 1.0, %v7311
        %v7313 = vrcp.pop %v7264
        %v7314 = vmul.f32 1.0, %v7313
        %v7315 = vrcp.pop %v7265
        %v7316 = vmul.f32 1.0, %v7315
        %v7317 = vrcp.pop %v7266
        %v7318 = vmul.f32 1.0, %v7317
        %v7319 = vrcp.pop %v7267
        %v7320 = vmul.f32 1.0, %v7319
        %v7321 = vrcp.pop %v7268
        %v7322 = vmul.f32 1.0, %v7321
        %v7323 = vrcp.pop %v7269
        %v7324 = vmul.f32 1.0, %v7323
        %v7325 = vrcp.pop %v7270
        %v7326 = vmul.f32 1.0, %v7325
        %v7327 = vrcp.pop %v7271
        %v7328 = vmul.f32 1.0, %v7327
        %v7329 = vrcp.pop %v7272
        %v7330 = vmul.f32 1.0, %v7329
        %v7331 = vrcp.pop %v7273
        %v7332 = vmul.f32 1.0, %v7331
        %v7333 = vrcp.pop %v7274
        %v7334 = vmul.f32 1.0, %v7333
        %v7335 = vrcp.pop %v7275
        %v7336 = vmul.f32 1.0, %v7335
        %v7337 = vrcp.pop %v7276
        %v7338 = vmul.f32 1.0, %v7337
        %v7339 = vrcp.pop %v7277
        %v7340 = vmul.f32 1.0, %v7339
        %v7341 = vrcp.pop %v7278
        %v7342 = vmul.f32 1.0, %v7341
        %v7343 = vmul.f32 %v6993, %v7280
        %v7344 = vmul.f32 %v6998, %v7282
        %v7345 = vmul.f32 %v7003, %v7284
        %v7346 = vmul.f32 %v7008, %v7286
        %v7347 = vmul.f32 %v7013, %v7288
        %v7348 = vmul.f32 %v7018, %v7290
        %v7349 = vmul.f32 %v7023, %v7292
        %v7350 = vmul.f32 %v7028, %v7294
        %v7351 = vmul.f32 %v7033, %v7296
        %v7352 = vmul.f32 %v7038, %v7298
        %v7353 = vmul.f32 %v7043, %v7300
        %v7354 = vmul.f32 %v7048, %v7302
        %v7355 = vmul.f32 %v7053, %v7304
        %v7356 = vmul.f32 %v7058, %v7306
        %v7357 = vmul.f32 %v7063, %v7308
        %v7358 = vmul.f32 %v7068, %v7310
        %v7359 = vmul.f32 %v7073, %v7312
        %v7360 = vmul.f32 %v7078, %v7314
        %v7361 = vmul.f32 %v7083, %v7316
        %v7362 = vmul.f32 %v7088, %v7318
        %v7363 = vmul.f32 %v7093, %v7320
        %v7364 = vmul.f32 %v7098, %v7322
        %v7365 = vmul.f32 %v7103, %v7324
        %v7366 = vmul.f32 %v7108, %v7326
        %v7367 = vmul.f32 %v7113, %v7328
        %v7368 = vmul.f32 %v7118, %v7330
        %v7369 = vmul.f32 %v7123, %v7332
        %v7370 = vmul.f32 %v7128, %v7334
        %v7371 = vmul.f32 %v7133, %v7336
        %v7372 = vmul.f32 %v7138, %v7338
        %v7373 = vmul.f32 %v7143, %v7340
        %v7374 = vmul.f32 %v7148, %v7342
        %7375 = vst.msk [vmem:[%s651] sm:$0xff] %vm2065, %v7343
        %7376 = vst.msk [vmem:[%s651 + $0x8] sm:$0xff] %vm2065, %v7344
        %7377 = vst.msk [vmem:[%s651 + $0x10] sm:$0xff] %vm2065, %v7345
        %7378 = vst.msk [vmem:[%s651 + $0x18] sm:$0xff] %vm2065, %v7346
        %7379 = vst.msk [vmem:[%s651 + $0x20] sm:$0xff] %vm2065, %v7347
        %7380 = vst.msk [vmem:[%s651 + $0x28] sm:$0xff] %vm2065, %v7348
        %7381 = vst.msk [vmem:[%s651 + $0x30] sm:$0xff] %vm2065, %v7349
        %7382 = vst.msk [vmem:[%s651 + $0x38] sm:$0xff] %vm2065, %v7350
        %7383 = vst.msk [vmem:[%s651 + $0x40] sm:$0xff] %vm2065, %v7351
        %7384 = vst.msk [vmem:[%s651 + $0x48] sm:$0xff] %vm2065, %v7352
        %7385 = vst.msk [vmem:[%s651 + $0x50] sm:$0xff] %vm2065, %v7353
        %7386 = vst.msk [vmem:[%s651 + $0x58] sm:$0xff] %vm2065, %v7354
        %7387 = vst.msk [vmem:[%s651 + $0x60] sm:$0xff] %vm2065, %v7355
        %7388 = vst.msk [vmem:[%s651 + $0x68] sm:$0xff] %vm2065, %v7356
        %7389 = vst.msk [vmem:[%s651 + $0x70] sm:$0xff] %vm2065, %v7357
        %7390 = vst.msk [vmem:[%s651 + $0x78] sm:$0xff] %vm2065, %v7358
        %7391 = vst.msk [vmem:[%s651 + $0x80] sm:$0xff] %vm2065, %v7359
        %7392 = vst.msk [vmem:[%s651 + $0x88] sm:$0xff] %vm2065, %v7360
        %7393 = vst.msk [vmem:[%s651 + $0x90] sm:$0xff] %vm2065, %v7361
        %7394 = vst.msk [vmem:[%s651 + $0x98] sm:$0xff] %vm2065, %v7362
        %7395 = vst.msk [vmem:[%s651 + $0xa0] sm:$0xff] %vm2065, %v7363
        %7396 = vst.msk [vmem:[%s651 + $0xa8] sm:$0xff] %vm2065, %v7364
        %7397 = vst.msk [vmem:[%s651 + $0xb0] sm:$0xff] %vm2065, %v7365
        %7398 = vst.msk [vmem:[%s651 + $0xb8] sm:$0xff] %vm2065, %v7366
        %7399 = vst.msk [vmem:[%s651 + $0xc0] sm:$0xff] %vm2065, %v7367
        %7400 = vst.msk [vmem:[%s651 + $0xc8] sm:$0xff] %vm2065, %v7368
        %7401 = vst.msk [vmem:[%s651 + $0xd0] sm:$0xff] %vm2065, %v7369
        %7402 = vst.msk [vmem:[%s651 + $0xd8] sm:$0xff] %vm2065, %v7370
        %7403 = vst.msk [vmem:[%s651 + $0xe0] sm:$0xff] %vm2065, %v7371
        %7404 = vst.msk [vmem:[%s651 + $0xe8] sm:$0xff] %vm2065, %v7372
        %7405 = vst.msk [vmem:[%s651 + $0xf0] sm:$0xff] %vm2065, %v7373
        %7406 = vst.msk [vmem:[%s651 + $0xf8] sm:$0xff] %vm2065, %v7374
        %v7407 = vld [vmem:[%s8] sm:$0xff]
        %v7408 = vld [vmem:[%s8 + $0x8] sm:$0xff]
        %v7410 = vsel %vm2065, %v7343, 0
        %v7413 = vsel %vm2065, %v7344, 0
        %v7416 = vsel %vm2065, %v7345, 0
        %v7419 = vsel %vm2065, %v7346, 0
        %v7422 = vsel %vm2065, %v7347, 0
        %v7425 = vsel %vm2065, %v7348, 0
        %v7428 = vsel %vm2065, %v7349, 0
        %v7431 = vsel %vm2065, %v7350, 0
        %v7434 = vsel %vm2065, %v7351, 0
        %v7437 = vsel %vm2065, %v7352, 0
        %v7440 = vsel %vm2065, %v7353, 0
        %v7443 = vsel %vm2065, %v7354, 0
        %v7446 = vsel %vm2065, %v7355, 0
        %v7449 = vsel %vm2065, %v7356, 0
        %v7452 = vsel %vm2065, %v7357, 0
        %v7455 = vsel %vm2065, %v7358, 0
        %v7458 = vsel %vm2065, %v7359, 0
        %v7461 = vsel %vm2065, %v7360, 0
        %v7464 = vsel %vm2065, %v7361, 0
        %v7467 = vsel %vm2065, %v7362, 0
        %v7470 = vsel %vm2065, %v7363, 0
        %v7473 = vsel %vm2065, %v7364, 0
        %v7476 = vsel %vm2065, %v7365, 0
        %v7479 = vsel %vm2065, %v7366, 0
        %v7482 = vsel %vm2065, %v7367, 0
        %v7485 = vsel %vm2065, %v7368, 0
        %v7488 = vsel %vm2065, %v7369, 0
        %v7491 = vsel %vm2065, %v7370, 0
        %v7494 = vsel %vm2065, %v7371, 0
        %v7497 = vsel %vm2065, %v7372, 0
        %v7500 = vsel %vm2065, %v7373, 0
        %v7503 = vsel %vm2065, %v7374, 0
        %7505 = vmatprep.subr.mxu0 0.0
        %7506 = vmatpush1.msra.mxu0 0.0
        %7507 = vmatprep.subr.mxu0 0.0
        %7508 = vmatpush1.msra.mxu0 0.0
        %7509 = vmatprep.subr.mxu0 0.0
        %7510 = vmatpush1.msra.mxu0 0.0
        %7511 = vmatprep.subr.mxu0 0.0
        %7512 = vmatpush1.msra.mxu0 0.0
        %7513 = vmatprep.subr.mxu0 0.0
        %7514 = vmatpush1.msra.mxu0 0.0
        %7515 = vmatprep.subr.mxu0 0.0
        %7516 = vmatpush1.msra.mxu0 0.0
        %7517 = vmatprep.subr.mxu0 0.0
        %7518 = vmatpush1.msra.mxu0 0.0
        %7519 = vmatprep.subr.mxu0 0.0
        %7520 = vmatpush1.msra.mxu0 0.0
        %7521 = vmatprep.subr.mxu0 0.0
        %7522 = vmatpush1.msra.mxu0 0.0
        %7523 = vmatprep.subr.mxu0 0.0
        %7524 = vmatpush1.msra.mxu0 0.0
        %7525 = vmatprep.subr.mxu0 0.0
        %7526 = vmatpush1.msra.mxu0 0.0
        %7527 = vmatprep.subr.mxu0 0.0
        %7528 = vmatpush1.msra.mxu0 0.0
        %7529 = vmatprep.subr.mxu0 0.0
        %7530 = vmatpush1.msra.mxu0 0.0
        %7531 = vmatprep.subr.mxu0 0.0
        %7532 = vmatpush1.msra.mxu0 0.0
        %7533 = vmatprep.subr.mxu0 0.0
        %7534 = vmatpush1.msra.mxu0 %v7408
        %7535 = vmatprep.subr.mxu0 0.0
        %7536 = vmatpush1.msra.mxu0 %v7407
        %7537 = vmatprep.subr.mxu0 0.0
        %7538 = vmatpush2.msra.mxu0 0.0
        %7539 = vmatprep.subr.mxu0 0.0
        %7540 = vmatpush2.msra.mxu0 0.0
        %7541 = vmatprep.subr.mxu0 0.0
        %7542 = vmatpush2.msra.mxu0 0.0
        %7543 = vmatprep.subr.mxu0 0.0
        %7544 = vmatpush2.msra.mxu0 0.0
        %7545 = vmatprep.subr.mxu0 0.0
        %7546 = vmatpush2.msra.mxu0 0.0
        %7547 = vmatprep.subr.mxu0 0.0
        %7548 = vmatpush2.msra.mxu0 0.0
        %7549 = vmatprep.subr.mxu0 0.0
        %7550 = vmatpush2.msra.mxu0 0.0
        %7551 = vmatprep.subr.mxu0 0.0
        %7552 = vmatpush2.msra.mxu0 0.0
        %7553 = vmatprep.subr.mxu0 0.0
        %7554 = vmatpush2.msra.mxu0 0.0
        %7555 = vmatprep.subr.mxu0 0.0
        %7556 = vmatpush2.msra.mxu0 0.0
        %7557 = vmatprep.subr.mxu0 0.0
        %7558 = vmatpush2.msra.mxu0 0.0
        %7559 = vmatprep.subr.mxu0 0.0
        %7560 = vmatpush2.msra.mxu0 0.0
        %7561 = vmatprep.subr.mxu0 0.0
        %7562 = vmatpush2.msra.mxu0 0.0
        %7563 = vmatprep.subr.mxu0 0.0
        %7564 = vmatpush2.msra.mxu0 0.0
        %7565 = vmatprep.subr.mxu0 0.0
        %7566 = vmatpush2.msra.mxu0 0.0
        %7567 = vmatprep.subr.mxu0 0.0
        %7568 = vmatpush2.msra.mxu0 0.0
        %7569 = vmatprep.mubr.f32.mxu0 0.0
        %7570 = vmatmul.mubr.f32.gmra.mxu0 %v7410
        %v7571 = vpop.f32.mrf.mxu0
        %v7572 = vadd.f32 0.0, %v7571
        %v7573 = vpop.f32.mrf.mxu0
        %7574 = vmatprep.mubr.f32.mxu0 0.0
        %7575 = vmatmul.mubr.f32.gmra.mxu0 %v7413
        %v7576 = vpop.f32.mrf.mxu0
        %v7577 = vadd.f32 0.0, %v7576
        %v7578 = vpop.f32.mrf.mxu0
        %7579 = vmatprep.mubr.f32.mxu0 0.0
        %7580 = vmatmul.mubr.f32.gmra.mxu0 %v7416
        %v7581 = vpop.f32.mrf.mxu0
        %v7582 = vadd.f32 0.0, %v7581
        %v7583 = vpop.f32.mrf.mxu0
        %7584 = vmatprep.mubr.f32.mxu0 0.0
        %7585 = vmatmul.mubr.f32.gmra.mxu0 %v7419
        %v7586 = vpop.f32.mrf.mxu0
        %v7587 = vadd.f32 0.0, %v7586
        %v7588 = vpop.f32.mrf.mxu0
        %7589 = vmatprep.mubr.f32.mxu0 0.0
        %7590 = vmatmul.mubr.f32.gmra.mxu0 %v7422
        %v7591 = vpop.f32.mrf.mxu0
        %v7592 = vadd.f32 0.0, %v7591
        %v7593 = vpop.f32.mrf.mxu0
        %7594 = vmatprep.mubr.f32.mxu0 0.0
        %7595 = vmatmul.mubr.f32.gmra.mxu0 %v7425
        %v7596 = vpop.f32.mrf.mxu0
        %v7597 = vadd.f32 0.0, %v7596
        %v7598 = vpop.f32.mrf.mxu0
        %7599 = vmatprep.mubr.f32.mxu0 0.0
        %7600 = vmatmul.mubr.f32.gmra.mxu0 %v7428
        %v7601 = vpop.f32.mrf.mxu0
        %v7602 = vadd.f32 0.0, %v7601
        %v7603 = vpop.f32.mrf.mxu0
        %7604 = vmatprep.mubr.f32.mxu0 0.0
        %7605 = vmatmul.mubr.f32.gmra.mxu0 %v7431
        %v7606 = vpop.f32.mrf.mxu0
        %v7607 = vadd.f32 0.0, %v7606
        %v7608 = vpop.f32.mrf.mxu0
        %7609 = vmatprep.mubr.f32.mxu0 0.0
        %7610 = vmatmul.mubr.f32.gmra.mxu0 %v7434
        %v7611 = vpop.f32.mrf.mxu0
        %v7612 = vadd.f32 0.0, %v7611
        %v7613 = vpop.f32.mrf.mxu0
        %7614 = vmatprep.mubr.f32.mxu0 0.0
        %7615 = vmatmul.mubr.f32.gmra.mxu0 %v7437
        %v7616 = vpop.f32.mrf.mxu0
        %v7617 = vadd.f32 0.0, %v7616
        %v7618 = vpop.f32.mrf.mxu0
        %7619 = vmatprep.mubr.f32.mxu0 0.0
        %7620 = vmatmul.mubr.f32.gmra.mxu0 %v7440
        %v7621 = vpop.f32.mrf.mxu0
        %v7622 = vadd.f32 0.0, %v7621
        %v7623 = vpop.f32.mrf.mxu0
        %7624 = vmatprep.mubr.f32.mxu0 0.0
        %7625 = vmatmul.mubr.f32.gmra.mxu0 %v7443
        %v7626 = vpop.f32.mrf.mxu0
        %v7627 = vadd.f32 0.0, %v7626
        %v7628 = vpop.f32.mrf.mxu0
        %7629 = vmatprep.mubr.f32.mxu0 0.0
        %7630 = vmatmul.mubr.f32.gmra.mxu0 %v7446
        %v7631 = vpop.f32.mrf.mxu0
        %v7632 = vadd.f32 0.0, %v7631
        %v7633 = vpop.f32.mrf.mxu0
        %7634 = vmatprep.mubr.f32.mxu0 0.0
        %7635 = vmatmul.mubr.f32.gmra.mxu0 %v7449
        %v7636 = vpop.f32.mrf.mxu0
        %v7637 = vadd.f32 0.0, %v7636
        %v7638 = vpop.f32.mrf.mxu0
        %7639 = vmatprep.mubr.f32.mxu0 0.0
        %7640 = vmatmul.mubr.f32.gmra.mxu0 %v7452
        %v7641 = vpop.f32.mrf.mxu0
        %v7642 = vadd.f32 0.0, %v7641
        %v7643 = vpop.f32.mrf.mxu0
        %7644 = vmatprep.mubr.f32.mxu0 0.0
        %7645 = vmatmul.mubr.f32.gmra.mxu0 %v7455
        %v7646 = vpop.f32.mrf.mxu0
        %v7647 = vadd.f32 0.0, %v7646
        %v7648 = vpop.f32.mrf.mxu0
        %7649 = vmatprep.mubr.f32.mxu0 0.0
        %7650 = vmatmul.mubr.f32.gmra.mxu0 %v7458
        %v7651 = vpop.f32.mrf.mxu0
        %v7652 = vadd.f32 0.0, %v7651
        %v7653 = vpop.f32.mrf.mxu0
        %7654 = vmatprep.mubr.f32.mxu0 0.0
        %7655 = vmatmul.mubr.f32.gmra.mxu0 %v7461
        %v7656 = vpop.f32.mrf.mxu0
        %v7657 = vadd.f32 0.0, %v7656
        %v7658 = vpop.f32.mrf.mxu0
        %7659 = vmatprep.mubr.f32.mxu0 0.0
        %7660 = vmatmul.mubr.f32.gmra.mxu0 %v7464
        %v7661 = vpop.f32.mrf.mxu0
        %v7662 = vadd.f32 0.0, %v7661
        %v7663 = vpop.f32.mrf.mxu0
        %7664 = vmatprep.mubr.f32.mxu0 0.0
        %7665 = vmatmul.mubr.f32.gmra.mxu0 %v7467
        %v7666 = vpop.f32.mrf.mxu0
        %v7667 = vadd.f32 0.0, %v7666
        %v7668 = vpop.f32.mrf.mxu0
        %7669 = vmatprep.mubr.f32.mxu0 0.0
        %7670 = vmatmul.mubr.f32.gmra.mxu0 %v7470
        %v7671 = vpop.f32.mrf.mxu0
        %v7672 = vadd.f32 0.0, %v7671
        %v7673 = vpop.f32.mrf.mxu0
        %7674 = vmatprep.mubr.f32.mxu0 0.0
        %7675 = vmatmul.mubr.f32.gmra.mxu0 %v7473
        %v7676 = vpop.f32.mrf.mxu0
        %v7677 = vadd.f32 0.0, %v7676
        %v7678 = vpop.f32.mrf.mxu0
        %7679 = vmatprep.mubr.f32.mxu0 0.0
        %7680 = vmatmul.mubr.f32.gmra.mxu0 %v7476
        %v7681 = vpop.f32.mrf.mxu0
        %v7682 = vadd.f32 0.0, %v7681
        %v7683 = vpop.f32.mrf.mxu0
        %7684 = vmatprep.mubr.f32.mxu0 0.0
        %7685 = vmatmul.mubr.f32.gmra.mxu0 %v7479
        %v7686 = vpop.f32.mrf.mxu0
        %v7687 = vadd.f32 0.0, %v7686
        %v7688 = vpop.f32.mrf.mxu0
        %7689 = vmatprep.mubr.f32.mxu0 0.0
        %7690 = vmatmul.mubr.f32.gmra.mxu0 %v7482
        %v7691 = vpop.f32.mrf.mxu0
        %v7692 = vadd.f32 0.0, %v7691
        %v7693 = vpop.f32.mrf.mxu0
        %7694 = vmatprep.mubr.f32.mxu0 0.0
        %7695 = vmatmul.mubr.f32.gmra.mxu0 %v7485
        %v7696 = vpop.f32.mrf.mxu0
        %v7697 = vadd.f32 0.0, %v7696
        %v7698 = vpop.f32.mrf.mxu0
        %7699 = vmatprep.mubr.f32.mxu0 0.0
        %7700 = vmatmul.mubr.f32.gmra.mxu0 %v7488
        %v7701 = vpop.f32.mrf.mxu0
        %v7702 = vadd.f32 0.0, %v7701
        %v7703 = vpop.f32.mrf.mxu0
        %7704 = vmatprep.mubr.f32.mxu0 0.0
        %7705 = vmatmul.mubr.f32.gmra.mxu0 %v7491
        %v7706 = vpop.f32.mrf.mxu0
        %v7707 = vadd.f32 0.0, %v7706
        %v7708 = vpop.f32.mrf.mxu0
        %7709 = vmatprep.mubr.f32.mxu0 0.0
        %7710 = vmatmul.mubr.f32.gmra.mxu0 %v7494
        %v7711 = vpop.f32.mrf.mxu0
        %v7712 = vadd.f32 0.0, %v7711
        %v7713 = vpop.f32.mrf.mxu0
        %7714 = vmatprep.mubr.f32.mxu0 0.0
        %7715 = vmatmul.mubr.f32.gmra.mxu0 %v7497
        %v7716 = vpop.f32.mrf.mxu0
        %v7717 = vadd.f32 0.0, %v7716
        %v7718 = vpop.f32.mrf.mxu0
        %7719 = vmatprep.mubr.f32.mxu0 0.0
        %7720 = vmatmul.mubr.f32.gmra.mxu0 %v7500
        %v7721 = vpop.f32.mrf.mxu0
        %v7722 = vadd.f32 0.0, %v7721
        %v7723 = vpop.f32.mrf.mxu0
        %7724 = vmatprep.mubr.f32.mxu0 0.0
        %7725 = vmatmul.mubr.f32.gmra.mxu0 %v7503
        %v7726 = vpop.f32.mrf.mxu0
        %v7727 = vadd.f32 0.0, %v7726
        %v7728 = vpop.f32.mrf.mxu0
        %7729 = vdwg.mxu0
        %7730 = vst.msk [vmem:[%s607] sm:$0xff] %vm2197, %v7572
        %7731 = vst.msk [vmem:[%s607 + $0x8] sm:$0xff] %vm2197, %v7577
        %7732 = vst.msk [vmem:[%s607 + $0x10] sm:$0xff] %vm2197, %v7582
        %7733 = vst.msk [vmem:[%s607 + $0x18] sm:$0xff] %vm2197, %v7587
        %7734 = vst.msk [vmem:[%s607 + $0x20] sm:$0xff] %vm2197, %v7592
        %7735 = vst.msk [vmem:[%s607 + $0x28] sm:$0xff] %vm2197, %v7597
        %7736 = vst.msk [vmem:[%s607 + $0x30] sm:$0xff] %vm2197, %v7602
        %7737 = vst.msk [vmem:[%s607 + $0x38] sm:$0xff] %vm2197, %v7607
        %7738 = vst.msk [vmem:[%s607 + $0x40] sm:$0xff] %vm2197, %v7612
        %7739 = vst.msk [vmem:[%s607 + $0x48] sm:$0xff] %vm2197, %v7617
        %7740 = vst.msk [vmem:[%s607 + $0x50] sm:$0xff] %vm2197, %v7622
        %7741 = vst.msk [vmem:[%s607 + $0x58] sm:$0xff] %vm2197, %v7627
        %7742 = vst.msk [vmem:[%s607 + $0x60] sm:$0xff] %vm2197, %v7632
        %7743 = vst.msk [vmem:[%s607 + $0x68] sm:$0xff] %vm2197, %v7637
        %7744 = vst.msk [vmem:[%s607 + $0x70] sm:$0xff] %vm2197, %v7642
        %7745 = vst.msk [vmem:[%s607 + $0x78] sm:$0xff] %vm2197, %v7647
        %7746 = vst.msk [vmem:[%s607 + $0x80] sm:$0xff] %vm2197, %v7652
        %7747 = vst.msk [vmem:[%s607 + $0x88] sm:$0xff] %vm2197, %v7657
        %7748 = vst.msk [vmem:[%s607 + $0x90] sm:$0xff] %vm2197, %v7662
        %7749 = vst.msk [vmem:[%s607 + $0x98] sm:$0xff] %vm2197, %v7667
        %7750 = vst.msk [vmem:[%s607 + $0xa0] sm:$0xff] %vm2197, %v7672
        %7751 = vst.msk [vmem:[%s607 + $0xa8] sm:$0xff] %vm2197, %v7677
        %7752 = vst.msk [vmem:[%s607 + $0xb0] sm:$0xff] %vm2197, %v7682
        %7753 = vst.msk [vmem:[%s607 + $0xb8] sm:$0xff] %vm2197, %v7687
        %7754 = vst.msk [vmem:[%s607 + $0xc0] sm:$0xff] %vm2197, %v7692
        %7755 = vst.msk [vmem:[%s607 + $0xc8] sm:$0xff] %vm2197, %v7697
        %7756 = vst.msk [vmem:[%s607 + $0xd0] sm:$0xff] %vm2197, %v7702
        %7757 = vst.msk [vmem:[%s607 + $0xd8] sm:$0xff] %vm2197, %v7707
        %7758 = vst.msk [vmem:[%s607 + $0xe0] sm:$0xff] %vm2197, %v7712
        %7759 = vst.msk [vmem:[%s607 + $0xe8] sm:$0xff] %vm2197, %v7717
        %7760 = vst.msk [vmem:[%s607 + $0xf0] sm:$0xff] %vm2197, %v7722
        %7761 = vst.msk [vmem:[%s607 + $0xf8] sm:$0xff] %vm2197, %v7727
        %v7762 = vld [vmem:[%s9] sm:$0x1]
        %v7764 = vlaneseq
        %v7765 = vshrl.u32 %v7764, 7
        %v7766 = vsub.s32 0, %v7765
        %v7767 = vrot.slane %v7762, %v7766
        %v7769 = vmul.f32 %v7572, %v7767
        %v7770 = vmul.f32 %v7577, %v7767
        %v7771 = vmul.f32 %v7582, %v7767
        %v7772 = vmul.f32 %v7587, %v7767
        %v7773 = vmul.f32 %v7592, %v7767
        %v7774 = vmul.f32 %v7597, %v7767
        %v7775 = vmul.f32 %v7602, %v7767
        %v7776 = vmul.f32 %v7607, %v7767
        %v7777 = vmul.f32 %v7612, %v7767
        %v7778 = vmul.f32 %v7617, %v7767
        %v7779 = vmul.f32 %v7622, %v7767
        %v7780 = vmul.f32 %v7627, %v7767
        %v7781 = vmul.f32 %v7632, %v7767
        %v7782 = vmul.f32 %v7637, %v7767
        %v7783 = vmul.f32 %v7642, %v7767
        %v7784 = vmul.f32 %v7647, %v7767
        %v7785 = vmul.f32 %v7652, %v7767
        %v7786 = vmul.f32 %v7657, %v7767
        %v7787 = vmul.f32 %v7662, %v7767
        %v7788 = vmul.f32 %v7667, %v7767
        %v7789 = vmul.f32 %v7672, %v7767
        %v7790 = vmul.f32 %v7677, %v7767
        %v7791 = vmul.f32 %v7682, %v7767
        %v7792 = vmul.f32 %v7687, %v7767
        %v7793 = vmul.f32 %v7692, %v7767
        %v7794 = vmul.f32 %v7697, %v7767
        %v7795 = vmul.f32 %v7702, %v7767
        %v7796 = vmul.f32 %v7707, %v7767
        %v7797 = vmul.f32 %v7712, %v7767
        %v7798 = vmul.f32 %v7717, %v7767
        %v7799 = vmul.f32 %v7722, %v7767
        %v7800 = vmul.f32 %v7727, %v7767
        %v7801 = vld [vmem:[%s10] sm:$0x1]
        %v7803 = vlaneseq
        %v7804 = vshrl.u32 %v7803, 7
        %v7805 = vsub.s32 0, %v7804
        %v7806 = vrot.slane %v7801, %v7805
        %v7808 = vadd.f32 %v7769, %v7806
        %v7809 = vadd.f32 %v7770, %v7806
        %v7810 = vadd.f32 %v7771, %v7806
        %v7811 = vadd.f32 %v7772, %v7806
        %v7812 = vadd.f32 %v7773, %v7806
        %v7813 = vadd.f32 %v7774, %v7806
        %v7814 = vadd.f32 %v7775, %v7806
        %v7815 = vadd.f32 %v7776, %v7806
        %v7816 = vadd.f32 %v7777, %v7806
        %v7817 = vadd.f32 %v7778, %v7806
        %v7818 = vadd.f32 %v7779, %v7806
        %v7819 = vadd.f32 %v7780, %v7806
        %v7820 = vadd.f32 %v7781, %v7806
        %v7821 = vadd.f32 %v7782, %v7806
        %v7822 = vadd.f32 %v7783, %v7806
        %v7823 = vadd.f32 %v7784, %v7806
        %v7824 = vadd.f32 %v7785, %v7806
        %v7825 = vadd.f32 %v7786, %v7806
        %v7826 = vadd.f32 %v7787, %v7806
        %v7827 = vadd.f32 %v7788, %v7806
        %v7828 = vadd.f32 %v7789, %v7806
        %v7829 = vadd.f32 %v7790, %v7806
        %v7830 = vadd.f32 %v7791, %v7806
        %v7831 = vadd.f32 %v7792, %v7806
        %v7832 = vadd.f32 %v7793, %v7806
        %v7833 = vadd.f32 %v7794, %v7806
        %v7834 = vadd.f32 %v7795, %v7806
        %v7835 = vadd.f32 %v7796, %v7806
        %v7836 = vadd.f32 %v7797, %v7806
        %v7837 = vadd.f32 %v7798, %v7806
        %v7838 = vadd.f32 %v7799, %v7806
        %v7839 = vadd.f32 %v7800, %v7806
        %7840 = vst.msk [vmem:[%s614] sm:$0xff] %vm2197, %v7808
        %7841 = vst.msk [vmem:[%s614 + $0x8] sm:$0xff] %vm2197, %v7809
        %7842 = vst.msk [vmem:[%s614 + $0x10] sm:$0xff] %vm2197, %v7810
        %7843 = vst.msk [vmem:[%s614 + $0x18] sm:$0xff] %vm2197, %v7811
        %7844 = vst.msk [vmem:[%s614 + $0x20] sm:$0xff] %vm2197, %v7812
        %7845 = vst.msk [vmem:[%s614 + $0x28] sm:$0xff] %vm2197, %v7813
        %7846 = vst.msk [vmem:[%s614 + $0x30] sm:$0xff] %vm2197, %v7814
        %7847 = vst.msk [vmem:[%s614 + $0x38] sm:$0xff] %vm2197, %v7815
        %7848 = vst.msk [vmem:[%s614 + $0x40] sm:$0xff] %vm2197, %v7816
        %7849 = vst.msk [vmem:[%s614 + $0x48] sm:$0xff] %vm2197, %v7817
        %7850 = vst.msk [vmem:[%s614 + $0x50] sm:$0xff] %vm2197, %v7818
        %7851 = vst.msk [vmem:[%s614 + $0x58] sm:$0xff] %vm2197, %v7819
        %7852 = vst.msk [vmem:[%s614 + $0x60] sm:$0xff] %vm2197, %v7820
        %7853 = vst.msk [vmem:[%s614 + $0x68] sm:$0xff] %vm2197, %v7821
        %7854 = vst.msk [vmem:[%s614 + $0x70] sm:$0xff] %vm2197, %v7822
        %7855 = vst.msk [vmem:[%s614 + $0x78] sm:$0xff] %vm2197, %v7823
        %7856 = vst.msk [vmem:[%s614 + $0x80] sm:$0xff] %vm2197, %v7824
        %7857 = vst.msk [vmem:[%s614 + $0x88] sm:$0xff] %vm2197, %v7825
        %7858 = vst.msk [vmem:[%s614 + $0x90] sm:$0xff] %vm2197, %v7826
        %7859 = vst.msk [vmem:[%s614 + $0x98] sm:$0xff] %vm2197, %v7827
        %7860 = vst.msk [vmem:[%s614 + $0xa0] sm:$0xff] %vm2197, %v7828
        %7861 = vst.msk [vmem:[%s614 + $0xa8] sm:$0xff] %vm2197, %v7829
        %7862 = vst.msk [vmem:[%s614 + $0xb0] sm:$0xff] %vm2197, %v7830
        %7863 = vst.msk [vmem:[%s614 + $0xb8] sm:$0xff] %vm2197, %v7831
        %7864 = vst.msk [vmem:[%s614 + $0xc0] sm:$0xff] %vm2197, %v7832
        %7865 = vst.msk [vmem:[%s614 + $0xc8] sm:$0xff] %vm2197, %v7833
        %7866 = vst.msk [vmem:[%s614 + $0xd0] sm:$0xff] %vm2197, %v7834
        %7867 = vst.msk [vmem:[%s614 + $0xd8] sm:$0xff] %vm2197, %v7835
        %7868 = vst.msk [vmem:[%s614 + $0xe0] sm:$0xff] %vm2197, %v7836
        %7869 = vst.msk [vmem:[%s614 + $0xe8] sm:$0xff] %vm2197, %v7837
        %7870 = vst.msk [vmem:[%s614 + $0xf0] sm:$0xff] %vm2197, %v7838
        %7871 = vst.msk [vmem:[%s614 + $0xf8] sm:$0xff] %vm2197, %v7839
        %v7872 = vxor.u32 %v7808, 2147483648
        %v7873 = vxor.u32 %v7809, 2147483648
        %v7874 = vxor.u32 %v7810, 2147483648
        %v7875 = vxor.u32 %v7811, 2147483648
        %v7876 = vxor.u32 %v7812, 2147483648
        %v7877 = vxor.u32 %v7813, 2147483648
        %v7878 = vxor.u32 %v7814, 2147483648
        %v7879 = vxor.u32 %v7815, 2147483648
        %v7880 = vxor.u32 %v7816, 2147483648
        %v7881 = vxor.u32 %v7817, 2147483648
        %v7882 = vxor.u32 %v7818, 2147483648
        %v7883 = vxor.u32 %v7819, 2147483648
        %v7884 = vxor.u32 %v7820, 2147483648
        %v7885 = vxor.u32 %v7821, 2147483648
        %v7886 = vxor.u32 %v7822, 2147483648
        %v7887 = vxor.u32 %v7823, 2147483648
        %v7888 = vxor.u32 %v7824, 2147483648
        %v7889 = vxor.u32 %v7825, 2147483648
        %v7890 = vxor.u32 %v7826, 2147483648
        %v7891 = vxor.u32 %v7827, 2147483648
        %v7892 = vxor.u32 %v7828, 2147483648
        %v7893 = vxor.u32 %v7829, 2147483648
        %v7894 = vxor.u32 %v7830, 2147483648
        %v7895 = vxor.u32 %v7831, 2147483648
        %v7896 = vxor.u32 %v7832, 2147483648
        %v7897 = vxor.u32 %v7833, 2147483648
        %v7898 = vxor.u32 %v7834, 2147483648
        %v7899 = vxor.u32 %v7835, 2147483648
        %v7900 = vxor.u32 %v7836, 2147483648
        %v7901 = vxor.u32 %v7837, 2147483648
        %v7902 = vxor.u32 %v7838, 2147483648
        %v7903 = vxor.u32 %v7839, 2147483648
        %v7904 = vmul.f32 %v7872, 1.442695
        %v7905 = vpow.pop %v7904
        %v7906 = vmul.f32 %v7873, 1.442695
        %v7907 = vpow.pop %v7906
        %v7908 = vmul.f32 %v7874, 1.442695
        %v7909 = vpow.pop %v7908
        %v7910 = vmul.f32 %v7875, 1.442695
        %v7911 = vpow.pop %v7910
        %v7912 = vmul.f32 %v7876, 1.442695
        %v7913 = vpow.pop %v7912
        %v7914 = vmul.f32 %v7877, 1.442695
        %v7915 = vpow.pop %v7914
        %v7916 = vmul.f32 %v7878, 1.442695
        %v7917 = vpow.pop %v7916
        %v7918 = vmul.f32 %v7879, 1.442695
        %v7919 = vpow.pop %v7918
        %v7920 = vmul.f32 %v7880, 1.442695
        %v7921 = vpow.pop %v7920
        %v7922 = vmul.f32 %v7881, 1.442695
        %v7923 = vpow.pop %v7922
        %v7924 = vmul.f32 %v7882, 1.442695
        %v7925 = vpow.pop %v7924
        %v7926 = vmul.f32 %v7883, 1.442695
        %v7927 = vpow.pop %v7926
        %v7928 = vmul.f32 %v7884, 1.442695
        %v7929 = vpow.pop %v7928
        %v7930 = vmul.f32 %v7885, 1.442695
        %v7931 = vpow.pop %v7930
        %v7932 = vmul.f32 %v7886, 1.442695
        %v7933 = vpow.pop %v7932
        %v7934 = vmul.f32 %v7887, 1.442695
        %v7935 = vpow.pop %v7934
        %v7936 = vmul.f32 %v7888, 1.442695
        %v7937 = vpow.pop %v7936
        %v7938 = vmul.f32 %v7889, 1.442695
        %v7939 = vpow.pop %v7938
        %v7940 = vmul.f32 %v7890, 1.442695
        %v7941 = vpow.pop %v7940
        %v7942 = vmul.f32 %v7891, 1.442695
        %v7943 = vpow.pop %v7942
        %v7944 = vmul.f32 %v7892, 1.442695
        %v7945 = vpow.pop %v7944
        %v7946 = vmul.f32 %v7893, 1.442695
        %v7947 = vpow.pop %v7946
        %v7948 = vmul.f32 %v7894, 1.442695
        %v7949 = vpow.pop %v7948
        %v7950 = vmul.f32 %v7895, 1.442695
        %v7951 = vpow.pop %v7950
        %v7952 = vmul.f32 %v7896, 1.442695
        %v7953 = vpow.pop %v7952
        %v7954 = vmul.f32 %v7897, 1.442695
        %v7955 = vpow.pop %v7954
        %v7956 = vmul.f32 %v7898, 1.442695
        %v7957 = vpow.pop %v7956
        %v7958 = vmul.f32 %v7899, 1.442695
        %v7959 = vpow.pop %v7958
        %v7960 = vmul.f32 %v7900, 1.442695
        %v7961 = vpow.pop %v7960
        %v7962 = vmul.f32 %v7901, 1.442695
        %v7963 = vpow.pop %v7962
        %v7964 = vmul.f32 %v7902, 1.442695
        %v7965 = vpow.pop %v7964
        %v7966 = vmul.f32 %v7903, 1.442695
        %v7967 = vpow.pop %v7966
        %v7968 = vadd.f32 %v7905, 1.0
        %v7969 = vadd.f32 %v7907, 1.0
        %v7970 = vadd.f32 %v7909, 1.0
        %v7971 = vadd.f32 %v7911, 1.0
        %v7972 = vadd.f32 %v7913, 1.0
        %v7973 = vadd.f32 %v7915, 1.0
        %v7974 = vadd.f32 %v7917, 1.0
        %v7975 = vadd.f32 %v7919, 1.0
        %v7976 = vadd.f32 %v7921, 1.0
        %v7977 = vadd.f32 %v7923, 1.0
        %v7978 = vadd.f32 %v7925, 1.0
        %v7979 = vadd.f32 %v7927, 1.0
        %v7980 = vadd.f32 %v7929, 1.0
        %v7981 = vadd.f32 %v7931, 1.0
        %v7982 = vadd.f32 %v7933, 1.0
        %v7983 = vadd.f32 %v7935, 1.0
        %v7984 = vadd.f32 %v7937, 1.0
        %v7985 = vadd.f32 %v7939, 1.0
        %v7986 = vadd.f32 %v7941, 1.0
        %v7987 = vadd.f32 %v7943, 1.0
        %v7988 = vadd.f32 %v7945, 1.0
        %v7989 = vadd.f32 %v7947, 1.0
        %v7990 = vadd.f32 %v7949, 1.0
        %v7991 = vadd.f32 %v7951, 1.0
        %v7992 = vadd.f32 %v7953, 1.0
        %v7993 = vadd.f32 %v7955, 1.0
        %v7994 = vadd.f32 %v7957, 1.0
        %v7995 = vadd.f32 %v7959, 1.0
        %v7996 = vadd.f32 %v7961, 1.0
        %v7997 = vadd.f32 %v7963, 1.0
        %v7998 = vadd.f32 %v7965, 1.0
        %v7999 = vadd.f32 %v7967, 1.0
        %v8000 = vrcp.pop %v7968
        %v8001 = vmul.f32 1.0, %v8000
        %v8002 = vrcp.pop %v7969
        %v8003 = vmul.f32 1.0, %v8002
        %v8004 = vrcp.pop %v7970
        %v8005 = vmul.f32 1.0, %v8004
        %v8006 = vrcp.pop %v7971
        %v8007 = vmul.f32 1.0, %v8006
        %v8008 = vrcp.pop %v7972
        %v8009 = vmul.f32 1.0, %v8008
        %v8010 = vrcp.pop %v7973
        %v8011 = vmul.f32 1.0, %v8010
        %v8012 = vrcp.pop %v7974
        %v8013 = vmul.f32 1.0, %v8012
        %v8014 = vrcp.pop %v7975
        %v8015 = vmul.f32 1.0, %v8014
        %v8016 = vrcp.pop %v7976
        %v8017 = vmul.f32 1.0, %v8016
        %v8018 = vrcp.pop %v7977
        %v8019 = vmul.f32 1.0, %v8018
        %v8020 = vrcp.pop %v7978
        %v8021 = vmul.f32 1.0, %v8020
        %v8022 = vrcp.pop %v7979
        %v8023 = vmul.f32 1.0, %v8022
        %v8024 = vrcp.pop %v7980
        %v8025 = vmul.f32 1.0, %v8024
        %v8026 = vrcp.pop %v7981
        %v8027 = vmul.f32 1.0, %v8026
        %v8028 = vrcp.pop %v7982
        %v8029 = vmul.f32 1.0, %v8028
        %v8030 = vrcp.pop %v7983
        %v8031 = vmul.f32 1.0, %v8030
        %v8032 = vrcp.pop %v7984
        %v8033 = vmul.f32 1.0, %v8032
        %v8034 = vrcp.pop %v7985
        %v8035 = vmul.f32 1.0, %v8034
        %v8036 = vrcp.pop %v7986
        %v8037 = vmul.f32 1.0, %v8036
        %v8038 = vrcp.pop %v7987
        %v8039 = vmul.f32 1.0, %v8038
        %v8040 = vrcp.pop %v7988
        %v8041 = vmul.f32 1.0, %v8040
        %v8042 = vrcp.pop %v7989
        %v8043 = vmul.f32 1.0, %v8042
        %v8044 = vrcp.pop %v7990
        %v8045 = vmul.f32 1.0, %v8044
        %v8046 = vrcp.pop %v7991
        %v8047 = vmul.f32 1.0, %v8046
        %v8048 = vrcp.pop %v7992
        %v8049 = vmul.f32 1.0, %v8048
        %v8050 = vrcp.pop %v7993
        %v8051 = vmul.f32 1.0, %v8050
        %v8052 = vrcp.pop %v7994
        %v8053 = vmul.f32 1.0, %v8052
        %v8054 = vrcp.pop %v7995
        %v8055 = vmul.f32 1.0, %v8054
        %v8056 = vrcp.pop %v7996
        %v8057 = vmul.f32 1.0, %v8056
        %v8058 = vrcp.pop %v7997
        %v8059 = vmul.f32 1.0, %v8058
        %v8060 = vrcp.pop %v7998
        %v8061 = vmul.f32 1.0, %v8060
        %v8062 = vrcp.pop %v7999
        %v8063 = vmul.f32 1.0, %v8062
        %v8064 = vmul.f32 %v7808, %v8001
        %v8065 = vmul.f32 %v7809, %v8003
        %v8066 = vmul.f32 %v7810, %v8005
        %v8067 = vmul.f32 %v7811, %v8007
        %v8068 = vmul.f32 %v7812, %v8009
        %v8069 = vmul.f32 %v7813, %v8011
        %v8070 = vmul.f32 %v7814, %v8013
        %v8071 = vmul.f32 %v7815, %v8015
        %v8072 = vmul.f32 %v7816, %v8017
        %v8073 = vmul.f32 %v7817, %v8019
        %v8074 = vmul.f32 %v7818, %v8021
        %v8075 = vmul.f32 %v7819, %v8023
        %v8076 = vmul.f32 %v7820, %v8025
        %v8077 = vmul.f32 %v7821, %v8027
        %v8078 = vmul.f32 %v7822, %v8029
        %v8079 = vmul.f32 %v7823, %v8031
        %v8080 = vmul.f32 %v7824, %v8033
        %v8081 = vmul.f32 %v7825, %v8035
        %v8082 = vmul.f32 %v7826, %v8037
        %v8083 = vmul.f32 %v7827, %v8039
        %v8084 = vmul.f32 %v7828, %v8041
        %v8085 = vmul.f32 %v7829, %v8043
        %v8086 = vmul.f32 %v7830, %v8045
        %v8087 = vmul.f32 %v7831, %v8047
        %v8088 = vmul.f32 %v7832, %v8049
        %v8089 = vmul.f32 %v7833, %v8051
        %v8090 = vmul.f32 %v7834, %v8053
        %v8091 = vmul.f32 %v7835, %v8055
        %v8092 = vmul.f32 %v7836, %v8057
        %v8093 = vmul.f32 %v7837, %v8059
        %v8094 = vmul.f32 %v7838, %v8061
        %v8095 = vmul.f32 %v7839, %v8063
        %8096 = vst.msk [vmem:[%s621] sm:$0xff] %vm2197, %v8064
        %8097 = vst.msk [vmem:[%s621 + $0x8] sm:$0xff] %vm2197, %v8065
        %8098 = vst.msk [vmem:[%s621 + $0x10] sm:$0xff] %vm2197, %v8066
        %8099 = vst.msk [vmem:[%s621 + $0x18] sm:$0xff] %vm2197, %v8067
        %8100 = vst.msk [vmem:[%s621 + $0x20] sm:$0xff] %vm2197, %v8068
        %8101 = vst.msk [vmem:[%s621 + $0x28] sm:$0xff] %vm2197, %v8069
        %8102 = vst.msk [vmem:[%s621 + $0x30] sm:$0xff] %vm2197, %v8070
        %8103 = vst.msk [vmem:[%s621 + $0x38] sm:$0xff] %vm2197, %v8071
        %8104 = vst.msk [vmem:[%s621 + $0x40] sm:$0xff] %vm2197, %v8072
        %8105 = vst.msk [vmem:[%s621 + $0x48] sm:$0xff] %vm2197, %v8073
        %8106 = vst.msk [vmem:[%s621 + $0x50] sm:$0xff] %vm2197, %v8074
        %8107 = vst.msk [vmem:[%s621 + $0x58] sm:$0xff] %vm2197, %v8075
        %8108 = vst.msk [vmem:[%s621 + $0x60] sm:$0xff] %vm2197, %v8076
        %8109 = vst.msk [vmem:[%s621 + $0x68] sm:$0xff] %vm2197, %v8077
        %8110 = vst.msk [vmem:[%s621 + $0x70] sm:$0xff] %vm2197, %v8078
        %8111 = vst.msk [vmem:[%s621 + $0x78] sm:$0xff] %vm2197, %v8079
        %8112 = vst.msk [vmem:[%s621 + $0x80] sm:$0xff] %vm2197, %v8080
        %8113 = vst.msk [vmem:[%s621 + $0x88] sm:$0xff] %vm2197, %v8081
        %8114 = vst.msk [vmem:[%s621 + $0x90] sm:$0xff] %vm2197, %v8082
        %8115 = vst.msk [vmem:[%s621 + $0x98] sm:$0xff] %vm2197, %v8083
        %8116 = vst.msk [vmem:[%s621 + $0xa0] sm:$0xff] %vm2197, %v8084
        %8117 = vst.msk [vmem:[%s621 + $0xa8] sm:$0xff] %vm2197, %v8085
        %8118 = vst.msk [vmem:[%s621 + $0xb0] sm:$0xff] %vm2197, %v8086
        %8119 = vst.msk [vmem:[%s621 + $0xb8] sm:$0xff] %vm2197, %v8087
        %8120 = vst.msk [vmem:[%s621 + $0xc0] sm:$0xff] %vm2197, %v8088
        %8121 = vst.msk [vmem:[%s621 + $0xc8] sm:$0xff] %vm2197, %v8089
        %8122 = vst.msk [vmem:[%s621 + $0xd0] sm:$0xff] %vm2197, %v8090
        %8123 = vst.msk [vmem:[%s621 + $0xd8] sm:$0xff] %vm2197, %v8091
        %8124 = vst.msk [vmem:[%s621 + $0xe0] sm:$0xff] %vm2197, %v8092
        %8125 = vst.msk [vmem:[%s621 + $0xe8] sm:$0xff] %vm2197, %v8093
        %8126 = vst.msk [vmem:[%s621 + $0xf0] sm:$0xff] %vm2197, %v8094
        %8127 = vst.msk [vmem:[%s621 + $0xf8] sm:$0xff] %vm2197, %v8095
        %p8128 = scmp.lt.s32.totalorder %s36, 1
        %s8129 = scalar_select %p8128, %s36, 1
        %s8130 = smul.addr %s8129, 32
        %s8131 = smul.addr %s8130, 8
        %s8132 = scalar_lea.vmem %s11, %s8131
        %p8133 = scmp.lt.s32.totalorder %s36, 1
        %s8134 = scalar_select %p8133, %s36, 1
        %s8135 = smul.addr %s8134, 32
        %s8136 = smul.addr %s8135, 8
        %s8137 = scalar_lea.vmem %s12, %s8136
        %p8138 = scmp.lt.s32.totalorder %s36, 1
        %s8139 = scalar_select %p8138, %s36, 1
        %s8140 = smul.addr %s8139, 32
        %s8141 = smul.addr %s8140, 8
        %s8142 = scalar_lea.vmem %s13, %s8141
        %p8143 = scmp.lt.s32.totalorder %s36, 1
        %s8144 = scalar_select %p8143, %s36, 1
        %s8145 = smul.addr %s8144, 32
        %s8146 = smul.addr %s8145, 8
        %s8147 = scalar_lea.vmem %s14, %s8146
        %p8148 = scmp.lt.s32.totalorder %s36, 1
        %s8149 = scalar_select %p8148, %s36, 1
        %s8150 = smul.addr %s8149, 32
        %s8151 = smul.addr %s8150, 8
        %s8152 = scalar_lea.vmem %s15, %s8151
        %s8153 = sand.u32 %s410, 1
        %s8154 = scalar_lea.sflag [#allocation4], %s8153
        %s8155 = sand.u32 %s410, 1
        %s8156 = smul.addr %s8155, 256
        %s8157 = scalar_lea.vmem [#allocation3], %s8156
        %s8158 = sand.u32 %s36, 1
        %s8159 = scalar_lea.sflag [#allocation6], %s8158
        %s8160 = sand.u32 %s436, 1
        %s8161 = smul.addr %s8160, 256
        %s8162 = scalar_lea.vmem [#allocation5], %s8161
        %s8163 = sand.u32 %s36, 1
        %s8164 = scalar_lea.sflag [#allocation6], %s8163
        %s8165 = sand.u32 %s462, 1
        %s8166 = smul.addr %s8165, 256
        %s8167 = scalar_lea.vmem [#allocation7], %s8166
        // Predicated region
        $region65: #{forward.1} parent=63 // pred_check
          %p8168 = pneg %p290
        $region66: #{forward.1} parent=63 // pred_check_branch
          %8170 = sbr.rel (%p8168) target = $region68
        $region67: #{forward.1} parent=63 // pred_region
          _
        $region68: #{forward.1} parent=63 // pred_fallthru
          _
        // Predicated region
        $region69: #{forward.1} parent=63 // pred_check
          %p8171 = pneg %p316
        $region70: #{forward.1} parent=63 // pred_check_branch
          %8173 = sbr.rel (%p8171) target = $region72
        $region71: #{forward.1} parent=63 // pred_region
          _
        $region72: #{forward.1} parent=63 // pred_fallthru
          _
        // Predicated region
        $region73: #{forward.1} parent=63 // pred_check
          %p8174 = pneg %p342
        $region74: #{forward.1} parent=63 // pred_check_branch
          %8176 = sbr.rel (%p8174) target = $region76
        $region75: #{forward.1} parent=63 // pred_region
          _
        $region76: #{forward.1} parent=63 // pred_fallthru
          _
        // Predicated region
        $region77: #{forward.1} parent=63 // pred_check
          %p8177 = pneg %p368
        $region78: #{forward.1} parent=63 // pred_check_branch
          %8179 = sbr.rel (%p8177) target = $region80
        $region79: #{forward.1} parent=63 // pred_region
          _
        $region80: #{forward.1} parent=63 // pred_fallthru
          _
        // Predicated region
        $region81: #{forward.1} parent=63 // pred_check
          %p8180 = pneg %p394
        $region82: #{forward.1} parent=63 // pred_check_branch
          %8182 = sbr.rel (%p8180) target = $region84
        $region83: #{forward.1} parent=63 // pred_region
          _
        $region84: #{forward.1} parent=63 // pred_fallthru
          _
        // Predicated region
        $region85: #{forward.1} parent=63 // pred_check
          %p8183 = pneg %p420
        $region86: #{forward.1} parent=63 // pred_check_branch
          %8185 = sbr.rel (%p8183) target = $region88
        $region87: #{forward.1} parent=63 // pred_region
          %s8187 = ssub.s32 4096, 4096
          %8188 = vsyncadd %s8154, %s8187
          %s8189 = smul.addr %s36, 32
          %s8190 = smul.addr %s8189, 128
          %s8191 = scalar_lea.hbm %s16, %s8190
          %s8192 = sshll.u32 %s8157, 4
          %s8193 = int_to_ptr.vmem [resolvable:$true] %s8192
          %8198 = dma.vmem_to_hbm [thread:$0]  %s8193, 4096, %s8191, %s8154, 128, 128, 8
        $region88: #{forward.1} parent=63 // pred_fallthru
          _
        // Predicated region
        $region89: #{forward.1} parent=63 // pred_check
          %p8199 = pneg %p446
        $region90: #{forward.1} parent=63 // pred_check_branch
          %8201 = sbr.rel (%p8199) target = $region92
        $region91: #{forward.1} parent=63 // pred_region
          %s8203 = ssub.s32 4096, 4096
          %8204 = vsyncadd %s8159, %s8203
          %s8205 = smul.addr %s36, 32
          %s8206 = smul.addr %s8205, 128
          %s8207 = scalar_lea.hbm %s17, %s8206
          %s8208 = sshll.u32 %s8162, 4
          %s8209 = int_to_ptr.vmem [resolvable:$true] %s8208
          %8214 = dma.vmem_to_hbm [thread:$0]  %s8209, 4096, %s8207, %s8159, 128, 128, 8
        $region92: #{forward.1} parent=63 // pred_fallthru
          _
        // Predicated region
        $region93: #{forward.1} parent=63 // pred_check
          %p8215 = pneg %p472
        $region94: #{forward.1} parent=63 // pred_check_branch
          %8217 = sbr.rel (%p8215) target = $region96
        $region95: #{forward.1} parent=63 // pred_region
          %s8219 = ssub.s32 4096, 4096
          %8220 = vsyncadd %s8164, %s8219
          %s8221 = smul.addr %s36, 32
          %s8222 = smul.addr %s8221, 128
          %s8223 = scalar_lea.hbm %s18, %s8222
          %s8224 = sshll.u32 %s8167, 4
          %s8225 = int_to_ptr.vmem [resolvable:$true] %s8224
          %8230 = dma.vmem_to_hbm [thread:$0]  %s8225, 4096, %s8223, %s8164, 128, 128, 8
        $region96: #{forward.1} parent=63 // pred_fallthru
          _
      $region64: #{forward.1} parent=5 // pred_fallthru
        _
      %p8231 = scmp.le.s32.totalorder 2, %s31
      // Predicated region
      $region97: #{forward.1} parent=5 // pred_check
        %p8232 = pneg %p8231
      $region98: #{forward.1} parent=5 // pred_check_branch
        %8234 = sbr.rel (%p8232) target = $region100
      $region99: #{forward.1} parent=5 // pred_region
        %s8235 = ssub.s32 %s31, 2
        // Predicated region
        $region101: #{forward.1} parent=99 // pred_check
          %p8236 = pneg %p296
        $region102: #{forward.1} parent=99 // pred_check_branch
          %8238 = sbr.rel (%p8236) target = $region104
        $region103: #{forward.1} parent=99 // pred_region
          %p8239 = scmp.lt.s32.totalorder %s37, 1
          %s8240 = scalar_select %p8239, %s37, 1
          %s8241 = smul.addr %s8240, 32
          %s8242 = smul.addr %s8241, 8
          %s8243 = scalar_lea.vmem %s11, %s8242
        $region104: #{forward.1} parent=99 // pred_fallthru
          _
        // Predicated region
        $region105: #{forward.1} parent=99 // pred_check
          %p8244 = pneg %p322
        $region106: #{forward.1} parent=99 // pred_check_branch
          %8246 = sbr.rel (%p8244) target = $region108
        $region107: #{forward.1} parent=99 // pred_region
          %p8247 = scmp.lt.s32.totalorder %s37, 1
          %s8248 = scalar_select %p8247, %s37, 1
          %s8249 = smul.addr %s8248, 32
          %s8250 = smul.addr %s8249, 8
          %s8251 = scalar_lea.vmem %s12, %s8250
        $region108: #{forward.1} parent=99 // pred_fallthru
          _
        // Predicated region
        $region109: #{forward.1} parent=99 // pred_check
          %p8252 = pneg %p348
        $region110: #{forward.1} parent=99 // pred_check_branch
          %8254 = sbr.rel (%p8252) target = $region112
        $region111: #{forward.1} parent=99 // pred_region
          %p8255 = scmp.lt.s32.totalorder %s37, 1
          %s8256 = scalar_select %p8255, %s37, 1
          %s8257 = smul.addr %s8256, 32
          %s8258 = smul.addr %s8257, 8
          %s8259 = scalar_lea.vmem %s13, %s8258
        $region112: #{forward.1} parent=99 // pred_fallthru
          _
        // Predicated region
        $region113: #{forward.1} parent=99 // pred_check
          %p8260 = pneg %p374
        $region114: #{forward.1} parent=99 // pred_check_branch
          %8262 = sbr.rel (%p8260) target = $region116
        $region115: #{forward.1} parent=99 // pred_region
          %p8263 = scmp.lt.s32.totalorder %s37, 1
          %s8264 = scalar_select %p8263, %s37, 1
          %s8265 = smul.addr %s8264, 32
          %s8266 = smul.addr %s8265, 8
          %s8267 = scalar_lea.vmem %s14, %s8266
        $region116: #{forward.1} parent=99 // pred_fallthru
          _
        // Predicated region
        $region117: #{forward.1} parent=99 // pred_check
          %p8268 = pneg %p400
        $region118: #{forward.1} parent=99 // pred_check_branch
          %8270 = sbr.rel (%p8268) target = $region120
        $region119: #{forward.1} parent=99 // pred_region
          %p8271 = scmp.lt.s32.totalorder %s37, 1
          %s8272 = scalar_select %p8271, %s37, 1
          %s8273 = smul.addr %s8272, 32
          %s8274 = smul.addr %s8273, 8
          %s8275 = scalar_lea.vmem %s15, %s8274
        $region120: #{forward.1} parent=99 // pred_fallthru
          _
        // Predicated region
        $region121: #{forward.1} parent=99 // pred_check
          %p8276 = pneg %p426
        $region122: #{forward.1} parent=99 // pred_check_branch
          %8278 = sbr.rel (%p8276) target = $region124
        $region123: #{forward.1} parent=99 // pred_region
          %s8279 = sand.u32 %s411, 1
          %s8280 = scalar_lea.sflag [#allocation4], %s8279
          %s8281 = sand.u32 %s411, 1
          %s8282 = smul.addr %s8281, 256
          %s8283 = scalar_lea.vmem [#allocation3], %s8282
          %8284 = dma.done %s8280, 4096
        $region124: #{forward.1} parent=99 // pred_fallthru
          _
        // Predicated region
        $region125: #{forward.1} parent=99 // pred_check
          %p8285 = pneg %p452
        $region126: #{forward.1} parent=99 // pred_check_branch
          %8287 = sbr.rel (%p8285) target = $region128
        $region127: #{forward.1} parent=99 // pred_region
          %s8288 = sand.u32 %s37, 1
          %s8289 = scalar_lea.sflag [#allocation6], %s8288
          %s8290 = sand.u32 %s437, 1
          %s8291 = smul.addr %s8290, 256
          %s8292 = scalar_lea.vmem [#allocation5], %s8291
          %8293 = dma.done %s8289, 4096
        $region128: #{forward.1} parent=99 // pred_fallthru
          _
        // Predicated region
        $region129: #{forward.1} parent=99 // pred_check
          %p8294 = pneg %p478
        $region130: #{forward.1} parent=99 // pred_check_branch
          %8296 = sbr.rel (%p8294) target = $region132
        $region131: #{forward.1} parent=99 // pred_region
          %s8297 = sand.u32 %s37, 1
          %s8298 = scalar_lea.sflag [#allocation6], %s8297
          %s8299 = sand.u32 %s463, 1
          %s8300 = smul.addr %s8299, 256
          %s8301 = scalar_lea.vmem [#allocation7], %s8300
          %8302 = dma.done %s8298, 4096
        $region132: #{forward.1} parent=99 // pred_fallthru
          _
      $region100: #{forward.1} parent=5 // pred_fallthru
        _
    $region6: #{forward.1} parent=1 // loop_footer
      %s35 = sadd.s32 1, %s31
    $region7: #{forward.1} parent=1 // loop_footer_branch
      %30 = sbr.rel target = $region3
    $region8: #{forward.1} parent=1 // loop_exit
      _
    %8303 = vsyncpa [#allocation4], 1
    %s8304 = scalar_lea.sflag [#allocation4], 1
    %8305 = vsyncpa %s8304, 1
    %8306 = vsyncpa [#allocation6], 1
    %s8307 = scalar_lea.sflag [#allocation6], 1
    %8308 = vsyncpa %s8307, 1

</llo_original>
